<compile_context>
chip_gen: v7x
topology: tpu7x:2x2x1
jax: 0.10.0
libtpu: 0.0.40
codegen_flags: <defaults>
</compile_context>

<pallas_src>
import functools

import jax
import jax.numpy as jnp
from jax.experimental import pallas as pl
from jax.experimental.pallas import tpu as pltpu


LANES = 128   # channel / feature padding target (one full lane group)


# ------------------------------ fused kernel -------------------------------

def _ra_fused_kernel(x_ref, wconv_ref, bconv_ref, rshift_ref, wfc_ref, bfc_ref,
                     o_ref, *, H, W, KH, KW, n_layers):
    """One batch element per grid step. Everything stays in VMEM / vregs.

    x_ref      : [H*W, C]          activation rows flattened sensor-major (m = w*H + h)
    wconv_ref  : [L, KH*KW, C, C]  per-layer, per-tap conv weights (zero padded)
    bconv_ref  : [L, 1, C]         per-layer conv bias (zero padded)
    rshift_ref : [KH, H*W, H*W]    0/1 matrices shifting rows by dy = ki - ph with
                                   boundary zeroing (identity at ki == ph)
    wfc_ref    : [W, C, F]         fc weight, pre-permuted so sensor-major row
                                   blocks of the conv output contract directly
    bfc_ref    : [1, F]
    o_ref      : [H, F]            fc output for this batch element (H = interval)
    """
    HW = H * W
    ph, pw = (KH - 1) // 2, (KW - 1) // 2
    Cp = x_ref.shape[-1]
    Fp = o_ref.shape[-1]

    act = x_ref[...]                                        # [HW, Cp] f32
    zeros = jnp.zeros_like(act)

    for l in range(n_layers):
        # Zero-extend along the flattened spatial axis: a dx shift becomes a
        # sublane-aligned static slice and out-of-image sensors read zeros.
        padded = jnp.concatenate([zeros, act, zeros], axis=0)   # [3*HW, Cp]
        acc = jnp.zeros((HW, Cp), jnp.float32)
        for ki in range(KH):                                # dy = ki - ph
            inner = jnp.zeros((HW, Cp), jnp.float32)
            for kj in range(KW):                            # dx = kj - pw
                dx = kj - pw
                if dx == 0:
                    tap = act
                else:
                    start = HW + dx * H
                    tap = jax.lax.slice(padded, (start, 0), (start + HW, Cp))
                inner = inner + jnp.dot(tap, wconv_ref[l, ki * KW + kj],
                                        preferred_element_type=jnp.float32)
            if ki == ph:                                    # dy == 0: identity
                acc = acc + inner
            else:                                           # dy shift + edge zeroing on the MXU
                acc = acc + jnp.dot(rshift_ref[ki], inner,
                                    preferred_element_type=jnp.float32)
        out = jnp.maximum(acc + bconv_ref[l], 0.0)          # bias + ReLU
        if 1 <= l <= n_layers - 2:                          # intermediate layers: residual
            out = out + act                                 # previous act already in vregs
        act = out

    # Final fc. Rows are sensor-major, so each sensor's [interval, C] block is a
    # contiguous aligned slice; contract it with its pre-permuted weight slab.
    fc = jnp.zeros((H, Fp), jnp.float32)
    for s in range(W):
        fc = fc + jnp.dot(act[s * H:(s + 1) * H, :], wfc_ref[s],
                          preferred_element_type=jnp.float32)
    o_ref[...] = (fc + bfc_ref[...]).astype(o_ref.dtype)


# --------------------------- parameter preparation ---------------------------

def prepare_params(params, *, interval, sensor, ksize, c_pad=LANES, f_pad=LANES):
    """One-time repack of PyTorch-layout parameters into the fused-kernel layout."""
    assert ksize % 2 == 1, "padding='same' path assumes an odd kernel size"
    H, W = interval, sensor
    HW = H * W
    ph = (ksize - 1) // 2

    def conv_taps(w, b):
        cout, cin, kh, kw = w.shape
        wt = jnp.transpose(w, (2, 3, 1, 0)).reshape(kh * kw, cin, cout)
        wt = jnp.pad(wt, ((0, 0), (0, c_pad - cin), (0, c_pad - cout)))
        bp = jnp.pad(b, (0, c_pad - cout)).reshape(1, c_pad)
        return wt, bp

    layers = ([(params["w_in"], params["b_in"])] + list(params["inter"])
              + [(params["w_out"], params["b_out"])])
    wts, bps = zip(*(conv_taps(w, b) for w, b in layers))
    wconv = jnp.stack(wts)                                  # [L, K*K, Cp, Cp]
    bconv = jnp.stack(bps)                                  # [L, 1, Cp]

    # 0/1 row-shift matrices for the interval (dy) offsets, with edge zeroing.
    m = jnp.arange(HW)
    h_idx = jnp.tile(jnp.arange(H), W)                      # h index of sensor-major row m
    rs = []
    for ki in range(ksize):
        dy = ki - ph
        valid = (h_idx + dy >= 0) & (h_idx + dy < H)
        cols = jnp.where(valid, m + dy, -1)                 # -1 -> all-zero row
        rs.append(jax.nn.one_hot(cols, HW, dtype=jnp.float32))
    rshift = jnp.stack(rs)                                  # [K, HW, HW]

    # fc: PyTorch flattening order is (channel, sensor); pre-permute so that
    # sensor-major conv rows contract directly: wfc[s, c, f] = fc_w[f, c*W + s].
    fc_w, fc_b = params["fc_w"], params["fc_b"]
    fc_dim, fc_in = fc_w.shape
    out_ch = params["w_out"].shape[0]
    assert fc_in == out_ch * W, "fused kernel implements fuse_time_flag=False"
    wfc = jnp.transpose(fc_w.reshape(fc_dim, out_ch, W), (2, 1, 0))
    wfc = jnp.pad(wfc, ((0, 0), (0, c_pad - out_ch), (0, f_pad - fc_dim)))
    bfc = jnp.pad(fc_b, (0, f_pad - fc_dim)).reshape(1, f_pad)

    return dict(wconv=wconv, bconv=bconv, rshift=rshift, wfc=wfc, bfc=bfc,
                ksize=ksize, n_layers=len(layers), fc_dim=fc_dim,
                interval=H, sensor=W)


# --------------------------------- forward ----------------------------------

def ra_encoder_forward(x_nchw, prep, *, fuse_time_flag=False):
    """x: [b, c_in, interval, sensor] -> [b*interval, fc_dim]."""
    if fuse_time_flag:
        # TODO(synk): fuse_time_flag=True (single fc over the [b, i*c*s] flatten)
        # is not implemented in the fused kernel; default path is False.
        raise NotImplementedError("fused kernel implements fuse_time_flag=False")
    B, Cin, H, W = x_nchw.shape
    assert (H, W) == (prep["interval"], prep["sensor"])
    HW = H * W
    KK = prep["ksize"] ** 2
    L = prep["n_layers"]
    Cp = prep["wconv"].shape[-1]
    Fp = prep["wfc"].shape[-1]

    # Layout plumbing only: NCHW -> sensor-major flattened spatial rows,
    # channels zero-padded onto a full 128-lane axis.
    x_rows = jnp.transpose(x_nchw, (0, 3, 2, 1)).reshape(B, HW, Cin)
    x_rows = jnp.pad(x_rows, ((0, 0), (0, 0), (0, Cp - Cin)))

    kernel = functools.partial(
        _ra_fused_kernel, H=H, W=W, KH=prep["ksize"], KW=prep["ksize"],
        n_layers=L)

    flops = B * (L * (KK * 2 * HW * Cp * Cp
                      + (prep["ksize"] - 1) * 2 * HW * HW * Cp)
                 + W * 2 * H * Cp * Fp)
    bytes_accessed = 4 * (B * HW * Cp + prep["wconv"].size + prep["bconv"].size
                          + prep["rshift"].size + prep["wfc"].size
                          + prep["bfc"].size + B * H * Fp)

    out = pl.pallas_call(
        kernel,
        out_shape=jax.ShapeDtypeStruct((B, H, Fp), jnp.float32),
        grid=(B,),
        in_specs=[
            pl.BlockSpec((None, HW, Cp), lambda b: (b, 0, 0)),     # activation tile
            pl.BlockSpec(prep["wconv"].shape, lambda b: (0, 0, 0, 0)),  # resident weights
            pl.BlockSpec(prep["bconv"].shape, lambda b: (0, 0, 0)),
            pl.BlockSpec(prep["rshift"].shape, lambda b: (0, 0, 0)),
            pl.BlockSpec(prep["wfc"].shape, lambda b: (0, 0, 0)),
            pl.BlockSpec(prep["bfc"].shape, lambda b: (0, 0)),
        ],
        out_specs=pl.BlockSpec((None, H, Fp), lambda b: (b, 0, 0)),
        compiler_params=pltpu.CompilerParams(
            dimension_semantics=("parallel",),      # batch across v7x's 2 TCs
            vmem_limit_bytes=32 * 1024 * 1024),
        cost_estimate=pl.CostEstimate(flops=int(flops), transcendentals=0,
                                      bytes_accessed=int(bytes_accessed)),
    )(x_rows, prep["wconv"], prep["bconv"], prep["rshift"], prep["wfc"],
      prep["bfc"])

    return out.reshape(B * H, Fp)[:, :prep["fc_dim"]]


# --------------------------- deterministic params ---------------------------

def init_params(key, in_ch, inter_ch, out_ch, ksize, fc_in, fc_dim, n_inter):
    def conv_init(k, cin, cout):
        kw, kb = jax.random.split(k)
        s = 1.0 / jnp.sqrt(cin * ksize * ksize)
        w = jax.random.uniform(kw, (cout, cin, ksize, ksize), jnp.float32, -s, s)
        b = jax.random.uniform(kb, (cout,), jnp.float32, -s, s)
        return w, b

    keys = jax.random.split(key, n_inter + 3)
    w_in, b_in = conv_init(keys[0], in_ch, inter_ch)
    inter = [conv_init(keys[1 + i], inter_ch, inter_ch) for i in range(n_inter)]
    w_out, b_out = conv_init(keys[n_inter + 1], inter_ch, out_ch)
    kfw, kfb = jax.random.split(keys[n_inter + 2])
    fs = 1.0 / jnp.sqrt(fc_in)
    fc_w = jax.random.uniform(kfw, (fc_dim, fc_in), jnp.float32, -fs, fs)
    fc_b = jax.random.uniform(kfb, (fc_dim,), jnp.float32, -fs, fs)
    return dict(w_in=w_in, b_in=b_in, inter=inter, w_out=w_out, b_out=b_out,
                fc_w=fc_w, fc_b=fc_b)


# ------------------------- pure-JAX reference check -------------------------

def _ref_conv(x_nchw, w, b, relu=True):
    y = jax.lax.conv_general_dilated(
        x_nchw, w, window_strides=(1, 1), padding="SAME",
        dimension_numbers=("NCHW", "OIHW", "NCHW"))
    y = y + b[None, :, None, None]
    return jnp.maximum(y, 0.0) if relu else y


def ra_encoder_ref(x_nchw, params, fuse_time_flag=False):
    h = _ref_conv(x_nchw, params["w_in"], params["b_in"])
    for (w, b) in params["inter"]:
        h = _ref_conv(h, w, b) + h
    h = _ref_conv(h, params["w_out"], params["b_out"])
    h = jnp.transpose(h, (0, 2, 1, 3))                 # [b, i, c, s]
    b_, i_, c_, s_ = h.shape
    flat = h.reshape(b_, i_ * c_ * s_) if fuse_time_flag else h.reshape(b_ * i_, c_ * s_)
    return flat @ params["fc_w"].T + params["fc_b"]


# ----------------------------------- main -----------------------------------

if __name__ == "__main__":
    key = jax.random.PRNGKey(0)
    batch, in_ch, interval, sensor = 2, 4, 8, 8
    inter_ch, out_ch, ksize, fc_dim, n_inter = 8, 4, 3, 32, 2
    fc_in = sensor * out_ch                            # fuse_time_flag=False

    k_x, k_p = jax.random.split(key)
    x = jax.random.normal(k_x, (batch, in_ch, interval, sensor), jnp.float32)
    params = init_params(k_p, in_ch, inter_ch, out_ch, ksize, fc_in, fc_dim, n_inter)
    prep = prepare_params(params, interval=interval, sensor=sensor, ksize=ksize)

    fwd = jax.jit(lambda xx: ra_encoder_forward(xx, prep))
    y = jax.block_until_ready(fwd(x))

    y_ref = ra_encoder_ref(x, params, fuse_time_flag=False)
    assert y.shape == (batch * interval, fc_dim), y.shape
    assert jnp.allclose(y, y_ref, atol=1e-4, rtol=1e-4), "mismatch vs JAX reference"

    print("KERNEL_OK")
</pallas_src>

<mosaic_0001>
module attributes {stable_mosaic.version = 11 : i64} {
  func.func @_ra_fused_kernel(%arg0: i32, %arg1: memref<1x64x128xf32, #tpu.memory_space<vmem>>, %arg2: memref<4x9x128x128xf32, #tpu.memory_space<vmem>>, %arg3: memref<4x1x128xf32, #tpu.memory_space<vmem>>, %arg4: memref<3x64x64xf32, #tpu.memory_space<vmem>>, %arg5: memref<8x128x128xf32, #tpu.memory_space<vmem>>, %arg6: memref<1x128xf32, #tpu.memory_space<vmem>>, %arg7: memref<1x8x128xf32, #tpu.memory_space<vmem>>) attributes {dimension_semantics = [#tpu.dimension_semantics<parallel>], iteration_bounds = array<i64: 2>, scalar_prefetch = 0 : i64, scratch_operands = 0 : i64, tpu.core_type = #tpu.core_type<tc>, window_params = [{transform_indices = @transform_0, window_bounds = array<i64: 1, 64, 128>}, {pipeline_mode = #tpu.pipeline_mode<synchronous>, transform_indices = @transform_1, window_bounds = array<i64: 4, 9, 128, 128>}, {pipeline_mode = #tpu.pipeline_mode<synchronous>, transform_indices = @transform_2, window_bounds = array<i64: 4, 1, 128>}, {pipeline_mode = #tpu.pipeline_mode<synchronous>, transform_indices = @transform_3, window_bounds = array<i64: 3, 64, 64>}, {pipeline_mode = #tpu.pipeline_mode<synchronous>, transform_indices = @transform_4, window_bounds = array<i64: 8, 128, 128>}, {pipeline_mode = #tpu.pipeline_mode<synchronous>, transform_indices = @transform_5, window_bounds = array<i64: 1, 128>}, {transform_indices = @transform_6, window_bounds = array<i64: 1, 8, 128>}]} {
    %c0 = arith.constant 0 : index
    %c0_0 = arith.constant 0 : index
    %c0_1 = arith.constant 0 : index
    %0 = vector.load %arg1[%c0, %c0_0, %c0_1] : memref<1x64x128xf32, #tpu.memory_space<vmem>>, vector<1x64x128xf32>
    %1 = vector.shape_cast %0 : vector<1x64x128xf32> to vector<64x128xf32>
    %cst = arith.constant 0.000000e+00 : f32
    %2 = vector.broadcast %cst : f32 to vector<64x128xf32>
    %3 = tpu.concatenate %2, %1, %2 in 0 : vector<64x128xf32>, vector<64x128xf32>, vector<64x128xf32> -> vector<192x128xf32>
    %cst_2 = arith.constant 0.000000e+00 : f32
    %4 = vector.broadcast %cst_2 : f32 to vector<64x128xf32>
    %cst_3 = arith.constant 0.000000e+00 : f32
    %5 = vector.broadcast %cst_3 : f32 to vector<64x128xf32>
    %6 = vector.extract_strided_slice %3 {offsets = [56, 0], sizes = [64, 128], strides = [1, 1]} : vector<192x128xf32> to vector<64x128xf32>
    %c0_4 = arith.constant 0 : index
    %c0_5 = arith.constant 0 : index
    %c0_6 = arith.constant 0 : index
    %c0_7 = arith.constant 0 : index
    %7 = vector.load %arg2[%c0_4, %c0_5, %c0_6, %c0_7] : memref<4x9x128x128xf32, #tpu.memory_space<vmem>>, vector<1x1x128x128xf32>
    %8 = vector.shape_cast %7 : vector<1x1x128x128xf32> to vector<128x128xf32>
    %cst_8 = arith.constant dense<0.000000e+00> : vector<64x128xf32>
    %9 = tpu.matmul %6, %8, %cst_8 {dimension_numbers = #tpu.dot_dimension_numbers<[1], [0], [0], [1], [0, 0, 1, 1], [], []>} : vector<64x128xf32>, vector<128x128xf32>, vector<64x128xf32> -> vector<64x128xf32>
    %10 = arith.addf %5, %9 : vector<64x128xf32>
    %c0_9 = arith.constant 0 : index
    %c1 = arith.constant 1 : index
    %c0_10 = arith.constant 0 : index
    %c0_11 = arith.constant 0 : index
    %11 = vector.load %arg2[%c0_9, %c1, %c0_10, %c0_11] : memref<4x9x128x128xf32, #tpu.memory_space<vmem>>, vector<1x1x128x128xf32>
    %12 = vector.shape_cast %11 : vector<1x1x128x128xf32> to vector<128x128xf32>
    %cst_12 = arith.constant dense<0.000000e+00> : vector<64x128xf32>
    %13 = tpu.matmul %1, %12, %cst_12 {dimension_numbers = #tpu.dot_dimension_numbers<[1], [0], [0], [1], [0, 0, 1, 1], [], []>} : vector<64x128xf32>, vector<128x128xf32>, vector<64x128xf32> -> vector<64x128xf32>
    %14 = arith.addf %10, %13 : vector<64x128xf32>
    %15 = vector.extract_strided_slice %3 {offsets = [72, 0], sizes = [64, 128], strides = [1, 1]} : vector<192x128xf32> to vector<64x128xf32>
    %c0_13 = arith.constant 0 : index
    %c2 = arith.constant 2 : index
    %c0_14 = arith.constant 0 : index
    %c0_15 = arith.constant 0 : index
    %16 = vector.load %arg2[%c0_13, %c2, %c0_14, %c0_15] : memref<4x9x128x128xf32, #tpu.memory_space<vmem>>, vector<1x1x128x128xf32>
    %17 = vector.shape_cast %16 : vector<1x1x128x128xf32> to vector<128x128xf32>
    %cst_16 = arith.constant dense<0.000000e+00> : vector<64x128xf32>
    %18 = tpu.matmul %15, %17, %cst_16 {dimension_numbers = #tpu.dot_dimension_numbers<[1], [0], [0], [1], [0, 0, 1, 1], [], []>} : vector<64x128xf32>, vector<128x128xf32>, vector<64x128xf32> -> vector<64x128xf32>
    %19 = arith.addf %14, %18 : vector<64x128xf32>
    %c0_17 = arith.constant 0 : index
    %c0_18 = arith.constant 0 : index
    %c0_19 = arith.constant 0 : index
    %20 = vector.load %arg4[%c0_17, %c0_18, %c0_19] : memref<3x64x64xf32, #tpu.memory_space<vmem>>, vector<1x64x64xf32>
    %21 = vector.shape_cast %20 : vector<1x64x64xf32> to vector<64x64xf32>
    %cst_20 = arith.constant dense<0.000000e+00> : vector<64x128xf32>
    %22 = tpu.matmul %21, %19, %cst_20 {dimension_numbers = #tpu.dot_dimension_numbers<[1], [0], [0], [1], [0, 0, 1, 1], [], []>} : vector<64x64xf32>, vector<64x128xf32>, vector<64x128xf32> -> vector<64x128xf32>
    %23 = arith.addf %4, %22 : vector<64x128xf32>
    %cst_21 = arith.constant 0.000000e+00 : f32
    %24 = vector.broadcast %cst_21 : f32 to vector<64x128xf32>
    %25 = vector.extract_strided_slice %3 {offsets = [56, 0], sizes = [64, 128], strides = [1, 1]} : vector<192x128xf32> to vector<64x128xf32>
    %c0_22 = arith.constant 0 : index
    %c3 = arith.constant 3 : index
    %c0_23 = arith.constant 0 : index
    %c0_24 = arith.constant 0 : index
    %26 = vector.load %arg2[%c0_22, %c3, %c0_23, %c0_24] : memref<4x9x128x128xf32, #tpu.memory_space<vmem>>, vector<1x1x128x128xf32>
    %27 = vector.shape_cast %26 : vector<1x1x128x128xf32> to vector<128x128xf32>
    %cst_25 = arith.constant dense<0.000000e+00> : vector<64x128xf32>
    %28 = tpu.matmul %25, %27, %cst_25 {dimension_numbers = #tpu.dot_dimension_numbers<[1], [0], [0], [1], [0, 0, 1, 1], [], []>} : vector<64x128xf32>, vector<128x128xf32>, vector<64x128xf32> -> vector<64x128xf32>
    %29 = arith.addf %24, %28 : vector<64x128xf32>
    %c0_26 = arith.constant 0 : index
    %c4 = arith.constant 4 : index
    %c0_27 = arith.constant 0 : index
    %c0_28 = arith.constant 0 : index
    %30 = vector.load %arg2[%c0_26, %c4, %c0_27, %c0_28] : memref<4x9x128x128xf32, #tpu.memory_space<vmem>>, vector<1x1x128x128xf32>
    %31 = vector.shape_cast %30 : vector<1x1x128x128xf32> to vector<128x128xf32>
    %cst_29 = arith.constant dense<0.000000e+00> : vector<64x128xf32>
    %32 = tpu.matmul %1, %31, %cst_29 {dimension_numbers = #tpu.dot_dimension_numbers<[1], [0], [0], [1], [0, 0, 1, 1], [], []>} : vector<64x128xf32>, vector<128x128xf32>, vector<64x128xf32> -> vector<64x128xf32>
    %33 = arith.addf %29, %32 : vector<64x128xf32>
    %34 = vector.extract_strided_slice %3 {offsets = [72, 0], sizes = [64, 128], strides = [1, 1]} : vector<192x128xf32> to vector<64x128xf32>
    %c0_30 = arith.constant 0 : index
    %c5 = arith.constant 5 : index
    %c0_31 = arith.constant 0 : index
    %c0_32 = arith.constant 0 : index
    %35 = vector.load %arg2[%c0_30, %c5, %c0_31, %c0_32] : memref<4x9x128x128xf32, #tpu.memory_space<vmem>>, vector<1x1x128x128xf32>
    %36 = vector.shape_cast %35 : vector<1x1x128x128xf32> to vector<128x128xf32>
    %cst_33 = arith.constant dense<0.000000e+00> : vector<64x128xf32>
    %37 = tpu.matmul %34, %36, %cst_33 {dimension_numbers = #tpu.dot_dimension_numbers<[1], [0], [0], [1], [0, 0, 1, 1], [], []>} : vector<64x128xf32>, vector<128x128xf32>, vector<64x128xf32> -> vector<64x128xf32>
    %38 = arith.addf %33, %37 : vector<64x128xf32>
    %39 = arith.addf %23, %38 : vector<64x128xf32>
    %cst_34 = arith.constant 0.000000e+00 : f32
    %40 = vector.broadcast %cst_34 : f32 to vector<64x128xf32>
    %41 = vector.extract_strided_slice %3 {offsets = [56, 0], sizes = [64, 128], strides = [1, 1]} : vector<192x128xf32> to vector<64x128xf32>
    %c0_35 = arith.constant 0 : index
    %c6 = arith.constant 6 : index
    %c0_36 = arith.constant 0 : index
    %c0_37 = arith.constant 0 : index
    %42 = vector.load %arg2[%c0_35, %c6, %c0_36, %c0_37] : memref<4x9x128x128xf32, #tpu.memory_space<vmem>>, vector<1x1x128x128xf32>
    %43 = vector.shape_cast %42 : vector<1x1x128x128xf32> to vector<128x128xf32>
    %cst_38 = arith.constant dense<0.000000e+00> : vector<64x128xf32>
    %44 = tpu.matmul %41, %43, %cst_38 {dimension_numbers = #tpu.dot_dimension_numbers<[1], [0], [0], [1], [0, 0, 1, 1], [], []>} : vector<64x128xf32>, vector<128x128xf32>, vector<64x128xf32> -> vector<64x128xf32>
    %45 = arith.addf %40, %44 : vector<64x128xf32>
    %c0_39 = arith.constant 0 : index
    %c7 = arith.constant 7 : index
    %c0_40 = arith.constant 0 : index
    %c0_41 = arith.constant 0 : index
    %46 = vector.load %arg2[%c0_39, %c7, %c0_40, %c0_41] : memref<4x9x128x128xf32, #tpu.memory_space<vmem>>, vector<1x1x128x128xf32>
    %47 = vector.shape_cast %46 : vector<1x1x128x128xf32> to vector<128x128xf32>
    %cst_42 = arith.constant dense<0.000000e+00> : vector<64x128xf32>
    %48 = tpu.matmul %1, %47, %cst_42 {dimension_numbers = #tpu.dot_dimension_numbers<[1], [0], [0], [1], [0, 0, 1, 1], [], []>} : vector<64x128xf32>, vector<128x128xf32>, vector<64x128xf32> -> vector<64x128xf32>
    %49 = arith.addf %45, %48 : vector<64x128xf32>
    %50 = vector.extract_strided_slice %3 {offsets = [72, 0], sizes = [64, 128], strides = [1, 1]} : vector<192x128xf32> to vector<64x128xf32>
    %c0_43 = arith.constant 0 : index
    %c8 = arith.constant 8 : index
    %c0_44 = arith.constant 0 : index
    %c0_45 = arith.constant 0 : index
    %51 = vector.load %arg2[%c0_43, %c8, %c0_44, %c0_45] : memref<4x9x128x128xf32, #tpu.memory_space<vmem>>, vector<1x1x128x128xf32>
    %52 = vector.shape_cast %51 : vector<1x1x128x128xf32> to vector<128x128xf32>
    %cst_46 = arith.constant dense<0.000000e+00> : vector<64x128xf32>
    %53 = tpu.matmul %50, %52, %cst_46 {dimension_numbers = #tpu.dot_dimension_numbers<[1], [0], [0], [1], [0, 0, 1, 1], [], []>} : vector<64x128xf32>, vector<128x128xf32>, vector<64x128xf32> -> vector<64x128xf32>
    %54 = arith.addf %49, %53 : vector<64x128xf32>
    %c2_47 = arith.constant 2 : index
    %c0_48 = arith.constant 0 : index
    %c0_49 = arith.constant 0 : index
    %55 = vector.load %arg4[%c2_47, %c0_48, %c0_49] : memref<3x64x64xf32, #tpu.memory_space<vmem>>, vector<1x64x64xf32>
    %56 = vector.shape_cast %55 : vector<1x64x64xf32> to vector<64x64xf32>
    %cst_50 = arith.constant dense<0.000000e+00> : vector<64x128xf32>
    %57 = tpu.matmul %56, %54, %cst_50 {dimension_numbers = #tpu.dot_dimension_numbers<[1], [0], [0], [1], [0, 0, 1, 1], [], []>} : vector<64x64xf32>, vector<64x128xf32>, vector<64x128xf32> -> vector<64x128xf32>
    %58 = arith.addf %39, %57 : vector<64x128xf32>
    %c0_51 = arith.constant 0 : index
    %c0_52 = arith.constant 0 : index
    %c0_53 = arith.constant 0 : index
    %59 = vector.load %arg3[%c0_51, %c0_52, %c0_53] : memref<4x1x128xf32, #tpu.memory_space<vmem>>, vector<1x1x128xf32>
    %60 = vector.shape_cast %59 : vector<1x1x128xf32> to vector<1x128xf32>
    %61 = vector.broadcast %60 : vector<1x128xf32> to vector<64x128xf32>
    %62 = arith.addf %58, %61 : vector<64x128xf32>
    %cst_54 = arith.constant 0.000000e+00 : f32
    %63 = vector.broadcast %cst_54 : f32 to vector<64x128xf32>
    %64 = arith.maximumf %62, %63 : vector<64x128xf32>
    %65 = tpu.concatenate %2, %64, %2 in 0 : vector<64x128xf32>, vector<64x128xf32>, vector<64x128xf32> -> vector<192x128xf32>
    %cst_55 = arith.constant 0.000000e+00 : f32
    %66 = vector.broadcast %cst_55 : f32 to vector<64x128xf32>
    %cst_56 = arith.constant 0.000000e+00 : f32
    %67 = vector.broadcast %cst_56 : f32 to vector<64x128xf32>
    %68 = vector.extract_strided_slice %65 {offsets = [56, 0], sizes = [64, 128], strides = [1, 1]} : vector<192x128xf32> to vector<64x128xf32>
    %c1_57 = arith.constant 1 : index
    %c0_58 = arith.constant 0 : index
    %c0_59 = arith.constant 0 : index
    %c0_60 = arith.constant 0 : index
    %69 = vector.load %arg2[%c1_57, %c0_58, %c0_59, %c0_60] : memref<4x9x128x128xf32, #tpu.memory_space<vmem>>, vector<1x1x128x128xf32>
    %70 = vector.shape_cast %69 : vector<1x1x128x128xf32> to vector<128x128xf32>
    %cst_61 = arith.constant dense<0.000000e+00> : vector<64x128xf32>
    %71 = tpu.matmul %68, %70, %cst_61 {dimension_numbers = #tpu.dot_dimension_numbers<[1], [0], [0], [1], [0, 0, 1, 1], [], []>} : vector<64x128xf32>, vector<128x128xf32>, vector<64x128xf32> -> vector<64x128xf32>
    %72 = arith.addf %67, %71 : vector<64x128xf32>
    %c1_62 = arith.constant 1 : index
    %c1_63 = arith.constant 1 : index
    %c0_64 = arith.constant 0 : index
    %c0_65 = arith.constant 0 : index
    %73 = vector.load %arg2[%c1_62, %c1_63, %c0_64, %c0_65] : memref<4x9x128x128xf32, #tpu.memory_space<vmem>>, vector<1x1x128x128xf32>
    %74 = vector.shape_cast %73 : vector<1x1x128x128xf32> to vector<128x128xf32>
    %cst_66 = arith.constant dense<0.000000e+00> : vector<64x128xf32>
    %75 = tpu.matmul %64, %74, %cst_66 {dimension_numbers = #tpu.dot_dimension_numbers<[1], [0], [0], [1], [0, 0, 1, 1], [], []>} : vector<64x128xf32>, vector<128x128xf32>, vector<64x128xf32> -> vector<64x128xf32>
    %76 = arith.addf %72, %75 : vector<64x128xf32>
    %77 = vector.extract_strided_slice %65 {offsets = [72, 0], sizes = [64, 128], strides = [1, 1]} : vector<192x128xf32> to vector<64x128xf32>
    %c1_67 = arith.constant 1 : index
    %c2_68 = arith.constant 2 : index
    %c0_69 = arith.constant 0 : index
    %c0_70 = arith.constant 0 : index
    %78 = vector.load %arg2[%c1_67, %c2_68, %c0_69, %c0_70] : memref<4x9x128x128xf32, #tpu.memory_space<vmem>>, vector<1x1x128x128xf32>
    %79 = vector.shape_cast %78 : vector<1x1x128x128xf32> to vector<128x128xf32>
    %cst_71 = arith.constant dense<0.000000e+00> : vector<64x128xf32>
    %80 = tpu.matmul %77, %79, %cst_71 {dimension_numbers = #tpu.dot_dimension_numbers<[1], [0], [0], [1], [0, 0, 1, 1], [], []>} : vector<64x128xf32>, vector<128x128xf32>, vector<64x128xf32> -> vector<64x128xf32>
    %81 = arith.addf %76, %80 : vector<64x128xf32>
    %c0_72 = arith.constant 0 : index
    %c0_73 = arith.constant 0 : index
    %c0_74 = arith.constant 0 : index
    %82 = vector.load %arg4[%c0_72, %c0_73, %c0_74] : memref<3x64x64xf32, #tpu.memory_space<vmem>>, vector<1x64x64xf32>
    %83 = vector.shape_cast %82 : vector<1x64x64xf32> to vector<64x64xf32>
    %cst_75 = arith.constant dense<0.000000e+00> : vector<64x128xf32>
    %84 = tpu.matmul %83, %81, %cst_75 {dimension_numbers = #tpu.dot_dimension_numbers<[1], [0], [0], [1], [0, 0, 1, 1], [], []>} : vector<64x64xf32>, vector<64x128xf32>, vector<64x128xf32> -> vector<64x128xf32>
    %85 = arith.addf %66, %84 : vector<64x128xf32>
    %cst_76 = arith.constant 0.000000e+00 : f32
    %86 = vector.broadcast %cst_76 : f32 to vector<64x128xf32>
    %87 = vector.extract_strided_slice %65 {offsets = [56, 0], sizes = [64, 128], strides = [1, 1]} : vector<192x128xf32> to vector<64x128xf32>
    %c1_77 = arith.constant 1 : index
    %c3_78 = arith.constant 3 : index
    %c0_79 = arith.constant 0 : index
    %c0_80 = arith.constant 0 : index
    %88 = vector.load %arg2[%c1_77, %c3_78, %c0_79, %c0_80] : memref<4x9x128x128xf32, #tpu.memory_space<vmem>>, vector<1x1x128x128xf32>
    %89 = vector.shape_cast %88 : vector<1x1x128x128xf32> to vector<128x128xf32>
    %cst_81 = arith.constant dense<0.000000e+00> : vector<64x128xf32>
    %90 = tpu.matmul %87, %89, %cst_81 {dimension_numbers = #tpu.dot_dimension_numbers<[1], [0], [0], [1], [0, 0, 1, 1], [], []>} : vector<64x128xf32>, vector<128x128xf32>, vector<64x128xf32> -> vector<64x128xf32>
    %91 = arith.addf %86, %90 : vector<64x128xf32>
    %c1_82 = arith.constant 1 : index
    %c4_83 = arith.constant 4 : index
    %c0_84 = arith.constant 0 : index
    %c0_85 = arith.constant 0 : index
    %92 = vector.load %arg2[%c1_82, %c4_83, %c0_84, %c0_85] : memref<4x9x128x128xf32, #tpu.memory_space<vmem>>, vector<1x1x128x128xf32>
    %93 = vector.shape_cast %92 : vector<1x1x128x128xf32> to vector<128x128xf32>
    %cst_86 = arith.constant dense<0.000000e+00> : vector<64x128xf32>
    %94 = tpu.matmul %64, %93, %cst_86 {dimension_numbers = #tpu.dot_dimension_numbers<[1], [0], [0], [1], [0, 0, 1, 1], [], []>} : vector<64x128xf32>, vector<128x128xf32>, vector<64x128xf32> -> vector<64x128xf32>
    %95 = arith.addf %91, %94 : vector<64x128xf32>
    %96 = vector.extract_strided_slice %65 {offsets = [72, 0], sizes = [64, 128], strides = [1, 1]} : vector<192x128xf32> to vector<64x128xf32>
    %c1_87 = arith.constant 1 : index
    %c5_88 = arith.constant 5 : index
    %c0_89 = arith.constant 0 : index
    %c0_90 = arith.constant 0 : index
    %97 = vector.load %arg2[%c1_87, %c5_88, %c0_89, %c0_90] : memref<4x9x128x128xf32, #tpu.memory_space<vmem>>, vector<1x1x128x128xf32>
    %98 = vector.shape_cast %97 : vector<1x1x128x128xf32> to vector<128x128xf32>
    %cst_91 = arith.constant dense<0.000000e+00> : vector<64x128xf32>
    %99 = tpu.matmul %96, %98, %cst_91 {dimension_numbers = #tpu.dot_dimension_numbers<[1], [0], [0], [1], [0, 0, 1, 1], [], []>} : vector<64x128xf32>, vector<128x128xf32>, vector<64x128xf32> -> vector<64x128xf32>
    %100 = arith.addf %95, %99 : vector<64x128xf32>
    %101 = arith.addf %85, %100 : vector<64x128xf32>
    %cst_92 = arith.constant 0.000000e+00 : f32
    %102 = vector.broadcast %cst_92 : f32 to vector<64x128xf32>
    %103 = vector.extract_strided_slice %65 {offsets = [56, 0], sizes = [64, 128], strides = [1, 1]} : vector<192x128xf32> to vector<64x128xf32>
    %c1_93 = arith.constant 1 : index
    %c6_94 = arith.constant 6 : index
    %c0_95 = arith.constant 0 : index
    %c0_96 = arith.constant 0 : index
    %104 = vector.load %arg2[%c1_93, %c6_94, %c0_95, %c0_96] : memref<4x9x128x128xf32, #tpu.memory_space<vmem>>, vector<1x1x128x128xf32>
    %105 = vector.shape_cast %104 : vector<1x1x128x128xf32> to vector<128x128xf32>
    %cst_97 = arith.constant dense<0.000000e+00> : vector<64x128xf32>
    %106 = tpu.matmul %103, %105, %cst_97 {dimension_numbers = #tpu.dot_dimension_numbers<[1], [0], [0], [1], [0, 0, 1, 1], [], []>} : vector<64x128xf32>, vector<128x128xf32>, vector<64x128xf32> -> vector<64x128xf32>
    %107 = arith.addf %102, %106 : vector<64x128xf32>
    %c1_98 = arith.constant 1 : index
    %c7_99 = arith.constant 7 : index
    %c0_100 = arith.constant 0 : index
    %c0_101 = arith.constant 0 : index
    %108 = vector.load %arg2[%c1_98, %c7_99, %c0_100, %c0_101] : memref<4x9x128x128xf32, #tpu.memory_space<vmem>>, vector<1x1x128x128xf32>
    %109 = vector.shape_cast %108 : vector<1x1x128x128xf32> to vector<128x128xf32>
    %cst_102 = arith.constant dense<0.000000e+00> : vector<64x128xf32>
    %110 = tpu.matmul %64, %109, %cst_102 {dimension_numbers = #tpu.dot_dimension_numbers<[1], [0], [0], [1], [0, 0, 1, 1], [], []>} : vector<64x128xf32>, vector<128x128xf32>, vector<64x128xf32> -> vector<64x128xf32>
    %111 = arith.addf %107, %110 : vector<64x128xf32>
    %112 = vector.extract_strided_slice %65 {offsets = [72, 0], sizes = [64, 128], strides = [1, 1]} : vector<192x128xf32> to vector<64x128xf32>
    %c1_103 = arith.constant 1 : index
    %c8_104 = arith.constant 8 : index
    %c0_105 = arith.constant 0 : index
    %c0_106 = arith.constant 0 : index
    %113 = vector.load %arg2[%c1_103, %c8_104, %c0_105, %c0_106] : memref<4x9x128x128xf32, #tpu.memory_space<vmem>>, vector<1x1x128x128xf32>
    %114 = vector.shape_cast %113 : vector<1x1x128x128xf32> to vector<128x128xf32>
    %cst_107 = arith.constant dense<0.000000e+00> : vector<64x128xf32>
    %115 = tpu.matmul %112, %114, %cst_107 {dimension_numbers = #tpu.dot_dimension_numbers<[1], [0], [0], [1], [0, 0, 1, 1], [], []>} : vector<64x128xf32>, vector<128x128xf32>, vector<64x128xf32> -> vector<64x128xf32>
    %116 = arith.addf %111, %115 : vector<64x128xf32>
    %c2_108 = arith.constant 2 : index
    %c0_109 = arith.constant 0 : index
    %c0_110 = arith.constant 0 : index
    %117 = vector.load %arg4[%c2_108, %c0_109, %c0_110] : memref<3x64x64xf32, #tpu.memory_space<vmem>>, vector<1x64x64xf32>
    %118 = vector.shape_cast %117 : vector<1x64x64xf32> to vector<64x64xf32>
    %cst_111 = arith.constant dense<0.000000e+00> : vector<64x128xf32>
    %119 = tpu.matmul %118, %116, %cst_111 {dimension_numbers = #tpu.dot_dimension_numbers<[1], [0], [0], [1], [0, 0, 1, 1], [], []>} : vector<64x64xf32>, vector<64x128xf32>, vector<64x128xf32> -> vector<64x128xf32>
    %120 = arith.addf %101, %119 : vector<64x128xf32>
    %c1_112 = arith.constant 1 : index
    %c0_113 = arith.constant 0 : index
    %c0_114 = arith.constant 0 : index
    %121 = vector.load %arg3[%c1_112, %c0_113, %c0_114] : memref<4x1x128xf32, #tpu.memory_space<vmem>>, vector<1x1x128xf32>
    %122 = vector.shape_cast %121 : vector<1x1x128xf32> to vector<1x128xf32>
    %123 = vector.broadcast %122 : vector<1x128xf32> to vector<64x128xf32>
    %124 = arith.addf %120, %123 : vector<64x128xf32>
    %cst_115 = arith.constant 0.000000e+00 : f32
    %125 = vector.broadcast %cst_115 : f32 to vector<64x128xf32>
    %126 = arith.maximumf %124, %125 : vector<64x128xf32>
    %127 = arith.addf %126, %64 : vector<64x128xf32>
    %128 = tpu.concatenate %2, %127, %2 in 0 : vector<64x128xf32>, vector<64x128xf32>, vector<64x128xf32> -> vector<192x128xf32>
    %cst_116 = arith.constant 0.000000e+00 : f32
    %129 = vector.broadcast %cst_116 : f32 to vector<64x128xf32>
    %cst_117 = arith.constant 0.000000e+00 : f32
    %130 = vector.broadcast %cst_117 : f32 to vector<64x128xf32>
    %131 = vector.extract_strided_slice %128 {offsets = [56, 0], sizes = [64, 128], strides = [1, 1]} : vector<192x128xf32> to vector<64x128xf32>
    %c2_118 = arith.constant 2 : index
    %c0_119 = arith.constant 0 : index
    %c0_120 = arith.constant 0 : index
    %c0_121 = arith.constant 0 : index
    %132 = vector.load %arg2[%c2_118, %c0_119, %c0_120, %c0_121] : memref<4x9x128x128xf32, #tpu.memory_space<vmem>>, vector<1x1x128x128xf32>
    %133 = vector.shape_cast %132 : vector<1x1x128x128xf32> to vector<128x128xf32>
    %cst_122 = arith.constant dense<0.000000e+00> : vector<64x128xf32>
    %134 = tpu.matmul %131, %133, %cst_122 {dimension_numbers = #tpu.dot_dimension_numbers<[1], [0], [0], [1], [0, 0, 1, 1], [], []>} : vector<64x128xf32>, vector<128x128xf32>, vector<64x128xf32> -> vector<64x128xf32>
    %135 = arith.addf %130, %134 : vector<64x128xf32>
    %c2_123 = arith.constant 2 : index
    %c1_124 = arith.constant 1 : index
    %c0_125 = arith.constant 0 : index
    %c0_126 = arith.constant 0 : index
    %136 = vector.load %arg2[%c2_123, %c1_124, %c0_125, %c0_126] : memref<4x9x128x128xf32, #tpu.memory_space<vmem>>, vector<1x1x128x128xf32>
    %137 = vector.shape_cast %136 : vector<1x1x128x128xf32> to vector<128x128xf32>
    %cst_127 = arith.constant dense<0.000000e+00> : vector<64x128xf32>
    %138 = tpu.matmul %127, %137, %cst_127 {dimension_numbers = #tpu.dot_dimension_numbers<[1], [0], [0], [1], [0, 0, 1, 1], [], []>} : vector<64x128xf32>, vector<128x128xf32>, vector<64x128xf32> -> vector<64x128xf32>
    %139 = arith.addf %135, %138 : vector<64x128xf32>
    %140 = vector.extract_strided_slice %128 {offsets = [72, 0], sizes = [64, 128], strides = [1, 1]} : vector<192x128xf32> to vector<64x128xf32>
    %c2_128 = arith.constant 2 : index
    %c2_129 = arith.constant 2 : index
    %c0_130 = arith.constant 0 : index
    %c0_131 = arith.constant 0 : index
    %141 = vector.load %arg2[%c2_128, %c2_129, %c0_130, %c0_131] : memref<4x9x128x128xf32, #tpu.memory_space<vmem>>, vector<1x1x128x128xf32>
    %142 = vector.shape_cast %141 : vector<1x1x128x128xf32> to vector<128x128xf32>
    %cst_132 = arith.constant dense<0.000000e+00> : vector<64x128xf32>
    %143 = tpu.matmul %140, %142, %cst_132 {dimension_numbers = #tpu.dot_dimension_numbers<[1], [0], [0], [1], [0, 0, 1, 1], [], []>} : vector<64x128xf32>, vector<128x128xf32>, vector<64x128xf32> -> vector<64x128xf32>
    %144 = arith.addf %139, %143 : vector<64x128xf32>
    %c0_133 = arith.constant 0 : index
    %c0_134 = arith.constant 0 : index
    %c0_135 = arith.constant 0 : index
    %145 = vector.load %arg4[%c0_133, %c0_134, %c0_135] : memref<3x64x64xf32, #tpu.memory_space<vmem>>, vector<1x64x64xf32>
    %146 = vector.shape_cast %145 : vector<1x64x64xf32> to vector<64x64xf32>
    %cst_136 = arith.constant dense<0.000000e+00> : vector<64x128xf32>
    %147 = tpu.matmul %146, %144, %cst_136 {dimension_numbers = #tpu.dot_dimension_numbers<[1], [0], [0], [1], [0, 0, 1, 1], [], []>} : vector<64x64xf32>, vector<64x128xf32>, vector<64x128xf32> -> vector<64x128xf32>
    %148 = arith.addf %129, %147 : vector<64x128xf32>
    %cst_137 = arith.constant 0.000000e+00 : f32
    %149 = vector.broadcast %cst_137 : f32 to vector<64x128xf32>
    %150 = vector.extract_strided_slice %128 {offsets = [56, 0], sizes = [64, 128], strides = [1, 1]} : vector<192x128xf32> to vector<64x128xf32>
    %c2_138 = arith.constant 2 : index
    %c3_139 = arith.constant 3 : index
    %c0_140 = arith.constant 0 : index
    %c0_141 = arith.constant 0 : index
    %151 = vector.load %arg2[%c2_138, %c3_139, %c0_140, %c0_141] : memref<4x9x128x128xf32, #tpu.memory_space<vmem>>, vector<1x1x128x128xf32>
    %152 = vector.shape_cast %151 : vector<1x1x128x128xf32> to vector<128x128xf32>
    %cst_142 = arith.constant dense<0.000000e+00> : vector<64x128xf32>
    %153 = tpu.matmul %150, %152, %cst_142 {dimension_numbers = #tpu.dot_dimension_numbers<[1], [0], [0], [1], [0, 0, 1, 1], [], []>} : vector<64x128xf32>, vector<128x128xf32>, vector<64x128xf32> -> vector<64x128xf32>
    %154 = arith.addf %149, %153 : vector<64x128xf32>
    %c2_143 = arith.constant 2 : index
    %c4_144 = arith.constant 4 : index
    %c0_145 = arith.constant 0 : index
    %c0_146 = arith.constant 0 : index
    %155 = vector.load %arg2[%c2_143, %c4_144, %c0_145, %c0_146] : memref<4x9x128x128xf32, #tpu.memory_space<vmem>>, vector<1x1x128x128xf32>
    %156 = vector.shape_cast %155 : vector<1x1x128x128xf32> to vector<128x128xf32>
    %cst_147 = arith.constant dense<0.000000e+00> : vector<64x128xf32>
    %157 = tpu.matmul %127, %156, %cst_147 {dimension_numbers = #tpu.dot_dimension_numbers<[1], [0], [0], [1], [0, 0, 1, 1], [], []>} : vector<64x128xf32>, vector<128x128xf32>, vector<64x128xf32> -> vector<64x128xf32>
    %158 = arith.addf %154, %157 : vector<64x128xf32>
    %159 = vector.extract_strided_slice %128 {offsets = [72, 0], sizes = [64, 128], strides = [1, 1]} : vector<192x128xf32> to vector<64x128xf32>
    %c2_148 = arith.constant 2 : index
    %c5_149 = arith.constant 5 : index
    %c0_150 = arith.constant 0 : index
    %c0_151 = arith.constant 0 : index
    %160 = vector.load %arg2[%c2_148, %c5_149, %c0_150, %c0_151] : memref<4x9x128x128xf32, #tpu.memory_space<vmem>>, vector<1x1x128x128xf32>
    %161 = vector.shape_cast %160 : vector<1x1x128x128xf32> to vector<128x128xf32>
    %cst_152 = arith.constant dense<0.000000e+00> : vector<64x128xf32>
    %162 = tpu.matmul %159, %161, %cst_152 {dimension_numbers = #tpu.dot_dimension_numbers<[1], [0], [0], [1], [0, 0, 1, 1], [], []>} : vector<64x128xf32>, vector<128x128xf32>, vector<64x128xf32> -> vector<64x128xf32>
    %163 = arith.addf %158, %162 : vector<64x128xf32>
    %164 = arith.addf %148, %163 : vector<64x128xf32>
    %cst_153 = arith.constant 0.000000e+00 : f32
    %165 = vector.broadcast %cst_153 : f32 to vector<64x128xf32>
    %166 = vector.extract_strided_slice %128 {offsets = [56, 0], sizes = [64, 128], strides = [1, 1]} : vector<192x128xf32> to vector<64x128xf32>
    %c2_154 = arith.constant 2 : index
    %c6_155 = arith.constant 6 : index
    %c0_156 = arith.constant 0 : index
    %c0_157 = arith.constant 0 : index
    %167 = vector.load %arg2[%c2_154, %c6_155, %c0_156, %c0_157] : memref<4x9x128x128xf32, #tpu.memory_space<vmem>>, vector<1x1x128x128xf32>
    %168 = vector.shape_cast %167 : vector<1x1x128x128xf32> to vector<128x128xf32>
    %cst_158 = arith.constant dense<0.000000e+00> : vector<64x128xf32>
    %169 = tpu.matmul %166, %168, %cst_158 {dimension_numbers = #tpu.dot_dimension_numbers<[1], [0], [0], [1], [0, 0, 1, 1], [], []>} : vector<64x128xf32>, vector<128x128xf32>, vector<64x128xf32> -> vector<64x128xf32>
    %170 = arith.addf %165, %169 : vector<64x128xf32>
    %c2_159 = arith.constant 2 : index
    %c7_160 = arith.constant 7 : index
    %c0_161 = arith.constant 0 : index
    %c0_162 = arith.constant 0 : index
    %171 = vector.load %arg2[%c2_159, %c7_160, %c0_161, %c0_162] : memref<4x9x128x128xf32, #tpu.memory_space<vmem>>, vector<1x1x128x128xf32>
    %172 = vector.shape_cast %171 : vector<1x1x128x128xf32> to vector<128x128xf32>
    %cst_163 = arith.constant dense<0.000000e+00> : vector<64x128xf32>
    %173 = tpu.matmul %127, %172, %cst_163 {dimension_numbers = #tpu.dot_dimension_numbers<[1], [0], [0], [1], [0, 0, 1, 1], [], []>} : vector<64x128xf32>, vector<128x128xf32>, vector<64x128xf32> -> vector<64x128xf32>
    %174 = arith.addf %170, %173 : vector<64x128xf32>
    %175 = vector.extract_strided_slice %128 {offsets = [72, 0], sizes = [64, 128], strides = [1, 1]} : vector<192x128xf32> to vector<64x128xf32>
    %c2_164 = arith.constant 2 : index
    %c8_165 = arith.constant 8 : index
    %c0_166 = arith.constant 0 : index
    %c0_167 = arith.constant 0 : index
    %176 = vector.load %arg2[%c2_164, %c8_165, %c0_166, %c0_167] : memref<4x9x128x128xf32, #tpu.memory_space<vmem>>, vector<1x1x128x128xf32>
    %177 = vector.shape_cast %176 : vector<1x1x128x128xf32> to vector<128x128xf32>
    %cst_168 = arith.constant dense<0.000000e+00> : vector<64x128xf32>
    %178 = tpu.matmul %175, %177, %cst_168 {dimension_numbers = #tpu.dot_dimension_numbers<[1], [0], [0], [1], [0, 0, 1, 1], [], []>} : vector<64x128xf32>, vector<128x128xf32>, vector<64x128xf32> -> vector<64x128xf32>
    %179 = arith.addf %174, %178 : vector<64x128xf32>
    %c2_169 = arith.constant 2 : index
    %c0_170 = arith.constant 0 : index
    %c0_171 = arith.constant 0 : index
    %180 = vector.load %arg4[%c2_169, %c0_170, %c0_171] : memref<3x64x64xf32, #tpu.memory_space<vmem>>, vector<1x64x64xf32>
    %181 = vector.shape_cast %180 : vector<1x64x64xf32> to vector<64x64xf32>
    %cst_172 = arith.constant dense<0.000000e+00> : vector<64x128xf32>
    %182 = tpu.matmul %181, %179, %cst_172 {dimension_numbers = #tpu.dot_dimension_numbers<[1], [0], [0], [1], [0, 0, 1, 1], [], []>} : vector<64x64xf32>, vector<64x128xf32>, vector<64x128xf32> -> vector<64x128xf32>
    %183 = arith.addf %164, %182 : vector<64x128xf32>
    %c2_173 = arith.constant 2 : index
    %c0_174 = arith.constant 0 : index
    %c0_175 = arith.constant 0 : index
    %184 = vector.load %arg3[%c2_173, %c0_174, %c0_175] : memref<4x1x128xf32, #tpu.memory_space<vmem>>, vector<1x1x128xf32>
    %185 = vector.shape_cast %184 : vector<1x1x128xf32> to vector<1x128xf32>
    %186 = vector.broadcast %185 : vector<1x128xf32> to vector<64x128xf32>
    %187 = arith.addf %183, %186 : vector<64x128xf32>
    %cst_176 = arith.constant 0.000000e+00 : f32
    %188 = vector.broadcast %cst_176 : f32 to vector<64x128xf32>
    %189 = arith.maximumf %187, %188 : vector<64x128xf32>
    %190 = arith.addf %189, %127 : vector<64x128xf32>
    %191 = tpu.concatenate %2, %190, %2 in 0 : vector<64x128xf32>, vector<64x128xf32>, vector<64x128xf32> -> vector<192x128xf32>
    %cst_177 = arith.constant 0.000000e+00 : f32
    %192 = vector.broadcast %cst_177 : f32 to vector<64x128xf32>
    %cst_178 = arith.constant 0.000000e+00 : f32
    %193 = vector.broadcast %cst_178 : f32 to vector<64x128xf32>
    %194 = vector.extract_strided_slice %191 {offsets = [56, 0], sizes = [64, 128], strides = [1, 1]} : vector<192x128xf32> to vector<64x128xf32>
    %c3_179 = arith.constant 3 : index
    %c0_180 = arith.constant 0 : index
    %c0_181 = arith.constant 0 : index
    %c0_182 = arith.constant 0 : index
    %195 = vector.load %arg2[%c3_179, %c0_180, %c0_181, %c0_182] : memref<4x9x128x128xf32, #tpu.memory_space<vmem>>, vector<1x1x128x128xf32>
    %196 = vector.shape_cast %195 : vector<1x1x128x128xf32> to vector<128x128xf32>
    %cst_183 = arith.constant dense<0.000000e+00> : vector<64x128xf32>
    %197 = tpu.matmul %194, %196, %cst_183 {dimension_numbers = #tpu.dot_dimension_numbers<[1], [0], [0], [1], [0, 0, 1, 1], [], []>} : vector<64x128xf32>, vector<128x128xf32>, vector<64x128xf32> -> vector<64x128xf32>
    %198 = arith.addf %193, %197 : vector<64x128xf32>
    %c3_184 = arith.constant 3 : index
    %c1_185 = arith.constant 1 : index
    %c0_186 = arith.constant 0 : index
    %c0_187 = arith.constant 0 : index
    %199 = vector.load %arg2[%c3_184, %c1_185, %c0_186, %c0_187] : memref<4x9x128x128xf32, #tpu.memory_space<vmem>>, vector<1x1x128x128xf32>
    %200 = vector.shape_cast %199 : vector<1x1x128x128xf32> to vector<128x128xf32>
    %cst_188 = arith.constant dense<0.000000e+00> : vector<64x128xf32>
    %201 = tpu.matmul %190, %200, %cst_188 {dimension_numbers = #tpu.dot_dimension_numbers<[1], [0], [0], [1], [0, 0, 1, 1], [], []>} : vector<64x128xf32>, vector<128x128xf32>, vector<64x128xf32> -> vector<64x128xf32>
    %202 = arith.addf %198, %201 : vector<64x128xf32>
    %203 = vector.extract_strided_slice %191 {offsets = [72, 0], sizes = [64, 128], strides = [1, 1]} : vector<192x128xf32> to vector<64x128xf32>
    %c3_189 = arith.constant 3 : index
    %c2_190 = arith.constant 2 : index
    %c0_191 = arith.constant 0 : index
    %c0_192 = arith.constant 0 : index
    %204 = vector.load %arg2[%c3_189, %c2_190, %c0_191, %c0_192] : memref<4x9x128x128xf32, #tpu.memory_space<vmem>>, vector<1x1x128x128xf32>
    %205 = vector.shape_cast %204 : vector<1x1x128x128xf32> to vector<128x128xf32>
    %cst_193 = arith.constant dense<0.000000e+00> : vector<64x128xf32>
    %206 = tpu.matmul %203, %205, %cst_193 {dimension_numbers = #tpu.dot_dimension_numbers<[1], [0], [0], [1], [0, 0, 1, 1], [], []>} : vector<64x128xf32>, vector<128x128xf32>, vector<64x128xf32> -> vector<64x128xf32>
    %207 = arith.addf %202, %206 : vector<64x128xf32>
    %c0_194 = arith.constant 0 : index
    %c0_195 = arith.constant 0 : index
    %c0_196 = arith.constant 0 : index
    %208 = vector.load %arg4[%c0_194, %c0_195, %c0_196] : memref<3x64x64xf32, #tpu.memory_space<vmem>>, vector<1x64x64xf32>
    %209 = vector.shape_cast %208 : vector<1x64x64xf32> to vector<64x64xf32>
    %cst_197 = arith.constant dense<0.000000e+00> : vector<64x128xf32>
    %210 = tpu.matmul %209, %207, %cst_197 {dimension_numbers = #tpu.dot_dimension_numbers<[1], [0], [0], [1], [0, 0, 1, 1], [], []>} : vector<64x64xf32>, vector<64x128xf32>, vector<64x128xf32> -> vector<64x128xf32>
    %211 = arith.addf %192, %210 : vector<64x128xf32>
    %cst_198 = arith.constant 0.000000e+00 : f32
    %212 = vector.broadcast %cst_198 : f32 to vector<64x128xf32>
    %213 = vector.extract_strided_slice %191 {offsets = [56, 0], sizes = [64, 128], strides = [1, 1]} : vector<192x128xf32> to vector<64x128xf32>
    %c3_199 = arith.constant 3 : index
    %c3_200 = arith.constant 3 : index
    %c0_201 = arith.constant 0 : index
    %c0_202 = arith.constant 0 : index
    %214 = vector.load %arg2[%c3_199, %c3_200, %c0_201, %c0_202] : memref<4x9x128x128xf32, #tpu.memory_space<vmem>>, vector<1x1x128x128xf32>
    %215 = vector.shape_cast %214 : vector<1x1x128x128xf32> to vector<128x128xf32>
    %cst_203 = arith.constant dense<0.000000e+00> : vector<64x128xf32>
    %216 = tpu.matmul %213, %215, %cst_203 {dimension_numbers = #tpu.dot_dimension_numbers<[1], [0], [0], [1], [0, 0, 1, 1], [], []>} : vector<64x128xf32>, vector<128x128xf32>, vector<64x128xf32> -> vector<64x128xf32>
    %217 = arith.addf %212, %216 : vector<64x128xf32>
    %c3_204 = arith.constant 3 : index
    %c4_205 = arith.constant 4 : index
    %c0_206 = arith.constant 0 : index
    %c0_207 = arith.constant 0 : index
    %218 = vector.load %arg2[%c3_204, %c4_205, %c0_206, %c0_207] : memref<4x9x128x128xf32, #tpu.memory_space<vmem>>, vector<1x1x128x128xf32>
    %219 = vector.shape_cast %218 : vector<1x1x128x128xf32> to vector<128x128xf32>
    %cst_208 = arith.constant dense<0.000000e+00> : vector<64x128xf32>
    %220 = tpu.matmul %190, %219, %cst_208 {dimension_numbers = #tpu.dot_dimension_numbers<[1], [0], [0], [1], [0, 0, 1, 1], [], []>} : vector<64x128xf32>, vector<128x128xf32>, vector<64x128xf32> -> vector<64x128xf32>
    %221 = arith.addf %217, %220 : vector<64x128xf32>
    %222 = vector.extract_strided_slice %191 {offsets = [72, 0], sizes = [64, 128], strides = [1, 1]} : vector<192x128xf32> to vector<64x128xf32>
    %c3_209 = arith.constant 3 : index
    %c5_210 = arith.constant 5 : index
    %c0_211 = arith.constant 0 : index
    %c0_212 = arith.constant 0 : index
    %223 = vector.load %arg2[%c3_209, %c5_210, %c0_211, %c0_212] : memref<4x9x128x128xf32, #tpu.memory_space<vmem>>, vector<1x1x128x128xf32>
    %224 = vector.shape_cast %223 : vector<1x1x128x128xf32> to vector<128x128xf32>
    %cst_213 = arith.constant dense<0.000000e+00> : vector<64x128xf32>
    %225 = tpu.matmul %222, %224, %cst_213 {dimension_numbers = #tpu.dot_dimension_numbers<[1], [0], [0], [1], [0, 0, 1, 1], [], []>} : vector<64x128xf32>, vector<128x128xf32>, vector<64x128xf32> -> vector<64x128xf32>
    %226 = arith.addf %221, %225 : vector<64x128xf32>
    %227 = arith.addf %211, %226 : vector<64x128xf32>
    %cst_214 = arith.constant 0.000000e+00 : f32
    %228 = vector.broadcast %cst_214 : f32 to vector<64x128xf32>
    %229 = vector.extract_strided_slice %191 {offsets = [56, 0], sizes = [64, 128], strides = [1, 1]} : vector<192x128xf32> to vector<64x128xf32>
    %c3_215 = arith.constant 3 : index
    %c6_216 = arith.constant 6 : index
    %c0_217 = arith.constant 0 : index
    %c0_218 = arith.constant 0 : index
    %230 = vector.load %arg2[%c3_215, %c6_216, %c0_217, %c0_218] : memref<4x9x128x128xf32, #tpu.memory_space<vmem>>, vector<1x1x128x128xf32>
    %231 = vector.shape_cast %230 : vector<1x1x128x128xf32> to vector<128x128xf32>
    %cst_219 = arith.constant dense<0.000000e+00> : vector<64x128xf32>
    %232 = tpu.matmul %229, %231, %cst_219 {dimension_numbers = #tpu.dot_dimension_numbers<[1], [0], [0], [1], [0, 0, 1, 1], [], []>} : vector<64x128xf32>, vector<128x128xf32>, vector<64x128xf32> -> vector<64x128xf32>
    %233 = arith.addf %228, %232 : vector<64x128xf32>
    %c3_220 = arith.constant 3 : index
    %c7_221 = arith.constant 7 : index
    %c0_222 = arith.constant 0 : index
    %c0_223 = arith.constant 0 : index
    %234 = vector.load %arg2[%c3_220, %c7_221, %c0_222, %c0_223] : memref<4x9x128x128xf32, #tpu.memory_space<vmem>>, vector<1x1x128x128xf32>
    %235 = vector.shape_cast %234 : vector<1x1x128x128xf32> to vector<128x128xf32>
    %cst_224 = arith.constant dense<0.000000e+00> : vector<64x128xf32>
    %236 = tpu.matmul %190, %235, %cst_224 {dimension_numbers = #tpu.dot_dimension_numbers<[1], [0], [0], [1], [0, 0, 1, 1], [], []>} : vector<64x128xf32>, vector<128x128xf32>, vector<64x128xf32> -> vector<64x128xf32>
    %237 = arith.addf %233, %236 : vector<64x128xf32>
    %238 = vector.extract_strided_slice %191 {offsets = [72, 0], sizes = [64, 128], strides = [1, 1]} : vector<192x128xf32> to vector<64x128xf32>
    %c3_225 = arith.constant 3 : index
    %c8_226 = arith.constant 8 : index
    %c0_227 = arith.constant 0 : index
    %c0_228 = arith.constant 0 : index
    %239 = vector.load %arg2[%c3_225, %c8_226, %c0_227, %c0_228] : memref<4x9x128x128xf32, #tpu.memory_space<vmem>>, vector<1x1x128x128xf32>
    %240 = vector.shape_cast %239 : vector<1x1x128x128xf32> to vector<128x128xf32>
    %cst_229 = arith.constant dense<0.000000e+00> : vector<64x128xf32>
    %241 = tpu.matmul %238, %240, %cst_229 {dimension_numbers = #tpu.dot_dimension_numbers<[1], [0], [0], [1], [0, 0, 1, 1], [], []>} : vector<64x128xf32>, vector<128x128xf32>, vector<64x128xf32> -> vector<64x128xf32>
    %242 = arith.addf %237, %241 : vector<64x128xf32>
    %c2_230 = arith.constant 2 : index
    %c0_231 = arith.constant 0 : index
    %c0_232 = arith.constant 0 : index
    %243 = vector.load %arg4[%c2_230, %c0_231, %c0_232] : memref<3x64x64xf32, #tpu.memory_space<vmem>>, vector<1x64x64xf32>
    %244 = vector.shape_cast %243 : vector<1x64x64xf32> to vector<64x64xf32>
    %cst_233 = arith.constant dense<0.000000e+00> : vector<64x128xf32>
    %245 = tpu.matmul %244, %242, %cst_233 {dimension_numbers = #tpu.dot_dimension_numbers<[1], [0], [0], [1], [0, 0, 1, 1], [], []>} : vector<64x64xf32>, vector<64x128xf32>, vector<64x128xf32> -> vector<64x128xf32>
    %246 = arith.addf %227, %245 : vector<64x128xf32>
    %c3_234 = arith.constant 3 : index
    %c0_235 = arith.constant 0 : index
    %c0_236 = arith.constant 0 : index
    %247 = vector.load %arg3[%c3_234, %c0_235, %c0_236] : memref<4x1x128xf32, #tpu.memory_space<vmem>>, vector<1x1x128xf32>
    %248 = vector.shape_cast %247 : vector<1x1x128xf32> to vector<1x128xf32>
    %249 = vector.broadcast %248 : vector<1x128xf32> to vector<64x128xf32>
    %250 = arith.addf %246, %249 : vector<64x128xf32>
    %cst_237 = arith.constant 0.000000e+00 : f32
    %251 = vector.broadcast %cst_237 : f32 to vector<64x128xf32>
    %252 = arith.maximumf %250, %251 : vector<64x128xf32>
    %cst_238 = arith.constant 0.000000e+00 : f32
    %253 = vector.broadcast %cst_238 : f32 to vector<8x128xf32>
    %254 = vector.extract_strided_slice %252 {offsets = [0, 0], sizes = [8, 128], strides = [1, 1]} : vector<64x128xf32> to vector<8x128xf32>
    %c0_239 = arith.constant 0 : index
    %c0_240 = arith.constant 0 : index
    %c0_241 = arith.constant 0 : index
    %255 = vector.load %arg5[%c0_239, %c0_240, %c0_241] : memref<8x128x128xf32, #tpu.memory_space<vmem>>, vector<1x128x128xf32>
    %256 = vector.shape_cast %255 : vector<1x128x128xf32> to vector<128x128xf32>
    %cst_242 = arith.constant dense<0.000000e+00> : vector<8x128xf32>
    %257 = tpu.matmul %254, %256, %cst_242 {dimension_numbers = #tpu.dot_dimension_numbers<[1], [0], [0], [1], [0, 0, 1, 1], [], []>} : vector<8x128xf32>, vector<128x128xf32>, vector<8x128xf32> -> vector<8x128xf32>
    %258 = arith.addf %253, %257 : vector<8x128xf32>
    %259 = vector.extract_strided_slice %252 {offsets = [8, 0], sizes = [8, 128], strides = [1, 1]} : vector<64x128xf32> to vector<8x128xf32>
    %c1_243 = arith.constant 1 : index
    %c0_244 = arith.constant 0 : index
    %c0_245 = arith.constant 0 : index
    %260 = vector.load %arg5[%c1_243, %c0_244, %c0_245] : memref<8x128x128xf32, #tpu.memory_space<vmem>>, vector<1x128x128xf32>
    %261 = vector.shape_cast %260 : vector<1x128x128xf32> to vector<128x128xf32>
    %cst_246 = arith.constant dense<0.000000e+00> : vector<8x128xf32>
    %262 = tpu.matmul %259, %261, %cst_246 {dimension_numbers = #tpu.dot_dimension_numbers<[1], [0], [0], [1], [0, 0, 1, 1], [], []>} : vector<8x128xf32>, vector<128x128xf32>, vector<8x128xf32> -> vector<8x128xf32>
    %263 = arith.addf %258, %262 : vector<8x128xf32>
    %264 = vector.extract_strided_slice %252 {offsets = [16, 0], sizes = [8, 128], strides = [1, 1]} : vector<64x128xf32> to vector<8x128xf32>
    %c2_247 = arith.constant 2 : index
    %c0_248 = arith.constant 0 : index
    %c0_249 = arith.constant 0 : index
    %265 = vector.load %arg5[%c2_247, %c0_248, %c0_249] : memref<8x128x128xf32, #tpu.memory_space<vmem>>, vector<1x128x128xf32>
    %266 = vector.shape_cast %265 : vector<1x128x128xf32> to vector<128x128xf32>
    %cst_250 = arith.constant dense<0.000000e+00> : vector<8x128xf32>
    %267 = tpu.matmul %264, %266, %cst_250 {dimension_numbers = #tpu.dot_dimension_numbers<[1], [0], [0], [1], [0, 0, 1, 1], [], []>} : vector<8x128xf32>, vector<128x128xf32>, vector<8x128xf32> -> vector<8x128xf32>
    %268 = arith.addf %263, %267 : vector<8x128xf32>
    %269 = vector.extract_strided_slice %252 {offsets = [24, 0], sizes = [8, 128], strides = [1, 1]} : vector<64x128xf32> to vector<8x128xf32>
    %c3_251 = arith.constant 3 : index
    %c0_252 = arith.constant 0 : index
    %c0_253 = arith.constant 0 : index
    %270 = vector.load %arg5[%c3_251, %c0_252, %c0_253] : memref<8x128x128xf32, #tpu.memory_space<vmem>>, vector<1x128x128xf32>
    %271 = vector.shape_cast %270 : vector<1x128x128xf32> to vector<128x128xf32>
    %cst_254 = arith.constant dense<0.000000e+00> : vector<8x128xf32>
    %272 = tpu.matmul %269, %271, %cst_254 {dimension_numbers = #tpu.dot_dimension_numbers<[1], [0], [0], [1], [0, 0, 1, 1], [], []>} : vector<8x128xf32>, vector<128x128xf32>, vector<8x128xf32> -> vector<8x128xf32>
    %273 = arith.addf %268, %272 : vector<8x128xf32>
    %274 = vector.extract_strided_slice %252 {offsets = [32, 0], sizes = [8, 128], strides = [1, 1]} : vector<64x128xf32> to vector<8x128xf32>
    %c4_255 = arith.constant 4 : index
    %c0_256 = arith.constant 0 : index
    %c0_257 = arith.constant 0 : index
    %275 = vector.load %arg5[%c4_255, %c0_256, %c0_257] : memref<8x128x128xf32, #tpu.memory_space<vmem>>, vector<1x128x128xf32>
    %276 = vector.shape_cast %275 : vector<1x128x128xf32> to vector<128x128xf32>
    %cst_258 = arith.constant dense<0.000000e+00> : vector<8x128xf32>
    %277 = tpu.matmul %274, %276, %cst_258 {dimension_numbers = #tpu.dot_dimension_numbers<[1], [0], [0], [1], [0, 0, 1, 1], [], []>} : vector<8x128xf32>, vector<128x128xf32>, vector<8x128xf32> -> vector<8x128xf32>
    %278 = arith.addf %273, %277 : vector<8x128xf32>
    %279 = vector.extract_strided_slice %252 {offsets = [40, 0], sizes = [8, 128], strides = [1, 1]} : vector<64x128xf32> to vector<8x128xf32>
    %c5_259 = arith.constant 5 : index
    %c0_260 = arith.constant 0 : index
    %c0_261 = arith.constant 0 : index
    %280 = vector.load %arg5[%c5_259, %c0_260, %c0_261] : memref<8x128x128xf32, #tpu.memory_space<vmem>>, vector<1x128x128xf32>
    %281 = vector.shape_cast %280 : vector<1x128x128xf32> to vector<128x128xf32>
    %cst_262 = arith.constant dense<0.000000e+00> : vector<8x128xf32>
    %282 = tpu.matmul %279, %281, %cst_262 {dimension_numbers = #tpu.dot_dimension_numbers<[1], [0], [0], [1], [0, 0, 1, 1], [], []>} : vector<8x128xf32>, vector<128x128xf32>, vector<8x128xf32> -> vector<8x128xf32>
    %283 = arith.addf %278, %282 : vector<8x128xf32>
    %284 = vector.extract_strided_slice %252 {offsets = [48, 0], sizes = [8, 128], strides = [1, 1]} : vector<64x128xf32> to vector<8x128xf32>
    %c6_263 = arith.constant 6 : index
    %c0_264 = arith.constant 0 : index
    %c0_265 = arith.constant 0 : index
    %285 = vector.load %arg5[%c6_263, %c0_264, %c0_265] : memref<8x128x128xf32, #tpu.memory_space<vmem>>, vector<1x128x128xf32>
    %286 = vector.shape_cast %285 : vector<1x128x128xf32> to vector<128x128xf32>
    %cst_266 = arith.constant dense<0.000000e+00> : vector<8x128xf32>
    %287 = tpu.matmul %284, %286, %cst_266 {dimension_numbers = #tpu.dot_dimension_numbers<[1], [0], [0], [1], [0, 0, 1, 1], [], []>} : vector<8x128xf32>, vector<128x128xf32>, vector<8x128xf32> -> vector<8x128xf32>
    %288 = arith.addf %283, %287 : vector<8x128xf32>
    %289 = vector.extract_strided_slice %252 {offsets = [56, 0], sizes = [8, 128], strides = [1, 1]} : vector<64x128xf32> to vector<8x128xf32>
    %c7_267 = arith.constant 7 : index
    %c0_268 = arith.constant 0 : index
    %c0_269 = arith.constant 0 : index
    %290 = vector.load %arg5[%c7_267, %c0_268, %c0_269] : memref<8x128x128xf32, #tpu.memory_space<vmem>>, vector<1x128x128xf32>
    %291 = vector.shape_cast %290 : vector<1x128x128xf32> to vector<128x128xf32>
    %cst_270 = arith.constant dense<0.000000e+00> : vector<8x128xf32>
    %292 = tpu.matmul %289, %291, %cst_270 {dimension_numbers = #tpu.dot_dimension_numbers<[1], [0], [0], [1], [0, 0, 1, 1], [], []>} : vector<8x128xf32>, vector<128x128xf32>, vector<8x128xf32> -> vector<8x128xf32>
    %293 = arith.addf %288, %292 : vector<8x128xf32>
    %c0_271 = arith.constant 0 : index
    %c0_272 = arith.constant 0 : index
    %294 = vector.load %arg6[%c0_271, %c0_272] : memref<1x128xf32, #tpu.memory_space<vmem>>, vector<1x128xf32>
    %295 = vector.broadcast %294 : vector<1x128xf32> to vector<8x128xf32>
    %296 = arith.addf %293, %295 : vector<8x128xf32>
    %c0_273 = arith.constant 0 : index
    %c0_274 = arith.constant 0 : index
    %c0_275 = arith.constant 0 : index
    %297 = vector.load %arg7[%c0_273, %c0_274, %c0_275] : memref<1x8x128xf32, #tpu.memory_space<vmem>>, vector<1x8x128xf32>
    %298 = vector.shape_cast %297 : vector<1x8x128xf32> to vector<8x128xf32>
    %299 = vector.shape_cast %296 : vector<8x128xf32> to vector<1x8x128xf32>
    tpu.vector_store %arg7[%c0_273, %c0_274, %c0_275], %299 {strides = array<i32>} : memref<1x8x128xf32, #tpu.memory_space<vmem>>, vector<1x8x128xf32>,
    return
  }
  func.func @transform_0(%arg0: i32) -> (i32, i32, i32) {
    %c0_i32 = arith.constant 0 : i32
    %c0_i32_0 = arith.constant 0 : i32
    %c0_i32_1 = arith.constant 0 : i32
    return %arg0, %c0_i32, %c0_i32_0 : i32, i32, i32
  }
  func.func @transform_1(%arg0: i32) -> (i32, i32, i32, i32) {
    %c0_i32 = arith.constant 0 : i32
    %c0_i32_0 = arith.constant 0 : i32
    %c0_i32_1 = arith.constant 0 : i32
    %c0_i32_2 = arith.constant 0 : i32
    %c0_i32_3 = arith.constant 0 : i32
    return %c0_i32, %c0_i32_0, %c0_i32_1, %c0_i32_2 : i32, i32, i32, i32
  }
  func.func @transform_2(%arg0: i32) -> (i32, i32, i32) {
    %c0_i32 = arith.constant 0 : i32
    %c0_i32_0 = arith.constant 0 : i32
    %c0_i32_1 = arith.constant 0 : i32
    %c0_i32_2 = arith.constant 0 : i32
    return %c0_i32, %c0_i32_0, %c0_i32_1 : i32, i32, i32
  }
  func.func @transform_3(%arg0: i32) -> (i32, i32, i32) {
    %c0_i32 = arith.constant 0 : i32
    %c0_i32_0 = arith.constant 0 : i32
    %c0_i32_1 = arith.constant 0 : i32
    %c0_i32_2 = arith.constant 0 : i32
    return %c0_i32, %c0_i32_0, %c0_i32_1 : i32, i32, i32
  }
  func.func @transform_4(%arg0: i32) -> (i32, i32, i32) {
    %c0_i32 = arith.constant 0 : i32
    %c0_i32_0 = arith.constant 0 : i32
    %c0_i32_1 = arith.constant 0 : i32
    %c0_i32_2 = arith.constant 0 : i32
    return %c0_i32, %c0_i32_0, %c0_i32_1 : i32, i32, i32
  }
  func.func @transform_5(%arg0: i32) -> (i32, i32) {
    %c0_i32 = arith.constant 0 : i32
    %c0_i32_0 = arith.constant 0 : i32
    %c0_i32_1 = arith.constant 0 : i32
    return %c0_i32, %c0_i32_0 : i32, i32
  }
  func.func @transform_6(%arg0: i32) -> (i32, i32, i32) {
    %c0_i32 = arith.constant 0 : i32
    %c0_i32_0 = arith.constant 0 : i32
    %c0_i32_1 = arith.constant 0 : i32
    return %arg0, %c0_i32, %c0_i32_0 : i32, i32, i32
  }
}

</mosaic_0001>

<llo_original>
// kernel: _lambda_.1
$region0: #{_lambda_.1}
  #allocation0 [shape = 'u32[]', space=smem, size = 0x4, offset = 0x4, fixed_abs, tag = 'smem constant byte address 0x4 - core index']
  #allocation1 [shape = 'u32[144,128]{1,0:T(1,128)}', space=vmem, size = 0x12000, scoped, tag = 'internal scratch']
  %s0 = inlined_call_operand.vmem [shape: f32[2,64,128], index: 0, kind: input, shape index: {}]
  %s1 = inlined_call_operand.hbm [shape: f32[4,9,128,128], index: 1, kind: input, shape index: {}]
  %s2 = inlined_call_operand.hbm [shape: f32[4,1,128], index: 2, kind: input, shape index: {}]
  %s3 = inlined_call_operand.hbm [shape: f32[3,64,64], index: 3, kind: input, shape index: {}]
  %s4 = inlined_call_operand.hbm [shape: f32[8,128,128], index: 4, kind: input, shape index: {}]
  %s5 = inlined_call_operand.hbm [shape: f32[1,128], index: 5, kind: input, shape index: {}]
  %s6 = inlined_call_operand.hbm [shape: f32[2,8,128], index: 6, kind: output, shape index: {}]
  %s7 = sld [smem:[#allocation0]]
  $region77: #{_lambda_.1} parent=0
    _
  %s9 = ssub.s32 1, %s7
  %s10 = scalar_select 0, %s9, %s7
  $region1: #{_lambda_.1} parent=0
    #allocation2 [shape = 'u8[2359296]{0}', space=vmem, size = 0x240000, scoped, tag = 'input window, operand 1, single buffered']
    #allocation3 [shape = 's32[2]{0}', space=sflag, size = 0x8, scoped, tag = 'scoped memory for _lambda_.1']
    #allocation4 [shape = 's32[2]{0}', space=sflag, size = 0x8, scoped, tag = 'scoped memory for _lambda_.1']
    #allocation5 [shape = 'u8[2048]{0}', space=vmem, size = 0x800, scoped, tag = 'input window, operand 2, single buffered']
    #allocation6 [shape = 's32[1]{0}', space=sflag, size = 0x4, scoped, tag = 'scoped memory for _lambda_.1']
    #allocation7 [shape = 'u8[98304]{0}', space=vmem, size = 0x18000, scoped, tag = 'input window, operand 3, single buffered']
    #allocation8 [shape = 'u8[524288]{0}', space=vmem, size = 0x80000, scoped, tag = 'input window, operand 4, single buffered']
    #allocation9 [shape = 's32[1]{0}', space=sflag, size = 0x4, scoped, tag = 'scoped memory for _lambda_.1']
    #allocation10 [shape = 'u8[512]{0}', space=vmem, size = 0x400, scoped, tag = 'input window, operand 5, single buffered']
    #allocation11 [shape = 'u8[8192]{0}', space=vmem, size = 0x2000, scoped, tag = 'output window, operand 0']
    %11 = vsyncpa [#allocation3], 0
    %12 = vsyncpa [#allocation6], 0
    %13 = vsyncpa [#allocation9], 0
    %14 = vsyncpa [#allocation4], 0
    %s15 = scalar_lea.sflag [#allocation4], 1
    %16 = vsyncpa %s15, 0
    loop: start=0, step=1, limit=4
    $region2: #{_lambda_.1} parent=1 // loop_pre_header
      _
    $region3: #{_lambda_.1} parent=1 // loop_header
      %s18 = sphi 0, %s22
      %p19 = scmp.ge.s32.totalorder %s18, 4
      %s28 = sphi 0, %s30
      %s31 = sphi 0, %s28
      %s32 = sphi 0, %s31
      %s48 = sphi 0, %s32
      %s52 = sphi 0, %s52
      %s54 = sphi 0, %s52
      %s55 = sphi 0, %s54
      %s69 = sphi 0, %s55
      %s73 = sphi 0, %s73
      %s75 = sphi 0, %s73
      %s76 = sphi 0, %s75
      %s90 = sphi 0, %s76
      %s94 = sphi 0, %s94
      %s96 = sphi 0, %s94
      %s97 = sphi 0, %s96
      %s111 = sphi 0, %s97
      %s115 = sphi 0, %s115
      %s117 = sphi 0, %s115
      %s118 = sphi 0, %s117
      %s132 = sphi 0, %s118
      %s136 = sphi 0, %s136
      %s138 = sphi 0, %s136
      %s139 = sphi 0, %s138
      %s153 = sphi 0, %s139
      %s159 = sphi 0, %s161
      %s162 = sphi 0, %s159
      %s163 = sphi 0, %s162
      %s179 = sphi 0, %s163
    $region4: #{_lambda_.1} parent=1 // loop_header_branch
      %21 = sbr.rel (%p19) target = $region8
    $region5: #{_lambda_.1} parent=1 // loop_body
      %s23 = ssub.s32 %s18, 1
      %s24 = ssub.s32 %s18, 2
      %s25 = sadd.s32 %s18, 1
      %s26 = ssub.s32 %s18, %s25
      %p27 = scmp.eq.s32.totalorder %s26, 0
      %s29 = sadd.s32 %s28, 1
      %s30 = scalar_select %p27, %s28, %s29
      %p33 = pneg %p27
      %p34 = scmp.eq.s32.totalorder %s18, 1
      %p35 = por %p33, %p34
      %p36 = scmp.ne.s32.totalorder %s28, %s31
      %p37 = scmp.eq.s32.totalorder %s18, 0
      %p38 = por %p36, %p37
      %p39 = scmp.ne.s32.totalorder %s28, %s31
      %p40 = scmp.eq.s32.totalorder %s23, 1
      %p41 = por %p39, %p40
      %p42 = scmp.ne.s32.totalorder %s31, %s32
      %p43 = scmp.eq.s32.totalorder %s23, 0
      %p44 = por %p42, %p43
      %p45 = scmp.ne.s32.totalorder %s31, %s32
      %p46 = scmp.eq.s32.totalorder %s24, 1
      %p47 = por %p45, %p46
      %p49 = scmp.ne.s32.totalorder %s32, %s48
      %p50 = scmp.eq.s32.totalorder %s24, 0
      %p51 = por %p49, %p50
      %s53 = sadd.s32 %s52, 1
      %p56 = scmp.eq.s32.totalorder %s18, 1
      %p57 = scmp.ne.s32.totalorder %s52, %s54
      %p58 = scmp.eq.s32.totalorder %s18, 0
      %p59 = por %p57, %p58
      %p60 = scmp.ne.s32.totalorder %s52, %s54
      %p61 = scmp.eq.s32.totalorder %s23, 1
      %p62 = por %p60, %p61
      %p63 = scmp.ne.s32.totalorder %s54, %s55
      %p64 = scmp.eq.s32.totalorder %s23, 0
      %p65 = por %p63, %p64
      %p66 = scmp.ne.s32.totalorder %s54, %s55
      %p67 = scmp.eq.s32.totalorder %s24, 1
      %p68 = por %p66, %p67
      %p70 = scmp.ne.s32.totalorder %s55, %s69
      %p71 = scmp.eq.s32.totalorder %s24, 0
      %p72 = por %p70, %p71
      %s74 = sadd.s32 %s73, 1
      %p77 = scmp.eq.s32.totalorder %s18, 1
      %p78 = scmp.ne.s32.totalorder %s73, %s75
      %p79 = scmp.eq.s32.totalorder %s18, 0
      %p80 = por %p78, %p79
      %p81 = scmp.ne.s32.totalorder %s73, %s75
      %p82 = scmp.eq.s32.totalorder %s23, 1
      %p83 = por %p81, %p82
      %p84 = scmp.ne.s32.totalorder %s75, %s76
      %p85 = scmp.eq.s32.totalorder %s23, 0
      %p86 = por %p84, %p85
      %p87 = scmp.ne.s32.totalorder %s75, %s76
      %p88 = scmp.eq.s32.totalorder %s24, 1
      %p89 = por %p87, %p88
      %p91 = scmp.ne.s32.totalorder %s76, %s90
      %p92 = scmp.eq.s32.totalorder %s24, 0
      %p93 = por %p91, %p92
      %s95 = sadd.s32 %s94, 1
      %p98 = scmp.eq.s32.totalorder %s18, 1
      %p99 = scmp.ne.s32.totalorder %s94, %s96
      %p100 = scmp.eq.s32.totalorder %s18, 0
      %p101 = por %p99, %p100
      %p102 = scmp.ne.s32.totalorder %s94, %s96
      %p103 = scmp.eq.s32.totalorder %s23, 1
      %p104 = por %p102, %p103
      %p105 = scmp.ne.s32.totalorder %s96, %s97
      %p106 = scmp.eq.s32.totalorder %s23, 0
      %p107 = por %p105, %p106
      %p108 = scmp.ne.s32.totalorder %s96, %s97
      %p109 = scmp.eq.s32.totalorder %s24, 1
      %p110 = por %p108, %p109
      %p112 = scmp.ne.s32.totalorder %s97, %s111
      %p113 = scmp.eq.s32.totalorder %s24, 0
      %p114 = por %p112, %p113
      %s116 = sadd.s32 %s115, 1
      %p119 = scmp.eq.s32.totalorder %s18, 1
      %p120 = scmp.ne.s32.totalorder %s115, %s117
      %p121 = scmp.eq.s32.totalorder %s18, 0
      %p122 = por %p120, %p121
      %p123 = scmp.ne.s32.totalorder %s115, %s117
      %p124 = scmp.eq.s32.totalorder %s23, 1
      %p125 = por %p123, %p124
      %p126 = scmp.ne.s32.totalorder %s117, %s118
      %p127 = scmp.eq.s32.totalorder %s23, 0
      %p128 = por %p126, %p127
      %p129 = scmp.ne.s32.totalorder %s117, %s118
      %p130 = scmp.eq.s32.totalorder %s24, 1
      %p131 = por %p129, %p130
      %p133 = scmp.ne.s32.totalorder %s118, %s132
      %p134 = scmp.eq.s32.totalorder %s24, 0
      %p135 = por %p133, %p134
      %s137 = sadd.s32 %s136, 1
      %p140 = scmp.eq.s32.totalorder %s18, 1
      %p141 = scmp.ne.s32.totalorder %s136, %s138
      %p142 = scmp.eq.s32.totalorder %s18, 0
      %p143 = por %p141, %p142
      %p144 = scmp.ne.s32.totalorder %s136, %s138
      %p145 = scmp.eq.s32.totalorder %s23, 1
      %p146 = por %p144, %p145
      %p147 = scmp.ne.s32.totalorder %s138, %s139
      %p148 = scmp.eq.s32.totalorder %s23, 0
      %p149 = por %p147, %p148
      %p150 = scmp.ne.s32.totalorder %s138, %s139
      %p151 = scmp.eq.s32.totalorder %s24, 1
      %p152 = por %p150, %p151
      %p154 = scmp.ne.s32.totalorder %s139, %s153
      %p155 = scmp.eq.s32.totalorder %s24, 0
      %p156 = por %p154, %p155
      %s157 = ssub.s32 %s18, %s25
      %p158 = scmp.eq.s32.totalorder %s157, 0
      %s160 = sadd.s32 %s159, 1
      %s161 = scalar_select %p158, %s159, %s160
      %p164 = pneg %p158
      %p165 = scmp.eq.s32.totalorder %s18, 1
      %p166 = por %p164, %p165
      %p167 = scmp.ne.s32.totalorder %s159, %s162
      %p168 = scmp.eq.s32.totalorder %s18, 0
      %p169 = por %p167, %p168
      %p170 = scmp.ne.s32.totalorder %s159, %s162
      %p171 = scmp.eq.s32.totalorder %s23, 1
      %p172 = por %p170, %p171
      %p173 = scmp.ne.s32.totalorder %s162, %s163
      %p174 = scmp.eq.s32.totalorder %s23, 0
      %p175 = por %p173, %p174
      %p176 = scmp.ne.s32.totalorder %s162, %s163
      %p177 = scmp.eq.s32.totalorder %s24, 1
      %p178 = por %p176, %p177
      %p180 = scmp.ne.s32.totalorder %s163, %s179
      %p181 = scmp.eq.s32.totalorder %s24, 0
      %p182 = por %p180, %p181
      %p183 = scmp.le.s32.totalorder 1, %s18
      %p184 = scmp.lt.s32.totalorder %s18, 3
      %p185 = pnand %p183, %p184
      %p186 = pneg %p185
      // Predicated region
      $region9: #{_lambda_.1} parent=5 // pred_check
        _
      $region10: #{_lambda_.1} parent=5 // pred_check_branch
        %188 = sbr.rel (%p185) target = $region12
      $region11: #{_lambda_.1} parent=5 // pred_region
        %s189 = ssub.s32 %s18, 1
        // Predicated region
        $region13: #{_lambda_.1} parent=11 // pred_check
          %p190 = pneg %p65
        $region14: #{_lambda_.1} parent=11 // pred_check_branch
          %192 = sbr.rel (%p190) target = $region16
        $region15: #{_lambda_.1} parent=11 // pred_region
          %s194 = ssub.s32 73728, 73728
          %195 = vsyncadd [#allocation3], %s194
          %s196 = sshll.u32 [#allocation2], 4
          %s197 = int_to_ptr.vmem [resolvable:$true] %s196
          %202 = dma.hbm_to_vmem [thread:$0]  %s1, 73728, %s197, [#allocation3], 128, 128, 8
        $region16: #{_lambda_.1} parent=11 // pred_fallthru
          _
        // Predicated region
        $region17: #{_lambda_.1} parent=11 // pred_check
          %p203 = pneg %p86
        $region18: #{_lambda_.1} parent=11 // pred_check_branch
          %205 = sbr.rel (%p203) target = $region20
        $region19: #{_lambda_.1} parent=11 // pred_region
          %s207 = ssub.s32 64, 64
          %208 = vsyncadd [#allocation6], %s207
          %s209 = sshll.u32 [#allocation5], 4
          %s210 = int_to_ptr.vmem [resolvable:$true] %s209
          %215 = dma.hbm_to_vmem [thread:$0]  %s2, 64, %s210, [#allocation6], 16, 16, 1
        $region20: #{_lambda_.1} parent=11 // pred_fallthru
          _
        // Predicated region
        $region21: #{_lambda_.1} parent=11 // pred_check
          %p216 = pneg %p107
        $region22: #{_lambda_.1} parent=11 // pred_check_branch
          %218 = sbr.rel (%p216) target = $region24
        $region23: #{_lambda_.1} parent=11 // pred_region
          %s220 = ssub.s32 3072, 3072
          %221 = vsyncadd [#allocation6], %s220
          %s222 = sshll.u32 [#allocation7], 4
          %s223 = int_to_ptr.vmem [resolvable:$true] %s222
          %228 = dma.hbm_to_vmem [thread:$0]  %s3, 3072, %s223, [#allocation6], 128, 128, 8
        $region24: #{_lambda_.1} parent=11 // pred_fallthru
          _
        // Predicated region
        $region25: #{_lambda_.1} parent=11 // pred_check
          %p229 = pneg %p128
        $region26: #{_lambda_.1} parent=11 // pred_check_branch
          %231 = sbr.rel (%p229) target = $region28
        $region27: #{_lambda_.1} parent=11 // pred_region
          %s233 = ssub.s32 16384, 16384
          %234 = vsyncadd [#allocation9], %s233
          %s235 = sshll.u32 [#allocation8], 4
          %s236 = int_to_ptr.vmem [resolvable:$true] %s235
          %241 = dma.hbm_to_vmem [thread:$0]  %s4, 16384, %s236, [#allocation9], 128, 128, 8
        $region28: #{_lambda_.1} parent=11 // pred_fallthru
          _
        // Predicated region
        $region29: #{_lambda_.1} parent=11 // pred_check
          %p242 = pneg %p149
        $region30: #{_lambda_.1} parent=11 // pred_check_branch
          %244 = sbr.rel (%p242) target = $region32
        $region31: #{_lambda_.1} parent=11 // pred_region
          %s246 = ssub.s32 16, 16
          %247 = vsyncadd [#allocation9], %s246
          %s249 = sshll.u32 [#allocation10], 4
          %s250 = int_to_ptr.vmem [resolvable:$true] %s249
          %252 = dma.hbm_to_vmem [thread:$0]  %s5, 16, %s250, [#allocation9]
        $region32: #{_lambda_.1} parent=11 // pred_fallthru
          _
      $region12: #{_lambda_.1} parent=5 // pred_fallthru
        _
      %p253 = scmp.lt.s32.totalorder %s18, 2
      // Predicated region
      $region33: #{_lambda_.1} parent=5 // pred_check
        %p254 = pneg %p253
      $region34: #{_lambda_.1} parent=5 // pred_check_branch
        %256 = sbr.rel (%p254) target = $region36
      $region35: #{_lambda_.1} parent=5 // pred_region
        // Predicated region
        $region37: #{_lambda_.1} parent=35 // pred_check
          %p257 = pneg %p38
        $region38: #{_lambda_.1} parent=35 // pred_check_branch
          %259 = sbr.rel (%p257) target = $region40
        $region39: #{_lambda_.1} parent=35 // pred_region
          %p260 = scmp.lt.s32.totalorder %s18, 1
          %s261 = scalar_select %p260, %s18, 1
          %s262 = smul.addr %s261, 8
          %s263 = smul.addr %s262, 8
          %s264 = scalar_lea.vmem %s0, %s263
        $region40: #{_lambda_.1} parent=35 // pred_fallthru
          _
      $region36: #{_lambda_.1} parent=5 // pred_fallthru
        _
      %p265 = scmp.le.s32.totalorder 1, %s18
      %p266 = scmp.lt.s32.totalorder %s18, 3
      %p267 = pnand %p265, %p266
      %p268 = pneg %p267
      // Predicated region
      $region41: #{_lambda_.1} parent=5 // pred_check
        _
      $region42: #{_lambda_.1} parent=5 // pred_check_branch
        %270 = sbr.rel (%p267) target = $region44
      $region43: #{_lambda_.1} parent=5 // pred_region
        %s271 = ssub.s32 %s18, 1
        // Predicated region
        $region45: #{_lambda_.1} parent=43 // pred_check
          %p272 = pneg %p65
        $region46: #{_lambda_.1} parent=43 // pred_check_branch
          %274 = sbr.rel (%p272) target = $region48
        $region47: #{_lambda_.1} parent=43 // pred_region
          %275 = dma.done [#allocation3], 73728
        $region48: #{_lambda_.1} parent=43 // pred_fallthru
          _
        // Predicated region
        $region49: #{_lambda_.1} parent=43 // pred_check
          %p276 = pneg %p86
        $region50: #{_lambda_.1} parent=43 // pred_check_branch
          %278 = sbr.rel (%p276) target = $region52
        $region51: #{_lambda_.1} parent=43 // pred_region
          %279 = dma.done [#allocation6], 64
        $region52: #{_lambda_.1} parent=43 // pred_fallthru
          _
        // Predicated region
        $region53: #{_lambda_.1} parent=43 // pred_check
          %p280 = pneg %p107
        $region54: #{_lambda_.1} parent=43 // pred_check_branch
          %282 = sbr.rel (%p280) target = $region56
        $region55: #{_lambda_.1} parent=43 // pred_region
          %283 = dma.done [#allocation6], 3072
        $region56: #{_lambda_.1} parent=43 // pred_fallthru
          _
        // Predicated region
        $region57: #{_lambda_.1} parent=43 // pred_check
          %p284 = pneg %p128
        $region58: #{_lambda_.1} parent=43 // pred_check_branch
          %286 = sbr.rel (%p284) target = $region60
        $region59: #{_lambda_.1} parent=43 // pred_region
          %287 = dma.done [#allocation9], 16384
        $region60: #{_lambda_.1} parent=43 // pred_fallthru
          _
        // Predicated region
        $region61: #{_lambda_.1} parent=43 // pred_check
          %p288 = pneg %p149
        $region62: #{_lambda_.1} parent=43 // pred_check_branch
          %290 = sbr.rel (%p288) target = $region64
        $region63: #{_lambda_.1} parent=43 // pred_region
          %291 = dma.done [#allocation9], 16
        $region64: #{_lambda_.1} parent=43 // pred_fallthru
          _
        %p292 = scmp.lt.s32.totalorder %s23, 1
        %s293 = scalar_select %p292, %s23, 1
        %s294 = smul.addr %s293, 8
        %s295 = smul.addr %s294, 8
        %s296 = scalar_lea.vmem %s0, %s295
        %p297 = pneg %p44
        %p298 = pneg %p41
        %p299 = pneg %p65
        %p300 = pneg %p62
        %p301 = pneg %p86
        %p302 = pneg %p83
        %p303 = pneg %p107
        %p304 = pneg %p104
        %p305 = pneg %p128
        %p306 = pneg %p125
        %p307 = pneg %p149
        %p308 = pneg %p146
        %p309 = pneg %p175
        %p310 = pneg %p172
        %s311 = sand.u32 %s162, 1
        %s312 = scalar_lea.sflag [#allocation4], %s311
        %s313 = sand.u32 %s162, 1
        %s314 = smul.addr %s313, 8
        %s315 = scalar_lea.vmem [#allocation11], %s314
        %p316 = scmp.lt.s32.totalorder %s23, 1
        %s317 = scalar_select %p316, %s23, 1
        %s318 = smul.addr %s317, 8
        %s319 = smul.addr %s318, 8
        %s320 = scalar_lea.vmem %s0, %s319
        %v321 = vld [vmem:[%s320] sm:$0xff]
        %v322 = vld [vmem:[%s320 + $0x8] sm:$0xff]
        %v323 = vld [vmem:[%s320 + $0x10] sm:$0xff]
        %v324 = vld [vmem:[%s320 + $0x18] sm:$0xff]
        %v325 = vld [vmem:[%s320 + $0x20] sm:$0xff]
        %v326 = vld [vmem:[%s320 + $0x28] sm:$0xff]
        %v327 = vld [vmem:[%s320 + $0x30] sm:$0xff]
        %v328 = vld [vmem:[%s320 + $0x38] sm:$0xff]
        %v329 = vld [vmem:[#allocation2] sm:$0xff]
        %v330 = vld [vmem:[#allocation2 + $0x8] sm:$0xff]
        %v331 = vld [vmem:[#allocation2 + $0x10] sm:$0xff]
        %v332 = vld [vmem:[#allocation2 + $0x18] sm:$0xff]
        %v333 = vld [vmem:[#allocation2 + $0x20] sm:$0xff]
        %v334 = vld [vmem:[#allocation2 + $0x28] sm:$0xff]
        %v335 = vld [vmem:[#allocation2 + $0x30] sm:$0xff]
        %v336 = vld [vmem:[#allocation2 + $0x38] sm:$0xff]
        %v337 = vld [vmem:[#allocation2 + $0x40] sm:$0xff]
        %v338 = vld [vmem:[#allocation2 + $0x48] sm:$0xff]
        %v339 = vld [vmem:[#allocation2 + $0x50] sm:$0xff]
        %v340 = vld [vmem:[#allocation2 + $0x58] sm:$0xff]
        %v341 = vld [vmem:[#allocation2 + $0x60] sm:$0xff]
        %v342 = vld [vmem:[#allocation2 + $0x68] sm:$0xff]
        %v343 = vld [vmem:[#allocation2 + $0x70] sm:$0xff]
        %v344 = vld [vmem:[#allocation2 + $0x78] sm:$0xff]
        %s345 = scalar_lea.vmem [#allocation2], 128
        %v346 = vld [vmem:[%s345] sm:$0xff]
        %v347 = vld [vmem:[%s345 + $0x8] sm:$0xff]
        %v348 = vld [vmem:[%s345 + $0x10] sm:$0xff]
        %v349 = vld [vmem:[%s345 + $0x18] sm:$0xff]
        %v350 = vld [vmem:[%s345 + $0x20] sm:$0xff]
        %v351 = vld [vmem:[%s345 + $0x28] sm:$0xff]
        %v352 = vld [vmem:[%s345 + $0x30] sm:$0xff]
        %v353 = vld [vmem:[%s345 + $0x38] sm:$0xff]
        %v354 = vld [vmem:[%s345 + $0x40] sm:$0xff]
        %v355 = vld [vmem:[%s345 + $0x48] sm:$0xff]
        %v356 = vld [vmem:[%s345 + $0x50] sm:$0xff]
        %v357 = vld [vmem:[%s345 + $0x58] sm:$0xff]
        %v358 = vld [vmem:[%s345 + $0x60] sm:$0xff]
        %v359 = vld [vmem:[%s345 + $0x68] sm:$0xff]
        %v360 = vld [vmem:[%s345 + $0x70] sm:$0xff]
        %v361 = vld [vmem:[%s345 + $0x78] sm:$0xff]
        %362 = vmatprep.subr.mxu0 0.0
        %363 = vmatpush1.msra.mxu0 %v346
        %364 = vmatprep.subr.mxu0 0.0
        %365 = vmatpush1.msra.mxu0 %v347
        %366 = vmatprep.subr.mxu0 0.0
        %367 = vmatpush1.msra.mxu0 %v348
        %368 = vmatprep.subr.mxu0 0.0
        %369 = vmatpush1.msra.mxu0 %v349
        %370 = vmatprep.subr.mxu0 0.0
        %371 = vmatpush1.msra.mxu0 %v350
        %372 = vmatprep.subr.mxu0 0.0
        %373 = vmatpush1.msra.mxu0 %v351
        %374 = vmatprep.subr.mxu0 0.0
        %375 = vmatpush1.msra.mxu0 %v352
        %376 = vmatprep.subr.mxu0 0.0
        %377 = vmatpush1.msra.mxu0 %v353
        %378 = vmatprep.subr.mxu0 0.0
        %379 = vmatpush1.msra.mxu0 %v354
        %380 = vmatprep.subr.mxu0 0.0
        %381 = vmatpush1.msra.mxu0 %v355
        %382 = vmatprep.subr.mxu0 0.0
        %383 = vmatpush1.msra.mxu0 %v356
        %384 = vmatprep.subr.mxu0 0.0
        %385 = vmatpush1.msra.mxu0 %v357
        %386 = vmatprep.subr.mxu0 0.0
        %387 = vmatpush1.msra.mxu0 %v358
        %388 = vmatprep.subr.mxu0 0.0
        %389 = vmatpush1.msra.mxu0 %v359
        %390 = vmatprep.subr.mxu0 0.0
        %391 = vmatpush1.msra.mxu0 %v360
        %392 = vmatprep.subr.mxu0 0.0
        %393 = vmatpush1.msra.mxu0 %v361
        %394 = vmatprep.subr.mxu0 0.0
        %395 = vmatpush1.msra.mxu0 0.0
        %396 = vmatprep.subr.mxu0 0.0
        %397 = vmatpush1.msra.mxu0 0.0
        %398 = vmatprep.subr.mxu0 0.0
        %399 = vmatpush1.msra.mxu0 0.0
        %400 = vmatprep.subr.mxu0 0.0
        %401 = vmatpush1.msra.mxu0 0.0
        %402 = vmatprep.subr.mxu0 0.0
        %403 = vmatpush1.msra.mxu0 0.0
        %404 = vmatprep.subr.mxu0 0.0
        %405 = vmatpush1.msra.mxu0 0.0
        %406 = vmatprep.subr.mxu0 0.0
        %407 = vmatpush1.msra.mxu0 0.0
        %408 = vmatprep.subr.mxu0 0.0
        %409 = vmatpush1.msra.mxu0 0.0
        %410 = vmatprep.subr.mxu0 0.0
        %411 = vmatpush1.msra.mxu0 0.0
        %412 = vmatprep.subr.mxu0 0.0
        %413 = vmatpush1.msra.mxu0 0.0
        %414 = vmatprep.subr.mxu0 0.0
        %415 = vmatpush1.msra.mxu0 0.0
        %416 = vmatprep.subr.mxu0 0.0
        %417 = vmatpush1.msra.mxu0 0.0
        %418 = vmatprep.subr.mxu0 0.0
        %419 = vmatpush1.msra.mxu0 0.0
        %420 = vmatprep.subr.mxu0 0.0
        %421 = vmatpush1.msra.mxu0 0.0
        %422 = vmatprep.subr.mxu0 0.0
        %423 = vmatpush1.msra.mxu0 0.0
        %424 = vmatprep.subr.mxu0 0.0
        %425 = vmatpush1.msra.mxu0 0.0
        %426 = vmatprep.mubr.f32.mxu0 0.0
        %427 = vmatmul.mubr.f32.gmra.mrb[0].mxu0 %v321
        %v428 = vpop.f32.mrb[0].mxu0
        %v429 = vadd.f32 0.0, %v428
        %v430 = vpop.f32.mrb[0].mxu0
        %431 = vmatprep.mubr.f32.mxu0 0.0
        %432 = vmatmul.mubr.f32.gmra.mrb[0].mxu0 %v322
        %v433 = vpop.f32.mrb[0].mxu0
        %v434 = vadd.f32 0.0, %v433
        %v435 = vpop.f32.mrb[0].mxu0
        %436 = vmatprep.mubr.f32.mxu0 0.0
        %437 = vmatmul.mubr.f32.gmra.mrb[0].mxu0 %v323
        %v438 = vpop.f32.mrb[0].mxu0
        %v439 = vadd.f32 0.0, %v438
        %v440 = vpop.f32.mrb[0].mxu0
        %441 = vmatprep.mubr.f32.mxu0 0.0
        %442 = vmatmul.mubr.f32.gmra.mrb[0].mxu0 %v324
        %v443 = vpop.f32.mrb[0].mxu0
        %v444 = vadd.f32 0.0, %v443
        %v445 = vpop.f32.mrb[0].mxu0
        %446 = vmatprep.mubr.f32.mxu0 0.0
        %447 = vmatmul.mubr.f32.gmra.mrb[0].mxu0 %v325
        %v448 = vpop.f32.mrb[0].mxu0
        %v449 = vadd.f32 0.0, %v448
        %v450 = vpop.f32.mrb[0].mxu0
        %451 = vmatprep.mubr.f32.mxu0 0.0
        %452 = vmatmul.mubr.f32.gmra.mrb[0].mxu0 %v326
        %v453 = vpop.f32.mrb[0].mxu0
        %v454 = vadd.f32 0.0, %v453
        %v455 = vpop.f32.mrb[0].mxu0
        %456 = vmatprep.mubr.f32.mxu0 0.0
        %457 = vmatmul.mubr.f32.gmra.mrb[0].mxu0 %v327
        %v458 = vpop.f32.mrb[0].mxu0
        %v459 = vadd.f32 0.0, %v458
        %v460 = vpop.f32.mrb[0].mxu0
        %461 = vmatprep.mubr.f32.mxu0 0.0
        %462 = vmatmul.mubr.f32.gmra.mrb[0].mxu0 %v328
        %v463 = vpop.f32.mrb[0].mxu0
        %v464 = vadd.f32 0.0, %v463
        %v465 = vpop.f32.mrb[0].mxu0
        %466 = vdwg.mxu0
        %467 = vmatprep.subr.mxu0 0.0
        %468 = vmatpush1.msra.mxu0 %v329
        %469 = vmatprep.subr.mxu0 0.0
        %470 = vmatpush1.msra.mxu0 %v330
        %471 = vmatprep.subr.mxu0 0.0
        %472 = vmatpush1.msra.mxu0 %v331
        %473 = vmatprep.subr.mxu0 0.0
        %474 = vmatpush1.msra.mxu0 %v332
        %475 = vmatprep.subr.mxu0 0.0
        %476 = vmatpush1.msra.mxu0 %v333
        %477 = vmatprep.subr.mxu0 0.0
        %478 = vmatpush1.msra.mxu0 %v334
        %479 = vmatprep.subr.mxu0 0.0
        %480 = vmatpush1.msra.mxu0 %v335
        %481 = vmatprep.subr.mxu0 0.0
        %482 = vmatpush1.msra.mxu0 %v336
        %483 = vmatprep.subr.mxu0 0.0
        %484 = vmatpush1.msra.mxu0 %v337
        %485 = vmatprep.subr.mxu0 0.0
        %486 = vmatpush1.msra.mxu0 %v338
        %487 = vmatprep.subr.mxu0 0.0
        %488 = vmatpush1.msra.mxu0 %v339
        %489 = vmatprep.subr.mxu0 0.0
        %490 = vmatpush1.msra.mxu0 %v340
        %491 = vmatprep.subr.mxu0 0.0
        %492 = vmatpush1.msra.mxu0 %v341
        %493 = vmatprep.subr.mxu0 0.0
        %494 = vmatpush1.msra.mxu0 %v342
        %495 = vmatprep.subr.mxu0 0.0
        %496 = vmatpush1.msra.mxu0 %v343
        %497 = vmatprep.subr.mxu0 0.0
        %498 = vmatpush1.msra.mxu0 %v344
        %499 = vmatprep.subr.mxu0 0.0
        %500 = vmatpush1.msra.mxu0 0.0
        %501 = vmatprep.subr.mxu0 0.0
        %502 = vmatpush1.msra.mxu0 0.0
        %503 = vmatprep.subr.mxu0 0.0
        %504 = vmatpush1.msra.mxu0 0.0
        %505 = vmatprep.subr.mxu0 0.0
        %506 = vmatpush1.msra.mxu0 0.0
        %507 = vmatprep.subr.mxu0 0.0
        %508 = vmatpush1.msra.mxu0 0.0
        %509 = vmatprep.subr.mxu0 0.0
        %510 = vmatpush1.msra.mxu0 0.0
        %511 = vmatprep.subr.mxu0 0.0
        %512 = vmatpush1.msra.mxu0 0.0
        %513 = vmatprep.subr.mxu0 0.0
        %514 = vmatpush1.msra.mxu0 0.0
        %515 = vmatprep.subr.mxu0 0.0
        %516 = vmatpush1.msra.mxu0 0.0
        %517 = vmatprep.subr.mxu0 0.0
        %518 = vmatpush1.msra.mxu0 0.0
        %519 = vmatprep.subr.mxu0 0.0
        %520 = vmatpush1.msra.mxu0 0.0
        %521 = vmatprep.subr.mxu0 0.0
        %522 = vmatpush1.msra.mxu0 0.0
        %523 = vmatprep.subr.mxu0 0.0
        %524 = vmatpush1.msra.mxu0 0.0
        %525 = vmatprep.subr.mxu0 0.0
        %526 = vmatpush1.msra.mxu0 0.0
        %527 = vmatprep.subr.mxu0 0.0
        %528 = vmatpush1.msra.mxu0 0.0
        %529 = vmatprep.subr.mxu0 0.0
        %530 = vmatpush1.msra.mxu0 0.0
        %531 = vmatprep.mubr.f32.mxu0 0.0
        %532 = vmatmul.mubr.f32.gmra.mrb[0].mxu0 0.0
        %v533 = vpop.f32.mrb[0].mxu0
        %v534 = vadd.f32 %v429, %v533
        %v535 = vpop.f32.mrb[0].mxu0
        %536 = vmatprep.mubr.f32.mxu0 0.0
        %537 = vmatmul.mubr.f32.gmra.mrb[0].mxu0 %v321
        %v538 = vpop.f32.mrb[0].mxu0
        %v539 = vadd.f32 %v434, %v538
        %v540 = vpop.f32.mrb[0].mxu0
        %541 = vmatprep.mubr.f32.mxu0 0.0
        %542 = vmatmul.mubr.f32.gmra.mrb[0].mxu0 %v322
        %v543 = vpop.f32.mrb[0].mxu0
        %v544 = vadd.f32 %v439, %v543
        %v545 = vpop.f32.mrb[0].mxu0
        %546 = vmatprep.mubr.f32.mxu0 0.0
        %547 = vmatmul.mubr.f32.gmra.mrb[0].mxu0 %v323
        %v548 = vpop.f32.mrb[0].mxu0
        %v549 = vadd.f32 %v444, %v548
        %v550 = vpop.f32.mrb[0].mxu0
        %551 = vmatprep.mubr.f32.mxu0 0.0
        %552 = vmatmul.mubr.f32.gmra.mrb[0].mxu0 %v324
        %v553 = vpop.f32.mrb[0].mxu0
        %v554 = vadd.f32 %v449, %v553
        %v555 = vpop.f32.mrb[0].mxu0
        %556 = vmatprep.mubr.f32.mxu0 0.0
        %557 = vmatmul.mubr.f32.gmra.mrb[0].mxu0 %v325
        %v558 = vpop.f32.mrb[0].mxu0
        %v559 = vadd.f32 %v454, %v558
        %v560 = vpop.f32.mrb[0].mxu0
        %561 = vmatprep.mubr.f32.mxu0 0.0
        %562 = vmatmul.mubr.f32.gmra.mrb[0].mxu0 %v326
        %v563 = vpop.f32.mrb[0].mxu0
        %v564 = vadd.f32 %v459, %v563
        %v565 = vpop.f32.mrb[0].mxu0
        %566 = vmatprep.mubr.f32.mxu0 0.0
        %567 = vmatmul.mubr.f32.gmra.mrb[0].mxu0 %v327
        %v568 = vpop.f32.mrb[0].mxu0
        %v569 = vadd.f32 %v464, %v568
        %v570 = vpop.f32.mrb[0].mxu0
        %571 = vdwg.mxu0
        %s572 = scalar_lea.vmem [#allocation2], 256
        %v573 = vld [vmem:[%s572] sm:$0xff]
        %v574 = vld [vmem:[%s572 + $0x8] sm:$0xff]
        %v575 = vld [vmem:[%s572 + $0x10] sm:$0xff]
        %v576 = vld [vmem:[%s572 + $0x18] sm:$0xff]
        %v577 = vld [vmem:[%s572 + $0x20] sm:$0xff]
        %v578 = vld [vmem:[%s572 + $0x28] sm:$0xff]
        %v579 = vld [vmem:[%s572 + $0x30] sm:$0xff]
        %v580 = vld [vmem:[%s572 + $0x38] sm:$0xff]
        %v581 = vld [vmem:[%s572 + $0x40] sm:$0xff]
        %v582 = vld [vmem:[%s572 + $0x48] sm:$0xff]
        %v583 = vld [vmem:[%s572 + $0x50] sm:$0xff]
        %v584 = vld [vmem:[%s572 + $0x58] sm:$0xff]
        %v585 = vld [vmem:[%s572 + $0x60] sm:$0xff]
        %v586 = vld [vmem:[%s572 + $0x68] sm:$0xff]
        %v587 = vld [vmem:[%s572 + $0x70] sm:$0xff]
        %v588 = vld [vmem:[%s572 + $0x78] sm:$0xff]
        %589 = vmatprep.subr.mxu0 0.0
        %590 = vmatpush1.msra.mxu0 %v573
        %591 = vmatprep.subr.mxu0 0.0
        %592 = vmatpush1.msra.mxu0 %v574
        %593 = vmatprep.subr.mxu0 0.0
        %594 = vmatpush1.msra.mxu0 %v575
        %595 = vmatprep.subr.mxu0 0.0
        %596 = vmatpush1.msra.mxu0 %v576
        %597 = vmatprep.subr.mxu0 0.0
        %598 = vmatpush1.msra.mxu0 %v577
        %599 = vmatprep.subr.mxu0 0.0
        %600 = vmatpush1.msra.mxu0 %v578
        %601 = vmatprep.subr.mxu0 0.0
        %602 = vmatpush1.msra.mxu0 %v579
        %603 = vmatprep.subr.mxu0 0.0
        %604 = vmatpush1.msra.mxu0 %v580
        %605 = vmatprep.subr.mxu0 0.0
        %606 = vmatpush1.msra.mxu0 %v581
        %607 = vmatprep.subr.mxu0 0.0
        %608 = vmatpush1.msra.mxu0 %v582
        %609 = vmatprep.subr.mxu0 0.0
        %610 = vmatpush1.msra.mxu0 %v583
        %611 = vmatprep.subr.mxu0 0.0
        %612 = vmatpush1.msra.mxu0 %v584
        %613 = vmatprep.subr.mxu0 0.0
        %614 = vmatpush1.msra.mxu0 %v585
        %615 = vmatprep.subr.mxu0 0.0
        %616 = vmatpush1.msra.mxu0 %v586
        %617 = vmatprep.subr.mxu0 0.0
        %618 = vmatpush1.msra.mxu0 %v587
        %619 = vmatprep.subr.mxu0 0.0
        %620 = vmatpush1.msra.mxu0 %v588
        %621 = vmatprep.subr.mxu0 0.0
        %622 = vmatpush1.msra.mxu0 0.0
        %623 = vmatprep.subr.mxu0 0.0
        %624 = vmatpush1.msra.mxu0 0.0
        %625 = vmatprep.subr.mxu0 0.0
        %626 = vmatpush1.msra.mxu0 0.0
        %627 = vmatprep.subr.mxu0 0.0
        %628 = vmatpush1.msra.mxu0 0.0
        %629 = vmatprep.subr.mxu0 0.0
        %630 = vmatpush1.msra.mxu0 0.0
        %631 = vmatprep.subr.mxu0 0.0
        %632 = vmatpush1.msra.mxu0 0.0
        %633 = vmatprep.subr.mxu0 0.0
        %634 = vmatpush1.msra.mxu0 0.0
        %635 = vmatprep.subr.mxu0 0.0
        %636 = vmatpush1.msra.mxu0 0.0
        %637 = vmatprep.subr.mxu0 0.0
        %638 = vmatpush1.msra.mxu0 0.0
        %639 = vmatprep.subr.mxu0 0.0
        %640 = vmatpush1.msra.mxu0 0.0
        %641 = vmatprep.subr.mxu0 0.0
        %642 = vmatpush1.msra.mxu0 0.0
        %643 = vmatprep.subr.mxu0 0.0
        %644 = vmatpush1.msra.mxu0 0.0
        %645 = vmatprep.subr.mxu0 0.0
        %646 = vmatpush1.msra.mxu0 0.0
        %647 = vmatprep.subr.mxu0 0.0
        %648 = vmatpush1.msra.mxu0 0.0
        %649 = vmatprep.subr.mxu0 0.0
        %650 = vmatpush1.msra.mxu0 0.0
        %651 = vmatprep.subr.mxu0 0.0
        %652 = vmatpush1.msra.mxu0 0.0
        %653 = vmatprep.mubr.f32.mxu0 0.0
        %654 = vmatmul.mubr.f32.gmra.mrb[0].mxu0 %v322
        %v655 = vpop.f32.mrb[0].mxu0
        %v656 = vadd.f32 0.0, %v655
        %v657 = vpop.f32.mrb[0].mxu0
        %658 = vmatprep.mubr.f32.mxu0 0.0
        %659 = vmatmul.mubr.f32.gmra.mrb[0].mxu0 %v323
        %v660 = vpop.f32.mrb[0].mxu0
        %v661 = vadd.f32 0.0, %v660
        %v662 = vpop.f32.mrb[0].mxu0
        %663 = vmatprep.mubr.f32.mxu0 0.0
        %664 = vmatmul.mubr.f32.gmra.mrb[0].mxu0 %v324
        %v665 = vpop.f32.mrb[0].mxu0
        %v666 = vadd.f32 0.0, %v665
        %v667 = vpop.f32.mrb[0].mxu0
        %668 = vmatprep.mubr.f32.mxu0 0.0
        %669 = vmatmul.mubr.f32.gmra.mrb[0].mxu0 %v325
        %v670 = vpop.f32.mrb[0].mxu0
        %v671 = vadd.f32 0.0, %v670
        %v672 = vpop.f32.mrb[0].mxu0
        %673 = vmatprep.mubr.f32.mxu0 0.0
        %674 = vmatmul.mubr.f32.gmra.mrb[0].mxu0 %v326
        %v675 = vpop.f32.mrb[0].mxu0
        %v676 = vadd.f32 0.0, %v675
        %v677 = vpop.f32.mrb[0].mxu0
        %678 = vmatprep.mubr.f32.mxu0 0.0
        %679 = vmatmul.mubr.f32.gmra.mrb[0].mxu0 %v327
        %v680 = vpop.f32.mrb[0].mxu0
        %v681 = vadd.f32 0.0, %v680
        %v682 = vpop.f32.mrb[0].mxu0
        %683 = vmatprep.mubr.f32.mxu0 0.0
        %684 = vmatmul.mubr.f32.gmra.mrb[0].mxu0 %v328
        %v685 = vpop.f32.mrb[0].mxu0
        %v686 = vadd.f32 0.0, %v685
        %v687 = vpop.f32.mrb[0].mxu0
        %688 = vmatprep.mubr.f32.mxu0 0.0
        %689 = vmatmul.mubr.f32.gmra.mrb[0].mxu0 0.0
        %v690 = vpop.f32.mrb[0].mxu0
        %v691 = vadd.f32 0.0, %v690
        %v692 = vpop.f32.mrb[0].mxu0
        %693 = vdwg.mxu0
        %v694 = vadd.f32 %v534, %v656
        %v695 = vadd.f32 %v539, %v661
        %v696 = vadd.f32 %v544, %v666
        %v697 = vadd.f32 %v549, %v671
        %v698 = vadd.f32 %v554, %v676
        %v699 = vadd.f32 %v559, %v681
        %v700 = vadd.f32 %v564, %v686
        %v701 = vadd.f32 %v569, %v691
        %v702 = vld [vmem:[#allocation7] sm:$0xff]
        %v703 = vld [vmem:[#allocation7 + $0x8] sm:$0xff]
        %v704 = vld [vmem:[#allocation7 + $0x10] sm:$0xff]
        %v705 = vld [vmem:[#allocation7 + $0x18] sm:$0xff]
        %v706 = vld [vmem:[#allocation7 + $0x20] sm:$0xff]
        %v707 = vld [vmem:[#allocation7 + $0x28] sm:$0xff]
        %v708 = vld [vmem:[#allocation7 + $0x30] sm:$0xff]
        %v709 = vld [vmem:[#allocation7 + $0x38] sm:$0xff]
        %s710 = scalar_lea.vmem [#allocation2], 384
        %v711 = vld [vmem:[%s710] sm:$0xff]
        %v712 = vld [vmem:[%s710 + $0x8] sm:$0xff]
        %v713 = vld [vmem:[%s710 + $0x10] sm:$0xff]
        %v714 = vld [vmem:[%s710 + $0x18] sm:$0xff]
        %v715 = vld [vmem:[%s710 + $0x20] sm:$0xff]
        %v716 = vld [vmem:[%s710 + $0x28] sm:$0xff]
        %v717 = vld [vmem:[%s710 + $0x30] sm:$0xff]
        %v718 = vld [vmem:[%s710 + $0x38] sm:$0xff]
        %v719 = vld [vmem:[%s710 + $0x40] sm:$0xff]
        %v720 = vld [vmem:[%s710 + $0x48] sm:$0xff]
        %v721 = vld [vmem:[%s710 + $0x50] sm:$0xff]
        %v722 = vld [vmem:[%s710 + $0x58] sm:$0xff]
        %v723 = vld [vmem:[%s710 + $0x60] sm:$0xff]
        %v724 = vld [vmem:[%s710 + $0x68] sm:$0xff]
        %v725 = vld [vmem:[%s710 + $0x70] sm:$0xff]
        %v726 = vld [vmem:[%s710 + $0x78] sm:$0xff]
        %s727 = scalar_lea.vmem [#allocation2], 512
        %v728 = vld [vmem:[%s727] sm:$0xff]
        %v729 = vld [vmem:[%s727 + $0x8] sm:$0xff]
        %v730 = vld [vmem:[%s727 + $0x10] sm:$0xff]
        %v731 = vld [vmem:[%s727 + $0x18] sm:$0xff]
        %v732 = vld [vmem:[%s727 + $0x20] sm:$0xff]
        %v733 = vld [vmem:[%s727 + $0x28] sm:$0xff]
        %v734 = vld [vmem:[%s727 + $0x30] sm:$0xff]
        %v735 = vld [vmem:[%s727 + $0x38] sm:$0xff]
        %v736 = vld [vmem:[%s727 + $0x40] sm:$0xff]
        %v737 = vld [vmem:[%s727 + $0x48] sm:$0xff]
        %v738 = vld [vmem:[%s727 + $0x50] sm:$0xff]
        %v739 = vld [vmem:[%s727 + $0x58] sm:$0xff]
        %v740 = vld [vmem:[%s727 + $0x60] sm:$0xff]
        %v741 = vld [vmem:[%s727 + $0x68] sm:$0xff]
        %v742 = vld [vmem:[%s727 + $0x70] sm:$0xff]
        %v743 = vld [vmem:[%s727 + $0x78] sm:$0xff]
        %744 = vmatprep.subr.mxu0 0.0
        %745 = vmatpush1.msra.mxu0 %v728
        %746 = vmatprep.subr.mxu0 0.0
        %747 = vmatpush1.msra.mxu0 %v729
        %748 = vmatprep.subr.mxu0 0.0
        %749 = vmatpush1.msra.mxu0 %v730
        %750 = vmatprep.subr.mxu0 0.0
        %751 = vmatpush1.msra.mxu0 %v731
        %752 = vmatprep.subr.mxu0 0.0
        %753 = vmatpush1.msra.mxu0 %v732
        %754 = vmatprep.subr.mxu0 0.0
        %755 = vmatpush1.msra.mxu0 %v733
        %756 = vmatprep.subr.mxu0 0.0
        %757 = vmatpush1.msra.mxu0 %v734
        %758 = vmatprep.subr.mxu0 0.0
        %759 = vmatpush1.msra.mxu0 %v735
        %760 = vmatprep.subr.mxu0 0.0
        %761 = vmatpush1.msra.mxu0 %v736
        %762 = vmatprep.subr.mxu0 0.0
        %763 = vmatpush1.msra.mxu0 %v737
        %764 = vmatprep.subr.mxu0 0.0
        %765 = vmatpush1.msra.mxu0 %v738
        %766 = vmatprep.subr.mxu0 0.0
        %767 = vmatpush1.msra.mxu0 %v739
        %768 = vmatprep.subr.mxu0 0.0
        %769 = vmatpush1.msra.mxu0 %v740
        %770 = vmatprep.subr.mxu0 0.0
        %771 = vmatpush1.msra.mxu0 %v741
        %772 = vmatprep.subr.mxu0 0.0
        %773 = vmatpush1.msra.mxu0 %v742
        %774 = vmatprep.subr.mxu0 0.0
        %775 = vmatpush1.msra.mxu0 %v743
        %776 = vmatprep.subr.mxu0 0.0
        %777 = vmatpush1.msra.mxu0 0.0
        %778 = vmatprep.subr.mxu0 0.0
        %779 = vmatpush1.msra.mxu0 0.0
        %780 = vmatprep.subr.mxu0 0.0
        %781 = vmatpush1.msra.mxu0 0.0
        %782 = vmatprep.subr.mxu0 0.0
        %783 = vmatpush1.msra.mxu0 0.0
        %784 = vmatprep.subr.mxu0 0.0
        %785 = vmatpush1.msra.mxu0 0.0
        %786 = vmatprep.subr.mxu0 0.0
        %787 = vmatpush1.msra.mxu0 0.0
        %788 = vmatprep.subr.mxu0 0.0
        %789 = vmatpush1.msra.mxu0 0.0
        %790 = vmatprep.subr.mxu0 0.0
        %791 = vmatpush1.msra.mxu0 0.0
        %792 = vmatprep.subr.mxu0 0.0
        %793 = vmatpush1.msra.mxu0 0.0
        %794 = vmatprep.subr.mxu0 0.0
        %795 = vmatpush1.msra.mxu0 0.0
        %796 = vmatprep.subr.mxu0 0.0
        %797 = vmatpush1.msra.mxu0 0.0
        %798 = vmatprep.subr.mxu0 0.0
        %799 = vmatpush1.msra.mxu0 0.0
        %800 = vmatprep.subr.mxu0 0.0
        %801 = vmatpush1.msra.mxu0 0.0
        %802 = vmatprep.subr.mxu0 0.0
        %803 = vmatpush1.msra.mxu0 0.0
        %804 = vmatprep.subr.mxu0 0.0
        %805 = vmatpush1.msra.mxu0 0.0
        %806 = vmatprep.subr.mxu0 0.0
        %807 = vmatpush1.msra.mxu0 0.0
        %808 = vmatprep.mubr.f32.mxu0 0.0
        %809 = vmatmul.mubr.f32.gmra.mrb[0].mxu0 %v321
        %v810 = vpop.f32.mrb[0].mxu0
        %v811 = vadd.f32 0.0, %v810
        %v812 = vpop.f32.mrb[0].mxu0
        %813 = vmatprep.mubr.f32.mxu0 0.0
        %814 = vmatmul.mubr.f32.gmra.mrb[0].mxu0 %v322
        %v815 = vpop.f32.mrb[0].mxu0
        %v816 = vadd.f32 0.0, %v815
        %v817 = vpop.f32.mrb[0].mxu0
        %818 = vmatprep.mubr.f32.mxu0 0.0
        %819 = vmatmul.mubr.f32.gmra.mrb[0].mxu0 %v323
        %v820 = vpop.f32.mrb[0].mxu0
        %v821 = vadd.f32 0.0, %v820
        %v822 = vpop.f32.mrb[0].mxu0
        %823 = vmatprep.mubr.f32.mxu0 0.0
        %824 = vmatmul.mubr.f32.gmra.mrb[0].mxu0 %v324
        %v825 = vpop.f32.mrb[0].mxu0
        %v826 = vadd.f32 0.0, %v825
        %v827 = vpop.f32.mrb[0].mxu0
        %828 = vmatprep.mubr.f32.mxu0 0.0
        %829 = vmatmul.mubr.f32.gmra.mrb[0].mxu0 %v325
        %v830 = vpop.f32.mrb[0].mxu0
        %v831 = vadd.f32 0.0, %v830
        %v832 = vpop.f32.mrb[0].mxu0
        %833 = vmatprep.mubr.f32.mxu0 0.0
        %834 = vmatmul.mubr.f32.gmra.mrb[0].mxu0 %v326
        %v835 = vpop.f32.mrb[0].mxu0
        %v836 = vadd.f32 0.0, %v835
        %v837 = vpop.f32.mrb[0].mxu0
        %838 = vmatprep.mubr.f32.mxu0 0.0
        %839 = vmatmul.mubr.f32.gmra.mrb[0].mxu0 %v327
        %v840 = vpop.f32.mrb[0].mxu0
        %v841 = vadd.f32 0.0, %v840
        %v842 = vpop.f32.mrb[0].mxu0
        %843 = vmatprep.mubr.f32.mxu0 0.0
        %844 = vmatmul.mubr.f32.gmra.mrb[0].mxu0 %v328
        %v845 = vpop.f32.mrb[0].mxu0
        %v846 = vadd.f32 0.0, %v845
        %v847 = vpop.f32.mrb[0].mxu0
        %848 = vdwg.mxu0
        %849 = vmatprep.subr.mxu0 0.0
        %850 = vmatpush1.msra.mxu0 %v711
        %851 = vmatprep.subr.mxu0 0.0
        %852 = vmatpush1.msra.mxu0 %v712
        %853 = vmatprep.subr.mxu0 0.0
        %854 = vmatpush1.msra.mxu0 %v713
        %855 = vmatprep.subr.mxu0 0.0
        %856 = vmatpush1.msra.mxu0 %v714
        %857 = vmatprep.subr.mxu0 0.0
        %858 = vmatpush1.msra.mxu0 %v715
        %859 = vmatprep.subr.mxu0 0.0
        %860 = vmatpush1.msra.mxu0 %v716
        %861 = vmatprep.subr.mxu0 0.0
        %862 = vmatpush1.msra.mxu0 %v717
        %863 = vmatprep.subr.mxu0 0.0
        %864 = vmatpush1.msra.mxu0 %v718
        %865 = vmatprep.subr.mxu0 0.0
        %866 = vmatpush1.msra.mxu0 %v719
        %867 = vmatprep.subr.mxu0 0.0
        %868 = vmatpush1.msra.mxu0 %v720
        %869 = vmatprep.subr.mxu0 0.0
        %870 = vmatpush1.msra.mxu0 %v721
        %871 = vmatprep.subr.mxu0 0.0
        %872 = vmatpush1.msra.mxu0 %v722
        %873 = vmatprep.subr.mxu0 0.0
        %874 = vmatpush1.msra.mxu0 %v723
        %875 = vmatprep.subr.mxu0 0.0
        %876 = vmatpush1.msra.mxu0 %v724
        %877 = vmatprep.subr.mxu0 0.0
        %878 = vmatpush1.msra.mxu0 %v725
        %879 = vmatprep.subr.mxu0 0.0
        %880 = vmatpush1.msra.mxu0 %v726
        %881 = vmatprep.subr.mxu0 0.0
        %882 = vmatpush1.msra.mxu0 0.0
        %883 = vmatprep.subr.mxu0 0.0
        %884 = vmatpush1.msra.mxu0 0.0
        %885 = vmatprep.subr.mxu0 0.0
        %886 = vmatpush1.msra.mxu0 0.0
        %887 = vmatprep.subr.mxu0 0.0
        %888 = vmatpush1.msra.mxu0 0.0
        %889 = vmatprep.subr.mxu0 0.0
        %890 = vmatpush1.msra.mxu0 0.0
        %891 = vmatprep.subr.mxu0 0.0
        %892 = vmatpush1.msra.mxu0 0.0
        %893 = vmatprep.subr.mxu0 0.0
        %894 = vmatpush1.msra.mxu0 0.0
        %895 = vmatprep.subr.mxu0 0.0
        %896 = vmatpush1.msra.mxu0 0.0
        %897 = vmatprep.subr.mxu0 0.0
        %898 = vmatpush1.msra.mxu0 0.0
        %899 = vmatprep.subr.mxu0 0.0
        %900 = vmatpush1.msra.mxu0 0.0
        %901 = vmatprep.subr.mxu0 0.0
        %902 = vmatpush1.msra.mxu0 0.0
        %903 = vmatprep.subr.mxu0 0.0
        %904 = vmatpush1.msra.mxu0 0.0
        %905 = vmatprep.subr.mxu0 0.0
        %906 = vmatpush1.msra.mxu0 0.0
        %907 = vmatprep.subr.mxu0 0.0
        %908 = vmatpush1.msra.mxu0 0.0
        %909 = vmatprep.subr.mxu0 0.0
        %910 = vmatpush1.msra.mxu0 0.0
        %911 = vmatprep.subr.mxu0 0.0
        %912 = vmatpush1.msra.mxu0 0.0
        %913 = vmatprep.mubr.f32.mxu0 0.0
        %914 = vmatmul.mubr.f32.gmra.mrb[0].mxu0 0.0
        %v915 = vpop.f32.mrb[0].mxu0
        %v916 = vadd.f32 %v811, %v915
        %v917 = vpop.f32.mrb[0].mxu0
        %918 = vmatprep.mubr.f32.mxu0 0.0
        %919 = vmatmul.mubr.f32.gmra.mrb[0].mxu0 %v321
        %v920 = vpop.f32.mrb[0].mxu0
        %v921 = vadd.f32 %v816, %v920
        %v922 = vpop.f32.mrb[0].mxu0
        %923 = vmatprep.mubr.f32.mxu0 0.0
        %924 = vmatmul.mubr.f32.gmra.mrb[0].mxu0 %v322
        %v925 = vpop.f32.mrb[0].mxu0
        %v926 = vadd.f32 %v821, %v925
        %v927 = vpop.f32.mrb[0].mxu0
        %928 = vmatprep.mubr.f32.mxu0 0.0
        %929 = vmatmul.mubr.f32.gmra.mrb[0].mxu0 %v323
        %v930 = vpop.f32.mrb[0].mxu0
        %v931 = vadd.f32 %v826, %v930
        %v932 = vpop.f32.mrb[0].mxu0
        %933 = vmatprep.mubr.f32.mxu0 0.0
        %934 = vmatmul.mubr.f32.gmra.mrb[0].mxu0 %v324
        %v935 = vpop.f32.mrb[0].mxu0
        %v936 = vadd.f32 %v831, %v935
        %v937 = vpop.f32.mrb[0].mxu0
        %938 = vmatprep.mubr.f32.mxu0 0.0
        %939 = vmatmul.mubr.f32.gmra.mrb[0].mxu0 %v325
        %v940 = vpop.f32.mrb[0].mxu0
        %v941 = vadd.f32 %v836, %v940
        %v942 = vpop.f32.mrb[0].mxu0
        %943 = vmatprep.mubr.f32.mxu0 0.0
        %944 = vmatmul.mubr.f32.gmra.mrb[0].mxu0 %v326
        %v945 = vpop.f32.mrb[0].mxu0
        %v946 = vadd.f32 %v841, %v945
        %v947 = vpop.f32.mrb[0].mxu0
        %948 = vmatprep.mubr.f32.mxu0 0.0
        %949 = vmatmul.mubr.f32.gmra.mrb[0].mxu0 %v327
        %v950 = vpop.f32.mrb[0].mxu0
        %v951 = vadd.f32 %v846, %v950
        %v952 = vpop.f32.mrb[0].mxu0
        %953 = vdwg.mxu0
        %s954 = scalar_lea.vmem [#allocation2], 640
        %v955 = vld [vmem:[%s954] sm:$0xff]
        %v956 = vld [vmem:[%s954 + $0x8] sm:$0xff]
        %v957 = vld [vmem:[%s954 + $0x10] sm:$0xff]
        %v958 = vld [vmem:[%s954 + $0x18] sm:$0xff]
        %v959 = vld [vmem:[%s954 + $0x20] sm:$0xff]
        %v960 = vld [vmem:[%s954 + $0x28] sm:$0xff]
        %v961 = vld [vmem:[%s954 + $0x30] sm:$0xff]
        %v962 = vld [vmem:[%s954 + $0x38] sm:$0xff]
        %v963 = vld [vmem:[%s954 + $0x40] sm:$0xff]
        %v964 = vld [vmem:[%s954 + $0x48] sm:$0xff]
        %v965 = vld [vmem:[%s954 + $0x50] sm:$0xff]
        %v966 = vld [vmem:[%s954 + $0x58] sm:$0xff]
        %v967 = vld [vmem:[%s954 + $0x60] sm:$0xff]
        %v968 = vld [vmem:[%s954 + $0x68] sm:$0xff]
        %v969 = vld [vmem:[%s954 + $0x70] sm:$0xff]
        %v970 = vld [vmem:[%s954 + $0x78] sm:$0xff]
        %971 = vmatprep.subr.mxu0 0.0
        %972 = vmatpush1.msra.mxu0 %v955
        %973 = vmatprep.subr.mxu0 0.0
        %974 = vmatpush1.msra.mxu0 %v956
        %975 = vmatprep.subr.mxu0 0.0
        %976 = vmatpush1.msra.mxu0 %v957
        %977 = vmatprep.subr.mxu0 0.0
        %978 = vmatpush1.msra.mxu0 %v958
        %979 = vmatprep.subr.mxu0 0.0
        %980 = vmatpush1.msra.mxu0 %v959
        %981 = vmatprep.subr.mxu0 0.0
        %982 = vmatpush1.msra.mxu0 %v960
        %983 = vmatprep.subr.mxu0 0.0
        %984 = vmatpush1.msra.mxu0 %v961
        %985 = vmatprep.subr.mxu0 0.0
        %986 = vmatpush1.msra.mxu0 %v962
        %987 = vmatprep.subr.mxu0 0.0
        %988 = vmatpush1.msra.mxu0 %v963
        %989 = vmatprep.subr.mxu0 0.0
        %990 = vmatpush1.msra.mxu0 %v964
        %991 = vmatprep.subr.mxu0 0.0
        %992 = vmatpush1.msra.mxu0 %v965
        %993 = vmatprep.subr.mxu0 0.0
        %994 = vmatpush1.msra.mxu0 %v966
        %995 = vmatprep.subr.mxu0 0.0
        %996 = vmatpush1.msra.mxu0 %v967
        %997 = vmatprep.subr.mxu0 0.0
        %998 = vmatpush1.msra.mxu0 %v968
        %999 = vmatprep.subr.mxu0 0.0
        %1000 = vmatpush1.msra.mxu0 %v969
        %1001 = vmatprep.subr.mxu0 0.0
        %1002 = vmatpush1.msra.mxu0 %v970
        %1003 = vmatprep.subr.mxu0 0.0
        %1004 = vmatpush1.msra.mxu0 0.0
        %1005 = vmatprep.subr.mxu0 0.0
        %1006 = vmatpush1.msra.mxu0 0.0
        %1007 = vmatprep.subr.mxu0 0.0
        %1008 = vmatpush1.msra.mxu0 0.0
        %1009 = vmatprep.subr.mxu0 0.0
        %1010 = vmatpush1.msra.mxu0 0.0
        %1011 = vmatprep.subr.mxu0 0.0
        %1012 = vmatpush1.msra.mxu0 0.0
        %1013 = vmatprep.subr.mxu0 0.0
        %1014 = vmatpush1.msra.mxu0 0.0
        %1015 = vmatprep.subr.mxu0 0.0
        %1016 = vmatpush1.msra.mxu0 0.0
        %1017 = vmatprep.subr.mxu0 0.0
        %1018 = vmatpush1.msra.mxu0 0.0
        %1019 = vmatprep.subr.mxu0 0.0
        %1020 = vmatpush1.msra.mxu0 0.0
        %1021 = vmatprep.subr.mxu0 0.0
        %1022 = vmatpush1.msra.mxu0 0.0
        %1023 = vmatprep.subr.mxu0 0.0
        %1024 = vmatpush1.msra.mxu0 0.0
        %1025 = vmatprep.subr.mxu0 0.0
        %1026 = vmatpush1.msra.mxu0 0.0
        %1027 = vmatprep.subr.mxu0 0.0
        %1028 = vmatpush1.msra.mxu0 0.0
        %1029 = vmatprep.subr.mxu0 0.0
        %1030 = vmatpush1.msra.mxu0 0.0
        %1031 = vmatprep.subr.mxu0 0.0
        %1032 = vmatpush1.msra.mxu0 0.0
        %1033 = vmatprep.subr.mxu0 0.0
        %1034 = vmatpush1.msra.mxu0 0.0
        %1035 = vmatprep.mubr.f32.mxu0 0.0
        %1036 = vmatmul.mubr.f32.gmra.mrb[0].mxu0 %v322
        %v1037 = vpop.f32.mrb[0].mxu0
        %v1038 = vadd.f32 0.0, %v1037
        %v1039 = vpop.f32.mrb[0].mxu0
        %1040 = vmatprep.mubr.f32.mxu0 0.0
        %1041 = vmatmul.mubr.f32.gmra.mrb[0].mxu0 %v323
        %v1042 = vpop.f32.mrb[0].mxu0
        %v1043 = vadd.f32 0.0, %v1042
        %v1044 = vpop.f32.mrb[0].mxu0
        %1045 = vmatprep.mubr.f32.mxu0 0.0
        %1046 = vmatmul.mubr.f32.gmra.mrb[0].mxu0 %v324
        %v1047 = vpop.f32.mrb[0].mxu0
        %v1048 = vadd.f32 0.0, %v1047
        %v1049 = vpop.f32.mrb[0].mxu0
        %1050 = vmatprep.mubr.f32.mxu0 0.0
        %1051 = vmatmul.mubr.f32.gmra.mrb[0].mxu0 %v325
        %v1052 = vpop.f32.mrb[0].mxu0
        %v1053 = vadd.f32 0.0, %v1052
        %v1054 = vpop.f32.mrb[0].mxu0
        %1055 = vmatprep.mubr.f32.mxu0 0.0
        %1056 = vmatmul.mubr.f32.gmra.mrb[0].mxu0 %v326
        %v1057 = vpop.f32.mrb[0].mxu0
        %v1058 = vadd.f32 0.0, %v1057
        %v1059 = vpop.f32.mrb[0].mxu0
        %1060 = vmatprep.mubr.f32.mxu0 0.0
        %1061 = vmatmul.mubr.f32.gmra.mrb[0].mxu0 %v327
        %v1062 = vpop.f32.mrb[0].mxu0
        %v1063 = vadd.f32 0.0, %v1062
        %v1064 = vpop.f32.mrb[0].mxu0
        %1065 = vmatprep.mubr.f32.mxu0 0.0
        %1066 = vmatmul.mubr.f32.gmra.mrb[0].mxu0 %v328
        %v1067 = vpop.f32.mrb[0].mxu0
        %v1068 = vadd.f32 0.0, %v1067
        %v1069 = vpop.f32.mrb[0].mxu0
        %1070 = vmatprep.mubr.f32.mxu0 0.0
        %1071 = vmatmul.mubr.f32.gmra.mrb[0].mxu0 0.0
        %v1072 = vpop.f32.mrb[0].mxu0
        %v1073 = vadd.f32 0.0, %v1072
        %v1074 = vpop.f32.mrb[0].mxu0
        %1075 = vdwg.mxu0
        %v1076 = vadd.f32 %v916, %v1038
        %v1077 = vadd.f32 %v921, %v1043
        %v1078 = vadd.f32 %v926, %v1048
        %v1079 = vadd.f32 %v931, %v1053
        %v1080 = vadd.f32 %v936, %v1058
        %v1081 = vadd.f32 %v941, %v1063
        %v1082 = vadd.f32 %v946, %v1068
        %v1083 = vadd.f32 %v951, %v1073
        %vm1084 = vcmask 523264
        %v1086 = vsel %vm1084, %v702, 0
        %v1089 = vsel %vm1084, %v703, 0
        %v1092 = vsel %vm1084, %v704, 0
        %v1095 = vsel %vm1084, %v705, 0
        %v1098 = vsel %vm1084, %v706, 0
        %v1101 = vsel %vm1084, %v707, 0
        %v1104 = vsel %vm1084, %v708, 0
        %v1107 = vsel %vm1084, %v709, 0
        %1109 = vmatprep.subr.mxu0 0.0
        %1110 = vmatpush1.msra.mxu0 %v694
        %1111 = vmatprep.subr.mxu0 0.0
        %1112 = vmatpush1.msra.mxu0 %v695
        %1113 = vmatprep.subr.mxu0 0.0
        %1114 = vmatpush1.msra.mxu0 %v696
        %1115 = vmatprep.subr.mxu0 0.0
        %1116 = vmatpush1.msra.mxu0 %v697
        %1117 = vmatprep.subr.mxu0 0.0
        %1118 = vmatpush1.msra.mxu0 %v698
        %1119 = vmatprep.subr.mxu0 0.0
        %1120 = vmatpush1.msra.mxu0 %v699
        %1121 = vmatprep.subr.mxu0 0.0
        %1122 = vmatpush1.msra.mxu0 %v700
        %1123 = vmatprep.subr.mxu0 0.0
        %1124 = vmatpush1.msra.mxu0 %v701
        %1125 = vmatprep.subr.mxu0 0.0
        %1126 = vmatpush1.msra.mxu0 0.0
        %1127 = vmatprep.subr.mxu0 0.0
        %1128 = vmatpush1.msra.mxu0 0.0
        %1129 = vmatprep.subr.mxu0 0.0
        %1130 = vmatpush1.msra.mxu0 0.0
        %1131 = vmatprep.subr.mxu0 0.0
        %1132 = vmatpush1.msra.mxu0 0.0
        %1133 = vmatprep.subr.mxu0 0.0
        %1134 = vmatpush1.msra.mxu0 0.0
        %1135 = vmatprep.subr.mxu0 0.0
        %1136 = vmatpush1.msra.mxu0 0.0
        %1137 = vmatprep.subr.mxu0 0.0
        %1138 = vmatpush1.msra.mxu0 0.0
        %1139 = vmatprep.subr.mxu0 0.0
        %1140 = vmatpush1.msra.mxu0 0.0
        %1141 = vmatprep.subr.mxu0 0.0
        %1142 = vmatpush1.msra.mxu0 0.0
        %1143 = vmatprep.subr.mxu0 0.0
        %1144 = vmatpush1.msra.mxu0 0.0
        %1145 = vmatprep.subr.mxu0 0.0
        %1146 = vmatpush1.msra.mxu0 0.0
        %1147 = vmatprep.subr.mxu0 0.0
        %1148 = vmatpush1.msra.mxu0 0.0
        %1149 = vmatprep.subr.mxu0 0.0
        %1150 = vmatpush1.msra.mxu0 0.0
        %1151 = vmatprep.subr.mxu0 0.0
        %1152 = vmatpush1.msra.mxu0 0.0
        %1153 = vmatprep.subr.mxu0 0.0
        %1154 = vmatpush1.msra.mxu0 0.0
        %1155 = vmatprep.subr.mxu0 0.0
        %1156 = vmatpush1.msra.mxu0 0.0
        %1157 = vmatprep.subr.mxu0 0.0
        %1158 = vmatpush1.msra.mxu0 0.0
        %1159 = vmatprep.subr.mxu0 0.0
        %1160 = vmatpush1.msra.mxu0 0.0
        %1161 = vmatprep.subr.mxu0 0.0
        %1162 = vmatpush1.msra.mxu0 0.0
        %1163 = vmatprep.subr.mxu0 0.0
        %1164 = vmatpush1.msra.mxu0 0.0
        %1165 = vmatprep.subr.mxu0 0.0
        %1166 = vmatpush1.msra.mxu0 0.0
        %1167 = vmatprep.subr.mxu0 0.0
        %1168 = vmatpush1.msra.mxu0 0.0
        %1169 = vmatprep.subr.mxu0 0.0
        %1170 = vmatpush1.msra.mxu0 0.0
        %1171 = vmatprep.subr.mxu0 0.0
        %1172 = vmatpush1.msra.mxu0 0.0
        %1173 = vmatprep.mubr.f32.mxu0 0.0
        %1174 = vmatmul.mubr.f32.gmra.mrb[0].mxu0 %v1086
        %v1175 = vpop.f32.mrb[0].mxu0
        %v1176 = vadd.f32 %v1076, %v1175
        %v1177 = vpop.f32.mrb[0].mxu0
        %1178 = vmatprep.mubr.f32.mxu0 0.0
        %1179 = vmatmul.mubr.f32.gmra.mrb[0].mxu0 %v1089
        %v1180 = vpop.f32.mrb[0].mxu0
        %v1181 = vadd.f32 %v1077, %v1180
        %v1182 = vpop.f32.mrb[0].mxu0
        %1183 = vmatprep.mubr.f32.mxu0 0.0
        %1184 = vmatmul.mubr.f32.gmra.mrb[0].mxu0 %v1092
        %v1185 = vpop.f32.mrb[0].mxu0
        %v1186 = vadd.f32 %v1078, %v1185
        %v1187 = vpop.f32.mrb[0].mxu0
        %1188 = vmatprep.mubr.f32.mxu0 0.0
        %1189 = vmatmul.mubr.f32.gmra.mrb[0].mxu0 %v1095
        %v1190 = vpop.f32.mrb[0].mxu0
        %v1191 = vadd.f32 %v1079, %v1190
        %v1192 = vpop.f32.mrb[0].mxu0
        %1193 = vmatprep.mubr.f32.mxu0 0.0
        %1194 = vmatmul.mubr.f32.gmra.mrb[0].mxu0 %v1098
        %v1195 = vpop.f32.mrb[0].mxu0
        %v1196 = vadd.f32 %v1080, %v1195
        %v1197 = vpop.f32.mrb[0].mxu0
        %1198 = vmatprep.mubr.f32.mxu0 0.0
        %1199 = vmatmul.mubr.f32.gmra.mrb[0].mxu0 %v1101
        %v1200 = vpop.f32.mrb[0].mxu0
        %v1201 = vadd.f32 %v1081, %v1200
        %v1202 = vpop.f32.mrb[0].mxu0
        %1203 = vmatprep.mubr.f32.mxu0 0.0
        %1204 = vmatmul.mubr.f32.gmra.mrb[0].mxu0 %v1104
        %v1205 = vpop.f32.mrb[0].mxu0
        %v1206 = vadd.f32 %v1082, %v1205
        %v1207 = vpop.f32.mrb[0].mxu0
        %1208 = vmatprep.mubr.f32.mxu0 0.0
        %1209 = vmatmul.mubr.f32.gmra.mrb[0].mxu0 %v1107
        %v1210 = vpop.f32.mrb[0].mxu0
        %v1211 = vadd.f32 %v1083, %v1210
        %v1212 = vpop.f32.mrb[0].mxu0
        %1213 = vdwg.mxu0
        %s1214 = scalar_lea.vmem [#allocation2], 768
        %v1215 = vld [vmem:[%s1214] sm:$0xff]
        %v1216 = vld [vmem:[%s1214 + $0x8] sm:$0xff]
        %v1217 = vld [vmem:[%s1214 + $0x10] sm:$0xff]
        %v1218 = vld [vmem:[%s1214 + $0x18] sm:$0xff]
        %v1219 = vld [vmem:[%s1214 + $0x20] sm:$0xff]
        %v1220 = vld [vmem:[%s1214 + $0x28] sm:$0xff]
        %v1221 = vld [vmem:[%s1214 + $0x30] sm:$0xff]
        %v1222 = vld [vmem:[%s1214 + $0x38] sm:$0xff]
        %v1223 = vld [vmem:[%s1214 + $0x40] sm:$0xff]
        %v1224 = vld [vmem:[%s1214 + $0x48] sm:$0xff]
        %v1225 = vld [vmem:[%s1214 + $0x50] sm:$0xff]
        %v1226 = vld [vmem:[%s1214 + $0x58] sm:$0xff]
        %v1227 = vld [vmem:[%s1214 + $0x60] sm:$0xff]
        %v1228 = vld [vmem:[%s1214 + $0x68] sm:$0xff]
        %v1229 = vld [vmem:[%s1214 + $0x70] sm:$0xff]
        %v1230 = vld [vmem:[%s1214 + $0x78] sm:$0xff]
        %s1231 = scalar_lea.vmem [#allocation2], 896
        %v1232 = vld [vmem:[%s1231] sm:$0xff]
        %v1233 = vld [vmem:[%s1231 + $0x8] sm:$0xff]
        %v1234 = vld [vmem:[%s1231 + $0x10] sm:$0xff]
        %v1235 = vld [vmem:[%s1231 + $0x18] sm:$0xff]
        %v1236 = vld [vmem:[%s1231 + $0x20] sm:$0xff]
        %v1237 = vld [vmem:[%s1231 + $0x28] sm:$0xff]
        %v1238 = vld [vmem:[%s1231 + $0x30] sm:$0xff]
        %v1239 = vld [vmem:[%s1231 + $0x38] sm:$0xff]
        %v1240 = vld [vmem:[%s1231 + $0x40] sm:$0xff]
        %v1241 = vld [vmem:[%s1231 + $0x48] sm:$0xff]
        %v1242 = vld [vmem:[%s1231 + $0x50] sm:$0xff]
        %v1243 = vld [vmem:[%s1231 + $0x58] sm:$0xff]
        %v1244 = vld [vmem:[%s1231 + $0x60] sm:$0xff]
        %v1245 = vld [vmem:[%s1231 + $0x68] sm:$0xff]
        %v1246 = vld [vmem:[%s1231 + $0x70] sm:$0xff]
        %v1247 = vld [vmem:[%s1231 + $0x78] sm:$0xff]
        %1248 = vmatprep.subr.mxu0 0.0
        %1249 = vmatpush1.msra.mxu0 %v1232
        %1250 = vmatprep.subr.mxu0 0.0
        %1251 = vmatpush1.msra.mxu0 %v1233
        %1252 = vmatprep.subr.mxu0 0.0
        %1253 = vmatpush1.msra.mxu0 %v1234
        %1254 = vmatprep.subr.mxu0 0.0
        %1255 = vmatpush1.msra.mxu0 %v1235
        %1256 = vmatprep.subr.mxu0 0.0
        %1257 = vmatpush1.msra.mxu0 %v1236
        %1258 = vmatprep.subr.mxu0 0.0
        %1259 = vmatpush1.msra.mxu0 %v1237
        %1260 = vmatprep.subr.mxu0 0.0
        %1261 = vmatpush1.msra.mxu0 %v1238
        %1262 = vmatprep.subr.mxu0 0.0
        %1263 = vmatpush1.msra.mxu0 %v1239
        %1264 = vmatprep.subr.mxu0 0.0
        %1265 = vmatpush1.msra.mxu0 %v1240
        %1266 = vmatprep.subr.mxu0 0.0
        %1267 = vmatpush1.msra.mxu0 %v1241
        %1268 = vmatprep.subr.mxu0 0.0
        %1269 = vmatpush1.msra.mxu0 %v1242
        %1270 = vmatprep.subr.mxu0 0.0
        %1271 = vmatpush1.msra.mxu0 %v1243
        %1272 = vmatprep.subr.mxu0 0.0
        %1273 = vmatpush1.msra.mxu0 %v1244
        %1274 = vmatprep.subr.mxu0 0.0
        %1275 = vmatpush1.msra.mxu0 %v1245
        %1276 = vmatprep.subr.mxu0 0.0
        %1277 = vmatpush1.msra.mxu0 %v1246
        %1278 = vmatprep.subr.mxu0 0.0
        %1279 = vmatpush1.msra.mxu0 %v1247
        %1280 = vmatprep.subr.mxu0 0.0
        %1281 = vmatpush1.msra.mxu0 0.0
        %1282 = vmatprep.subr.mxu0 0.0
        %1283 = vmatpush1.msra.mxu0 0.0
        %1284 = vmatprep.subr.mxu0 0.0
        %1285 = vmatpush1.msra.mxu0 0.0
        %1286 = vmatprep.subr.mxu0 0.0
        %1287 = vmatpush1.msra.mxu0 0.0
        %1288 = vmatprep.subr.mxu0 0.0
        %1289 = vmatpush1.msra.mxu0 0.0
        %1290 = vmatprep.subr.mxu0 0.0
        %1291 = vmatpush1.msra.mxu0 0.0
        %1292 = vmatprep.subr.mxu0 0.0
        %1293 = vmatpush1.msra.mxu0 0.0
        %1294 = vmatprep.subr.mxu0 0.0
        %1295 = vmatpush1.msra.mxu0 0.0
        %1296 = vmatprep.subr.mxu0 0.0
        %1297 = vmatpush1.msra.mxu0 0.0
        %1298 = vmatprep.subr.mxu0 0.0
        %1299 = vmatpush1.msra.mxu0 0.0
        %1300 = vmatprep.subr.mxu0 0.0
        %1301 = vmatpush1.msra.mxu0 0.0
        %1302 = vmatprep.subr.mxu0 0.0
        %1303 = vmatpush1.msra.mxu0 0.0
        %1304 = vmatprep.subr.mxu0 0.0
        %1305 = vmatpush1.msra.mxu0 0.0
        %1306 = vmatprep.subr.mxu0 0.0
        %1307 = vmatpush1.msra.mxu0 0.0
        %1308 = vmatprep.subr.mxu0 0.0
        %1309 = vmatpush1.msra.mxu0 0.0
        %1310 = vmatprep.subr.mxu0 0.0
        %1311 = vmatpush1.msra.mxu0 0.0
        %1312 = vmatprep.mubr.f32.mxu0 0.0
        %1313 = vmatmul.mubr.f32.gmra.mrb[0].mxu0 %v321
        %v1314 = vpop.f32.mrb[0].mxu0
        %v1315 = vadd.f32 0.0, %v1314
        %v1316 = vpop.f32.mrb[0].mxu0
        %1317 = vmatprep.mubr.f32.mxu0 0.0
        %1318 = vmatmul.mubr.f32.gmra.mrb[0].mxu0 %v322
        %v1319 = vpop.f32.mrb[0].mxu0
        %v1320 = vadd.f32 0.0, %v1319
        %v1321 = vpop.f32.mrb[0].mxu0
        %1322 = vmatprep.mubr.f32.mxu0 0.0
        %1323 = vmatmul.mubr.f32.gmra.mrb[0].mxu0 %v323
        %v1324 = vpop.f32.mrb[0].mxu0
        %v1325 = vadd.f32 0.0, %v1324
        %v1326 = vpop.f32.mrb[0].mxu0
        %1327 = vmatprep.mubr.f32.mxu0 0.0
        %1328 = vmatmul.mubr.f32.gmra.mrb[0].mxu0 %v324
        %v1329 = vpop.f32.mrb[0].mxu0
        %v1330 = vadd.f32 0.0, %v1329
        %v1331 = vpop.f32.mrb[0].mxu0
        %1332 = vmatprep.mubr.f32.mxu0 0.0
        %1333 = vmatmul.mubr.f32.gmra.mrb[0].mxu0 %v325
        %v1334 = vpop.f32.mrb[0].mxu0
        %v1335 = vadd.f32 0.0, %v1334
        %v1336 = vpop.f32.mrb[0].mxu0
        %1337 = vmatprep.mubr.f32.mxu0 0.0
        %1338 = vmatmul.mubr.f32.gmra.mrb[0].mxu0 %v326
        %v1339 = vpop.f32.mrb[0].mxu0
        %v1340 = vadd.f32 0.0, %v1339
        %v1341 = vpop.f32.mrb[0].mxu0
        %1342 = vmatprep.mubr.f32.mxu0 0.0
        %1343 = vmatmul.mubr.f32.gmra.mrb[0].mxu0 %v327
        %v1344 = vpop.f32.mrb[0].mxu0
        %v1345 = vadd.f32 0.0, %v1344
        %v1346 = vpop.f32.mrb[0].mxu0
        %1347 = vmatprep.mubr.f32.mxu0 0.0
        %1348 = vmatmul.mubr.f32.gmra.mrb[0].mxu0 %v328
        %v1349 = vpop.f32.mrb[0].mxu0
        %v1350 = vadd.f32 0.0, %v1349
        %v1351 = vpop.f32.mrb[0].mxu0
        %1352 = vdwg.mxu0
        %1353 = vmatprep.subr.mxu0 0.0
        %1354 = vmatpush1.msra.mxu0 %v1215
        %1355 = vmatprep.subr.mxu0 0.0
        %1356 = vmatpush1.msra.mxu0 %v1216
        %1357 = vmatprep.subr.mxu0 0.0
        %1358 = vmatpush1.msra.mxu0 %v1217
        %1359 = vmatprep.subr.mxu0 0.0
        %1360 = vmatpush1.msra.mxu0 %v1218
        %1361 = vmatprep.subr.mxu0 0.0
        %1362 = vmatpush1.msra.mxu0 %v1219
        %1363 = vmatprep.subr.mxu0 0.0
        %1364 = vmatpush1.msra.mxu0 %v1220
        %1365 = vmatprep.subr.mxu0 0.0
        %1366 = vmatpush1.msra.mxu0 %v1221
        %1367 = vmatprep.subr.mxu0 0.0
        %1368 = vmatpush1.msra.mxu0 %v1222
        %1369 = vmatprep.subr.mxu0 0.0
        %1370 = vmatpush1.msra.mxu0 %v1223
        %1371 = vmatprep.subr.mxu0 0.0
        %1372 = vmatpush1.msra.mxu0 %v1224
        %1373 = vmatprep.subr.mxu0 0.0
        %1374 = vmatpush1.msra.mxu0 %v1225
        %1375 = vmatprep.subr.mxu0 0.0
        %1376 = vmatpush1.msra.mxu0 %v1226
        %1377 = vmatprep.subr.mxu0 0.0
        %1378 = vmatpush1.msra.mxu0 %v1227
        %1379 = vmatprep.subr.mxu0 0.0
        %1380 = vmatpush1.msra.mxu0 %v1228
        %1381 = vmatprep.subr.mxu0 0.0
        %1382 = vmatpush1.msra.mxu0 %v1229
        %1383 = vmatprep.subr.mxu0 0.0
        %1384 = vmatpush1.msra.mxu0 %v1230
        %1385 = vmatprep.subr.mxu0 0.0
        %1386 = vmatpush1.msra.mxu0 0.0
        %1387 = vmatprep.subr.mxu0 0.0
        %1388 = vmatpush1.msra.mxu0 0.0
        %1389 = vmatprep.subr.mxu0 0.0
        %1390 = vmatpush1.msra.mxu0 0.0
        %1391 = vmatprep.subr.mxu0 0.0
        %1392 = vmatpush1.msra.mxu0 0.0
        %1393 = vmatprep.subr.mxu0 0.0
        %1394 = vmatpush1.msra.mxu0 0.0
        %1395 = vmatprep.subr.mxu0 0.0
        %1396 = vmatpush1.msra.mxu0 0.0
        %1397 = vmatprep.subr.mxu0 0.0
        %1398 = vmatpush1.msra.mxu0 0.0
        %1399 = vmatprep.subr.mxu0 0.0
        %1400 = vmatpush1.msra.mxu0 0.0
        %1401 = vmatprep.subr.mxu0 0.0
        %1402 = vmatpush1.msra.mxu0 0.0
        %1403 = vmatprep.subr.mxu0 0.0
        %1404 = vmatpush1.msra.mxu0 0.0
        %1405 = vmatprep.subr.mxu0 0.0
        %1406 = vmatpush1.msra.mxu0 0.0
        %1407 = vmatprep.subr.mxu0 0.0
        %1408 = vmatpush1.msra.mxu0 0.0
        %1409 = vmatprep.subr.mxu0 0.0
        %1410 = vmatpush1.msra.mxu0 0.0
        %1411 = vmatprep.subr.mxu0 0.0
        %1412 = vmatpush1.msra.mxu0 0.0
        %1413 = vmatprep.subr.mxu0 0.0
        %1414 = vmatpush1.msra.mxu0 0.0
        %1415 = vmatprep.subr.mxu0 0.0
        %1416 = vmatpush1.msra.mxu0 0.0
        %1417 = vmatprep.mubr.f32.mxu0 0.0
        %1418 = vmatmul.mubr.f32.gmra.mrb[0].mxu0 0.0
        %v1419 = vpop.f32.mrb[0].mxu0
        %v1420 = vadd.f32 %v1315, %v1419
        %v1421 = vpop.f32.mrb[0].mxu0
        %1422 = vmatprep.mubr.f32.mxu0 0.0
        %1423 = vmatmul.mubr.f32.gmra.mrb[0].mxu0 %v321
        %v1424 = vpop.f32.mrb[0].mxu0
        %v1425 = vadd.f32 %v1320, %v1424
        %v1426 = vpop.f32.mrb[0].mxu0
        %1427 = vmatprep.mubr.f32.mxu0 0.0
        %1428 = vmatmul.mubr.f32.gmra.mrb[0].mxu0 %v322
        %v1429 = vpop.f32.mrb[0].mxu0
        %v1430 = vadd.f32 %v1325, %v1429
        %v1431 = vpop.f32.mrb[0].mxu0
        %1432 = vmatprep.mubr.f32.mxu0 0.0
        %1433 = vmatmul.mubr.f32.gmra.mrb[0].mxu0 %v323
        %v1434 = vpop.f32.mrb[0].mxu0
        %v1435 = vadd.f32 %v1330, %v1434
        %v1436 = vpop.f32.mrb[0].mxu0
        %1437 = vmatprep.mubr.f32.mxu0 0.0
        %1438 = vmatmul.mubr.f32.gmra.mrb[0].mxu0 %v324
        %v1439 = vpop.f32.mrb[0].mxu0
        %v1440 = vadd.f32 %v1335, %v1439
        %v1441 = vpop.f32.mrb[0].mxu0
        %1442 = vmatprep.mubr.f32.mxu0 0.0
        %1443 = vmatmul.mubr.f32.gmra.mrb[0].mxu0 %v325
        %v1444 = vpop.f32.mrb[0].mxu0
        %v1445 = vadd.f32 %v1340, %v1444
        %v1446 = vpop.f32.mrb[0].mxu0
        %1447 = vmatprep.mubr.f32.mxu0 0.0
        %1448 = vmatmul.mubr.f32.gmra.mrb[0].mxu0 %v326
        %v1449 = vpop.f32.mrb[0].mxu0
        %v1450 = vadd.f32 %v1345, %v1449
        %v1451 = vpop.f32.mrb[0].mxu0
        %1452 = vmatprep.mubr.f32.mxu0 0.0
        %1453 = vmatmul.mubr.f32.gmra.mrb[0].mxu0 %v327
        %v1454 = vpop.f32.mrb[0].mxu0
        %v1455 = vadd.f32 %v1350, %v1454
        %v1456 = vpop.f32.mrb[0].mxu0
        %1457 = vdwg.mxu0
        %s1458 = scalar_lea.vmem [#allocation2], 1024
        %v1459 = vld [vmem:[%s1458] sm:$0xff]
        %v1460 = vld [vmem:[%s1458 + $0x8] sm:$0xff]
        %v1461 = vld [vmem:[%s1458 + $0x10] sm:$0xff]
        %v1462 = vld [vmem:[%s1458 + $0x18] sm:$0xff]
        %v1463 = vld [vmem:[%s1458 + $0x20] sm:$0xff]
        %v1464 = vld [vmem:[%s1458 + $0x28] sm:$0xff]
        %v1465 = vld [vmem:[%s1458 + $0x30] sm:$0xff]
        %v1466 = vld [vmem:[%s1458 + $0x38] sm:$0xff]
        %v1467 = vld [vmem:[%s1458 + $0x40] sm:$0xff]
        %v1468 = vld [vmem:[%s1458 + $0x48] sm:$0xff]
        %v1469 = vld [vmem:[%s1458 + $0x50] sm:$0xff]
        %v1470 = vld [vmem:[%s1458 + $0x58] sm:$0xff]
        %v1471 = vld [vmem:[%s1458 + $0x60] sm:$0xff]
        %v1472 = vld [vmem:[%s1458 + $0x68] sm:$0xff]
        %v1473 = vld [vmem:[%s1458 + $0x70] sm:$0xff]
        %v1474 = vld [vmem:[%s1458 + $0x78] sm:$0xff]
        %1475 = vmatprep.subr.mxu0 0.0
        %1476 = vmatpush1.msra.mxu0 %v1459
        %1477 = vmatprep.subr.mxu0 0.0
        %1478 = vmatpush1.msra.mxu0 %v1460
        %1479 = vmatprep.subr.mxu0 0.0
        %1480 = vmatpush1.msra.mxu0 %v1461
        %1481 = vmatprep.subr.mxu0 0.0
        %1482 = vmatpush1.msra.mxu0 %v1462
        %1483 = vmatprep.subr.mxu0 0.0
        %1484 = vmatpush1.msra.mxu0 %v1463
        %1485 = vmatprep.subr.mxu0 0.0
        %1486 = vmatpush1.msra.mxu0 %v1464
        %1487 = vmatprep.subr.mxu0 0.0
        %1488 = vmatpush1.msra.mxu0 %v1465
        %1489 = vmatprep.subr.mxu0 0.0
        %1490 = vmatpush1.msra.mxu0 %v1466
        %1491 = vmatprep.subr.mxu0 0.0
        %1492 = vmatpush1.msra.mxu0 %v1467
        %1493 = vmatprep.subr.mxu0 0.0
        %1494 = vmatpush1.msra.mxu0 %v1468
        %1495 = vmatprep.subr.mxu0 0.0
        %1496 = vmatpush1.msra.mxu0 %v1469
        %1497 = vmatprep.subr.mxu0 0.0
        %1498 = vmatpush1.msra.mxu0 %v1470
        %1499 = vmatprep.subr.mxu0 0.0
        %1500 = vmatpush1.msra.mxu0 %v1471
        %1501 = vmatprep.subr.mxu0 0.0
        %1502 = vmatpush1.msra.mxu0 %v1472
        %1503 = vmatprep.subr.mxu0 0.0
        %1504 = vmatpush1.msra.mxu0 %v1473
        %1505 = vmatprep.subr.mxu0 0.0
        %1506 = vmatpush1.msra.mxu0 %v1474
        %1507 = vmatprep.subr.mxu0 0.0
        %1508 = vmatpush1.msra.mxu0 0.0
        %1509 = vmatprep.subr.mxu0 0.0
        %1510 = vmatpush1.msra.mxu0 0.0
        %1511 = vmatprep.subr.mxu0 0.0
        %1512 = vmatpush1.msra.mxu0 0.0
        %1513 = vmatprep.subr.mxu0 0.0
        %1514 = vmatpush1.msra.mxu0 0.0
        %1515 = vmatprep.subr.mxu0 0.0
        %1516 = vmatpush1.msra.mxu0 0.0
        %1517 = vmatprep.subr.mxu0 0.0
        %1518 = vmatpush1.msra.mxu0 0.0
        %1519 = vmatprep.subr.mxu0 0.0
        %1520 = vmatpush1.msra.mxu0 0.0
        %1521 = vmatprep.subr.mxu0 0.0
        %1522 = vmatpush1.msra.mxu0 0.0
        %1523 = vmatprep.subr.mxu0 0.0
        %1524 = vmatpush1.msra.mxu0 0.0
        %1525 = vmatprep.subr.mxu0 0.0
        %1526 = vmatpush1.msra.mxu0 0.0
        %1527 = vmatprep.subr.mxu0 0.0
        %1528 = vmatpush1.msra.mxu0 0.0
        %1529 = vmatprep.subr.mxu0 0.0
        %1530 = vmatpush1.msra.mxu0 0.0
        %1531 = vmatprep.subr.mxu0 0.0
        %1532 = vmatpush1.msra.mxu0 0.0
        %1533 = vmatprep.subr.mxu0 0.0
        %1534 = vmatpush1.msra.mxu0 0.0
        %1535 = vmatprep.subr.mxu0 0.0
        %1536 = vmatpush1.msra.mxu0 0.0
        %1537 = vmatprep.subr.mxu0 0.0
        %1538 = vmatpush1.msra.mxu0 0.0
        %1539 = vmatprep.mubr.f32.mxu0 0.0
        %1540 = vmatmul.mubr.f32.gmra.mrb[0].mxu0 %v322
        %v1541 = vpop.f32.mrb[0].mxu0
        %v1542 = vadd.f32 0.0, %v1541
        %v1543 = vpop.f32.mrb[0].mxu0
        %1544 = vmatprep.mubr.f32.mxu0 0.0
        %1545 = vmatmul.mubr.f32.gmra.mrb[0].mxu0 %v323
        %v1546 = vpop.f32.mrb[0].mxu0
        %v1547 = vadd.f32 0.0, %v1546
        %v1548 = vpop.f32.mrb[0].mxu0
        %1549 = vmatprep.mubr.f32.mxu0 0.0
        %1550 = vmatmul.mubr.f32.gmra.mrb[0].mxu0 %v324
        %v1551 = vpop.f32.mrb[0].mxu0
        %v1552 = vadd.f32 0.0, %v1551
        %v1553 = vpop.f32.mrb[0].mxu0
        %1554 = vmatprep.mubr.f32.mxu0 0.0
        %1555 = vmatmul.mubr.f32.gmra.mrb[0].mxu0 %v325
        %v1556 = vpop.f32.mrb[0].mxu0
        %v1557 = vadd.f32 0.0, %v1556
        %v1558 = vpop.f32.mrb[0].mxu0
        %1559 = vmatprep.mubr.f32.mxu0 0.0
        %1560 = vmatmul.mubr.f32.gmra.mrb[0].mxu0 %v326
        %v1561 = vpop.f32.mrb[0].mxu0
        %v1562 = vadd.f32 0.0, %v1561
        %v1563 = vpop.f32.mrb[0].mxu0
        %1564 = vmatprep.mubr.f32.mxu0 0.0
        %1565 = vmatmul.mubr.f32.gmra.mrb[0].mxu0 %v327
        %v1566 = vpop.f32.mrb[0].mxu0
        %v1567 = vadd.f32 0.0, %v1566
        %v1568 = vpop.f32.mrb[0].mxu0
        %1569 = vmatprep.mubr.f32.mxu0 0.0
        %1570 = vmatmul.mubr.f32.gmra.mrb[0].mxu0 %v328
        %v1571 = vpop.f32.mrb[0].mxu0
        %v1572 = vadd.f32 0.0, %v1571
        %v1573 = vpop.f32.mrb[0].mxu0
        %1574 = vmatprep.mubr.f32.mxu0 0.0
        %1575 = vmatmul.mubr.f32.gmra.mrb[0].mxu0 0.0
        %v1576 = vpop.f32.mrb[0].mxu0
        %v1577 = vadd.f32 0.0, %v1576
        %v1578 = vpop.f32.mrb[0].mxu0
        %1579 = vdwg.mxu0
        %v1580 = vadd.f32 %v1420, %v1542
        %v1581 = vadd.f32 %v1425, %v1547
        %v1582 = vadd.f32 %v1430, %v1552
        %v1583 = vadd.f32 %v1435, %v1557
        %v1584 = vadd.f32 %v1440, %v1562
        %v1585 = vadd.f32 %v1445, %v1567
        %v1586 = vadd.f32 %v1450, %v1572
        %v1587 = vadd.f32 %v1455, %v1577
        %s1588 = scalar_lea.vmem [#allocation7], 128
        %v1589 = vld [vmem:[%s1588] sm:$0xff]
        %v1590 = vld [vmem:[%s1588 + $0x8] sm:$0xff]
        %v1591 = vld [vmem:[%s1588 + $0x10] sm:$0xff]
        %v1592 = vld [vmem:[%s1588 + $0x18] sm:$0xff]
        %v1593 = vld [vmem:[%s1588 + $0x20] sm:$0xff]
        %v1594 = vld [vmem:[%s1588 + $0x28] sm:$0xff]
        %v1595 = vld [vmem:[%s1588 + $0x30] sm:$0xff]
        %v1596 = vld [vmem:[%s1588 + $0x38] sm:$0xff]
        %v1598 = vsel %vm1084, %v1589, 0
        %v1601 = vsel %vm1084, %v1590, 0
        %v1604 = vsel %vm1084, %v1591, 0
        %v1607 = vsel %vm1084, %v1592, 0
        %v1610 = vsel %vm1084, %v1593, 0
        %v1613 = vsel %vm1084, %v1594, 0
        %v1616 = vsel %vm1084, %v1595, 0
        %v1619 = vsel %vm1084, %v1596, 0
        %1621 = vmatprep.subr.mxu0 0.0
        %1622 = vmatpush1.msra.mxu0 %v1580
        %1623 = vmatprep.subr.mxu0 0.0
        %1624 = vmatpush1.msra.mxu0 %v1581
        %1625 = vmatprep.subr.mxu0 0.0
        %1626 = vmatpush1.msra.mxu0 %v1582
        %1627 = vmatprep.subr.mxu0 0.0
        %1628 = vmatpush1.msra.mxu0 %v1583
        %1629 = vmatprep.subr.mxu0 0.0
        %1630 = vmatpush1.msra.mxu0 %v1584
        %1631 = vmatprep.subr.mxu0 0.0
        %1632 = vmatpush1.msra.mxu0 %v1585
        %1633 = vmatprep.subr.mxu0 0.0
        %1634 = vmatpush1.msra.mxu0 %v1586
        %1635 = vmatprep.subr.mxu0 0.0
        %1636 = vmatpush1.msra.mxu0 %v1587
        %1637 = vmatprep.subr.mxu0 0.0
        %1638 = vmatpush1.msra.mxu0 0.0
        %1639 = vmatprep.subr.mxu0 0.0
        %1640 = vmatpush1.msra.mxu0 0.0
        %1641 = vmatprep.subr.mxu0 0.0
        %1642 = vmatpush1.msra.mxu0 0.0
        %1643 = vmatprep.subr.mxu0 0.0
        %1644 = vmatpush1.msra.mxu0 0.0
        %1645 = vmatprep.subr.mxu0 0.0
        %1646 = vmatpush1.msra.mxu0 0.0
        %1647 = vmatprep.subr.mxu0 0.0
        %1648 = vmatpush1.msra.mxu0 0.0
        %1649 = vmatprep.subr.mxu0 0.0
        %1650 = vmatpush1.msra.mxu0 0.0
        %1651 = vmatprep.subr.mxu0 0.0
        %1652 = vmatpush1.msra.mxu0 0.0
        %1653 = vmatprep.subr.mxu0 0.0
        %1654 = vmatpush1.msra.mxu0 0.0
        %1655 = vmatprep.subr.mxu0 0.0
        %1656 = vmatpush1.msra.mxu0 0.0
        %1657 = vmatprep.subr.mxu0 0.0
        %1658 = vmatpush1.msra.mxu0 0.0
        %1659 = vmatprep.subr.mxu0 0.0
        %1660 = vmatpush1.msra.mxu0 0.0
        %1661 = vmatprep.subr.mxu0 0.0
        %1662 = vmatpush1.msra.mxu0 0.0
        %1663 = vmatprep.subr.mxu0 0.0
        %1664 = vmatpush1.msra.mxu0 0.0
        %1665 = vmatprep.subr.mxu0 0.0
        %1666 = vmatpush1.msra.mxu0 0.0
        %1667 = vmatprep.subr.mxu0 0.0
        %1668 = vmatpush1.msra.mxu0 0.0
        %1669 = vmatprep.subr.mxu0 0.0
        %1670 = vmatpush1.msra.mxu0 0.0
        %1671 = vmatprep.subr.mxu0 0.0
        %1672 = vmatpush1.msra.mxu0 0.0
        %1673 = vmatprep.subr.mxu0 0.0
        %1674 = vmatpush1.msra.mxu0 0.0
        %1675 = vmatprep.subr.mxu0 0.0
        %1676 = vmatpush1.msra.mxu0 0.0
        %1677 = vmatprep.subr.mxu0 0.0
        %1678 = vmatpush1.msra.mxu0 0.0
        %1679 = vmatprep.subr.mxu0 0.0
        %1680 = vmatpush1.msra.mxu0 0.0
        %1681 = vmatprep.subr.mxu0 0.0
        %1682 = vmatpush1.msra.mxu0 0.0
        %1683 = vmatprep.subr.mxu0 0.0
        %1684 = vmatpush1.msra.mxu0 0.0
        %1685 = vmatprep.mubr.f32.mxu0 0.0
        %1686 = vmatmul.mubr.f32.gmra.mrb[0].mxu0 %v1598
        %v1687 = vpop.f32.mrb[0].mxu0
        %v1688 = vadd.f32 0.0, %v1687
        %v1689 = vpop.f32.mrb[0].mxu0
        %1690 = vmatprep.mubr.f32.mxu0 0.0
        %1691 = vmatmul.mubr.f32.gmra.mrb[0].mxu0 %v1601
        %v1692 = vpop.f32.mrb[0].mxu0
        %v1693 = vadd.f32 0.0, %v1692
        %v1694 = vpop.f32.mrb[0].mxu0
        %1695 = vmatprep.mubr.f32.mxu0 0.0
        %1696 = vmatmul.mubr.f32.gmra.mrb[0].mxu0 %v1604
        %v1697 = vpop.f32.mrb[0].mxu0
        %v1698 = vadd.f32 0.0, %v1697
        %v1699 = vpop.f32.mrb[0].mxu0
        %1700 = vmatprep.mubr.f32.mxu0 0.0
        %1701 = vmatmul.mubr.f32.gmra.mrb[0].mxu0 %v1607
        %v1702 = vpop.f32.mrb[0].mxu0
        %v1703 = vadd.f32 0.0, %v1702
        %v1704 = vpop.f32.mrb[0].mxu0
        %1705 = vmatprep.mubr.f32.mxu0 0.0
        %1706 = vmatmul.mubr.f32.gmra.mrb[0].mxu0 %v1610
        %v1707 = vpop.f32.mrb[0].mxu0
        %v1708 = vadd.f32 0.0, %v1707
        %v1709 = vpop.f32.mrb[0].mxu0
        %1710 = vmatprep.mubr.f32.mxu0 0.0
        %1711 = vmatmul.mubr.f32.gmra.mrb[0].mxu0 %v1613
        %v1712 = vpop.f32.mrb[0].mxu0
        %v1713 = vadd.f32 0.0, %v1712
        %v1714 = vpop.f32.mrb[0].mxu0
        %1715 = vmatprep.mubr.f32.mxu0 0.0
        %1716 = vmatmul.mubr.f32.gmra.mrb[0].mxu0 %v1616
        %v1717 = vpop.f32.mrb[0].mxu0
        %v1718 = vadd.f32 0.0, %v1717
        %v1719 = vpop.f32.mrb[0].mxu0
        %1720 = vmatprep.mubr.f32.mxu0 0.0
        %1721 = vmatmul.mubr.f32.gmra.mrb[0].mxu0 %v1619
        %v1722 = vpop.f32.mrb[0].mxu0
        %v1723 = vadd.f32 0.0, %v1722
        %v1724 = vpop.f32.mrb[0].mxu0
        %1725 = vdwg.mxu0
        %v1726 = vadd.f32 %v1176, %v1688
        %v1727 = vadd.f32 %v1181, %v1693
        %v1728 = vadd.f32 %v1186, %v1698
        %v1729 = vadd.f32 %v1191, %v1703
        %v1730 = vadd.f32 %v1196, %v1708
        %v1731 = vadd.f32 %v1201, %v1713
        %v1732 = vadd.f32 %v1206, %v1718
        %v1733 = vadd.f32 %v1211, %v1723
        %v1734 = vld [vmem:[#allocation5] sm:$0x1]
        %v1736 = vlaneseq
        %v1737 = vshrl.u32 %v1736, 7
        %v1738 = vsub.s32 0, %v1737
        %v1739 = vrot.slane %v1734, %v1738
        %v1741 = vadd.f32 %v1726, %v1739
        %v1742 = vadd.f32 %v1727, %v1739
        %v1743 = vadd.f32 %v1728, %v1739
        %v1744 = vadd.f32 %v1729, %v1739
        %v1745 = vadd.f32 %v1730, %v1739
        %v1746 = vadd.f32 %v1731, %v1739
        %v1747 = vadd.f32 %v1732, %v1739
        %v1748 = vadd.f32 %v1733, %v1739
        %v1749 = vmax.f32 %v1741, 0.0
        %v1750 = vmax.f32 %v1742, 0.0
        %v1751 = vmax.f32 %v1743, 0.0
        %v1752 = vmax.f32 %v1744, 0.0
        %v1753 = vmax.f32 %v1745, 0.0
        %v1754 = vmax.f32 %v1746, 0.0
        %v1755 = vmax.f32 %v1747, 0.0
        %v1756 = vmax.f32 %v1748, 0.0
        %s1757 = scalar_lea.vmem [#allocation2], 1152
        %v1758 = vld [vmem:[%s1757] sm:$0xff]
        %v1759 = vld [vmem:[%s1757 + $0x8] sm:$0xff]
        %v1760 = vld [vmem:[%s1757 + $0x10] sm:$0xff]
        %v1761 = vld [vmem:[%s1757 + $0x18] sm:$0xff]
        %v1762 = vld [vmem:[%s1757 + $0x20] sm:$0xff]
        %v1763 = vld [vmem:[%s1757 + $0x28] sm:$0xff]
        %v1764 = vld [vmem:[%s1757 + $0x30] sm:$0xff]
        %v1765 = vld [vmem:[%s1757 + $0x38] sm:$0xff]
        %v1766 = vld [vmem:[%s1757 + $0x40] sm:$0xff]
        %v1767 = vld [vmem:[%s1757 + $0x48] sm:$0xff]
        %v1768 = vld [vmem:[%s1757 + $0x50] sm:$0xff]
        %v1769 = vld [vmem:[%s1757 + $0x58] sm:$0xff]
        %v1770 = vld [vmem:[%s1757 + $0x60] sm:$0xff]
        %v1771 = vld [vmem:[%s1757 + $0x68] sm:$0xff]
        %v1772 = vld [vmem:[%s1757 + $0x70] sm:$0xff]
        %v1773 = vld [vmem:[%s1757 + $0x78] sm:$0xff]
        %s1774 = scalar_lea.vmem [#allocation2], 1280
        %v1775 = vld [vmem:[%s1774] sm:$0xff]
        %v1776 = vld [vmem:[%s1774 + $0x8] sm:$0xff]
        %v1777 = vld [vmem:[%s1774 + $0x10] sm:$0xff]
        %v1778 = vld [vmem:[%s1774 + $0x18] sm:$0xff]
        %v1779 = vld [vmem:[%s1774 + $0x20] sm:$0xff]
        %v1780 = vld [vmem:[%s1774 + $0x28] sm:$0xff]
        %v1781 = vld [vmem:[%s1774 + $0x30] sm:$0xff]
        %v1782 = vld [vmem:[%s1774 + $0x38] sm:$0xff]
        %v1783 = vld [vmem:[%s1774 + $0x40] sm:$0xff]
        %v1784 = vld [vmem:[%s1774 + $0x48] sm:$0xff]
        %v1785 = vld [vmem:[%s1774 + $0x50] sm:$0xff]
        %v1786 = vld [vmem:[%s1774 + $0x58] sm:$0xff]
        %v1787 = vld [vmem:[%s1774 + $0x60] sm:$0xff]
        %v1788 = vld [vmem:[%s1774 + $0x68] sm:$0xff]
        %v1789 = vld [vmem:[%s1774 + $0x70] sm:$0xff]
        %v1790 = vld [vmem:[%s1774 + $0x78] sm:$0xff]
        %1791 = vmatprep.subr.mxu0 0.0
        %1792 = vmatpush1.msra.mxu0 %v1775
        %1793 = vmatprep.subr.mxu0 0.0
        %1794 = vmatpush1.msra.mxu0 %v1776
        %1795 = vmatprep.subr.mxu0 0.0
        %1796 = vmatpush1.msra.mxu0 %v1777
        %1797 = vmatprep.subr.mxu0 0.0
        %1798 = vmatpush1.msra.mxu0 %v1778
        %1799 = vmatprep.subr.mxu0 0.0
        %1800 = vmatpush1.msra.mxu0 %v1779
        %1801 = vmatprep.subr.mxu0 0.0
        %1802 = vmatpush1.msra.mxu0 %v1780
        %1803 = vmatprep.subr.mxu0 0.0
        %1804 = vmatpush1.msra.mxu0 %v1781
        %1805 = vmatprep.subr.mxu0 0.0
        %1806 = vmatpush1.msra.mxu0 %v1782
        %1807 = vmatprep.subr.mxu0 0.0
        %1808 = vmatpush1.msra.mxu0 %v1783
        %1809 = vmatprep.subr.mxu0 0.0
        %1810 = vmatpush1.msra.mxu0 %v1784
        %1811 = vmatprep.subr.mxu0 0.0
        %1812 = vmatpush1.msra.mxu0 %v1785
        %1813 = vmatprep.subr.mxu0 0.0
        %1814 = vmatpush1.msra.mxu0 %v1786
        %1815 = vmatprep.subr.mxu0 0.0
        %1816 = vmatpush1.msra.mxu0 %v1787
        %1817 = vmatprep.subr.mxu0 0.0
        %1818 = vmatpush1.msra.mxu0 %v1788
        %1819 = vmatprep.subr.mxu0 0.0
        %1820 = vmatpush1.msra.mxu0 %v1789
        %1821 = vmatprep.subr.mxu0 0.0
        %1822 = vmatpush1.msra.mxu0 %v1790
        %1823 = vmatprep.subr.mxu0 0.0
        %1824 = vmatpush1.msra.mxu0 0.0
        %1825 = vmatprep.subr.mxu0 0.0
        %1826 = vmatpush1.msra.mxu0 0.0
        %1827 = vmatprep.subr.mxu0 0.0
        %1828 = vmatpush1.msra.mxu0 0.0
        %1829 = vmatprep.subr.mxu0 0.0
        %1830 = vmatpush1.msra.mxu0 0.0
        %1831 = vmatprep.subr.mxu0 0.0
        %1832 = vmatpush1.msra.mxu0 0.0
        %1833 = vmatprep.subr.mxu0 0.0
        %1834 = vmatpush1.msra.mxu0 0.0
        %1835 = vmatprep.subr.mxu0 0.0
        %1836 = vmatpush1.msra.mxu0 0.0
        %1837 = vmatprep.subr.mxu0 0.0
        %1838 = vmatpush1.msra.mxu0 0.0
        %1839 = vmatprep.subr.mxu0 0.0
        %1840 = vmatpush1.msra.mxu0 0.0
        %1841 = vmatprep.subr.mxu0 0.0
        %1842 = vmatpush1.msra.mxu0 0.0
        %1843 = vmatprep.subr.mxu0 0.0
        %1844 = vmatpush1.msra.mxu0 0.0
        %1845 = vmatprep.subr.mxu0 0.0
        %1846 = vmatpush1.msra.mxu0 0.0
        %1847 = vmatprep.subr.mxu0 0.0
        %1848 = vmatpush1.msra.mxu0 0.0
        %1849 = vmatprep.subr.mxu0 0.0
        %1850 = vmatpush1.msra.mxu0 0.0
        %1851 = vmatprep.subr.mxu0 0.0
        %1852 = vmatpush1.msra.mxu0 0.0
        %1853 = vmatprep.subr.mxu0 0.0
        %1854 = vmatpush1.msra.mxu0 0.0
        %1855 = vmatprep.mubr.f32.mxu0 0.0
        %1856 = vmatmul.mubr.f32.gmra.mrb[0].mxu0 %v1749
        %v1857 = vpop.f32.mrb[0].mxu0
        %v1858 = vadd.f32 0.0, %v1857
        %v1859 = vpop.f32.mrb[0].mxu0
        %1860 = vmatprep.mubr.f32.mxu0 0.0
        %1861 = vmatmul.mubr.f32.gmra.mrb[0].mxu0 %v1750
        %v1862 = vpop.f32.mrb[0].mxu0
        %v1863 = vadd.f32 0.0, %v1862
        %v1864 = vpop.f32.mrb[0].mxu0
        %1865 = vmatprep.mubr.f32.mxu0 0.0
        %1866 = vmatmul.mubr.f32.gmra.mrb[0].mxu0 %v1751
        %v1867 = vpop.f32.mrb[0].mxu0
        %v1868 = vadd.f32 0.0, %v1867
        %v1869 = vpop.f32.mrb[0].mxu0
        %1870 = vmatprep.mubr.f32.mxu0 0.0
        %1871 = vmatmul.mubr.f32.gmra.mrb[0].mxu0 %v1752
        %v1872 = vpop.f32.mrb[0].mxu0
        %v1873 = vadd.f32 0.0, %v1872
        %v1874 = vpop.f32.mrb[0].mxu0
        %1875 = vmatprep.mubr.f32.mxu0 0.0
        %1876 = vmatmul.mubr.f32.gmra.mrb[0].mxu0 %v1753
        %v1877 = vpop.f32.mrb[0].mxu0
        %v1878 = vadd.f32 0.0, %v1877
        %v1879 = vpop.f32.mrb[0].mxu0
        %1880 = vmatprep.mubr.f32.mxu0 0.0
        %1881 = vmatmul.mubr.f32.gmra.mrb[0].mxu0 %v1754
        %v1882 = vpop.f32.mrb[0].mxu0
        %v1883 = vadd.f32 0.0, %v1882
        %v1884 = vpop.f32.mrb[0].mxu0
        %1885 = vmatprep.mubr.f32.mxu0 0.0
        %1886 = vmatmul.mubr.f32.gmra.mrb[0].mxu0 %v1755
        %v1887 = vpop.f32.mrb[0].mxu0
        %v1888 = vadd.f32 0.0, %v1887
        %v1889 = vpop.f32.mrb[0].mxu0
        %1890 = vmatprep.mubr.f32.mxu0 0.0
        %1891 = vmatmul.mubr.f32.gmra.mrb[0].mxu0 %v1756
        %v1892 = vpop.f32.mrb[0].mxu0
        %v1893 = vadd.f32 0.0, %v1892
        %v1894 = vpop.f32.mrb[0].mxu0
        %1895 = vdwg.mxu0
        %1896 = vmatprep.subr.mxu0 0.0
        %1897 = vmatpush1.msra.mxu0 %v1758
        %1898 = vmatprep.subr.mxu0 0.0
        %1899 = vmatpush1.msra.mxu0 %v1759
        %1900 = vmatprep.subr.mxu0 0.0
        %1901 = vmatpush1.msra.mxu0 %v1760
        %1902 = vmatprep.subr.mxu0 0.0
        %1903 = vmatpush1.msra.mxu0 %v1761
        %1904 = vmatprep.subr.mxu0 0.0
        %1905 = vmatpush1.msra.mxu0 %v1762
        %1906 = vmatprep.subr.mxu0 0.0
        %1907 = vmatpush1.msra.mxu0 %v1763
        %1908 = vmatprep.subr.mxu0 0.0
        %1909 = vmatpush1.msra.mxu0 %v1764
        %1910 = vmatprep.subr.mxu0 0.0
        %1911 = vmatpush1.msra.mxu0 %v1765
        %1912 = vmatprep.subr.mxu0 0.0
        %1913 = vmatpush1.msra.mxu0 %v1766
        %1914 = vmatprep.subr.mxu0 0.0
        %1915 = vmatpush1.msra.mxu0 %v1767
        %1916 = vmatprep.subr.mxu0 0.0
        %1917 = vmatpush1.msra.mxu0 %v1768
        %1918 = vmatprep.subr.mxu0 0.0
        %1919 = vmatpush1.msra.mxu0 %v1769
        %1920 = vmatprep.subr.mxu0 0.0
        %1921 = vmatpush1.msra.mxu0 %v1770
        %1922 = vmatprep.subr.mxu0 0.0
        %1923 = vmatpush1.msra.mxu0 %v1771
        %1924 = vmatprep.subr.mxu0 0.0
        %1925 = vmatpush1.msra.mxu0 %v1772
        %1926 = vmatprep.subr.mxu0 0.0
        %1927 = vmatpush1.msra.mxu0 %v1773
        %1928 = vmatprep.subr.mxu0 0.0
        %1929 = vmatpush1.msra.mxu0 0.0
        %1930 = vmatprep.subr.mxu0 0.0
        %1931 = vmatpush1.msra.mxu0 0.0
        %1932 = vmatprep.subr.mxu0 0.0
        %1933 = vmatpush1.msra.mxu0 0.0
        %1934 = vmatprep.subr.mxu0 0.0
        %1935 = vmatpush1.msra.mxu0 0.0
        %1936 = vmatprep.subr.mxu0 0.0
        %1937 = vmatpush1.msra.mxu0 0.0
        %1938 = vmatprep.subr.mxu0 0.0
        %1939 = vmatpush1.msra.mxu0 0.0
        %1940 = vmatprep.subr.mxu0 0.0
        %1941 = vmatpush1.msra.mxu0 0.0
        %1942 = vmatprep.subr.mxu0 0.0
        %1943 = vmatpush1.msra.mxu0 0.0
        %1944 = vmatprep.subr.mxu0 0.0
        %1945 = vmatpush1.msra.mxu0 0.0
        %1946 = vmatprep.subr.mxu0 0.0
        %1947 = vmatpush1.msra.mxu0 0.0
        %1948 = vmatprep.subr.mxu0 0.0
        %1949 = vmatpush1.msra.mxu0 0.0
        %1950 = vmatprep.subr.mxu0 0.0
        %1951 = vmatpush1.msra.mxu0 0.0
        %1952 = vmatprep.subr.mxu0 0.0
        %1953 = vmatpush1.msra.mxu0 0.0
        %1954 = vmatprep.subr.mxu0 0.0
        %1955 = vmatpush1.msra.mxu0 0.0
        %1956 = vmatprep.subr.mxu0 0.0
        %1957 = vmatpush1.msra.mxu0 0.0
        %1958 = vmatprep.subr.mxu0 0.0
        %1959 = vmatpush1.msra.mxu0 0.0
        %1960 = vmatprep.mubr.f32.mxu0 0.0
        %1961 = vmatmul.mubr.f32.gmra.mrb[0].mxu0 0.0
        %v1962 = vpop.f32.mrb[0].mxu0
        %v1963 = vadd.f32 %v1858, %v1962
        %v1964 = vpop.f32.mrb[0].mxu0
        %1965 = vmatprep.mubr.f32.mxu0 0.0
        %1966 = vmatmul.mubr.f32.gmra.mrb[0].mxu0 %v1749
        %v1967 = vpop.f32.mrb[0].mxu0
        %v1968 = vadd.f32 %v1863, %v1967
        %v1969 = vpop.f32.mrb[0].mxu0
        %1970 = vmatprep.mubr.f32.mxu0 0.0
        %1971 = vmatmul.mubr.f32.gmra.mrb[0].mxu0 %v1750
        %v1972 = vpop.f32.mrb[0].mxu0
        %v1973 = vadd.f32 %v1868, %v1972
        %v1974 = vpop.f32.mrb[0].mxu0
        %1975 = vmatprep.mubr.f32.mxu0 0.0
        %1976 = vmatmul.mubr.f32.gmra.mrb[0].mxu0 %v1751
        %v1977 = vpop.f32.mrb[0].mxu0
        %v1978 = vadd.f32 %v1873, %v1977
        %v1979 = vpop.f32.mrb[0].mxu0
        %1980 = vmatprep.mubr.f32.mxu0 0.0
        %1981 = vmatmul.mubr.f32.gmra.mrb[0].mxu0 %v1752
        %v1982 = vpop.f32.mrb[0].mxu0
        %v1983 = vadd.f32 %v1878, %v1982
        %v1984 = vpop.f32.mrb[0].mxu0
        %1985 = vmatprep.mubr.f32.mxu0 0.0
        %1986 = vmatmul.mubr.f32.gmra.mrb[0].mxu0 %v1753
        %v1987 = vpop.f32.mrb[0].mxu0
        %v1988 = vadd.f32 %v1883, %v1987
        %v1989 = vpop.f32.mrb[0].mxu0
        %1990 = vmatprep.mubr.f32.mxu0 0.0
        %1991 = vmatmul.mubr.f32.gmra.mrb[0].mxu0 %v1754
        %v1992 = vpop.f32.mrb[0].mxu0
        %v1993 = vadd.f32 %v1888, %v1992
        %v1994 = vpop.f32.mrb[0].mxu0
        %1995 = vmatprep.mubr.f32.mxu0 0.0
        %1996 = vmatmul.mubr.f32.gmra.mrb[0].mxu0 %v1755
        %v1997 = vpop.f32.mrb[0].mxu0
        %v1998 = vadd.f32 %v1893, %v1997
        %v1999 = vpop.f32.mrb[0].mxu0
        %2000 = vdwg.mxu0
        %s2001 = scalar_lea.vmem [#allocation2], 1408
        %v2002 = vld [vmem:[%s2001] sm:$0xff]
        %v2003 = vld [vmem:[%s2001 + $0x8] sm:$0xff]
        %v2004 = vld [vmem:[%s2001 + $0x10] sm:$0xff]
        %v2005 = vld [vmem:[%s2001 + $0x18] sm:$0xff]
        %v2006 = vld [vmem:[%s2001 + $0x20] sm:$0xff]
        %v2007 = vld [vmem:[%s2001 + $0x28] sm:$0xff]
        %v2008 = vld [vmem:[%s2001 + $0x30] sm:$0xff]
        %v2009 = vld [vmem:[%s2001 + $0x38] sm:$0xff]
        %v2010 = vld [vmem:[%s2001 + $0x40] sm:$0xff]
        %v2011 = vld [vmem:[%s2001 + $0x48] sm:$0xff]
        %v2012 = vld [vmem:[%s2001 + $0x50] sm:$0xff]
        %v2013 = vld [vmem:[%s2001 + $0x58] sm:$0xff]
        %v2014 = vld [vmem:[%s2001 + $0x60] sm:$0xff]
        %v2015 = vld [vmem:[%s2001 + $0x68] sm:$0xff]
        %v2016 = vld [vmem:[%s2001 + $0x70] sm:$0xff]
        %v2017 = vld [vmem:[%s2001 + $0x78] sm:$0xff]
        %2018 = vmatprep.subr.mxu0 0.0
        %2019 = vmatpush1.msra.mxu0 %v2002
        %2020 = vmatprep.subr.mxu0 0.0
        %2021 = vmatpush1.msra.mxu0 %v2003
        %2022 = vmatprep.subr.mxu0 0.0
        %2023 = vmatpush1.msra.mxu0 %v2004
        %2024 = vmatprep.subr.mxu0 0.0
        %2025 = vmatpush1.msra.mxu0 %v2005
        %2026 = vmatprep.subr.mxu0 0.0
        %2027 = vmatpush1.msra.mxu0 %v2006
        %2028 = vmatprep.subr.mxu0 0.0
        %2029 = vmatpush1.msra.mxu0 %v2007
        %2030 = vmatprep.subr.mxu0 0.0
        %2031 = vmatpush1.msra.mxu0 %v2008
        %2032 = vmatprep.subr.mxu0 0.0
        %2033 = vmatpush1.msra.mxu0 %v2009
        %2034 = vmatprep.subr.mxu0 0.0
        %2035 = vmatpush1.msra.mxu0 %v2010
        %2036 = vmatprep.subr.mxu0 0.0
        %2037 = vmatpush1.msra.mxu0 %v2011
        %2038 = vmatprep.subr.mxu0 0.0
        %2039 = vmatpush1.msra.mxu0 %v2012
        %2040 = vmatprep.subr.mxu0 0.0
        %2041 = vmatpush1.msra.mxu0 %v2013
        %2042 = vmatprep.subr.mxu0 0.0
        %2043 = vmatpush1.msra.mxu0 %v2014
        %2044 = vmatprep.subr.mxu0 0.0
        %2045 = vmatpush1.msra.mxu0 %v2015
        %2046 = vmatprep.subr.mxu0 0.0
        %2047 = vmatpush1.msra.mxu0 %v2016
        %2048 = vmatprep.subr.mxu0 0.0
        %2049 = vmatpush1.msra.mxu0 %v2017
        %2050 = vmatprep.subr.mxu0 0.0
        %2051 = vmatpush1.msra.mxu0 0.0
        %2052 = vmatprep.subr.mxu0 0.0
        %2053 = vmatpush1.msra.mxu0 0.0
        %2054 = vmatprep.subr.mxu0 0.0
        %2055 = vmatpush1.msra.mxu0 0.0
        %2056 = vmatprep.subr.mxu0 0.0
        %2057 = vmatpush1.msra.mxu0 0.0
        %2058 = vmatprep.subr.mxu0 0.0
        %2059 = vmatpush1.msra.mxu0 0.0
        %2060 = vmatprep.subr.mxu0 0.0
        %2061 = vmatpush1.msra.mxu0 0.0
        %2062 = vmatprep.subr.mxu0 0.0
        %2063 = vmatpush1.msra.mxu0 0.0
        %2064 = vmatprep.subr.mxu0 0.0
        %2065 = vmatpush1.msra.mxu0 0.0
        %2066 = vmatprep.subr.mxu0 0.0
        %2067 = vmatpush1.msra.mxu0 0.0
        %2068 = vmatprep.subr.mxu0 0.0
        %2069 = vmatpush1.msra.mxu0 0.0
        %2070 = vmatprep.subr.mxu0 0.0
        %2071 = vmatpush1.msra.mxu0 0.0
        %2072 = vmatprep.subr.mxu0 0.0
        %2073 = vmatpush1.msra.mxu0 0.0
        %2074 = vmatprep.subr.mxu0 0.0
        %2075 = vmatpush1.msra.mxu0 0.0
        %2076 = vmatprep.subr.mxu0 0.0
        %2077 = vmatpush1.msra.mxu0 0.0
        %2078 = vmatprep.subr.mxu0 0.0
        %2079 = vmatpush1.msra.mxu0 0.0
        %2080 = vmatprep.subr.mxu0 0.0
        %2081 = vmatpush1.msra.mxu0 0.0
        %2082 = vmatprep.mubr.f32.mxu0 0.0
        %2083 = vmatmul.mubr.f32.gmra.mrb[0].mxu0 %v1750
        %v2084 = vpop.f32.mrb[0].mxu0
        %v2085 = vadd.f32 0.0, %v2084
        %v2086 = vpop.f32.mrb[0].mxu0
        %2087 = vmatprep.mubr.f32.mxu0 0.0
        %2088 = vmatmul.mubr.f32.gmra.mrb[0].mxu0 %v1751
        %v2089 = vpop.f32.mrb[0].mxu0
        %v2090 = vadd.f32 0.0, %v2089
        %v2091 = vpop.f32.mrb[0].mxu0
        %2092 = vmatprep.mubr.f32.mxu0 0.0
        %2093 = vmatmul.mubr.f32.gmra.mrb[0].mxu0 %v1752
        %v2094 = vpop.f32.mrb[0].mxu0
        %v2095 = vadd.f32 0.0, %v2094
        %v2096 = vpop.f32.mrb[0].mxu0
        %2097 = vmatprep.mubr.f32.mxu0 0.0
        %2098 = vmatmul.mubr.f32.gmra.mrb[0].mxu0 %v1753
        %v2099 = vpop.f32.mrb[0].mxu0
        %v2100 = vadd.f32 0.0, %v2099
        %v2101 = vpop.f32.mrb[0].mxu0
        %2102 = vmatprep.mubr.f32.mxu0 0.0
        %2103 = vmatmul.mubr.f32.gmra.mrb[0].mxu0 %v1754
        %v2104 = vpop.f32.mrb[0].mxu0
        %v2105 = vadd.f32 0.0, %v2104
        %v2106 = vpop.f32.mrb[0].mxu0
        %2107 = vmatprep.mubr.f32.mxu0 0.0
        %2108 = vmatmul.mubr.f32.gmra.mrb[0].mxu0 %v1755
        %v2109 = vpop.f32.mrb[0].mxu0
        %v2110 = vadd.f32 0.0, %v2109
        %v2111 = vpop.f32.mrb[0].mxu0
        %2112 = vmatprep.mubr.f32.mxu0 0.0
        %2113 = vmatmul.mubr.f32.gmra.mrb[0].mxu0 %v1756
        %v2114 = vpop.f32.mrb[0].mxu0
        %v2115 = vadd.f32 0.0, %v2114
        %v2116 = vpop.f32.mrb[0].mxu0
        %2117 = vmatprep.mubr.f32.mxu0 0.0
        %2118 = vmatmul.mubr.f32.gmra.mrb[0].mxu0 0.0
        %v2119 = vpop.f32.mrb[0].mxu0
        %v2120 = vadd.f32 0.0, %v2119
        %v2121 = vpop.f32.mrb[0].mxu0
        %2122 = vdwg.mxu0
        %v2123 = vadd.f32 %v1963, %v2085
        %v2124 = vadd.f32 %v1968, %v2090
        %v2125 = vadd.f32 %v1973, %v2095
        %v2126 = vadd.f32 %v1978, %v2100
        %v2127 = vadd.f32 %v1983, %v2105
        %v2128 = vadd.f32 %v1988, %v2110
        %v2129 = vadd.f32 %v1993, %v2115
        %v2130 = vadd.f32 %v1998, %v2120
        %s2131 = scalar_lea.vmem [#allocation2], 1536
        %v2132 = vld [vmem:[%s2131] sm:$0xff]
        %v2133 = vld [vmem:[%s2131 + $0x8] sm:$0xff]
        %v2134 = vld [vmem:[%s2131 + $0x10] sm:$0xff]
        %v2135 = vld [vmem:[%s2131 + $0x18] sm:$0xff]
        %v2136 = vld [vmem:[%s2131 + $0x20] sm:$0xff]
        %v2137 = vld [vmem:[%s2131 + $0x28] sm:$0xff]
        %v2138 = vld [vmem:[%s2131 + $0x30] sm:$0xff]
        %v2139 = vld [vmem:[%s2131 + $0x38] sm:$0xff]
        %v2140 = vld [vmem:[%s2131 + $0x40] sm:$0xff]
        %v2141 = vld [vmem:[%s2131 + $0x48] sm:$0xff]
        %v2142 = vld [vmem:[%s2131 + $0x50] sm:$0xff]
        %v2143 = vld [vmem:[%s2131 + $0x58] sm:$0xff]
        %v2144 = vld [vmem:[%s2131 + $0x60] sm:$0xff]
        %v2145 = vld [vmem:[%s2131 + $0x68] sm:$0xff]
        %v2146 = vld [vmem:[%s2131 + $0x70] sm:$0xff]
        %v2147 = vld [vmem:[%s2131 + $0x78] sm:$0xff]
        %s2148 = scalar_lea.vmem [#allocation2], 1664
        %v2149 = vld [vmem:[%s2148] sm:$0xff]
        %v2150 = vld [vmem:[%s2148 + $0x8] sm:$0xff]
        %v2151 = vld [vmem:[%s2148 + $0x10] sm:$0xff]
        %v2152 = vld [vmem:[%s2148 + $0x18] sm:$0xff]
        %v2153 = vld [vmem:[%s2148 + $0x20] sm:$0xff]
        %v2154 = vld [vmem:[%s2148 + $0x28] sm:$0xff]
        %v2155 = vld [vmem:[%s2148 + $0x30] sm:$0xff]
        %v2156 = vld [vmem:[%s2148 + $0x38] sm:$0xff]
        %v2157 = vld [vmem:[%s2148 + $0x40] sm:$0xff]
        %v2158 = vld [vmem:[%s2148 + $0x48] sm:$0xff]
        %v2159 = vld [vmem:[%s2148 + $0x50] sm:$0xff]
        %v2160 = vld [vmem:[%s2148 + $0x58] sm:$0xff]
        %v2161 = vld [vmem:[%s2148 + $0x60] sm:$0xff]
        %v2162 = vld [vmem:[%s2148 + $0x68] sm:$0xff]
        %v2163 = vld [vmem:[%s2148 + $0x70] sm:$0xff]
        %v2164 = vld [vmem:[%s2148 + $0x78] sm:$0xff]
        %2165 = vmatprep.subr.mxu0 0.0
        %2166 = vmatpush1.msra.mxu0 %v2149
        %2167 = vmatprep.subr.mxu0 0.0
        %2168 = vmatpush1.msra.mxu0 %v2150
        %2169 = vmatprep.subr.mxu0 0.0
        %2170 = vmatpush1.msra.mxu0 %v2151
        %2171 = vmatprep.subr.mxu0 0.0
        %2172 = vmatpush1.msra.mxu0 %v2152
        %2173 = vmatprep.subr.mxu0 0.0
        %2174 = vmatpush1.msra.mxu0 %v2153
        %2175 = vmatprep.subr.mxu0 0.0
        %2176 = vmatpush1.msra.mxu0 %v2154
        %2177 = vmatprep.subr.mxu0 0.0
        %2178 = vmatpush1.msra.mxu0 %v2155
        %2179 = vmatprep.subr.mxu0 0.0
        %2180 = vmatpush1.msra.mxu0 %v2156
        %2181 = vmatprep.subr.mxu0 0.0
        %2182 = vmatpush1.msra.mxu0 %v2157
        %2183 = vmatprep.subr.mxu0 0.0
        %2184 = vmatpush1.msra.mxu0 %v2158
        %2185 = vmatprep.subr.mxu0 0.0
        %2186 = vmatpush1.msra.mxu0 %v2159
        %2187 = vmatprep.subr.mxu0 0.0
        %2188 = vmatpush1.msra.mxu0 %v2160
        %2189 = vmatprep.subr.mxu0 0.0
        %2190 = vmatpush1.msra.mxu0 %v2161
        %2191 = vmatprep.subr.mxu0 0.0
        %2192 = vmatpush1.msra.mxu0 %v2162
        %2193 = vmatprep.subr.mxu0 0.0
        %2194 = vmatpush1.msra.mxu0 %v2163
        %2195 = vmatprep.subr.mxu0 0.0
        %2196 = vmatpush1.msra.mxu0 %v2164
        %2197 = vmatprep.subr.mxu0 0.0
        %2198 = vmatpush1.msra.mxu0 0.0
        %2199 = vmatprep.subr.mxu0 0.0
        %2200 = vmatpush1.msra.mxu0 0.0
        %2201 = vmatprep.subr.mxu0 0.0
        %2202 = vmatpush1.msra.mxu0 0.0
        %2203 = vmatprep.subr.mxu0 0.0
        %2204 = vmatpush1.msra.mxu0 0.0
        %2205 = vmatprep.subr.mxu0 0.0
        %2206 = vmatpush1.msra.mxu0 0.0
        %2207 = vmatprep.subr.mxu0 0.0
        %2208 = vmatpush1.msra.mxu0 0.0
        %2209 = vmatprep.subr.mxu0 0.0
        %2210 = vmatpush1.msra.mxu0 0.0
        %2211 = vmatprep.subr.mxu0 0.0
        %2212 = vmatpush1.msra.mxu0 0.0
        %2213 = vmatprep.subr.mxu0 0.0
        %2214 = vmatpush1.msra.mxu0 0.0
        %2215 = vmatprep.subr.mxu0 0.0
        %2216 = vmatpush1.msra.mxu0 0.0
        %2217 = vmatprep.subr.mxu0 0.0
        %2218 = vmatpush1.msra.mxu0 0.0
        %2219 = vmatprep.subr.mxu0 0.0
        %2220 = vmatpush1.msra.mxu0 0.0
        %2221 = vmatprep.subr.mxu0 0.0
        %2222 = vmatpush1.msra.mxu0 0.0
        %2223 = vmatprep.subr.mxu0 0.0
        %2224 = vmatpush1.msra.mxu0 0.0
        %2225 = vmatprep.subr.mxu0 0.0
        %2226 = vmatpush1.msra.mxu0 0.0
        %2227 = vmatprep.subr.mxu0 0.0
        %2228 = vmatpush1.msra.mxu0 0.0
        %2229 = vmatprep.mubr.f32.mxu0 0.0
        %2230 = vmatmul.mubr.f32.gmra.mrb[0].mxu0 %v1749
        %v2231 = vpop.f32.mrb[0].mxu0
        %v2232 = vadd.f32 0.0, %v2231
        %v2233 = vpop.f32.mrb[0].mxu0
        %2234 = vmatprep.mubr.f32.mxu0 0.0
        %2235 = vmatmul.mubr.f32.gmra.mrb[0].mxu0 %v1750
        %v2236 = vpop.f32.mrb[0].mxu0
        %v2237 = vadd.f32 0.0, %v2236
        %v2238 = vpop.f32.mrb[0].mxu0
        %2239 = vmatprep.mubr.f32.mxu0 0.0
        %2240 = vmatmul.mubr.f32.gmra.mrb[0].mxu0 %v1751
        %v2241 = vpop.f32.mrb[0].mxu0
        %v2242 = vadd.f32 0.0, %v2241
        %v2243 = vpop.f32.mrb[0].mxu0
        %2244 = vmatprep.mubr.f32.mxu0 0.0
        %2245 = vmatmul.mubr.f32.gmra.mrb[0].mxu0 %v1752
        %v2246 = vpop.f32.mrb[0].mxu0
        %v2247 = vadd.f32 0.0, %v2246
        %v2248 = vpop.f32.mrb[0].mxu0
        %2249 = vmatprep.mubr.f32.mxu0 0.0
        %2250 = vmatmul.mubr.f32.gmra.mrb[0].mxu0 %v1753
        %v2251 = vpop.f32.mrb[0].mxu0
        %v2252 = vadd.f32 0.0, %v2251
        %v2253 = vpop.f32.mrb[0].mxu0
        %2254 = vmatprep.mubr.f32.mxu0 0.0
        %2255 = vmatmul.mubr.f32.gmra.mrb[0].mxu0 %v1754
        %v2256 = vpop.f32.mrb[0].mxu0
        %v2257 = vadd.f32 0.0, %v2256
        %v2258 = vpop.f32.mrb[0].mxu0
        %2259 = vmatprep.mubr.f32.mxu0 0.0
        %2260 = vmatmul.mubr.f32.gmra.mrb[0].mxu0 %v1755
        %v2261 = vpop.f32.mrb[0].mxu0
        %v2262 = vadd.f32 0.0, %v2261
        %v2263 = vpop.f32.mrb[0].mxu0
        %2264 = vmatprep.mubr.f32.mxu0 0.0
        %2265 = vmatmul.mubr.f32.gmra.mrb[0].mxu0 %v1756
        %v2266 = vpop.f32.mrb[0].mxu0
        %v2267 = vadd.f32 0.0, %v2266
        %v2268 = vpop.f32.mrb[0].mxu0
        %2269 = vdwg.mxu0
        %2270 = vmatprep.subr.mxu0 0.0
        %2271 = vmatpush1.msra.mxu0 %v2132
        %2272 = vmatprep.subr.mxu0 0.0
        %2273 = vmatpush1.msra.mxu0 %v2133
        %2274 = vmatprep.subr.mxu0 0.0
        %2275 = vmatpush1.msra.mxu0 %v2134
        %2276 = vmatprep.subr.mxu0 0.0
        %2277 = vmatpush1.msra.mxu0 %v2135
        %2278 = vmatprep.subr.mxu0 0.0
        %2279 = vmatpush1.msra.mxu0 %v2136
        %2280 = vmatprep.subr.mxu0 0.0
        %2281 = vmatpush1.msra.mxu0 %v2137
        %2282 = vmatprep.subr.mxu0 0.0
        %2283 = vmatpush1.msra.mxu0 %v2138
        %2284 = vmatprep.subr.mxu0 0.0
        %2285 = vmatpush1.msra.mxu0 %v2139
        %2286 = vmatprep.subr.mxu0 0.0
        %2287 = vmatpush1.msra.mxu0 %v2140
        %2288 = vmatprep.subr.mxu0 0.0
        %2289 = vmatpush1.msra.mxu0 %v2141
        %2290 = vmatprep.subr.mxu0 0.0
        %2291 = vmatpush1.msra.mxu0 %v2142
        %2292 = vmatprep.subr.mxu0 0.0
        %2293 = vmatpush1.msra.mxu0 %v2143
        %2294 = vmatprep.subr.mxu0 0.0
        %2295 = vmatpush1.msra.mxu0 %v2144
        %2296 = vmatprep.subr.mxu0 0.0
        %2297 = vmatpush1.msra.mxu0 %v2145
        %2298 = vmatprep.subr.mxu0 0.0
        %2299 = vmatpush1.msra.mxu0 %v2146
        %2300 = vmatprep.subr.mxu0 0.0
        %2301 = vmatpush1.msra.mxu0 %v2147
        %2302 = vmatprep.subr.mxu0 0.0
        %2303 = vmatpush1.msra.mxu0 0.0
        %2304 = vmatprep.subr.mxu0 0.0
        %2305 = vmatpush1.msra.mxu0 0.0
        %2306 = vmatprep.subr.mxu0 0.0
        %2307 = vmatpush1.msra.mxu0 0.0
        %2308 = vmatprep.subr.mxu0 0.0
        %2309 = vmatpush1.msra.mxu0 0.0
        %2310 = vmatprep.subr.mxu0 0.0
        %2311 = vmatpush1.msra.mxu0 0.0
        %2312 = vmatprep.subr.mxu0 0.0
        %2313 = vmatpush1.msra.mxu0 0.0
        %2314 = vmatprep.subr.mxu0 0.0
        %2315 = vmatpush1.msra.mxu0 0.0
        %2316 = vmatprep.subr.mxu0 0.0
        %2317 = vmatpush1.msra.mxu0 0.0
        %2318 = vmatprep.subr.mxu0 0.0
        %2319 = vmatpush1.msra.mxu0 0.0
        %2320 = vmatprep.subr.mxu0 0.0
        %2321 = vmatpush1.msra.mxu0 0.0
        %2322 = vmatprep.subr.mxu0 0.0
        %2323 = vmatpush1.msra.mxu0 0.0
        %2324 = vmatprep.subr.mxu0 0.0
        %2325 = vmatpush1.msra.mxu0 0.0
        %2326 = vmatprep.subr.mxu0 0.0
        %2327 = vmatpush1.msra.mxu0 0.0
        %2328 = vmatprep.subr.mxu0 0.0
        %2329 = vmatpush1.msra.mxu0 0.0
        %2330 = vmatprep.subr.mxu0 0.0
        %2331 = vmatpush1.msra.mxu0 0.0
        %2332 = vmatprep.subr.mxu0 0.0
        %2333 = vmatpush1.msra.mxu0 0.0
        %2334 = vmatprep.mubr.f32.mxu0 0.0
        %2335 = vmatmul.mubr.f32.gmra.mrb[0].mxu0 0.0
        %v2336 = vpop.f32.mrb[0].mxu0
        %v2337 = vadd.f32 %v2232, %v2336
        %v2338 = vpop.f32.mrb[0].mxu0
        %2339 = vmatprep.mubr.f32.mxu0 0.0
        %2340 = vmatmul.mubr.f32.gmra.mrb[0].mxu0 %v1749
        %v2341 = vpop.f32.mrb[0].mxu0
        %v2342 = vadd.f32 %v2237, %v2341
        %v2343 = vpop.f32.mrb[0].mxu0
        %2344 = vmatprep.mubr.f32.mxu0 0.0
        %2345 = vmatmul.mubr.f32.gmra.mrb[0].mxu0 %v1750
        %v2346 = vpop.f32.mrb[0].mxu0
        %v2347 = vadd.f32 %v2242, %v2346
        %v2348 = vpop.f32.mrb[0].mxu0
        %2349 = vmatprep.mubr.f32.mxu0 0.0
        %2350 = vmatmul.mubr.f32.gmra.mrb[0].mxu0 %v1751
        %v2351 = vpop.f32.mrb[0].mxu0
        %v2352 = vadd.f32 %v2247, %v2351
        %v2353 = vpop.f32.mrb[0].mxu0
        %2354 = vmatprep.mubr.f32.mxu0 0.0
        %2355 = vmatmul.mubr.f32.gmra.mrb[0].mxu0 %v1752
        %v2356 = vpop.f32.mrb[0].mxu0
        %v2357 = vadd.f32 %v2252, %v2356
        %v2358 = vpop.f32.mrb[0].mxu0
        %2359 = vmatprep.mubr.f32.mxu0 0.0
        %2360 = vmatmul.mubr.f32.gmra.mrb[0].mxu0 %v1753
        %v2361 = vpop.f32.mrb[0].mxu0
        %v2362 = vadd.f32 %v2257, %v2361
        %v2363 = vpop.f32.mrb[0].mxu0
        %2364 = vmatprep.mubr.f32.mxu0 0.0
        %2365 = vmatmul.mubr.f32.gmra.mrb[0].mxu0 %v1754
        %v2366 = vpop.f32.mrb[0].mxu0
        %v2367 = vadd.f32 %v2262, %v2366
        %v2368 = vpop.f32.mrb[0].mxu0
        %2369 = vmatprep.mubr.f32.mxu0 0.0
        %2370 = vmatmul.mubr.f32.gmra.mrb[0].mxu0 %v1755
        %v2371 = vpop.f32.mrb[0].mxu0
        %v2372 = vadd.f32 %v2267, %v2371
        %v2373 = vpop.f32.mrb[0].mxu0
        %2374 = vdwg.mxu0
        %s2375 = scalar_lea.vmem [#allocation2], 1792
        %v2376 = vld [vmem:[%s2375] sm:$0xff]
        %v2377 = vld [vmem:[%s2375 + $0x8] sm:$0xff]
        %v2378 = vld [vmem:[%s2375 + $0x10] sm:$0xff]
        %v2379 = vld [vmem:[%s2375 + $0x18] sm:$0xff]
        %v2380 = vld [vmem:[%s2375 + $0x20] sm:$0xff]
        %v2381 = vld [vmem:[%s2375 + $0x28] sm:$0xff]
        %v2382 = vld [vmem:[%s2375 + $0x30] sm:$0xff]
        %v2383 = vld [vmem:[%s2375 + $0x38] sm:$0xff]
        %v2384 = vld [vmem:[%s2375 + $0x40] sm:$0xff]
        %v2385 = vld [vmem:[%s2375 + $0x48] sm:$0xff]
        %v2386 = vld [vmem:[%s2375 + $0x50] sm:$0xff]
        %v2387 = vld [vmem:[%s2375 + $0x58] sm:$0xff]
        %v2388 = vld [vmem:[%s2375 + $0x60] sm:$0xff]
        %v2389 = vld [vmem:[%s2375 + $0x68] sm:$0xff]
        %v2390 = vld [vmem:[%s2375 + $0x70] sm:$0xff]
        %v2391 = vld [vmem:[%s2375 + $0x78] sm:$0xff]
        %2392 = vmatprep.subr.mxu0 0.0
        %2393 = vmatpush1.msra.mxu0 %v2376
        %2394 = vmatprep.subr.mxu0 0.0
        %2395 = vmatpush1.msra.mxu0 %v2377
        %2396 = vmatprep.subr.mxu0 0.0
        %2397 = vmatpush1.msra.mxu0 %v2378
        %2398 = vmatprep.subr.mxu0 0.0
        %2399 = vmatpush1.msra.mxu0 %v2379
        %2400 = vmatprep.subr.mxu0 0.0
        %2401 = vmatpush1.msra.mxu0 %v2380
        %2402 = vmatprep.subr.mxu0 0.0
        %2403 = vmatpush1.msra.mxu0 %v2381
        %2404 = vmatprep.subr.mxu0 0.0
        %2405 = vmatpush1.msra.mxu0 %v2382
        %2406 = vmatprep.subr.mxu0 0.0
        %2407 = vmatpush1.msra.mxu0 %v2383
        %2408 = vmatprep.subr.mxu0 0.0
        %2409 = vmatpush1.msra.mxu0 %v2384
        %2410 = vmatprep.subr.mxu0 0.0
        %2411 = vmatpush1.msra.mxu0 %v2385
        %2412 = vmatprep.subr.mxu0 0.0
        %2413 = vmatpush1.msra.mxu0 %v2386
        %2414 = vmatprep.subr.mxu0 0.0
        %2415 = vmatpush1.msra.mxu0 %v2387
        %2416 = vmatprep.subr.mxu0 0.0
        %2417 = vmatpush1.msra.mxu0 %v2388
        %2418 = vmatprep.subr.mxu0 0.0
        %2419 = vmatpush1.msra.mxu0 %v2389
        %2420 = vmatprep.subr.mxu0 0.0
        %2421 = vmatpush1.msra.mxu0 %v2390
        %2422 = vmatprep.subr.mxu0 0.0
        %2423 = vmatpush1.msra.mxu0 %v2391
        %2424 = vmatprep.subr.mxu0 0.0
        %2425 = vmatpush1.msra.mxu0 0.0
        %2426 = vmatprep.subr.mxu0 0.0
        %2427 = vmatpush1.msra.mxu0 0.0
        %2428 = vmatprep.subr.mxu0 0.0
        %2429 = vmatpush1.msra.mxu0 0.0
        %2430 = vmatprep.subr.mxu0 0.0
        %2431 = vmatpush1.msra.mxu0 0.0
        %2432 = vmatprep.subr.mxu0 0.0
        %2433 = vmatpush1.msra.mxu0 0.0
        %2434 = vmatprep.subr.mxu0 0.0
        %2435 = vmatpush1.msra.mxu0 0.0
        %2436 = vmatprep.subr.mxu0 0.0
        %2437 = vmatpush1.msra.mxu0 0.0
        %2438 = vmatprep.subr.mxu0 0.0
        %2439 = vmatpush1.msra.mxu0 0.0
        %2440 = vmatprep.subr.mxu0 0.0
        %2441 = vmatpush1.msra.mxu0 0.0
        %2442 = vmatprep.subr.mxu0 0.0
        %2443 = vmatpush1.msra.mxu0 0.0
        %2444 = vmatprep.subr.mxu0 0.0
        %2445 = vmatpush1.msra.mxu0 0.0
        %2446 = vmatprep.subr.mxu0 0.0
        %2447 = vmatpush1.msra.mxu0 0.0
        %2448 = vmatprep.subr.mxu0 0.0
        %2449 = vmatpush1.msra.mxu0 0.0
        %2450 = vmatprep.subr.mxu0 0.0
        %2451 = vmatpush1.msra.mxu0 0.0
        %2452 = vmatprep.subr.mxu0 0.0
        %2453 = vmatpush1.msra.mxu0 0.0
        %2454 = vmatprep.subr.mxu0 0.0
        %2455 = vmatpush1.msra.mxu0 0.0
        %2456 = vmatprep.mubr.f32.mxu0 0.0
        %2457 = vmatmul.mubr.f32.gmra.mrb[0].mxu0 %v1750
        %v2458 = vpop.f32.mrb[0].mxu0
        %v2459 = vadd.f32 0.0, %v2458
        %v2460 = vpop.f32.mrb[0].mxu0
        %2461 = vmatprep.mubr.f32.mxu0 0.0
        %2462 = vmatmul.mubr.f32.gmra.mrb[0].mxu0 %v1751
        %v2463 = vpop.f32.mrb[0].mxu0
        %v2464 = vadd.f32 0.0, %v2463
        %v2465 = vpop.f32.mrb[0].mxu0
        %2466 = vmatprep.mubr.f32.mxu0 0.0
        %2467 = vmatmul.mubr.f32.gmra.mrb[0].mxu0 %v1752
        %v2468 = vpop.f32.mrb[0].mxu0
        %v2469 = vadd.f32 0.0, %v2468
        %v2470 = vpop.f32.mrb[0].mxu0
        %2471 = vmatprep.mubr.f32.mxu0 0.0
        %2472 = vmatmul.mubr.f32.gmra.mrb[0].mxu0 %v1753
        %v2473 = vpop.f32.mrb[0].mxu0
        %v2474 = vadd.f32 0.0, %v2473
        %v2475 = vpop.f32.mrb[0].mxu0
        %2476 = vmatprep.mubr.f32.mxu0 0.0
        %2477 = vmatmul.mubr.f32.gmra.mrb[0].mxu0 %v1754
        %v2478 = vpop.f32.mrb[0].mxu0
        %v2479 = vadd.f32 0.0, %v2478
        %v2480 = vpop.f32.mrb[0].mxu0
        %2481 = vmatprep.mubr.f32.mxu0 0.0
        %2482 = vmatmul.mubr.f32.gmra.mrb[0].mxu0 %v1755
        %v2483 = vpop.f32.mrb[0].mxu0
        %v2484 = vadd.f32 0.0, %v2483
        %v2485 = vpop.f32.mrb[0].mxu0
        %2486 = vmatprep.mubr.f32.mxu0 0.0
        %2487 = vmatmul.mubr.f32.gmra.mrb[0].mxu0 %v1756
        %v2488 = vpop.f32.mrb[0].mxu0
        %v2489 = vadd.f32 0.0, %v2488
        %v2490 = vpop.f32.mrb[0].mxu0
        %2491 = vmatprep.mubr.f32.mxu0 0.0
        %2492 = vmatmul.mubr.f32.gmra.mrb[0].mxu0 0.0
        %v2493 = vpop.f32.mrb[0].mxu0
        %v2494 = vadd.f32 0.0, %v2493
        %v2495 = vpop.f32.mrb[0].mxu0
        %2496 = vdwg.mxu0
        %v2497 = vadd.f32 %v2337, %v2459
        %v2498 = vadd.f32 %v2342, %v2464
        %v2499 = vadd.f32 %v2347, %v2469
        %v2500 = vadd.f32 %v2352, %v2474
        %v2501 = vadd.f32 %v2357, %v2479
        %v2502 = vadd.f32 %v2362, %v2484
        %v2503 = vadd.f32 %v2367, %v2489
        %v2504 = vadd.f32 %v2372, %v2494
        %2505 = vmatprep.subr.mxu0 0.0
        %2506 = vmatpush1.msra.mxu0 %v2123
        %2507 = vmatprep.subr.mxu0 0.0
        %2508 = vmatpush1.msra.mxu0 %v2124
        %2509 = vmatprep.subr.mxu0 0.0
        %2510 = vmatpush1.msra.mxu0 %v2125
        %2511 = vmatprep.subr.mxu0 0.0
        %2512 = vmatpush1.msra.mxu0 %v2126
        %2513 = vmatprep.subr.mxu0 0.0
        %2514 = vmatpush1.msra.mxu0 %v2127
        %2515 = vmatprep.subr.mxu0 0.0
        %2516 = vmatpush1.msra.mxu0 %v2128
        %2517 = vmatprep.subr.mxu0 0.0
        %2518 = vmatpush1.msra.mxu0 %v2129
        %2519 = vmatprep.subr.mxu0 0.0
        %2520 = vmatpush1.msra.mxu0 %v2130
        %2521 = vmatprep.subr.mxu0 0.0
        %2522 = vmatpush1.msra.mxu0 0.0
        %2523 = vmatprep.subr.mxu0 0.0
        %2524 = vmatpush1.msra.mxu0 0.0
        %2525 = vmatprep.subr.mxu0 0.0
        %2526 = vmatpush1.msra.mxu0 0.0
        %2527 = vmatprep.subr.mxu0 0.0
        %2528 = vmatpush1.msra.mxu0 0.0
        %2529 = vmatprep.subr.mxu0 0.0
        %2530 = vmatpush1.msra.mxu0 0.0
        %2531 = vmatprep.subr.mxu0 0.0
        %2532 = vmatpush1.msra.mxu0 0.0
        %2533 = vmatprep.subr.mxu0 0.0
        %2534 = vmatpush1.msra.mxu0 0.0
        %2535 = vmatprep.subr.mxu0 0.0
        %2536 = vmatpush1.msra.mxu0 0.0
        %2537 = vmatprep.subr.mxu0 0.0
        %2538 = vmatpush1.msra.mxu0 0.0
        %2539 = vmatprep.subr.mxu0 0.0
        %2540 = vmatpush1.msra.mxu0 0.0
        %2541 = vmatprep.subr.mxu0 0.0
        %2542 = vmatpush1.msra.mxu0 0.0
        %2543 = vmatprep.subr.mxu0 0.0
        %2544 = vmatpush1.msra.mxu0 0.0
        %2545 = vmatprep.subr.mxu0 0.0
        %2546 = vmatpush1.msra.mxu0 0.0
        %2547 = vmatprep.subr.mxu0 0.0
        %2548 = vmatpush1.msra.mxu0 0.0
        %2549 = vmatprep.subr.mxu0 0.0
        %2550 = vmatpush1.msra.mxu0 0.0
        %2551 = vmatprep.subr.mxu0 0.0
        %2552 = vmatpush1.msra.mxu0 0.0
        %2553 = vmatprep.subr.mxu0 0.0
        %2554 = vmatpush1.msra.mxu0 0.0
        %2555 = vmatprep.subr.mxu0 0.0
        %2556 = vmatpush1.msra.mxu0 0.0
        %2557 = vmatprep.subr.mxu0 0.0
        %2558 = vmatpush1.msra.mxu0 0.0
        %2559 = vmatprep.subr.mxu0 0.0
        %2560 = vmatpush1.msra.mxu0 0.0
        %2561 = vmatprep.subr.mxu0 0.0
        %2562 = vmatpush1.msra.mxu0 0.0
        %2563 = vmatprep.subr.mxu0 0.0
        %2564 = vmatpush1.msra.mxu0 0.0
        %2565 = vmatprep.subr.mxu0 0.0
        %2566 = vmatpush1.msra.mxu0 0.0
        %2567 = vmatprep.subr.mxu0 0.0
        %2568 = vmatpush1.msra.mxu0 0.0
        %2569 = vmatprep.mubr.f32.mxu0 0.0
        %2570 = vmatmul.mubr.f32.gmra.mrb[0].mxu0 %v1086
        %v2571 = vpop.f32.mrb[0].mxu0
        %v2572 = vadd.f32 %v2497, %v2571
        %v2573 = vpop.f32.mrb[0].mxu0
        %2574 = vmatprep.mubr.f32.mxu0 0.0
        %2575 = vmatmul.mubr.f32.gmra.mrb[0].mxu0 %v1089
        %v2576 = vpop.f32.mrb[0].mxu0
        %v2577 = vadd.f32 %v2498, %v2576
        %v2578 = vpop.f32.mrb[0].mxu0
        %2579 = vmatprep.mubr.f32.mxu0 0.0
        %2580 = vmatmul.mubr.f32.gmra.mrb[0].mxu0 %v1092
        %v2581 = vpop.f32.mrb[0].mxu0
        %v2582 = vadd.f32 %v2499, %v2581
        %v2583 = vpop.f32.mrb[0].mxu0
        %2584 = vmatprep.mubr.f32.mxu0 0.0
        %2585 = vmatmul.mubr.f32.gmra.mrb[0].mxu0 %v1095
        %v2586 = vpop.f32.mrb[0].mxu0
        %v2587 = vadd.f32 %v2500, %v2586
        %v2588 = vpop.f32.mrb[0].mxu0
        %2589 = vmatprep.mubr.f32.mxu0 0.0
        %2590 = vmatmul.mubr.f32.gmra.mrb[0].mxu0 %v1098
        %v2591 = vpop.f32.mrb[0].mxu0
        %v2592 = vadd.f32 %v2501, %v2591
        %v2593 = vpop.f32.mrb[0].mxu0
        %2594 = vmatprep.mubr.f32.mxu0 0.0
        %2595 = vmatmul.mubr.f32.gmra.mrb[0].mxu0 %v1101
        %v2596 = vpop.f32.mrb[0].mxu0
        %v2597 = vadd.f32 %v2502, %v2596
        %v2598 = vpop.f32.mrb[0].mxu0
        %2599 = vmatprep.mubr.f32.mxu0 0.0
        %2600 = vmatmul.mubr.f32.gmra.mrb[0].mxu0 %v1104
        %v2601 = vpop.f32.mrb[0].mxu0
        %v2602 = vadd.f32 %v2503, %v2601
        %v2603 = vpop.f32.mrb[0].mxu0
        %2604 = vmatprep.mubr.f32.mxu0 0.0
        %2605 = vmatmul.mubr.f32.gmra.mrb[0].mxu0 %v1107
        %v2606 = vpop.f32.mrb[0].mxu0
        %v2607 = vadd.f32 %v2504, %v2606
        %v2608 = vpop.f32.mrb[0].mxu0
        %2609 = vdwg.mxu0
        %s2610 = scalar_lea.vmem [#allocation2], 1920
        %v2611 = vld [vmem:[%s2610] sm:$0xff]
        %v2612 = vld [vmem:[%s2610 + $0x8] sm:$0xff]
        %v2613 = vld [vmem:[%s2610 + $0x10] sm:$0xff]
        %v2614 = vld [vmem:[%s2610 + $0x18] sm:$0xff]
        %v2615 = vld [vmem:[%s2610 + $0x20] sm:$0xff]
        %v2616 = vld [vmem:[%s2610 + $0x28] sm:$0xff]
        %v2617 = vld [vmem:[%s2610 + $0x30] sm:$0xff]
        %v2618 = vld [vmem:[%s2610 + $0x38] sm:$0xff]
        %v2619 = vld [vmem:[%s2610 + $0x40] sm:$0xff]
        %v2620 = vld [vmem:[%s2610 + $0x48] sm:$0xff]
        %v2621 = vld [vmem:[%s2610 + $0x50] sm:$0xff]
        %v2622 = vld [vmem:[%s2610 + $0x58] sm:$0xff]
        %v2623 = vld [vmem:[%s2610 + $0x60] sm:$0xff]
        %v2624 = vld [vmem:[%s2610 + $0x68] sm:$0xff]
        %v2625 = vld [vmem:[%s2610 + $0x70] sm:$0xff]
        %v2626 = vld [vmem:[%s2610 + $0x78] sm:$0xff]
        %s2627 = scalar_lea.vmem [#allocation2], 2048
        %v2628 = vld [vmem:[%s2627] sm:$0xff]
        %v2629 = vld [vmem:[%s2627 + $0x8] sm:$0xff]
        %v2630 = vld [vmem:[%s2627 + $0x10] sm:$0xff]
        %v2631 = vld [vmem:[%s2627 + $0x18] sm:$0xff]
        %v2632 = vld [vmem:[%s2627 + $0x20] sm:$0xff]
        %v2633 = vld [vmem:[%s2627 + $0x28] sm:$0xff]
        %v2634 = vld [vmem:[%s2627 + $0x30] sm:$0xff]
        %v2635 = vld [vmem:[%s2627 + $0x38] sm:$0xff]
        %v2636 = vld [vmem:[%s2627 + $0x40] sm:$0xff]
        %v2637 = vld [vmem:[%s2627 + $0x48] sm:$0xff]
        %v2638 = vld [vmem:[%s2627 + $0x50] sm:$0xff]
        %v2639 = vld [vmem:[%s2627 + $0x58] sm:$0xff]
        %v2640 = vld [vmem:[%s2627 + $0x60] sm:$0xff]
        %v2641 = vld [vmem:[%s2627 + $0x68] sm:$0xff]
        %v2642 = vld [vmem:[%s2627 + $0x70] sm:$0xff]
        %v2643 = vld [vmem:[%s2627 + $0x78] sm:$0xff]
        %2644 = vmatprep.subr.mxu0 0.0
        %2645 = vmatpush1.msra.mxu0 %v2628
        %2646 = vmatprep.subr.mxu0 0.0
        %2647 = vmatpush1.msra.mxu0 %v2629
        %2648 = vmatprep.subr.mxu0 0.0
        %2649 = vmatpush1.msra.mxu0 %v2630
        %2650 = vmatprep.subr.mxu0 0.0
        %2651 = vmatpush1.msra.mxu0 %v2631
        %2652 = vmatprep.subr.mxu0 0.0
        %2653 = vmatpush1.msra.mxu0 %v2632
        %2654 = vmatprep.subr.mxu0 0.0
        %2655 = vmatpush1.msra.mxu0 %v2633
        %2656 = vmatprep.subr.mxu0 0.0
        %2657 = vmatpush1.msra.mxu0 %v2634
        %2658 = vmatprep.subr.mxu0 0.0
        %2659 = vmatpush1.msra.mxu0 %v2635
        %2660 = vmatprep.subr.mxu0 0.0
        %2661 = vmatpush1.msra.mxu0 %v2636
        %2662 = vmatprep.subr.mxu0 0.0
        %2663 = vmatpush1.msra.mxu0 %v2637
        %2664 = vmatprep.subr.mxu0 0.0
        %2665 = vmatpush1.msra.mxu0 %v2638
        %2666 = vmatprep.subr.mxu0 0.0
        %2667 = vmatpush1.msra.mxu0 %v2639
        %2668 = vmatprep.subr.mxu0 0.0
        %2669 = vmatpush1.msra.mxu0 %v2640
        %2670 = vmatprep.subr.mxu0 0.0
        %2671 = vmatpush1.msra.mxu0 %v2641
        %2672 = vmatprep.subr.mxu0 0.0
        %2673 = vmatpush1.msra.mxu0 %v2642
        %2674 = vmatprep.subr.mxu0 0.0
        %2675 = vmatpush1.msra.mxu0 %v2643
        %2676 = vmatprep.subr.mxu0 0.0
        %2677 = vmatpush1.msra.mxu0 0.0
        %2678 = vmatprep.subr.mxu0 0.0
        %2679 = vmatpush1.msra.mxu0 0.0
        %2680 = vmatprep.subr.mxu0 0.0
        %2681 = vmatpush1.msra.mxu0 0.0
        %2682 = vmatprep.subr.mxu0 0.0
        %2683 = vmatpush1.msra.mxu0 0.0
        %2684 = vmatprep.subr.mxu0 0.0
        %2685 = vmatpush1.msra.mxu0 0.0
        %2686 = vmatprep.subr.mxu0 0.0
        %2687 = vmatpush1.msra.mxu0 0.0
        %2688 = vmatprep.subr.mxu0 0.0
        %2689 = vmatpush1.msra.mxu0 0.0
        %2690 = vmatprep.subr.mxu0 0.0
        %2691 = vmatpush1.msra.mxu0 0.0
        %2692 = vmatprep.subr.mxu0 0.0
        %2693 = vmatpush1.msra.mxu0 0.0
        %2694 = vmatprep.subr.mxu0 0.0
        %2695 = vmatpush1.msra.mxu0 0.0
        %2696 = vmatprep.subr.mxu0 0.0
        %2697 = vmatpush1.msra.mxu0 0.0
        %2698 = vmatprep.subr.mxu0 0.0
        %2699 = vmatpush1.msra.mxu0 0.0
        %2700 = vmatprep.subr.mxu0 0.0
        %2701 = vmatpush1.msra.mxu0 0.0
        %2702 = vmatprep.subr.mxu0 0.0
        %2703 = vmatpush1.msra.mxu0 0.0
        %2704 = vmatprep.subr.mxu0 0.0
        %2705 = vmatpush1.msra.mxu0 0.0
        %2706 = vmatprep.subr.mxu0 0.0
        %2707 = vmatpush1.msra.mxu0 0.0
        %2708 = vmatprep.mubr.f32.mxu0 0.0
        %2709 = vmatmul.mubr.f32.gmra.mrb[0].mxu0 %v1749
        %v2710 = vpop.f32.mrb[0].mxu0
        %v2711 = vadd.f32 0.0, %v2710
        %v2712 = vpop.f32.mrb[0].mxu0
        %2713 = vmatprep.mubr.f32.mxu0 0.0
        %2714 = vmatmul.mubr.f32.gmra.mrb[0].mxu0 %v1750
        %v2715 = vpop.f32.mrb[0].mxu0
        %v2716 = vadd.f32 0.0, %v2715
        %v2717 = vpop.f32.mrb[0].mxu0
        %2718 = vmatprep.mubr.f32.mxu0 0.0
        %2719 = vmatmul.mubr.f32.gmra.mrb[0].mxu0 %v1751
        %v2720 = vpop.f32.mrb[0].mxu0
        %v2721 = vadd.f32 0.0, %v2720
        %v2722 = vpop.f32.mrb[0].mxu0
        %2723 = vmatprep.mubr.f32.mxu0 0.0
        %2724 = vmatmul.mubr.f32.gmra.mrb[0].mxu0 %v1752
        %v2725 = vpop.f32.mrb[0].mxu0
        %v2726 = vadd.f32 0.0, %v2725
        %v2727 = vpop.f32.mrb[0].mxu0
        %2728 = vmatprep.mubr.f32.mxu0 0.0
        %2729 = vmatmul.mubr.f32.gmra.mrb[0].mxu0 %v1753
        %v2730 = vpop.f32.mrb[0].mxu0
        %v2731 = vadd.f32 0.0, %v2730
        %v2732 = vpop.f32.mrb[0].mxu0
        %2733 = vmatprep.mubr.f32.mxu0 0.0
        %2734 = vmatmul.mubr.f32.gmra.mrb[0].mxu0 %v1754
        %v2735 = vpop.f32.mrb[0].mxu0
        %v2736 = vadd.f32 0.0, %v2735
        %v2737 = vpop.f32.mrb[0].mxu0
        %2738 = vmatprep.mubr.f32.mxu0 0.0
        %2739 = vmatmul.mubr.f32.gmra.mrb[0].mxu0 %v1755
        %v2740 = vpop.f32.mrb[0].mxu0
        %v2741 = vadd.f32 0.0, %v2740
        %v2742 = vpop.f32.mrb[0].mxu0
        %2743 = vmatprep.mubr.f32.mxu0 0.0
        %2744 = vmatmul.mubr.f32.gmra.mrb[0].mxu0 %v1756
        %v2745 = vpop.f32.mrb[0].mxu0
        %v2746 = vadd.f32 0.0, %v2745
        %v2747 = vpop.f32.mrb[0].mxu0
        %2748 = vdwg.mxu0
        %2749 = vmatprep.subr.mxu0 0.0
        %2750 = vmatpush1.msra.mxu0 %v2611
        %2751 = vmatprep.subr.mxu0 0.0
        %2752 = vmatpush1.msra.mxu0 %v2612
        %2753 = vmatprep.subr.mxu0 0.0
        %2754 = vmatpush1.msra.mxu0 %v2613
        %2755 = vmatprep.subr.mxu0 0.0
        %2756 = vmatpush1.msra.mxu0 %v2614
        %2757 = vmatprep.subr.mxu0 0.0
        %2758 = vmatpush1.msra.mxu0 %v2615
        %2759 = vmatprep.subr.mxu0 0.0
        %2760 = vmatpush1.msra.mxu0 %v2616
        %2761 = vmatprep.subr.mxu0 0.0
        %2762 = vmatpush1.msra.mxu0 %v2617
        %2763 = vmatprep.subr.mxu0 0.0
        %2764 = vmatpush1.msra.mxu0 %v2618
        %2765 = vmatprep.subr.mxu0 0.0
        %2766 = vmatpush1.msra.mxu0 %v2619
        %2767 = vmatprep.subr.mxu0 0.0
        %2768 = vmatpush1.msra.mxu0 %v2620
        %2769 = vmatprep.subr.mxu0 0.0
        %2770 = vmatpush1.msra.mxu0 %v2621
        %2771 = vmatprep.subr.mxu0 0.0
        %2772 = vmatpush1.msra.mxu0 %v2622
        %2773 = vmatprep.subr.mxu0 0.0
        %2774 = vmatpush1.msra.mxu0 %v2623
        %2775 = vmatprep.subr.mxu0 0.0
        %2776 = vmatpush1.msra.mxu0 %v2624
        %2777 = vmatprep.subr.mxu0 0.0
        %2778 = vmatpush1.msra.mxu0 %v2625
        %2779 = vmatprep.subr.mxu0 0.0
        %2780 = vmatpush1.msra.mxu0 %v2626
        %2781 = vmatprep.subr.mxu0 0.0
        %2782 = vmatpush1.msra.mxu0 0.0
        %2783 = vmatprep.subr.mxu0 0.0
        %2784 = vmatpush1.msra.mxu0 0.0
        %2785 = vmatprep.subr.mxu0 0.0
        %2786 = vmatpush1.msra.mxu0 0.0
        %2787 = vmatprep.subr.mxu0 0.0
        %2788 = vmatpush1.msra.mxu0 0.0
        %2789 = vmatprep.subr.mxu0 0.0
        %2790 = vmatpush1.msra.mxu0 0.0
        %2791 = vmatprep.subr.mxu0 0.0
        %2792 = vmatpush1.msra.mxu0 0.0
        %2793 = vmatprep.subr.mxu0 0.0
        %2794 = vmatpush1.msra.mxu0 0.0
        %2795 = vmatprep.subr.mxu0 0.0
        %2796 = vmatpush1.msra.mxu0 0.0
        %2797 = vmatprep.subr.mxu0 0.0
        %2798 = vmatpush1.msra.mxu0 0.0
        %2799 = vmatprep.subr.mxu0 0.0
        %2800 = vmatpush1.msra.mxu0 0.0
        %2801 = vmatprep.subr.mxu0 0.0
        %2802 = vmatpush1.msra.mxu0 0.0
        %2803 = vmatprep.subr.mxu0 0.0
        %2804 = vmatpush1.msra.mxu0 0.0
        %2805 = vmatprep.subr.mxu0 0.0
        %2806 = vmatpush1.msra.mxu0 0.0
        %2807 = vmatprep.subr.mxu0 0.0
        %2808 = vmatpush1.msra.mxu0 0.0
        %2809 = vmatprep.subr.mxu0 0.0
        %2810 = vmatpush1.msra.mxu0 0.0
        %2811 = vmatprep.subr.mxu0 0.0
        %2812 = vmatpush1.msra.mxu0 0.0
        %2813 = vmatprep.mubr.f32.mxu0 0.0
        %2814 = vmatmul.mubr.f32.gmra.mrb[0].mxu0 0.0
        %v2815 = vpop.f32.mrb[0].mxu0
        %v2816 = vadd.f32 %v2711, %v2815
        %v2817 = vpop.f32.mrb[0].mxu0
        %2818 = vmatprep.mubr.f32.mxu0 0.0
        %2819 = vmatmul.mubr.f32.gmra.mrb[0].mxu0 %v1749
        %v2820 = vpop.f32.mrb[0].mxu0
        %v2821 = vadd.f32 %v2716, %v2820
        %v2822 = vpop.f32.mrb[0].mxu0
        %2823 = vmatprep.mubr.f32.mxu0 0.0
        %2824 = vmatmul.mubr.f32.gmra.mrb[0].mxu0 %v1750
        %v2825 = vpop.f32.mrb[0].mxu0
        %v2826 = vadd.f32 %v2721, %v2825
        %v2827 = vpop.f32.mrb[0].mxu0
        %2828 = vmatprep.mubr.f32.mxu0 0.0
        %2829 = vmatmul.mubr.f32.gmra.mrb[0].mxu0 %v1751
        %v2830 = vpop.f32.mrb[0].mxu0
        %v2831 = vadd.f32 %v2726, %v2830
        %v2832 = vpop.f32.mrb[0].mxu0
        %2833 = vmatprep.mubr.f32.mxu0 0.0
        %2834 = vmatmul.mubr.f32.gmra.mrb[0].mxu0 %v1752
        %v2835 = vpop.f32.mrb[0].mxu0
        %v2836 = vadd.f32 %v2731, %v2835
        %v2837 = vpop.f32.mrb[0].mxu0
        %2838 = vmatprep.mubr.f32.mxu0 0.0
        %2839 = vmatmul.mubr.f32.gmra.mrb[0].mxu0 %v1753
        %v2840 = vpop.f32.mrb[0].mxu0
        %v2841 = vadd.f32 %v2736, %v2840
        %v2842 = vpop.f32.mrb[0].mxu0
        %2843 = vmatprep.mubr.f32.mxu0 0.0
        %2844 = vmatmul.mubr.f32.gmra.mrb[0].mxu0 %v1754
        %v2845 = vpop.f32.mrb[0].mxu0
        %v2846 = vadd.f32 %v2741, %v2845
        %v2847 = vpop.f32.mrb[0].mxu0
        %2848 = vmatprep.mubr.f32.mxu0 0.0
        %2849 = vmatmul.mubr.f32.gmra.mrb[0].mxu0 %v1755
        %v2850 = vpop.f32.mrb[0].mxu0
        %v2851 = vadd.f32 %v2746, %v2850
        %v2852 = vpop.f32.mrb[0].mxu0
        %2853 = vdwg.mxu0
        %s2854 = scalar_lea.vmem [#allocation2], 2176
        %v2855 = vld [vmem:[%s2854] sm:$0xff]
        %v2856 = vld [vmem:[%s2854 + $0x8] sm:$0xff]
        %v2857 = vld [vmem:[%s2854 + $0x10] sm:$0xff]
        %v2858 = vld [vmem:[%s2854 + $0x18] sm:$0xff]
        %v2859 = vld [vmem:[%s2854 + $0x20] sm:$0xff]
        %v2860 = vld [vmem:[%s2854 + $0x28] sm:$0xff]
        %v2861 = vld [vmem:[%s2854 + $0x30] sm:$0xff]
        %v2862 = vld [vmem:[%s2854 + $0x38] sm:$0xff]
        %v2863 = vld [vmem:[%s2854 + $0x40] sm:$0xff]
        %v2864 = vld [vmem:[%s2854 + $0x48] sm:$0xff]
        %v2865 = vld [vmem:[%s2854 + $0x50] sm:$0xff]
        %v2866 = vld [vmem:[%s2854 + $0x58] sm:$0xff]
        %v2867 = vld [vmem:[%s2854 + $0x60] sm:$0xff]
        %v2868 = vld [vmem:[%s2854 + $0x68] sm:$0xff]
        %v2869 = vld [vmem:[%s2854 + $0x70] sm:$0xff]
        %v2870 = vld [vmem:[%s2854 + $0x78] sm:$0xff]
        %2871 = vmatprep.subr.mxu0 0.0
        %2872 = vmatpush1.msra.mxu0 %v2855
        %2873 = vmatprep.subr.mxu0 0.0
        %2874 = vmatpush1.msra.mxu0 %v2856
        %2875 = vmatprep.subr.mxu0 0.0
        %2876 = vmatpush1.msra.mxu0 %v2857
        %2877 = vmatprep.subr.mxu0 0.0
        %2878 = vmatpush1.msra.mxu0 %v2858
        %2879 = vmatprep.subr.mxu0 0.0
        %2880 = vmatpush1.msra.mxu0 %v2859
        %2881 = vmatprep.subr.mxu0 0.0
        %2882 = vmatpush1.msra.mxu0 %v2860
        %2883 = vmatprep.subr.mxu0 0.0
        %2884 = vmatpush1.msra.mxu0 %v2861
        %2885 = vmatprep.subr.mxu0 0.0
        %2886 = vmatpush1.msra.mxu0 %v2862
        %2887 = vmatprep.subr.mxu0 0.0
        %2888 = vmatpush1.msra.mxu0 %v2863
        %2889 = vmatprep.subr.mxu0 0.0
        %2890 = vmatpush1.msra.mxu0 %v2864
        %2891 = vmatprep.subr.mxu0 0.0
        %2892 = vmatpush1.msra.mxu0 %v2865
        %2893 = vmatprep.subr.mxu0 0.0
        %2894 = vmatpush1.msra.mxu0 %v2866
        %2895 = vmatprep.subr.mxu0 0.0
        %2896 = vmatpush1.msra.mxu0 %v2867
        %2897 = vmatprep.subr.mxu0 0.0
        %2898 = vmatpush1.msra.mxu0 %v2868
        %2899 = vmatprep.subr.mxu0 0.0
        %2900 = vmatpush1.msra.mxu0 %v2869
        %2901 = vmatprep.subr.mxu0 0.0
        %2902 = vmatpush1.msra.mxu0 %v2870
        %2903 = vmatprep.subr.mxu0 0.0
        %2904 = vmatpush1.msra.mxu0 0.0
        %2905 = vmatprep.subr.mxu0 0.0
        %2906 = vmatpush1.msra.mxu0 0.0
        %2907 = vmatprep.subr.mxu0 0.0
        %2908 = vmatpush1.msra.mxu0 0.0
        %2909 = vmatprep.subr.mxu0 0.0
        %2910 = vmatpush1.msra.mxu0 0.0
        %2911 = vmatprep.subr.mxu0 0.0
        %2912 = vmatpush1.msra.mxu0 0.0
        %2913 = vmatprep.subr.mxu0 0.0
        %2914 = vmatpush1.msra.mxu0 0.0
        %2915 = vmatprep.subr.mxu0 0.0
        %2916 = vmatpush1.msra.mxu0 0.0
        %2917 = vmatprep.subr.mxu0 0.0
        %2918 = vmatpush1.msra.mxu0 0.0
        %2919 = vmatprep.subr.mxu0 0.0
        %2920 = vmatpush1.msra.mxu0 0.0
        %2921 = vmatprep.subr.mxu0 0.0
        %2922 = vmatpush1.msra.mxu0 0.0
        %2923 = vmatprep.subr.mxu0 0.0
        %2924 = vmatpush1.msra.mxu0 0.0
        %2925 = vmatprep.subr.mxu0 0.0
        %2926 = vmatpush1.msra.mxu0 0.0
        %2927 = vmatprep.subr.mxu0 0.0
        %2928 = vmatpush1.msra.mxu0 0.0
        %2929 = vmatprep.subr.mxu0 0.0
        %2930 = vmatpush1.msra.mxu0 0.0
        %2931 = vmatprep.subr.mxu0 0.0
        %2932 = vmatpush1.msra.mxu0 0.0
        %2933 = vmatprep.subr.mxu0 0.0
        %2934 = vmatpush1.msra.mxu0 0.0
        %2935 = vmatprep.mubr.f32.mxu0 0.0
        %2936 = vmatmul.mubr.f32.gmra.mrb[0].mxu0 %v1750
        %v2937 = vpop.f32.mrb[0].mxu0
        %v2938 = vadd.f32 0.0, %v2937
        %v2939 = vpop.f32.mrb[0].mxu0
        %2940 = vmatprep.mubr.f32.mxu0 0.0
        %2941 = vmatmul.mubr.f32.gmra.mrb[0].mxu0 %v1751
        %v2942 = vpop.f32.mrb[0].mxu0
        %v2943 = vadd.f32 0.0, %v2942
        %v2944 = vpop.f32.mrb[0].mxu0
        %2945 = vmatprep.mubr.f32.mxu0 0.0
        %2946 = vmatmul.mubr.f32.gmra.mrb[0].mxu0 %v1752
        %v2947 = vpop.f32.mrb[0].mxu0
        %v2948 = vadd.f32 0.0, %v2947
        %v2949 = vpop.f32.mrb[0].mxu0
        %2950 = vmatprep.mubr.f32.mxu0 0.0
        %2951 = vmatmul.mubr.f32.gmra.mrb[0].mxu0 %v1753
        %v2952 = vpop.f32.mrb[0].mxu0
        %v2953 = vadd.f32 0.0, %v2952
        %v2954 = vpop.f32.mrb[0].mxu0
        %2955 = vmatprep.mubr.f32.mxu0 0.0
        %2956 = vmatmul.mubr.f32.gmra.mrb[0].mxu0 %v1754
        %v2957 = vpop.f32.mrb[0].mxu0
        %v2958 = vadd.f32 0.0, %v2957
        %v2959 = vpop.f32.mrb[0].mxu0
        %2960 = vmatprep.mubr.f32.mxu0 0.0
        %2961 = vmatmul.mubr.f32.gmra.mrb[0].mxu0 %v1755
        %v2962 = vpop.f32.mrb[0].mxu0
        %v2963 = vadd.f32 0.0, %v2962
        %v2964 = vpop.f32.mrb[0].mxu0
        %2965 = vmatprep.mubr.f32.mxu0 0.0
        %2966 = vmatmul.mubr.f32.gmra.mrb[0].mxu0 %v1756
        %v2967 = vpop.f32.mrb[0].mxu0
        %v2968 = vadd.f32 0.0, %v2967
        %v2969 = vpop.f32.mrb[0].mxu0
        %2970 = vmatprep.mubr.f32.mxu0 0.0
        %2971 = vmatmul.mubr.f32.gmra.mrb[0].mxu0 0.0
        %v2972 = vpop.f32.mrb[0].mxu0
        %v2973 = vadd.f32 0.0, %v2972
        %v2974 = vpop.f32.mrb[0].mxu0
        %2975 = vdwg.mxu0
        %v2976 = vadd.f32 %v2816, %v2938
        %v2977 = vadd.f32 %v2821, %v2943
        %v2978 = vadd.f32 %v2826, %v2948
        %v2979 = vadd.f32 %v2831, %v2953
        %v2980 = vadd.f32 %v2836, %v2958
        %v2981 = vadd.f32 %v2841, %v2963
        %v2982 = vadd.f32 %v2846, %v2968
        %v2983 = vadd.f32 %v2851, %v2973
        %2984 = vmatprep.subr.mxu0 0.0
        %2985 = vmatpush1.msra.mxu0 %v2976
        %2986 = vmatprep.subr.mxu0 0.0
        %2987 = vmatpush1.msra.mxu0 %v2977
        %2988 = vmatprep.subr.mxu0 0.0
        %2989 = vmatpush1.msra.mxu0 %v2978
        %2990 = vmatprep.subr.mxu0 0.0
        %2991 = vmatpush1.msra.mxu0 %v2979
        %2992 = vmatprep.subr.mxu0 0.0
        %2993 = vmatpush1.msra.mxu0 %v2980
        %2994 = vmatprep.subr.mxu0 0.0
        %2995 = vmatpush1.msra.mxu0 %v2981
        %2996 = vmatprep.subr.mxu0 0.0
        %2997 = vmatpush1.msra.mxu0 %v2982
        %2998 = vmatprep.subr.mxu0 0.0
        %2999 = vmatpush1.msra.mxu0 %v2983
        %3000 = vmatprep.subr.mxu0 0.0
        %3001 = vmatpush1.msra.mxu0 0.0
        %3002 = vmatprep.subr.mxu0 0.0
        %3003 = vmatpush1.msra.mxu0 0.0
        %3004 = vmatprep.subr.mxu0 0.0
        %3005 = vmatpush1.msra.mxu0 0.0
        %3006 = vmatprep.subr.mxu0 0.0
        %3007 = vmatpush1.msra.mxu0 0.0
        %3008 = vmatprep.subr.mxu0 0.0
        %3009 = vmatpush1.msra.mxu0 0.0
        %3010 = vmatprep.subr.mxu0 0.0
        %3011 = vmatpush1.msra.mxu0 0.0
        %3012 = vmatprep.subr.mxu0 0.0
        %3013 = vmatpush1.msra.mxu0 0.0
        %3014 = vmatprep.subr.mxu0 0.0
        %3015 = vmatpush1.msra.mxu0 0.0
        %3016 = vmatprep.subr.mxu0 0.0
        %3017 = vmatpush1.msra.mxu0 0.0
        %3018 = vmatprep.subr.mxu0 0.0
        %3019 = vmatpush1.msra.mxu0 0.0
        %3020 = vmatprep.subr.mxu0 0.0
        %3021 = vmatpush1.msra.mxu0 0.0
        %3022 = vmatprep.subr.mxu0 0.0
        %3023 = vmatpush1.msra.mxu0 0.0
        %3024 = vmatprep.subr.mxu0 0.0
        %3025 = vmatpush1.msra.mxu0 0.0
        %3026 = vmatprep.subr.mxu0 0.0
        %3027 = vmatpush1.msra.mxu0 0.0
        %3028 = vmatprep.subr.mxu0 0.0
        %3029 = vmatpush1.msra.mxu0 0.0
        %3030 = vmatprep.subr.mxu0 0.0
        %3031 = vmatpush1.msra.mxu0 0.0
        %3032 = vmatprep.subr.mxu0 0.0
        %3033 = vmatpush1.msra.mxu0 0.0
        %3034 = vmatprep.subr.mxu0 0.0
        %3035 = vmatpush1.msra.mxu0 0.0
        %3036 = vmatprep.subr.mxu0 0.0
        %3037 = vmatpush1.msra.mxu0 0.0
        %3038 = vmatprep.subr.mxu0 0.0
        %3039 = vmatpush1.msra.mxu0 0.0
        %3040 = vmatprep.subr.mxu0 0.0
        %3041 = vmatpush1.msra.mxu0 0.0
        %3042 = vmatprep.subr.mxu0 0.0
        %3043 = vmatpush1.msra.mxu0 0.0
        %3044 = vmatprep.subr.mxu0 0.0
        %3045 = vmatpush1.msra.mxu0 0.0
        %3046 = vmatprep.subr.mxu0 0.0
        %3047 = vmatpush1.msra.mxu0 0.0
        %3048 = vmatprep.mubr.f32.mxu0 0.0
        %3049 = vmatmul.mubr.f32.gmra.mrb[0].mxu0 %v1598
        %v3050 = vpop.f32.mrb[0].mxu0
        %v3051 = vadd.f32 0.0, %v3050
        %v3052 = vpop.f32.mrb[0].mxu0
        %3053 = vmatprep.mubr.f32.mxu0 0.0
        %3054 = vmatmul.mubr.f32.gmra.mrb[0].mxu0 %v1601
        %v3055 = vpop.f32.mrb[0].mxu0
        %v3056 = vadd.f32 0.0, %v3055
        %v3057 = vpop.f32.mrb[0].mxu0
        %3058 = vmatprep.mubr.f32.mxu0 0.0
        %3059 = vmatmul.mubr.f32.gmra.mrb[0].mxu0 %v1604
        %v3060 = vpop.f32.mrb[0].mxu0
        %v3061 = vadd.f32 0.0, %v3060
        %v3062 = vpop.f32.mrb[0].mxu0
        %3063 = vmatprep.mubr.f32.mxu0 0.0
        %3064 = vmatmul.mubr.f32.gmra.mrb[0].mxu0 %v1607
        %v3065 = vpop.f32.mrb[0].mxu0
        %v3066 = vadd.f32 0.0, %v3065
        %v3067 = vpop.f32.mrb[0].mxu0
        %3068 = vmatprep.mubr.f32.mxu0 0.0
        %3069 = vmatmul.mubr.f32.gmra.mrb[0].mxu0 %v1610
        %v3070 = vpop.f32.mrb[0].mxu0
        %v3071 = vadd.f32 0.0, %v3070
        %v3072 = vpop.f32.mrb[0].mxu0
        %3073 = vmatprep.mubr.f32.mxu0 0.0
        %3074 = vmatmul.mubr.f32.gmra.mrb[0].mxu0 %v1613
        %v3075 = vpop.f32.mrb[0].mxu0
        %v3076 = vadd.f32 0.0, %v3075
        %v3077 = vpop.f32.mrb[0].mxu0
        %3078 = vmatprep.mubr.f32.mxu0 0.0
        %3079 = vmatmul.mubr.f32.gmra.mrb[0].mxu0 %v1616
        %v3080 = vpop.f32.mrb[0].mxu0
        %v3081 = vadd.f32 0.0, %v3080
        %v3082 = vpop.f32.mrb[0].mxu0
        %3083 = vmatprep.mubr.f32.mxu0 0.0
        %3084 = vmatmul.mubr.f32.gmra.mrb[0].mxu0 %v1619
        %v3085 = vpop.f32.mrb[0].mxu0
        %v3086 = vadd.f32 0.0, %v3085
        %v3087 = vpop.f32.mrb[0].mxu0
        %3088 = vdwg.mxu0
        %v3089 = vadd.f32 %v2572, %v3051
        %v3090 = vadd.f32 %v2577, %v3056
        %v3091 = vadd.f32 %v2582, %v3061
        %v3092 = vadd.f32 %v2587, %v3066
        %v3093 = vadd.f32 %v2592, %v3071
        %v3094 = vadd.f32 %v2597, %v3076
        %v3095 = vadd.f32 %v2602, %v3081
        %v3096 = vadd.f32 %v2607, %v3086
        %s3097 = scalar_lea.vmem [#allocation5], 1
        %v3098 = vld [vmem:[%s3097] sm:$0x1]
        %v3100 = vlaneseq
        %v3101 = vshrl.u32 %v3100, 7
        %v3102 = vsub.s32 0, %v3101
        %v3103 = vrot.slane %v3098, %v3102
        %v3105 = vadd.f32 %v3089, %v3103
        %v3106 = vadd.f32 %v3090, %v3103
        %v3107 = vadd.f32 %v3091, %v3103
        %v3108 = vadd.f32 %v3092, %v3103
        %v3109 = vadd.f32 %v3093, %v3103
        %v3110 = vadd.f32 %v3094, %v3103
        %v3111 = vadd.f32 %v3095, %v3103
        %v3112 = vadd.f32 %v3096, %v3103
        %v3113 = vmax.f32 %v3105, 0.0
        %v3114 = vmax.f32 %v3106, 0.0
        %v3115 = vmax.f32 %v3107, 0.0
        %v3116 = vmax.f32 %v3108, 0.0
        %v3117 = vmax.f32 %v3109, 0.0
        %v3118 = vmax.f32 %v3110, 0.0
        %v3119 = vmax.f32 %v3111, 0.0
        %v3120 = vmax.f32 %v3112, 0.0
        %v3121 = vadd.f32 %v3113, %v1749
        %v3122 = vadd.f32 %v3114, %v1750
        %v3123 = vadd.f32 %v3115, %v1751
        %v3124 = vadd.f32 %v3116, %v1752
        %v3125 = vadd.f32 %v3117, %v1753
        %v3126 = vadd.f32 %v3118, %v1754
        %v3127 = vadd.f32 %v3119, %v1755
        %v3128 = vadd.f32 %v3120, %v1756
        %s3129 = scalar_lea.vmem [#allocation2], 2304
        %v3130 = vld [vmem:[%s3129] sm:$0xff]
        %v3131 = vld [vmem:[%s3129 + $0x8] sm:$0xff]
        %v3132 = vld [vmem:[%s3129 + $0x10] sm:$0xff]
        %v3133 = vld [vmem:[%s3129 + $0x18] sm:$0xff]
        %v3134 = vld [vmem:[%s3129 + $0x20] sm:$0xff]
        %v3135 = vld [vmem:[%s3129 + $0x28] sm:$0xff]
        %v3136 = vld [vmem:[%s3129 + $0x30] sm:$0xff]
        %v3137 = vld [vmem:[%s3129 + $0x38] sm:$0xff]
        %v3138 = vld [vmem:[%s3129 + $0x40] sm:$0xff]
        %v3139 = vld [vmem:[%s3129 + $0x48] sm:$0xff]
        %v3140 = vld [vmem:[%s3129 + $0x50] sm:$0xff]
        %v3141 = vld [vmem:[%s3129 + $0x58] sm:$0xff]
        %v3142 = vld [vmem:[%s3129 + $0x60] sm:$0xff]
        %v3143 = vld [vmem:[%s3129 + $0x68] sm:$0xff]
        %v3144 = vld [vmem:[%s3129 + $0x70] sm:$0xff]
        %v3145 = vld [vmem:[%s3129 + $0x78] sm:$0xff]
        %s3146 = scalar_lea.vmem [#allocation2], 2432
        %v3147 = vld [vmem:[%s3146] sm:$0xff]
        %v3148 = vld [vmem:[%s3146 + $0x8] sm:$0xff]
        %v3149 = vld [vmem:[%s3146 + $0x10] sm:$0xff]
        %v3150 = vld [vmem:[%s3146 + $0x18] sm:$0xff]
        %v3151 = vld [vmem:[%s3146 + $0x20] sm:$0xff]
        %v3152 = vld [vmem:[%s3146 + $0x28] sm:$0xff]
        %v3153 = vld [vmem:[%s3146 + $0x30] sm:$0xff]
        %v3154 = vld [vmem:[%s3146 + $0x38] sm:$0xff]
        %v3155 = vld [vmem:[%s3146 + $0x40] sm:$0xff]
        %v3156 = vld [vmem:[%s3146 + $0x48] sm:$0xff]
        %v3157 = vld [vmem:[%s3146 + $0x50] sm:$0xff]
        %v3158 = vld [vmem:[%s3146 + $0x58] sm:$0xff]
        %v3159 = vld [vmem:[%s3146 + $0x60] sm:$0xff]
        %v3160 = vld [vmem:[%s3146 + $0x68] sm:$0xff]
        %v3161 = vld [vmem:[%s3146 + $0x70] sm:$0xff]
        %v3162 = vld [vmem:[%s3146 + $0x78] sm:$0xff]
        %3163 = vmatprep.subr.mxu0 0.0
        %3164 = vmatpush1.msra.mxu0 %v3147
        %3165 = vmatprep.subr.mxu0 0.0
        %3166 = vmatpush1.msra.mxu0 %v3148
        %3167 = vmatprep.subr.mxu0 0.0
        %3168 = vmatpush1.msra.mxu0 %v3149
        %3169 = vmatprep.subr.mxu0 0.0
        %3170 = vmatpush1.msra.mxu0 %v3150
        %3171 = vmatprep.subr.mxu0 0.0
        %3172 = vmatpush1.msra.mxu0 %v3151
        %3173 = vmatprep.subr.mxu0 0.0
        %3174 = vmatpush1.msra.mxu0 %v3152
        %3175 = vmatprep.subr.mxu0 0.0
        %3176 = vmatpush1.msra.mxu0 %v3153
        %3177 = vmatprep.subr.mxu0 0.0
        %3178 = vmatpush1.msra.mxu0 %v3154
        %3179 = vmatprep.subr.mxu0 0.0
        %3180 = vmatpush1.msra.mxu0 %v3155
        %3181 = vmatprep.subr.mxu0 0.0
        %3182 = vmatpush1.msra.mxu0 %v3156
        %3183 = vmatprep.subr.mxu0 0.0
        %3184 = vmatpush1.msra.mxu0 %v3157
        %3185 = vmatprep.subr.mxu0 0.0
        %3186 = vmatpush1.msra.mxu0 %v3158
        %3187 = vmatprep.subr.mxu0 0.0
        %3188 = vmatpush1.msra.mxu0 %v3159
        %3189 = vmatprep.subr.mxu0 0.0
        %3190 = vmatpush1.msra.mxu0 %v3160
        %3191 = vmatprep.subr.mxu0 0.0
        %3192 = vmatpush1.msra.mxu0 %v3161
        %3193 = vmatprep.subr.mxu0 0.0
        %3194 = vmatpush1.msra.mxu0 %v3162
        %3195 = vmatprep.subr.mxu0 0.0
        %3196 = vmatpush1.msra.mxu0 0.0
        %3197 = vmatprep.subr.mxu0 0.0
        %3198 = vmatpush1.msra.mxu0 0.0
        %3199 = vmatprep.subr.mxu0 0.0
        %3200 = vmatpush1.msra.mxu0 0.0
        %3201 = vmatprep.subr.mxu0 0.0
        %3202 = vmatpush1.msra.mxu0 0.0
        %3203 = vmatprep.subr.mxu0 0.0
        %3204 = vmatpush1.msra.mxu0 0.0
        %3205 = vmatprep.subr.mxu0 0.0
        %3206 = vmatpush1.msra.mxu0 0.0
        %3207 = vmatprep.subr.mxu0 0.0
        %3208 = vmatpush1.msra.mxu0 0.0
        %3209 = vmatprep.subr.mxu0 0.0
        %3210 = vmatpush1.msra.mxu0 0.0
        %3211 = vmatprep.subr.mxu0 0.0
        %3212 = vmatpush1.msra.mxu0 0.0
        %3213 = vmatprep.subr.mxu0 0.0
        %3214 = vmatpush1.msra.mxu0 0.0
        %3215 = vmatprep.subr.mxu0 0.0
        %3216 = vmatpush1.msra.mxu0 0.0
        %3217 = vmatprep.subr.mxu0 0.0
        %3218 = vmatpush1.msra.mxu0 0.0
        %3219 = vmatprep.subr.mxu0 0.0
        %3220 = vmatpush1.msra.mxu0 0.0
        %3221 = vmatprep.subr.mxu0 0.0
        %3222 = vmatpush1.msra.mxu0 0.0
        %3223 = vmatprep.subr.mxu0 0.0
        %3224 = vmatpush1.msra.mxu0 0.0
        %3225 = vmatprep.subr.mxu0 0.0
        %3226 = vmatpush1.msra.mxu0 0.0
        %3227 = vmatprep.mubr.f32.mxu0 0.0
        %3228 = vmatmul.mubr.f32.gmra.mrb[0].mxu0 %v3121
        %v3229 = vpop.f32.mrb[0].mxu0
        %v3230 = vadd.f32 0.0, %v3229
        %v3231 = vpop.f32.mrb[0].mxu0
        %3232 = vmatprep.mubr.f32.mxu0 0.0
        %3233 = vmatmul.mubr.f32.gmra.mrb[0].mxu0 %v3122
        %v3234 = vpop.f32.mrb[0].mxu0
        %v3235 = vadd.f32 0.0, %v3234
        %v3236 = vpop.f32.mrb[0].mxu0
        %3237 = vmatprep.mubr.f32.mxu0 0.0
        %3238 = vmatmul.mubr.f32.gmra.mrb[0].mxu0 %v3123
        %v3239 = vpop.f32.mrb[0].mxu0
        %v3240 = vadd.f32 0.0, %v3239
        %v3241 = vpop.f32.mrb[0].mxu0
        %3242 = vmatprep.mubr.f32.mxu0 0.0
        %3243 = vmatmul.mubr.f32.gmra.mrb[0].mxu0 %v3124
        %v3244 = vpop.f32.mrb[0].mxu0
        %v3245 = vadd.f32 0.0, %v3244
        %v3246 = vpop.f32.mrb[0].mxu0
        %3247 = vmatprep.mubr.f32.mxu0 0.0
        %3248 = vmatmul.mubr.f32.gmra.mrb[0].mxu0 %v3125
        %v3249 = vpop.f32.mrb[0].mxu0
        %v3250 = vadd.f32 0.0, %v3249
        %v3251 = vpop.f32.mrb[0].mxu0
        %3252 = vmatprep.mubr.f32.mxu0 0.0
        %3253 = vmatmul.mubr.f32.gmra.mrb[0].mxu0 %v3126
        %v3254 = vpop.f32.mrb[0].mxu0
        %v3255 = vadd.f32 0.0, %v3254
        %v3256 = vpop.f32.mrb[0].mxu0
        %3257 = vmatprep.mubr.f32.mxu0 0.0
        %3258 = vmatmul.mubr.f32.gmra.mrb[0].mxu0 %v3127
        %v3259 = vpop.f32.mrb[0].mxu0
        %v3260 = vadd.f32 0.0, %v3259
        %v3261 = vpop.f32.mrb[0].mxu0
        %3262 = vmatprep.mubr.f32.mxu0 0.0
        %3263 = vmatmul.mubr.f32.gmra.mrb[0].mxu0 %v3128
        %v3264 = vpop.f32.mrb[0].mxu0
        %v3265 = vadd.f32 0.0, %v3264
        %v3266 = vpop.f32.mrb[0].mxu0
        %3267 = vdwg.mxu0
        %3268 = vmatprep.subr.mxu0 0.0
        %3269 = vmatpush1.msra.mxu0 %v3130
        %3270 = vmatprep.subr.mxu0 0.0
        %3271 = vmatpush1.msra.mxu0 %v3131
        %3272 = vmatprep.subr.mxu0 0.0
        %3273 = vmatpush1.msra.mxu0 %v3132
        %3274 = vmatprep.subr.mxu0 0.0
        %3275 = vmatpush1.msra.mxu0 %v3133
        %3276 = vmatprep.subr.mxu0 0.0
        %3277 = vmatpush1.msra.mxu0 %v3134
        %3278 = vmatprep.subr.mxu0 0.0
        %3279 = vmatpush1.msra.mxu0 %v3135
        %3280 = vmatprep.subr.mxu0 0.0
        %3281 = vmatpush1.msra.mxu0 %v3136
        %3282 = vmatprep.subr.mxu0 0.0
        %3283 = vmatpush1.msra.mxu0 %v3137
        %3284 = vmatprep.subr.mxu0 0.0
        %3285 = vmatpush1.msra.mxu0 %v3138
        %3286 = vmatprep.subr.mxu0 0.0
        %3287 = vmatpush1.msra.mxu0 %v3139
        %3288 = vmatprep.subr.mxu0 0.0
        %3289 = vmatpush1.msra.mxu0 %v3140
        %3290 = vmatprep.subr.mxu0 0.0
        %3291 = vmatpush1.msra.mxu0 %v3141
        %3292 = vmatprep.subr.mxu0 0.0
        %3293 = vmatpush1.msra.mxu0 %v3142
        %3294 = vmatprep.subr.mxu0 0.0
        %3295 = vmatpush1.msra.mxu0 %v3143
        %3296 = vmatprep.subr.mxu0 0.0
        %3297 = vmatpush1.msra.mxu0 %v3144
        %3298 = vmatprep.subr.mxu0 0.0
        %3299 = vmatpush1.msra.mxu0 %v3145
        %3300 = vmatprep.subr.mxu0 0.0
        %3301 = vmatpush1.msra.mxu0 0.0
        %3302 = vmatprep.subr.mxu0 0.0
        %3303 = vmatpush1.msra.mxu0 0.0
        %3304 = vmatprep.subr.mxu0 0.0
        %3305 = vmatpush1.msra.mxu0 0.0
        %3306 = vmatprep.subr.mxu0 0.0
        %3307 = vmatpush1.msra.mxu0 0.0
        %3308 = vmatprep.subr.mxu0 0.0
        %3309 = vmatpush1.msra.mxu0 0.0
        %3310 = vmatprep.subr.mxu0 0.0
        %3311 = vmatpush1.msra.mxu0 0.0
        %3312 = vmatprep.subr.mxu0 0.0
        %3313 = vmatpush1.msra.mxu0 0.0
        %3314 = vmatprep.subr.mxu0 0.0
        %3315 = vmatpush1.msra.mxu0 0.0
        %3316 = vmatprep.subr.mxu0 0.0
        %3317 = vmatpush1.msra.mxu0 0.0
        %3318 = vmatprep.subr.mxu0 0.0
        %3319 = vmatpush1.msra.mxu0 0.0
        %3320 = vmatprep.subr.mxu0 0.0
        %3321 = vmatpush1.msra.mxu0 0.0
        %3322 = vmatprep.subr.mxu0 0.0
        %3323 = vmatpush1.msra.mxu0 0.0
        %3324 = vmatprep.subr.mxu0 0.0
        %3325 = vmatpush1.msra.mxu0 0.0
        %3326 = vmatprep.subr.mxu0 0.0
        %3327 = vmatpush1.msra.mxu0 0.0
        %3328 = vmatprep.subr.mxu0 0.0
        %3329 = vmatpush1.msra.mxu0 0.0
        %3330 = vmatprep.subr.mxu0 0.0
        %3331 = vmatpush1.msra.mxu0 0.0
        %3332 = vmatprep.mubr.f32.mxu0 0.0
        %3333 = vmatmul.mubr.f32.gmra.mrb[0].mxu0 0.0
        %v3334 = vpop.f32.mrb[0].mxu0
        %v3335 = vadd.f32 %v3230, %v3334
        %v3336 = vpop.f32.mrb[0].mxu0
        %3337 = vmatprep.mubr.f32.mxu0 0.0
        %3338 = vmatmul.mubr.f32.gmra.mrb[0].mxu0 %v3121
        %v3339 = vpop.f32.mrb[0].mxu0
        %v3340 = vadd.f32 %v3235, %v3339
        %v3341 = vpop.f32.mrb[0].mxu0
        %3342 = vmatprep.mubr.f32.mxu0 0.0
        %3343 = vmatmul.mubr.f32.gmra.mrb[0].mxu0 %v3122
        %v3344 = vpop.f32.mrb[0].mxu0
        %v3345 = vadd.f32 %v3240, %v3344
        %v3346 = vpop.f32.mrb[0].mxu0
        %3347 = vmatprep.mubr.f32.mxu0 0.0
        %3348 = vmatmul.mubr.f32.gmra.mrb[0].mxu0 %v3123
        %v3349 = vpop.f32.mrb[0].mxu0
        %v3350 = vadd.f32 %v3245, %v3349
        %v3351 = vpop.f32.mrb[0].mxu0
        %3352 = vmatprep.mubr.f32.mxu0 0.0
        %3353 = vmatmul.mubr.f32.gmra.mrb[0].mxu0 %v3124
        %v3354 = vpop.f32.mrb[0].mxu0
        %v3355 = vadd.f32 %v3250, %v3354
        %v3356 = vpop.f32.mrb[0].mxu0
        %3357 = vmatprep.mubr.f32.mxu0 0.0
        %3358 = vmatmul.mubr.f32.gmra.mrb[0].mxu0 %v3125
        %v3359 = vpop.f32.mrb[0].mxu0
        %v3360 = vadd.f32 %v3255, %v3359
        %v3361 = vpop.f32.mrb[0].mxu0
        %3362 = vmatprep.mubr.f32.mxu0 0.0
        %3363 = vmatmul.mubr.f32.gmra.mrb[0].mxu0 %v3126
        %v3364 = vpop.f32.mrb[0].mxu0
        %v3365 = vadd.f32 %v3260, %v3364
        %v3366 = vpop.f32.mrb[0].mxu0
        %3367 = vmatprep.mubr.f32.mxu0 0.0
        %3368 = vmatmul.mubr.f32.gmra.mrb[0].mxu0 %v3127
        %v3369 = vpop.f32.mrb[0].mxu0
        %v3370 = vadd.f32 %v3265, %v3369
        %v3371 = vpop.f32.mrb[0].mxu0
        %3372 = vdwg.mxu0
        %s3373 = scalar_lea.vmem [#allocation2], 2560
        %v3374 = vld [vmem:[%s3373] sm:$0xff]
        %v3375 = vld [vmem:[%s3373 + $0x8] sm:$0xff]
        %v3376 = vld [vmem:[%s3373 + $0x10] sm:$0xff]
        %v3377 = vld [vmem:[%s3373 + $0x18] sm:$0xff]
        %v3378 = vld [vmem:[%s3373 + $0x20] sm:$0xff]
        %v3379 = vld [vmem:[%s3373 + $0x28] sm:$0xff]
        %v3380 = vld [vmem:[%s3373 + $0x30] sm:$0xff]
        %v3381 = vld [vmem:[%s3373 + $0x38] sm:$0xff]
        %v3382 = vld [vmem:[%s3373 + $0x40] sm:$0xff]
        %v3383 = vld [vmem:[%s3373 + $0x48] sm:$0xff]
        %v3384 = vld [vmem:[%s3373 + $0x50] sm:$0xff]
        %v3385 = vld [vmem:[%s3373 + $0x58] sm:$0xff]
        %v3386 = vld [vmem:[%s3373 + $0x60] sm:$0xff]
        %v3387 = vld [vmem:[%s3373 + $0x68] sm:$0xff]
        %v3388 = vld [vmem:[%s3373 + $0x70] sm:$0xff]
        %v3389 = vld [vmem:[%s3373 + $0x78] sm:$0xff]
        %3390 = vmatprep.subr.mxu0 0.0
        %3391 = vmatpush1.msra.mxu0 %v3374
        %3392 = vmatprep.subr.mxu0 0.0
        %3393 = vmatpush1.msra.mxu0 %v3375
        %3394 = vmatprep.subr.mxu0 0.0
        %3395 = vmatpush1.msra.mxu0 %v3376
        %3396 = vmatprep.subr.mxu0 0.0
        %3397 = vmatpush1.msra.mxu0 %v3377
        %3398 = vmatprep.subr.mxu0 0.0
        %3399 = vmatpush1.msra.mxu0 %v3378
        %3400 = vmatprep.subr.mxu0 0.0
        %3401 = vmatpush1.msra.mxu0 %v3379
        %3402 = vmatprep.subr.mxu0 0.0
        %3403 = vmatpush1.msra.mxu0 %v3380
        %3404 = vmatprep.subr.mxu0 0.0
        %3405 = vmatpush1.msra.mxu0 %v3381
        %3406 = vmatprep.subr.mxu0 0.0
        %3407 = vmatpush1.msra.mxu0 %v3382
        %3408 = vmatprep.subr.mxu0 0.0
        %3409 = vmatpush1.msra.mxu0 %v3383
        %3410 = vmatprep.subr.mxu0 0.0
        %3411 = vmatpush1.msra.mxu0 %v3384
        %3412 = vmatprep.subr.mxu0 0.0
        %3413 = vmatpush1.msra.mxu0 %v3385
        %3414 = vmatprep.subr.mxu0 0.0
        %3415 = vmatpush1.msra.mxu0 %v3386
        %3416 = vmatprep.subr.mxu0 0.0
        %3417 = vmatpush1.msra.mxu0 %v3387
        %3418 = vmatprep.subr.mxu0 0.0
        %3419 = vmatpush1.msra.mxu0 %v3388
        %3420 = vmatprep.subr.mxu0 0.0
        %3421 = vmatpush1.msra.mxu0 %v3389
        %3422 = vmatprep.subr.mxu0 0.0
        %3423 = vmatpush1.msra.mxu0 0.0
        %3424 = vmatprep.subr.mxu0 0.0
        %3425 = vmatpush1.msra.mxu0 0.0
        %3426 = vmatprep.subr.mxu0 0.0
        %3427 = vmatpush1.msra.mxu0 0.0
        %3428 = vmatprep.subr.mxu0 0.0
        %3429 = vmatpush1.msra.mxu0 0.0
        %3430 = vmatprep.subr.mxu0 0.0
        %3431 = vmatpush1.msra.mxu0 0.0
        %3432 = vmatprep.subr.mxu0 0.0
        %3433 = vmatpush1.msra.mxu0 0.0
        %3434 = vmatprep.subr.mxu0 0.0
        %3435 = vmatpush1.msra.mxu0 0.0
        %3436 = vmatprep.subr.mxu0 0.0
        %3437 = vmatpush1.msra.mxu0 0.0
        %3438 = vmatprep.subr.mxu0 0.0
        %3439 = vmatpush1.msra.mxu0 0.0
        %3440 = vmatprep.subr.mxu0 0.0
        %3441 = vmatpush1.msra.mxu0 0.0
        %3442 = vmatprep.subr.mxu0 0.0
        %3443 = vmatpush1.msra.mxu0 0.0
        %3444 = vmatprep.subr.mxu0 0.0
        %3445 = vmatpush1.msra.mxu0 0.0
        %3446 = vmatprep.subr.mxu0 0.0
        %3447 = vmatpush1.msra.mxu0 0.0
        %3448 = vmatprep.subr.mxu0 0.0
        %3449 = vmatpush1.msra.mxu0 0.0
        %3450 = vmatprep.subr.mxu0 0.0
        %3451 = vmatpush1.msra.mxu0 0.0
        %3452 = vmatprep.subr.mxu0 0.0
        %3453 = vmatpush1.msra.mxu0 0.0
        %3454 = vmatprep.mubr.f32.mxu0 0.0
        %3455 = vmatmul.mubr.f32.gmra.mrb[0].mxu0 %v3122
        %v3456 = vpop.f32.mrb[0].mxu0
        %v3457 = vadd.f32 0.0, %v3456
        %v3458 = vpop.f32.mrb[0].mxu0
        %3459 = vmatprep.mubr.f32.mxu0 0.0
        %3460 = vmatmul.mubr.f32.gmra.mrb[0].mxu0 %v3123
        %v3461 = vpop.f32.mrb[0].mxu0
        %v3462 = vadd.f32 0.0, %v3461
        %v3463 = vpop.f32.mrb[0].mxu0
        %3464 = vmatprep.mubr.f32.mxu0 0.0
        %3465 = vmatmul.mubr.f32.gmra.mrb[0].mxu0 %v3124
        %v3466 = vpop.f32.mrb[0].mxu0
        %v3467 = vadd.f32 0.0, %v3466
        %v3468 = vpop.f32.mrb[0].mxu0
        %3469 = vmatprep.mubr.f32.mxu0 0.0
        %3470 = vmatmul.mubr.f32.gmra.mrb[0].mxu0 %v3125
        %v3471 = vpop.f32.mrb[0].mxu0
        %v3472 = vadd.f32 0.0, %v3471
        %v3473 = vpop.f32.mrb[0].mxu0
        %3474 = vmatprep.mubr.f32.mxu0 0.0
        %3475 = vmatmul.mubr.f32.gmra.mrb[0].mxu0 %v3126
        %v3476 = vpop.f32.mrb[0].mxu0
        %v3477 = vadd.f32 0.0, %v3476
        %v3478 = vpop.f32.mrb[0].mxu0
        %3479 = vmatprep.mubr.f32.mxu0 0.0
        %3480 = vmatmul.mubr.f32.gmra.mrb[0].mxu0 %v3127
        %v3481 = vpop.f32.mrb[0].mxu0
        %v3482 = vadd.f32 0.0, %v3481
        %v3483 = vpop.f32.mrb[0].mxu0
        %3484 = vmatprep.mubr.f32.mxu0 0.0
        %3485 = vmatmul.mubr.f32.gmra.mrb[0].mxu0 %v3128
        %v3486 = vpop.f32.mrb[0].mxu0
        %v3487 = vadd.f32 0.0, %v3486
        %v3488 = vpop.f32.mrb[0].mxu0
        %3489 = vmatprep.mubr.f32.mxu0 0.0
        %3490 = vmatmul.mubr.f32.gmra.mrb[0].mxu0 0.0
        %v3491 = vpop.f32.mrb[0].mxu0
        %v3492 = vadd.f32 0.0, %v3491
        %v3493 = vpop.f32.mrb[0].mxu0
        %3494 = vdwg.mxu0
        %v3495 = vadd.f32 %v3335, %v3457
        %v3496 = vadd.f32 %v3340, %v3462
        %v3497 = vadd.f32 %v3345, %v3467
        %v3498 = vadd.f32 %v3350, %v3472
        %v3499 = vadd.f32 %v3355, %v3477
        %v3500 = vadd.f32 %v3360, %v3482
        %v3501 = vadd.f32 %v3365, %v3487
        %v3502 = vadd.f32 %v3370, %v3492
        %s3503 = scalar_lea.vmem [#allocation2], 2688
        %v3504 = vld [vmem:[%s3503] sm:$0xff]
        %v3505 = vld [vmem:[%s3503 + $0x8] sm:$0xff]
        %v3506 = vld [vmem:[%s3503 + $0x10] sm:$0xff]
        %v3507 = vld [vmem:[%s3503 + $0x18] sm:$0xff]
        %v3508 = vld [vmem:[%s3503 + $0x20] sm:$0xff]
        %v3509 = vld [vmem:[%s3503 + $0x28] sm:$0xff]
        %v3510 = vld [vmem:[%s3503 + $0x30] sm:$0xff]
        %v3511 = vld [vmem:[%s3503 + $0x38] sm:$0xff]
        %v3512 = vld [vmem:[%s3503 + $0x40] sm:$0xff]
        %v3513 = vld [vmem:[%s3503 + $0x48] sm:$0xff]
        %v3514 = vld [vmem:[%s3503 + $0x50] sm:$0xff]
        %v3515 = vld [vmem:[%s3503 + $0x58] sm:$0xff]
        %v3516 = vld [vmem:[%s3503 + $0x60] sm:$0xff]
        %v3517 = vld [vmem:[%s3503 + $0x68] sm:$0xff]
        %v3518 = vld [vmem:[%s3503 + $0x70] sm:$0xff]
        %v3519 = vld [vmem:[%s3503 + $0x78] sm:$0xff]
        %s3520 = scalar_lea.vmem [#allocation2], 2816
        %v3521 = vld [vmem:[%s3520] sm:$0xff]
        %v3522 = vld [vmem:[%s3520 + $0x8] sm:$0xff]
        %v3523 = vld [vmem:[%s3520 + $0x10] sm:$0xff]
        %v3524 = vld [vmem:[%s3520 + $0x18] sm:$0xff]
        %v3525 = vld [vmem:[%s3520 + $0x20] sm:$0xff]
        %v3526 = vld [vmem:[%s3520 + $0x28] sm:$0xff]
        %v3527 = vld [vmem:[%s3520 + $0x30] sm:$0xff]
        %v3528 = vld [vmem:[%s3520 + $0x38] sm:$0xff]
        %v3529 = vld [vmem:[%s3520 + $0x40] sm:$0xff]
        %v3530 = vld [vmem:[%s3520 + $0x48] sm:$0xff]
        %v3531 = vld [vmem:[%s3520 + $0x50] sm:$0xff]
        %v3532 = vld [vmem:[%s3520 + $0x58] sm:$0xff]
        %v3533 = vld [vmem:[%s3520 + $0x60] sm:$0xff]
        %v3534 = vld [vmem:[%s3520 + $0x68] sm:$0xff]
        %v3535 = vld [vmem:[%s3520 + $0x70] sm:$0xff]
        %v3536 = vld [vmem:[%s3520 + $0x78] sm:$0xff]
        %3537 = vmatprep.subr.mxu0 0.0
        %3538 = vmatpush1.msra.mxu0 %v3521
        %3539 = vmatprep.subr.mxu0 0.0
        %3540 = vmatpush1.msra.mxu0 %v3522
        %3541 = vmatprep.subr.mxu0 0.0
        %3542 = vmatpush1.msra.mxu0 %v3523
        %3543 = vmatprep.subr.mxu0 0.0
        %3544 = vmatpush1.msra.mxu0 %v3524
        %3545 = vmatprep.subr.mxu0 0.0
        %3546 = vmatpush1.msra.mxu0 %v3525
        %3547 = vmatprep.subr.mxu0 0.0
        %3548 = vmatpush1.msra.mxu0 %v3526
        %3549 = vmatprep.subr.mxu0 0.0
        %3550 = vmatpush1.msra.mxu0 %v3527
        %3551 = vmatprep.subr.mxu0 0.0
        %3552 = vmatpush1.msra.mxu0 %v3528
        %3553 = vmatprep.subr.mxu0 0.0
        %3554 = vmatpush1.msra.mxu0 %v3529
        %3555 = vmatprep.subr.mxu0 0.0
        %3556 = vmatpush1.msra.mxu0 %v3530
        %3557 = vmatprep.subr.mxu0 0.0
        %3558 = vmatpush1.msra.mxu0 %v3531
        %3559 = vmatprep.subr.mxu0 0.0
        %3560 = vmatpush1.msra.mxu0 %v3532
        %3561 = vmatprep.subr.mxu0 0.0
        %3562 = vmatpush1.msra.mxu0 %v3533
        %3563 = vmatprep.subr.mxu0 0.0
        %3564 = vmatpush1.msra.mxu0 %v3534
        %3565 = vmatprep.subr.mxu0 0.0
        %3566 = vmatpush1.msra.mxu0 %v3535
        %3567 = vmatprep.subr.mxu0 0.0
        %3568 = vmatpush1.msra.mxu0 %v3536
        %3569 = vmatprep.subr.mxu0 0.0
        %3570 = vmatpush1.msra.mxu0 0.0
        %3571 = vmatprep.subr.mxu0 0.0
        %3572 = vmatpush1.msra.mxu0 0.0
        %3573 = vmatprep.subr.mxu0 0.0
        %3574 = vmatpush1.msra.mxu0 0.0
        %3575 = vmatprep.subr.mxu0 0.0
        %3576 = vmatpush1.msra.mxu0 0.0
        %3577 = vmatprep.subr.mxu0 0.0
        %3578 = vmatpush1.msra.mxu0 0.0
        %3579 = vmatprep.subr.mxu0 0.0
        %3580 = vmatpush1.msra.mxu0 0.0
        %3581 = vmatprep.subr.mxu0 0.0
        %3582 = vmatpush1.msra.mxu0 0.0
        %3583 = vmatprep.subr.mxu0 0.0
        %3584 = vmatpush1.msra.mxu0 0.0
        %3585 = vmatprep.subr.mxu0 0.0
        %3586 = vmatpush1.msra.mxu0 0.0
        %3587 = vmatprep.subr.mxu0 0.0
        %3588 = vmatpush1.msra.mxu0 0.0
        %3589 = vmatprep.subr.mxu0 0.0
        %3590 = vmatpush1.msra.mxu0 0.0
        %3591 = vmatprep.subr.mxu0 0.0
        %3592 = vmatpush1.msra.mxu0 0.0
        %3593 = vmatprep.subr.mxu0 0.0
        %3594 = vmatpush1.msra.mxu0 0.0
        %3595 = vmatprep.subr.mxu0 0.0
        %3596 = vmatpush1.msra.mxu0 0.0
        %3597 = vmatprep.subr.mxu0 0.0
        %3598 = vmatpush1.msra.mxu0 0.0
        %3599 = vmatprep.subr.mxu0 0.0
        %3600 = vmatpush1.msra.mxu0 0.0
        %3601 = vmatprep.mubr.f32.mxu0 0.0
        %3602 = vmatmul.mubr.f32.gmra.mrb[0].mxu0 %v3121
        %v3603 = vpop.f32.mrb[0].mxu0
        %v3604 = vadd.f32 0.0, %v3603
        %v3605 = vpop.f32.mrb[0].mxu0
        %3606 = vmatprep.mubr.f32.mxu0 0.0
        %3607 = vmatmul.mubr.f32.gmra.mrb[0].mxu0 %v3122
        %v3608 = vpop.f32.mrb[0].mxu0
        %v3609 = vadd.f32 0.0, %v3608
        %v3610 = vpop.f32.mrb[0].mxu0
        %3611 = vmatprep.mubr.f32.mxu0 0.0
        %3612 = vmatmul.mubr.f32.gmra.mrb[0].mxu0 %v3123
        %v3613 = vpop.f32.mrb[0].mxu0
        %v3614 = vadd.f32 0.0, %v3613
        %v3615 = vpop.f32.mrb[0].mxu0
        %3616 = vmatprep.mubr.f32.mxu0 0.0
        %3617 = vmatmul.mubr.f32.gmra.mrb[0].mxu0 %v3124
        %v3618 = vpop.f32.mrb[0].mxu0
        %v3619 = vadd.f32 0.0, %v3618
        %v3620 = vpop.f32.mrb[0].mxu0
        %3621 = vmatprep.mubr.f32.mxu0 0.0
        %3622 = vmatmul.mubr.f32.gmra.mrb[0].mxu0 %v3125
        %v3623 = vpop.f32.mrb[0].mxu0
        %v3624 = vadd.f32 0.0, %v3623
        %v3625 = vpop.f32.mrb[0].mxu0
        %3626 = vmatprep.mubr.f32.mxu0 0.0
        %3627 = vmatmul.mubr.f32.gmra.mrb[0].mxu0 %v3126
        %v3628 = vpop.f32.mrb[0].mxu0
        %v3629 = vadd.f32 0.0, %v3628
        %v3630 = vpop.f32.mrb[0].mxu0
        %3631 = vmatprep.mubr.f32.mxu0 0.0
        %3632 = vmatmul.mubr.f32.gmra.mrb[0].mxu0 %v3127
        %v3633 = vpop.f32.mrb[0].mxu0
        %v3634 = vadd.f32 0.0, %v3633
        %v3635 = vpop.f32.mrb[0].mxu0
        %3636 = vmatprep.mubr.f32.mxu0 0.0
        %3637 = vmatmul.mubr.f32.gmra.mrb[0].mxu0 %v3128
        %v3638 = vpop.f32.mrb[0].mxu0
        %v3639 = vadd.f32 0.0, %v3638
        %v3640 = vpop.f32.mrb[0].mxu0
        %3641 = vdwg.mxu0
        %3642 = vmatprep.subr.mxu0 0.0
        %3643 = vmatpush1.msra.mxu0 %v3504
        %3644 = vmatprep.subr.mxu0 0.0
        %3645 = vmatpush1.msra.mxu0 %v3505
        %3646 = vmatprep.subr.mxu0 0.0
        %3647 = vmatpush1.msra.mxu0 %v3506
        %3648 = vmatprep.subr.mxu0 0.0
        %3649 = vmatpush1.msra.mxu0 %v3507
        %3650 = vmatprep.subr.mxu0 0.0
        %3651 = vmatpush1.msra.mxu0 %v3508
        %3652 = vmatprep.subr.mxu0 0.0
        %3653 = vmatpush1.msra.mxu0 %v3509
        %3654 = vmatprep.subr.mxu0 0.0
        %3655 = vmatpush1.msra.mxu0 %v3510
        %3656 = vmatprep.subr.mxu0 0.0
        %3657 = vmatpush1.msra.mxu0 %v3511
        %3658 = vmatprep.subr.mxu0 0.0
        %3659 = vmatpush1.msra.mxu0 %v3512
        %3660 = vmatprep.subr.mxu0 0.0
        %3661 = vmatpush1.msra.mxu0 %v3513
        %3662 = vmatprep.subr.mxu0 0.0
        %3663 = vmatpush1.msra.mxu0 %v3514
        %3664 = vmatprep.subr.mxu0 0.0
        %3665 = vmatpush1.msra.mxu0 %v3515
        %3666 = vmatprep.subr.mxu0 0.0
        %3667 = vmatpush1.msra.mxu0 %v3516
        %3668 = vmatprep.subr.mxu0 0.0
        %3669 = vmatpush1.msra.mxu0 %v3517
        %3670 = vmatprep.subr.mxu0 0.0
        %3671 = vmatpush1.msra.mxu0 %v3518
        %3672 = vmatprep.subr.mxu0 0.0
        %3673 = vmatpush1.msra.mxu0 %v3519
        %3674 = vmatprep.subr.mxu0 0.0
        %3675 = vmatpush1.msra.mxu0 0.0
        %3676 = vmatprep.subr.mxu0 0.0
        %3677 = vmatpush1.msra.mxu0 0.0
        %3678 = vmatprep.subr.mxu0 0.0
        %3679 = vmatpush1.msra.mxu0 0.0
        %3680 = vmatprep.subr.mxu0 0.0
        %3681 = vmatpush1.msra.mxu0 0.0
        %3682 = vmatprep.subr.mxu0 0.0
        %3683 = vmatpush1.msra.mxu0 0.0
        %3684 = vmatprep.subr.mxu0 0.0
        %3685 = vmatpush1.msra.mxu0 0.0
        %3686 = vmatprep.subr.mxu0 0.0
        %3687 = vmatpush1.msra.mxu0 0.0
        %3688 = vmatprep.subr.mxu0 0.0
        %3689 = vmatpush1.msra.mxu0 0.0
        %3690 = vmatprep.subr.mxu0 0.0
        %3691 = vmatpush1.msra.mxu0 0.0
        %3692 = vmatprep.subr.mxu0 0.0
        %3693 = vmatpush1.msra.mxu0 0.0
        %3694 = vmatprep.subr.mxu0 0.0
        %3695 = vmatpush1.msra.mxu0 0.0
        %3696 = vmatprep.subr.mxu0 0.0
        %3697 = vmatpush1.msra.mxu0 0.0
        %3698 = vmatprep.subr.mxu0 0.0
        %3699 = vmatpush1.msra.mxu0 0.0
        %3700 = vmatprep.subr.mxu0 0.0
        %3701 = vmatpush1.msra.mxu0 0.0
        %3702 = vmatprep.subr.mxu0 0.0
        %3703 = vmatpush1.msra.mxu0 0.0
        %3704 = vmatprep.subr.mxu0 0.0
        %3705 = vmatpush1.msra.mxu0 0.0
        %3706 = vmatprep.mubr.f32.mxu0 0.0
        %3707 = vmatmul.mubr.f32.gmra.mrb[0].mxu0 0.0
        %v3708 = vpop.f32.mrb[0].mxu0
        %v3709 = vadd.f32 %v3604, %v3708
        %v3710 = vpop.f32.mrb[0].mxu0
        %3711 = vmatprep.mubr.f32.mxu0 0.0
        %3712 = vmatmul.mubr.f32.gmra.mrb[0].mxu0 %v3121
        %v3713 = vpop.f32.mrb[0].mxu0
        %v3714 = vadd.f32 %v3609, %v3713
        %v3715 = vpop.f32.mrb[0].mxu0
        %3716 = vmatprep.mubr.f32.mxu0 0.0
        %3717 = vmatmul.mubr.f32.gmra.mrb[0].mxu0 %v3122
        %v3718 = vpop.f32.mrb[0].mxu0
        %v3719 = vadd.f32 %v3614, %v3718
        %v3720 = vpop.f32.mrb[0].mxu0
        %3721 = vmatprep.mubr.f32.mxu0 0.0
        %3722 = vmatmul.mubr.f32.gmra.mrb[0].mxu0 %v3123
        %v3723 = vpop.f32.mrb[0].mxu0
        %v3724 = vadd.f32 %v3619, %v3723
        %v3725 = vpop.f32.mrb[0].mxu0
        %3726 = vmatprep.mubr.f32.mxu0 0.0
        %3727 = vmatmul.mubr.f32.gmra.mrb[0].mxu0 %v3124
        %v3728 = vpop.f32.mrb[0].mxu0
        %v3729 = vadd.f32 %v3624, %v3728
        %v3730 = vpop.f32.mrb[0].mxu0
        %3731 = vmatprep.mubr.f32.mxu0 0.0
        %3732 = vmatmul.mubr.f32.gmra.mrb[0].mxu0 %v3125
        %v3733 = vpop.f32.mrb[0].mxu0
        %v3734 = vadd.f32 %v3629, %v3733
        %v3735 = vpop.f32.mrb[0].mxu0
        %3736 = vmatprep.mubr.f32.mxu0 0.0
        %3737 = vmatmul.mubr.f32.gmra.mrb[0].mxu0 %v3126
        %v3738 = vpop.f32.mrb[0].mxu0
        %v3739 = vadd.f32 %v3634, %v3738
        %v3740 = vpop.f32.mrb[0].mxu0
        %3741 = vmatprep.mubr.f32.mxu0 0.0
        %3742 = vmatmul.mubr.f32.gmra.mrb[0].mxu0 %v3127
        %v3743 = vpop.f32.mrb[0].mxu0
        %v3744 = vadd.f32 %v3639, %v3743
        %v3745 = vpop.f32.mrb[0].mxu0
        %3746 = vdwg.mxu0
        %s3747 = scalar_lea.vmem [#allocation2], 2944
        %v3748 = vld [vmem:[%s3747] sm:$0xff]
        %v3749 = vld [vmem:[%s3747 + $0x8] sm:$0xff]
        %v3750 = vld [vmem:[%s3747 + $0x10] sm:$0xff]
        %v3751 = vld [vmem:[%s3747 + $0x18] sm:$0xff]
        %v3752 = vld [vmem:[%s3747 + $0x20] sm:$0xff]
        %v3753 = vld [vmem:[%s3747 + $0x28] sm:$0xff]
        %v3754 = vld [vmem:[%s3747 + $0x30] sm:$0xff]
        %v3755 = vld [vmem:[%s3747 + $0x38] sm:$0xff]
        %v3756 = vld [vmem:[%s3747 + $0x40] sm:$0xff]
        %v3757 = vld [vmem:[%s3747 + $0x48] sm:$0xff]
        %v3758 = vld [vmem:[%s3747 + $0x50] sm:$0xff]
        %v3759 = vld [vmem:[%s3747 + $0x58] sm:$0xff]
        %v3760 = vld [vmem:[%s3747 + $0x60] sm:$0xff]
        %v3761 = vld [vmem:[%s3747 + $0x68] sm:$0xff]
        %v3762 = vld [vmem:[%s3747 + $0x70] sm:$0xff]
        %v3763 = vld [vmem:[%s3747 + $0x78] sm:$0xff]
        %3764 = vmatprep.subr.mxu0 0.0
        %3765 = vmatpush1.msra.mxu0 %v3748
        %3766 = vmatprep.subr.mxu0 0.0
        %3767 = vmatpush1.msra.mxu0 %v3749
        %3768 = vmatprep.subr.mxu0 0.0
        %3769 = vmatpush1.msra.mxu0 %v3750
        %3770 = vmatprep.subr.mxu0 0.0
        %3771 = vmatpush1.msra.mxu0 %v3751
        %3772 = vmatprep.subr.mxu0 0.0
        %3773 = vmatpush1.msra.mxu0 %v3752
        %3774 = vmatprep.subr.mxu0 0.0
        %3775 = vmatpush1.msra.mxu0 %v3753
        %3776 = vmatprep.subr.mxu0 0.0
        %3777 = vmatpush1.msra.mxu0 %v3754
        %3778 = vmatprep.subr.mxu0 0.0
        %3779 = vmatpush1.msra.mxu0 %v3755
        %3780 = vmatprep.subr.mxu0 0.0
        %3781 = vmatpush1.msra.mxu0 %v3756
        %3782 = vmatprep.subr.mxu0 0.0
        %3783 = vmatpush1.msra.mxu0 %v3757
        %3784 = vmatprep.subr.mxu0 0.0
        %3785 = vmatpush1.msra.mxu0 %v3758
        %3786 = vmatprep.subr.mxu0 0.0
        %3787 = vmatpush1.msra.mxu0 %v3759
        %3788 = vmatprep.subr.mxu0 0.0
        %3789 = vmatpush1.msra.mxu0 %v3760
        %3790 = vmatprep.subr.mxu0 0.0
        %3791 = vmatpush1.msra.mxu0 %v3761
        %3792 = vmatprep.subr.mxu0 0.0
        %3793 = vmatpush1.msra.mxu0 %v3762
        %3794 = vmatprep.subr.mxu0 0.0
        %3795 = vmatpush1.msra.mxu0 %v3763
        %3796 = vmatprep.subr.mxu0 0.0
        %3797 = vmatpush1.msra.mxu0 0.0
        %3798 = vmatprep.subr.mxu0 0.0
        %3799 = vmatpush1.msra.mxu0 0.0
        %3800 = vmatprep.subr.mxu0 0.0
        %3801 = vmatpush1.msra.mxu0 0.0
        %3802 = vmatprep.subr.mxu0 0.0
        %3803 = vmatpush1.msra.mxu0 0.0
        %3804 = vmatprep.subr.mxu0 0.0
        %3805 = vmatpush1.msra.mxu0 0.0
        %3806 = vmatprep.subr.mxu0 0.0
        %3807 = vmatpush1.msra.mxu0 0.0
        %3808 = vmatprep.subr.mxu0 0.0
        %3809 = vmatpush1.msra.mxu0 0.0
        %3810 = vmatprep.subr.mxu0 0.0
        %3811 = vmatpush1.msra.mxu0 0.0
        %3812 = vmatprep.subr.mxu0 0.0
        %3813 = vmatpush1.msra.mxu0 0.0
        %3814 = vmatprep.subr.mxu0 0.0
        %3815 = vmatpush1.msra.mxu0 0.0
        %3816 = vmatprep.subr.mxu0 0.0
        %3817 = vmatpush1.msra.mxu0 0.0
        %3818 = vmatprep.subr.mxu0 0.0
        %3819 = vmatpush1.msra.mxu0 0.0
        %3820 = vmatprep.subr.mxu0 0.0
        %3821 = vmatpush1.msra.mxu0 0.0
        %3822 = vmatprep.subr.mxu0 0.0
        %3823 = vmatpush1.msra.mxu0 0.0
        %3824 = vmatprep.subr.mxu0 0.0
        %3825 = vmatpush1.msra.mxu0 0.0
        %3826 = vmatprep.subr.mxu0 0.0
        %3827 = vmatpush1.msra.mxu0 0.0
        %3828 = vmatprep.mubr.f32.mxu0 0.0
        %3829 = vmatmul.mubr.f32.gmra.mrb[0].mxu0 %v3122
        %v3830 = vpop.f32.mrb[0].mxu0
        %v3831 = vadd.f32 0.0, %v3830
        %v3832 = vpop.f32.mrb[0].mxu0
        %3833 = vmatprep.mubr.f32.mxu0 0.0
        %3834 = vmatmul.mubr.f32.gmra.mrb[0].mxu0 %v3123
        %v3835 = vpop.f32.mrb[0].mxu0
        %v3836 = vadd.f32 0.0, %v3835
        %v3837 = vpop.f32.mrb[0].mxu0
        %3838 = vmatprep.mubr.f32.mxu0 0.0
        %3839 = vmatmul.mubr.f32.gmra.mrb[0].mxu0 %v3124
        %v3840 = vpop.f32.mrb[0].mxu0
        %v3841 = vadd.f32 0.0, %v3840
        %v3842 = vpop.f32.mrb[0].mxu0
        %3843 = vmatprep.mubr.f32.mxu0 0.0
        %3844 = vmatmul.mubr.f32.gmra.mrb[0].mxu0 %v3125
        %v3845 = vpop.f32.mrb[0].mxu0
        %v3846 = vadd.f32 0.0, %v3845
        %v3847 = vpop.f32.mrb[0].mxu0
        %3848 = vmatprep.mubr.f32.mxu0 0.0
        %3849 = vmatmul.mubr.f32.gmra.mrb[0].mxu0 %v3126
        %v3850 = vpop.f32.mrb[0].mxu0
        %v3851 = vadd.f32 0.0, %v3850
        %v3852 = vpop.f32.mrb[0].mxu0
        %3853 = vmatprep.mubr.f32.mxu0 0.0
        %3854 = vmatmul.mubr.f32.gmra.mrb[0].mxu0 %v3127
        %v3855 = vpop.f32.mrb[0].mxu0
        %v3856 = vadd.f32 0.0, %v3855
        %v3857 = vpop.f32.mrb[0].mxu0
        %3858 = vmatprep.mubr.f32.mxu0 0.0
        %3859 = vmatmul.mubr.f32.gmra.mrb[0].mxu0 %v3128
        %v3860 = vpop.f32.mrb[0].mxu0
        %v3861 = vadd.f32 0.0, %v3860
        %v3862 = vpop.f32.mrb[0].mxu0
        %3863 = vmatprep.mubr.f32.mxu0 0.0
        %3864 = vmatmul.mubr.f32.gmra.mrb[0].mxu0 0.0
        %v3865 = vpop.f32.mrb[0].mxu0
        %v3866 = vadd.f32 0.0, %v3865
        %v3867 = vpop.f32.mrb[0].mxu0
        %3868 = vdwg.mxu0
        %v3869 = vadd.f32 %v3709, %v3831
        %v3870 = vadd.f32 %v3714, %v3836
        %v3871 = vadd.f32 %v3719, %v3841
        %v3872 = vadd.f32 %v3724, %v3846
        %v3873 = vadd.f32 %v3729, %v3851
        %v3874 = vadd.f32 %v3734, %v3856
        %v3875 = vadd.f32 %v3739, %v3861
        %v3876 = vadd.f32 %v3744, %v3866
        %3877 = vmatprep.subr.mxu0 0.0
        %3878 = vmatpush1.msra.mxu0 %v3495
        %3879 = vmatprep.subr.mxu0 0.0
        %3880 = vmatpush1.msra.mxu0 %v3496
        %3881 = vmatprep.subr.mxu0 0.0
        %3882 = vmatpush1.msra.mxu0 %v3497
        %3883 = vmatprep.subr.mxu0 0.0
        %3884 = vmatpush1.msra.mxu0 %v3498
        %3885 = vmatprep.subr.mxu0 0.0
        %3886 = vmatpush1.msra.mxu0 %v3499
        %3887 = vmatprep.subr.mxu0 0.0
        %3888 = vmatpush1.msra.mxu0 %v3500
        %3889 = vmatprep.subr.mxu0 0.0
        %3890 = vmatpush1.msra.mxu0 %v3501
        %3891 = vmatprep.subr.mxu0 0.0
        %3892 = vmatpush1.msra.mxu0 %v3502
        %3893 = vmatprep.subr.mxu0 0.0
        %3894 = vmatpush1.msra.mxu0 0.0
        %3895 = vmatprep.subr.mxu0 0.0
        %3896 = vmatpush1.msra.mxu0 0.0
        %3897 = vmatprep.subr.mxu0 0.0
        %3898 = vmatpush1.msra.mxu0 0.0
        %3899 = vmatprep.subr.mxu0 0.0
        %3900 = vmatpush1.msra.mxu0 0.0
        %3901 = vmatprep.subr.mxu0 0.0
        %3902 = vmatpush1.msra.mxu0 0.0
        %3903 = vmatprep.subr.mxu0 0.0
        %3904 = vmatpush1.msra.mxu0 0.0
        %3905 = vmatprep.subr.mxu0 0.0
        %3906 = vmatpush1.msra.mxu0 0.0
        %3907 = vmatprep.subr.mxu0 0.0
        %3908 = vmatpush1.msra.mxu0 0.0
        %3909 = vmatprep.subr.mxu0 0.0
        %3910 = vmatpush1.msra.mxu0 0.0
        %3911 = vmatprep.subr.mxu0 0.0
        %3912 = vmatpush1.msra.mxu0 0.0
        %3913 = vmatprep.subr.mxu0 0.0
        %3914 = vmatpush1.msra.mxu0 0.0
        %3915 = vmatprep.subr.mxu0 0.0
        %3916 = vmatpush1.msra.mxu0 0.0
        %3917 = vmatprep.subr.mxu0 0.0
        %3918 = vmatpush1.msra.mxu0 0.0
        %3919 = vmatprep.subr.mxu0 0.0
        %3920 = vmatpush1.msra.mxu0 0.0
        %3921 = vmatprep.subr.mxu0 0.0
        %3922 = vmatpush1.msra.mxu0 0.0
        %3923 = vmatprep.subr.mxu0 0.0
        %3924 = vmatpush1.msra.mxu0 0.0
        %3925 = vmatprep.subr.mxu0 0.0
        %3926 = vmatpush1.msra.mxu0 0.0
        %3927 = vmatprep.subr.mxu0 0.0
        %3928 = vmatpush1.msra.mxu0 0.0
        %3929 = vmatprep.subr.mxu0 0.0
        %3930 = vmatpush1.msra.mxu0 0.0
        %3931 = vmatprep.subr.mxu0 0.0
        %3932 = vmatpush1.msra.mxu0 0.0
        %3933 = vmatprep.subr.mxu0 0.0
        %3934 = vmatpush1.msra.mxu0 0.0
        %3935 = vmatprep.subr.mxu0 0.0
        %3936 = vmatpush1.msra.mxu0 0.0
        %3937 = vmatprep.subr.mxu0 0.0
        %3938 = vmatpush1.msra.mxu0 0.0
        %3939 = vmatprep.subr.mxu0 0.0
        %3940 = vmatpush1.msra.mxu0 0.0
        %3941 = vmatprep.mubr.f32.mxu0 0.0
        %3942 = vmatmul.mubr.f32.gmra.mrb[0].mxu0 %v1086
        %v3943 = vpop.f32.mrb[0].mxu0
        %v3944 = vadd.f32 %v3869, %v3943
        %v3945 = vpop.f32.mrb[0].mxu0
        %3946 = vmatprep.mubr.f32.mxu0 0.0
        %3947 = vmatmul.mubr.f32.gmra.mrb[0].mxu0 %v1089
        %v3948 = vpop.f32.mrb[0].mxu0
        %v3949 = vadd.f32 %v3870, %v3948
        %v3950 = vpop.f32.mrb[0].mxu0
        %3951 = vmatprep.mubr.f32.mxu0 0.0
        %3952 = vmatmul.mubr.f32.gmra.mrb[0].mxu0 %v1092
        %v3953 = vpop.f32.mrb[0].mxu0
        %v3954 = vadd.f32 %v3871, %v3953
        %v3955 = vpop.f32.mrb[0].mxu0
        %3956 = vmatprep.mubr.f32.mxu0 0.0
        %3957 = vmatmul.mubr.f32.gmra.mrb[0].mxu0 %v1095
        %v3958 = vpop.f32.mrb[0].mxu0
        %v3959 = vadd.f32 %v3872, %v3958
        %v3960 = vpop.f32.mrb[0].mxu0
        %3961 = vmatprep.mubr.f32.mxu0 0.0
        %3962 = vmatmul.mubr.f32.gmra.mrb[0].mxu0 %v1098
        %v3963 = vpop.f32.mrb[0].mxu0
        %v3964 = vadd.f32 %v3873, %v3963
        %v3965 = vpop.f32.mrb[0].mxu0
        %3966 = vmatprep.mubr.f32.mxu0 0.0
        %3967 = vmatmul.mubr.f32.gmra.mrb[0].mxu0 %v1101
        %v3968 = vpop.f32.mrb[0].mxu0
        %v3969 = vadd.f32 %v3874, %v3968
        %v3970 = vpop.f32.mrb[0].mxu0
        %3971 = vmatprep.mubr.f32.mxu0 0.0
        %3972 = vmatmul.mubr.f32.gmra.mrb[0].mxu0 %v1104
        %v3973 = vpop.f32.mrb[0].mxu0
        %v3974 = vadd.f32 %v3875, %v3973
        %v3975 = vpop.f32.mrb[0].mxu0
        %3976 = vmatprep.mubr.f32.mxu0 0.0
        %3977 = vmatmul.mubr.f32.gmra.mrb[0].mxu0 %v1107
        %v3978 = vpop.f32.mrb[0].mxu0
        %v3979 = vadd.f32 %v3876, %v3978
        %v3980 = vpop.f32.mrb[0].mxu0
        %3981 = vdwg.mxu0
        %s3982 = scalar_lea.vmem [#allocation2], 3072
        %v3983 = vld [vmem:[%s3982] sm:$0xff]
        %v3984 = vld [vmem:[%s3982 + $0x8] sm:$0xff]
        %v3985 = vld [vmem:[%s3982 + $0x10] sm:$0xff]
        %v3986 = vld [vmem:[%s3982 + $0x18] sm:$0xff]
        %v3987 = vld [vmem:[%s3982 + $0x20] sm:$0xff]
        %v3988 = vld [vmem:[%s3982 + $0x28] sm:$0xff]
        %v3989 = vld [vmem:[%s3982 + $0x30] sm:$0xff]
        %v3990 = vld [vmem:[%s3982 + $0x38] sm:$0xff]
        %v3991 = vld [vmem:[%s3982 + $0x40] sm:$0xff]
        %v3992 = vld [vmem:[%s3982 + $0x48] sm:$0xff]
        %v3993 = vld [vmem:[%s3982 + $0x50] sm:$0xff]
        %v3994 = vld [vmem:[%s3982 + $0x58] sm:$0xff]
        %v3995 = vld [vmem:[%s3982 + $0x60] sm:$0xff]
        %v3996 = vld [vmem:[%s3982 + $0x68] sm:$0xff]
        %v3997 = vld [vmem:[%s3982 + $0x70] sm:$0xff]
        %v3998 = vld [vmem:[%s3982 + $0x78] sm:$0xff]
        %s3999 = scalar_lea.vmem [#allocation2], 3200
        %v4000 = vld [vmem:[%s3999] sm:$0xff]
        %v4001 = vld [vmem:[%s3999 + $0x8] sm:$0xff]
        %v4002 = vld [vmem:[%s3999 + $0x10] sm:$0xff]
        %v4003 = vld [vmem:[%s3999 + $0x18] sm:$0xff]
        %v4004 = vld [vmem:[%s3999 + $0x20] sm:$0xff]
        %v4005 = vld [vmem:[%s3999 + $0x28] sm:$0xff]
        %v4006 = vld [vmem:[%s3999 + $0x30] sm:$0xff]
        %v4007 = vld [vmem:[%s3999 + $0x38] sm:$0xff]
        %v4008 = vld [vmem:[%s3999 + $0x40] sm:$0xff]
        %v4009 = vld [vmem:[%s3999 + $0x48] sm:$0xff]
        %v4010 = vld [vmem:[%s3999 + $0x50] sm:$0xff]
        %v4011 = vld [vmem:[%s3999 + $0x58] sm:$0xff]
        %v4012 = vld [vmem:[%s3999 + $0x60] sm:$0xff]
        %v4013 = vld [vmem:[%s3999 + $0x68] sm:$0xff]
        %v4014 = vld [vmem:[%s3999 + $0x70] sm:$0xff]
        %v4015 = vld [vmem:[%s3999 + $0x78] sm:$0xff]
        %4016 = vmatprep.subr.mxu0 0.0
        %4017 = vmatpush1.msra.mxu0 %v4000
        %4018 = vmatprep.subr.mxu0 0.0
        %4019 = vmatpush1.msra.mxu0 %v4001
        %4020 = vmatprep.subr.mxu0 0.0
        %4021 = vmatpush1.msra.mxu0 %v4002
        %4022 = vmatprep.subr.mxu0 0.0
        %4023 = vmatpush1.msra.mxu0 %v4003
        %4024 = vmatprep.subr.mxu0 0.0
        %4025 = vmatpush1.msra.mxu0 %v4004
        %4026 = vmatprep.subr.mxu0 0.0
        %4027 = vmatpush1.msra.mxu0 %v4005
        %4028 = vmatprep.subr.mxu0 0.0
        %4029 = vmatpush1.msra.mxu0 %v4006
        %4030 = vmatprep.subr.mxu0 0.0
        %4031 = vmatpush1.msra.mxu0 %v4007
        %4032 = vmatprep.subr.mxu0 0.0
        %4033 = vmatpush1.msra.mxu0 %v4008
        %4034 = vmatprep.subr.mxu0 0.0
        %4035 = vmatpush1.msra.mxu0 %v4009
        %4036 = vmatprep.subr.mxu0 0.0
        %4037 = vmatpush1.msra.mxu0 %v4010
        %4038 = vmatprep.subr.mxu0 0.0
        %4039 = vmatpush1.msra.mxu0 %v4011
        %4040 = vmatprep.subr.mxu0 0.0
        %4041 = vmatpush1.msra.mxu0 %v4012
        %4042 = vmatprep.subr.mxu0 0.0
        %4043 = vmatpush1.msra.mxu0 %v4013
        %4044 = vmatprep.subr.mxu0 0.0
        %4045 = vmatpush1.msra.mxu0 %v4014
        %4046 = vmatprep.subr.mxu0 0.0
        %4047 = vmatpush1.msra.mxu0 %v4015
        %4048 = vmatprep.subr.mxu0 0.0
        %4049 = vmatpush1.msra.mxu0 0.0
        %4050 = vmatprep.subr.mxu0 0.0
        %4051 = vmatpush1.msra.mxu0 0.0
        %4052 = vmatprep.subr.mxu0 0.0
        %4053 = vmatpush1.msra.mxu0 0.0
        %4054 = vmatprep.subr.mxu0 0.0
        %4055 = vmatpush1.msra.mxu0 0.0
        %4056 = vmatprep.subr.mxu0 0.0
        %4057 = vmatpush1.msra.mxu0 0.0
        %4058 = vmatprep.subr.mxu0 0.0
        %4059 = vmatpush1.msra.mxu0 0.0
        %4060 = vmatprep.subr.mxu0 0.0
        %4061 = vmatpush1.msra.mxu0 0.0
        %4062 = vmatprep.subr.mxu0 0.0
        %4063 = vmatpush1.msra.mxu0 0.0
        %4064 = vmatprep.subr.mxu0 0.0
        %4065 = vmatpush1.msra.mxu0 0.0
        %4066 = vmatprep.subr.mxu0 0.0
        %4067 = vmatpush1.msra.mxu0 0.0
        %4068 = vmatprep.subr.mxu0 0.0
        %4069 = vmatpush1.msra.mxu0 0.0
        %4070 = vmatprep.subr.mxu0 0.0
        %4071 = vmatpush1.msra.mxu0 0.0
        %4072 = vmatprep.subr.mxu0 0.0
        %4073 = vmatpush1.msra.mxu0 0.0
        %4074 = vmatprep.subr.mxu0 0.0
        %4075 = vmatpush1.msra.mxu0 0.0
        %4076 = vmatprep.subr.mxu0 0.0
        %4077 = vmatpush1.msra.mxu0 0.0
        %4078 = vmatprep.subr.mxu0 0.0
        %4079 = vmatpush1.msra.mxu0 0.0
        %4080 = vmatprep.mubr.f32.mxu0 0.0
        %4081 = vmatmul.mubr.f32.gmra.mrb[0].mxu0 %v3121
        %v4082 = vpop.f32.mrb[0].mxu0
        %v4083 = vadd.f32 0.0, %v4082
        %v4084 = vpop.f32.mrb[0].mxu0
        %4085 = vmatprep.mubr.f32.mxu0 0.0
        %4086 = vmatmul.mubr.f32.gmra.mrb[0].mxu0 %v3122
        %v4087 = vpop.f32.mrb[0].mxu0
        %v4088 = vadd.f32 0.0, %v4087
        %v4089 = vpop.f32.mrb[0].mxu0
        %4090 = vmatprep.mubr.f32.mxu0 0.0
        %4091 = vmatmul.mubr.f32.gmra.mrb[0].mxu0 %v3123
        %v4092 = vpop.f32.mrb[0].mxu0
        %v4093 = vadd.f32 0.0, %v4092
        %v4094 = vpop.f32.mrb[0].mxu0
        %4095 = vmatprep.mubr.f32.mxu0 0.0
        %4096 = vmatmul.mubr.f32.gmra.mrb[0].mxu0 %v3124
        %v4097 = vpop.f32.mrb[0].mxu0
        %v4098 = vadd.f32 0.0, %v4097
        %v4099 = vpop.f32.mrb[0].mxu0
        %4100 = vmatprep.mubr.f32.mxu0 0.0
        %4101 = vmatmul.mubr.f32.gmra.mrb[0].mxu0 %v3125
        %v4102 = vpop.f32.mrb[0].mxu0
        %v4103 = vadd.f32 0.0, %v4102
        %v4104 = vpop.f32.mrb[0].mxu0
        %4105 = vmatprep.mubr.f32.mxu0 0.0
        %4106 = vmatmul.mubr.f32.gmra.mrb[0].mxu0 %v3126
        %v4107 = vpop.f32.mrb[0].mxu0
        %v4108 = vadd.f32 0.0, %v4107
        %v4109 = vpop.f32.mrb[0].mxu0
        %4110 = vmatprep.mubr.f32.mxu0 0.0
        %4111 = vmatmul.mubr.f32.gmra.mrb[0].mxu0 %v3127
        %v4112 = vpop.f32.mrb[0].mxu0
        %v4113 = vadd.f32 0.0, %v4112
        %v4114 = vpop.f32.mrb[0].mxu0
        %4115 = vmatprep.mubr.f32.mxu0 0.0
        %4116 = vmatmul.mubr.f32.gmra.mrb[0].mxu0 %v3128
        %v4117 = vpop.f32.mrb[0].mxu0
        %v4118 = vadd.f32 0.0, %v4117
        %v4119 = vpop.f32.mrb[0].mxu0
        %4120 = vdwg.mxu0
        %4121 = vmatprep.subr.mxu0 0.0
        %4122 = vmatpush1.msra.mxu0 %v3983
        %4123 = vmatprep.subr.mxu0 0.0
        %4124 = vmatpush1.msra.mxu0 %v3984
        %4125 = vmatprep.subr.mxu0 0.0
        %4126 = vmatpush1.msra.mxu0 %v3985
        %4127 = vmatprep.subr.mxu0 0.0
        %4128 = vmatpush1.msra.mxu0 %v3986
        %4129 = vmatprep.subr.mxu0 0.0
        %4130 = vmatpush1.msra.mxu0 %v3987
        %4131 = vmatprep.subr.mxu0 0.0
        %4132 = vmatpush1.msra.mxu0 %v3988
        %4133 = vmatprep.subr.mxu0 0.0
        %4134 = vmatpush1.msra.mxu0 %v3989
        %4135 = vmatprep.subr.mxu0 0.0
        %4136 = vmatpush1.msra.mxu0 %v3990
        %4137 = vmatprep.subr.mxu0 0.0
        %4138 = vmatpush1.msra.mxu0 %v3991
        %4139 = vmatprep.subr.mxu0 0.0
        %4140 = vmatpush1.msra.mxu0 %v3992
        %4141 = vmatprep.subr.mxu0 0.0
        %4142 = vmatpush1.msra.mxu0 %v3993
        %4143 = vmatprep.subr.mxu0 0.0
        %4144 = vmatpush1.msra.mxu0 %v3994
        %4145 = vmatprep.subr.mxu0 0.0
        %4146 = vmatpush1.msra.mxu0 %v3995
        %4147 = vmatprep.subr.mxu0 0.0
        %4148 = vmatpush1.msra.mxu0 %v3996
        %4149 = vmatprep.subr.mxu0 0.0
        %4150 = vmatpush1.msra.mxu0 %v3997
        %4151 = vmatprep.subr.mxu0 0.0
        %4152 = vmatpush1.msra.mxu0 %v3998
        %4153 = vmatprep.subr.mxu0 0.0
        %4154 = vmatpush1.msra.mxu0 0.0
        %4155 = vmatprep.subr.mxu0 0.0
        %4156 = vmatpush1.msra.mxu0 0.0
        %4157 = vmatprep.subr.mxu0 0.0
        %4158 = vmatpush1.msra.mxu0 0.0
        %4159 = vmatprep.subr.mxu0 0.0
        %4160 = vmatpush1.msra.mxu0 0.0
        %4161 = vmatprep.subr.mxu0 0.0
        %4162 = vmatpush1.msra.mxu0 0.0
        %4163 = vmatprep.subr.mxu0 0.0
        %4164 = vmatpush1.msra.mxu0 0.0
        %4165 = vmatprep.subr.mxu0 0.0
        %4166 = vmatpush1.msra.mxu0 0.0
        %4167 = vmatprep.subr.mxu0 0.0
        %4168 = vmatpush1.msra.mxu0 0.0
        %4169 = vmatprep.subr.mxu0 0.0
        %4170 = vmatpush1.msra.mxu0 0.0
        %4171 = vmatprep.subr.mxu0 0.0
        %4172 = vmatpush1.msra.mxu0 0.0
        %4173 = vmatprep.subr.mxu0 0.0
        %4174 = vmatpush1.msra.mxu0 0.0
        %4175 = vmatprep.subr.mxu0 0.0
        %4176 = vmatpush1.msra.mxu0 0.0
        %4177 = vmatprep.subr.mxu0 0.0
        %4178 = vmatpush1.msra.mxu0 0.0
        %4179 = vmatprep.subr.mxu0 0.0
        %4180 = vmatpush1.msra.mxu0 0.0
        %4181 = vmatprep.subr.mxu0 0.0
        %4182 = vmatpush1.msra.mxu0 0.0
        %4183 = vmatprep.subr.mxu0 0.0
        %4184 = vmatpush1.msra.mxu0 0.0
        %4185 = vmatprep.mubr.f32.mxu0 0.0
        %4186 = vmatmul.mubr.f32.gmra.mrb[0].mxu0 0.0
        %v4187 = vpop.f32.mrb[0].mxu0
        %v4188 = vadd.f32 %v4083, %v4187
        %v4189 = vpop.f32.mrb[0].mxu0
        %4190 = vmatprep.mubr.f32.mxu0 0.0
        %4191 = vmatmul.mubr.f32.gmra.mrb[0].mxu0 %v3121
        %v4192 = vpop.f32.mrb[0].mxu0
        %v4193 = vadd.f32 %v4088, %v4192
        %v4194 = vpop.f32.mrb[0].mxu0
        %4195 = vmatprep.mubr.f32.mxu0 0.0
        %4196 = vmatmul.mubr.f32.gmra.mrb[0].mxu0 %v3122
        %v4197 = vpop.f32.mrb[0].mxu0
        %v4198 = vadd.f32 %v4093, %v4197
        %v4199 = vpop.f32.mrb[0].mxu0
        %4200 = vmatprep.mubr.f32.mxu0 0.0
        %4201 = vmatmul.mubr.f32.gmra.mrb[0].mxu0 %v3123
        %v4202 = vpop.f32.mrb[0].mxu0
        %v4203 = vadd.f32 %v4098, %v4202
        %v4204 = vpop.f32.mrb[0].mxu0
        %4205 = vmatprep.mubr.f32.mxu0 0.0
        %4206 = vmatmul.mubr.f32.gmra.mrb[0].mxu0 %v3124
        %v4207 = vpop.f32.mrb[0].mxu0
        %v4208 = vadd.f32 %v4103, %v4207
        %v4209 = vpop.f32.mrb[0].mxu0
        %4210 = vmatprep.mubr.f32.mxu0 0.0
        %4211 = vmatmul.mubr.f32.gmra.mrb[0].mxu0 %v3125
        %v4212 = vpop.f32.mrb[0].mxu0
        %v4213 = vadd.f32 %v4108, %v4212
        %v4214 = vpop.f32.mrb[0].mxu0
        %4215 = vmatprep.mubr.f32.mxu0 0.0
        %4216 = vmatmul.mubr.f32.gmra.mrb[0].mxu0 %v3126
        %v4217 = vpop.f32.mrb[0].mxu0
        %v4218 = vadd.f32 %v4113, %v4217
        %v4219 = vpop.f32.mrb[0].mxu0
        %4220 = vmatprep.mubr.f32.mxu0 0.0
        %4221 = vmatmul.mubr.f32.gmra.mrb[0].mxu0 %v3127
        %v4222 = vpop.f32.mrb[0].mxu0
        %v4223 = vadd.f32 %v4118, %v4222
        %v4224 = vpop.f32.mrb[0].mxu0
        %4225 = vdwg.mxu0
        %s4226 = scalar_lea.vmem [#allocation2], 3328
        %v4227 = vld [vmem:[%s4226] sm:$0xff]
        %v4228 = vld [vmem:[%s4226 + $0x8] sm:$0xff]
        %v4229 = vld [vmem:[%s4226 + $0x10] sm:$0xff]
        %v4230 = vld [vmem:[%s4226 + $0x18] sm:$0xff]
        %v4231 = vld [vmem:[%s4226 + $0x20] sm:$0xff]
        %v4232 = vld [vmem:[%s4226 + $0x28] sm:$0xff]
        %v4233 = vld [vmem:[%s4226 + $0x30] sm:$0xff]
        %v4234 = vld [vmem:[%s4226 + $0x38] sm:$0xff]
        %v4235 = vld [vmem:[%s4226 + $0x40] sm:$0xff]
        %v4236 = vld [vmem:[%s4226 + $0x48] sm:$0xff]
        %v4237 = vld [vmem:[%s4226 + $0x50] sm:$0xff]
        %v4238 = vld [vmem:[%s4226 + $0x58] sm:$0xff]
        %v4239 = vld [vmem:[%s4226 + $0x60] sm:$0xff]
        %v4240 = vld [vmem:[%s4226 + $0x68] sm:$0xff]
        %v4241 = vld [vmem:[%s4226 + $0x70] sm:$0xff]
        %v4242 = vld [vmem:[%s4226 + $0x78] sm:$0xff]
        %4243 = vmatprep.subr.mxu0 0.0
        %4244 = vmatpush1.msra.mxu0 %v4227
        %4245 = vmatprep.subr.mxu0 0.0
        %4246 = vmatpush1.msra.mxu0 %v4228
        %4247 = vmatprep.subr.mxu0 0.0
        %4248 = vmatpush1.msra.mxu0 %v4229
        %4249 = vmatprep.subr.mxu0 0.0
        %4250 = vmatpush1.msra.mxu0 %v4230
        %4251 = vmatprep.subr.mxu0 0.0
        %4252 = vmatpush1.msra.mxu0 %v4231
        %4253 = vmatprep.subr.mxu0 0.0
        %4254 = vmatpush1.msra.mxu0 %v4232
        %4255 = vmatprep.subr.mxu0 0.0
        %4256 = vmatpush1.msra.mxu0 %v4233
        %4257 = vmatprep.subr.mxu0 0.0
        %4258 = vmatpush1.msra.mxu0 %v4234
        %4259 = vmatprep.subr.mxu0 0.0
        %4260 = vmatpush1.msra.mxu0 %v4235
        %4261 = vmatprep.subr.mxu0 0.0
        %4262 = vmatpush1.msra.mxu0 %v4236
        %4263 = vmatprep.subr.mxu0 0.0
        %4264 = vmatpush1.msra.mxu0 %v4237
        %4265 = vmatprep.subr.mxu0 0.0
        %4266 = vmatpush1.msra.mxu0 %v4238
        %4267 = vmatprep.subr.mxu0 0.0
        %4268 = vmatpush1.msra.mxu0 %v4239
        %4269 = vmatprep.subr.mxu0 0.0
        %4270 = vmatpush1.msra.mxu0 %v4240
        %4271 = vmatprep.subr.mxu0 0.0
        %4272 = vmatpush1.msra.mxu0 %v4241
        %4273 = vmatprep.subr.mxu0 0.0
        %4274 = vmatpush1.msra.mxu0 %v4242
        %4275 = vmatprep.subr.mxu0 0.0
        %4276 = vmatpush1.msra.mxu0 0.0
        %4277 = vmatprep.subr.mxu0 0.0
        %4278 = vmatpush1.msra.mxu0 0.0
        %4279 = vmatprep.subr.mxu0 0.0
        %4280 = vmatpush1.msra.mxu0 0.0
        %4281 = vmatprep.subr.mxu0 0.0
        %4282 = vmatpush1.msra.mxu0 0.0
        %4283 = vmatprep.subr.mxu0 0.0
        %4284 = vmatpush1.msra.mxu0 0.0
        %4285 = vmatprep.subr.mxu0 0.0
        %4286 = vmatpush1.msra.mxu0 0.0
        %4287 = vmatprep.subr.mxu0 0.0
        %4288 = vmatpush1.msra.mxu0 0.0
        %4289 = vmatprep.subr.mxu0 0.0
        %4290 = vmatpush1.msra.mxu0 0.0
        %4291 = vmatprep.subr.mxu0 0.0
        %4292 = vmatpush1.msra.mxu0 0.0
        %4293 = vmatprep.subr.mxu0 0.0
        %4294 = vmatpush1.msra.mxu0 0.0
        %4295 = vmatprep.subr.mxu0 0.0
        %4296 = vmatpush1.msra.mxu0 0.0
        %4297 = vmatprep.subr.mxu0 0.0
        %4298 = vmatpush1.msra.mxu0 0.0
        %4299 = vmatprep.subr.mxu0 0.0
        %4300 = vmatpush1.msra.mxu0 0.0
        %4301 = vmatprep.subr.mxu0 0.0
        %4302 = vmatpush1.msra.mxu0 0.0
        %4303 = vmatprep.subr.mxu0 0.0
        %4304 = vmatpush1.msra.mxu0 0.0
        %4305 = vmatprep.subr.mxu0 0.0
        %4306 = vmatpush1.msra.mxu0 0.0
        %4307 = vmatprep.mubr.f32.mxu0 0.0
        %4308 = vmatmul.mubr.f32.gmra.mrb[0].mxu0 %v3122
        %v4309 = vpop.f32.mrb[0].mxu0
        %v4310 = vadd.f32 0.0, %v4309
        %v4311 = vpop.f32.mrb[0].mxu0
        %4312 = vmatprep.mubr.f32.mxu0 0.0
        %4313 = vmatmul.mubr.f32.gmra.mrb[0].mxu0 %v3123
        %v4314 = vpop.f32.mrb[0].mxu0
        %v4315 = vadd.f32 0.0, %v4314
        %v4316 = vpop.f32.mrb[0].mxu0
        %4317 = vmatprep.mubr.f32.mxu0 0.0
        %4318 = vmatmul.mubr.f32.gmra.mrb[0].mxu0 %v3124
        %v4319 = vpop.f32.mrb[0].mxu0
        %v4320 = vadd.f32 0.0, %v4319
        %v4321 = vpop.f32.mrb[0].mxu0
        %4322 = vmatprep.mubr.f32.mxu0 0.0
        %4323 = vmatmul.mubr.f32.gmra.mrb[0].mxu0 %v3125
        %v4324 = vpop.f32.mrb[0].mxu0
        %v4325 = vadd.f32 0.0, %v4324
        %v4326 = vpop.f32.mrb[0].mxu0
        %4327 = vmatprep.mubr.f32.mxu0 0.0
        %4328 = vmatmul.mubr.f32.gmra.mrb[0].mxu0 %v3126
        %v4329 = vpop.f32.mrb[0].mxu0
        %v4330 = vadd.f32 0.0, %v4329
        %v4331 = vpop.f32.mrb[0].mxu0
        %4332 = vmatprep.mubr.f32.mxu0 0.0
        %4333 = vmatmul.mubr.f32.gmra.mrb[0].mxu0 %v3127
        %v4334 = vpop.f32.mrb[0].mxu0
        %v4335 = vadd.f32 0.0, %v4334
        %v4336 = vpop.f32.mrb[0].mxu0
        %4337 = vmatprep.mubr.f32.mxu0 0.0
        %4338 = vmatmul.mubr.f32.gmra.mrb[0].mxu0 %v3128
        %v4339 = vpop.f32.mrb[0].mxu0
        %v4340 = vadd.f32 0.0, %v4339
        %v4341 = vpop.f32.mrb[0].mxu0
        %4342 = vmatprep.mubr.f32.mxu0 0.0
        %4343 = vmatmul.mubr.f32.gmra.mrb[0].mxu0 0.0
        %v4344 = vpop.f32.mrb[0].mxu0
        %v4345 = vadd.f32 0.0, %v4344
        %v4346 = vpop.f32.mrb[0].mxu0
        %4347 = vdwg.mxu0
        %v4348 = vadd.f32 %v4188, %v4310
        %v4349 = vadd.f32 %v4193, %v4315
        %v4350 = vadd.f32 %v4198, %v4320
        %v4351 = vadd.f32 %v4203, %v4325
        %v4352 = vadd.f32 %v4208, %v4330
        %v4353 = vadd.f32 %v4213, %v4335
        %v4354 = vadd.f32 %v4218, %v4340
        %v4355 = vadd.f32 %v4223, %v4345
        %4356 = vmatprep.subr.mxu0 0.0
        %4357 = vmatpush1.msra.mxu0 %v4348
        %4358 = vmatprep.subr.mxu0 0.0
        %4359 = vmatpush1.msra.mxu0 %v4349
        %4360 = vmatprep.subr.mxu0 0.0
        %4361 = vmatpush1.msra.mxu0 %v4350
        %4362 = vmatprep.subr.mxu0 0.0
        %4363 = vmatpush1.msra.mxu0 %v4351
        %4364 = vmatprep.subr.mxu0 0.0
        %4365 = vmatpush1.msra.mxu0 %v4352
        %4366 = vmatprep.subr.mxu0 0.0
        %4367 = vmatpush1.msra.mxu0 %v4353
        %4368 = vmatprep.subr.mxu0 0.0
        %4369 = vmatpush1.msra.mxu0 %v4354
        %4370 = vmatprep.subr.mxu0 0.0
        %4371 = vmatpush1.msra.mxu0 %v4355
        %4372 = vmatprep.subr.mxu0 0.0
        %4373 = vmatpush1.msra.mxu0 0.0
        %4374 = vmatprep.subr.mxu0 0.0
        %4375 = vmatpush1.msra.mxu0 0.0
        %4376 = vmatprep.subr.mxu0 0.0
        %4377 = vmatpush1.msra.mxu0 0.0
        %4378 = vmatprep.subr.mxu0 0.0
        %4379 = vmatpush1.msra.mxu0 0.0
        %4380 = vmatprep.subr.mxu0 0.0
        %4381 = vmatpush1.msra.mxu0 0.0
        %4382 = vmatprep.subr.mxu0 0.0
        %4383 = vmatpush1.msra.mxu0 0.0
        %4384 = vmatprep.subr.mxu0 0.0
        %4385 = vmatpush1.msra.mxu0 0.0
        %4386 = vmatprep.subr.mxu0 0.0
        %4387 = vmatpush1.msra.mxu0 0.0
        %4388 = vmatprep.subr.mxu0 0.0
        %4389 = vmatpush1.msra.mxu0 0.0
        %4390 = vmatprep.subr.mxu0 0.0
        %4391 = vmatpush1.msra.mxu0 0.0
        %4392 = vmatprep.subr.mxu0 0.0
        %4393 = vmatpush1.msra.mxu0 0.0
        %4394 = vmatprep.subr.mxu0 0.0
        %4395 = vmatpush1.msra.mxu0 0.0
        %4396 = vmatprep.subr.mxu0 0.0
        %4397 = vmatpush1.msra.mxu0 0.0
        %4398 = vmatprep.subr.mxu0 0.0
        %4399 = vmatpush1.msra.mxu0 0.0
        %4400 = vmatprep.subr.mxu0 0.0
        %4401 = vmatpush1.msra.mxu0 0.0
        %4402 = vmatprep.subr.mxu0 0.0
        %4403 = vmatpush1.msra.mxu0 0.0
        %4404 = vmatprep.subr.mxu0 0.0
        %4405 = vmatpush1.msra.mxu0 0.0
        %4406 = vmatprep.subr.mxu0 0.0
        %4407 = vmatpush1.msra.mxu0 0.0
        %4408 = vmatprep.subr.mxu0 0.0
        %4409 = vmatpush1.msra.mxu0 0.0
        %4410 = vmatprep.subr.mxu0 0.0
        %4411 = vmatpush1.msra.mxu0 0.0
        %4412 = vmatprep.subr.mxu0 0.0
        %4413 = vmatpush1.msra.mxu0 0.0
        %4414 = vmatprep.subr.mxu0 0.0
        %4415 = vmatpush1.msra.mxu0 0.0
        %4416 = vmatprep.subr.mxu0 0.0
        %4417 = vmatpush1.msra.mxu0 0.0
        %4418 = vmatprep.subr.mxu0 0.0
        %4419 = vmatpush1.msra.mxu0 0.0
        %4420 = vmatprep.mubr.f32.mxu0 0.0
        %4421 = vmatmul.mubr.f32.gmra.mrb[0].mxu0 %v1598
        %v4422 = vpop.f32.mrb[0].mxu0
        %v4423 = vadd.f32 0.0, %v4422
        %v4424 = vpop.f32.mrb[0].mxu0
        %4425 = vmatprep.mubr.f32.mxu0 0.0
        %4426 = vmatmul.mubr.f32.gmra.mrb[0].mxu0 %v1601
        %v4427 = vpop.f32.mrb[0].mxu0
        %v4428 = vadd.f32 0.0, %v4427
        %v4429 = vpop.f32.mrb[0].mxu0
        %4430 = vmatprep.mubr.f32.mxu0 0.0
        %4431 = vmatmul.mubr.f32.gmra.mrb[0].mxu0 %v1604
        %v4432 = vpop.f32.mrb[0].mxu0
        %v4433 = vadd.f32 0.0, %v4432
        %v4434 = vpop.f32.mrb[0].mxu0
        %4435 = vmatprep.mubr.f32.mxu0 0.0
        %4436 = vmatmul.mubr.f32.gmra.mrb[0].mxu0 %v1607
        %v4437 = vpop.f32.mrb[0].mxu0
        %v4438 = vadd.f32 0.0, %v4437
        %v4439 = vpop.f32.mrb[0].mxu0
        %4440 = vmatprep.mubr.f32.mxu0 0.0
        %4441 = vmatmul.mubr.f32.gmra.mrb[0].mxu0 %v1610
        %v4442 = vpop.f32.mrb[0].mxu0
        %v4443 = vadd.f32 0.0, %v4442
        %v4444 = vpop.f32.mrb[0].mxu0
        %4445 = vmatprep.mubr.f32.mxu0 0.0
        %4446 = vmatmul.mubr.f32.gmra.mrb[0].mxu0 %v1613
        %v4447 = vpop.f32.mrb[0].mxu0
        %v4448 = vadd.f32 0.0, %v4447
        %v4449 = vpop.f32.mrb[0].mxu0
        %4450 = vmatprep.mubr.f32.mxu0 0.0
        %4451 = vmatmul.mubr.f32.gmra.mrb[0].mxu0 %v1616
        %v4452 = vpop.f32.mrb[0].mxu0
        %v4453 = vadd.f32 0.0, %v4452
        %v4454 = vpop.f32.mrb[0].mxu0
        %4455 = vmatprep.mubr.f32.mxu0 0.0
        %4456 = vmatmul.mubr.f32.gmra.mrb[0].mxu0 %v1619
        %v4457 = vpop.f32.mrb[0].mxu0
        %v4458 = vadd.f32 0.0, %v4457
        %v4459 = vpop.f32.mrb[0].mxu0
        %4460 = vdwg.mxu0
        %v4461 = vadd.f32 %v3944, %v4423
        %v4462 = vadd.f32 %v3949, %v4428
        %v4463 = vadd.f32 %v3954, %v4433
        %v4464 = vadd.f32 %v3959, %v4438
        %v4465 = vadd.f32 %v3964, %v4443
        %v4466 = vadd.f32 %v3969, %v4448
        %v4467 = vadd.f32 %v3974, %v4453
        %v4468 = vadd.f32 %v3979, %v4458
        %s4469 = scalar_lea.vmem [#allocation5], 2
        %v4470 = vld [vmem:[%s4469] sm:$0x1]
        %v4472 = vlaneseq
        %v4473 = vshrl.u32 %v4472, 7
        %v4474 = vsub.s32 0, %v4473
        %v4475 = vrot.slane %v4470, %v4474
        %v4477 = vadd.f32 %v4461, %v4475
        %v4478 = vadd.f32 %v4462, %v4475
        %v4479 = vadd.f32 %v4463, %v4475
        %v4480 = vadd.f32 %v4464, %v4475
        %v4481 = vadd.f32 %v4465, %v4475
        %v4482 = vadd.f32 %v4466, %v4475
        %v4483 = vadd.f32 %v4467, %v4475
        %v4484 = vadd.f32 %v4468, %v4475
        %v4485 = vmax.f32 %v4477, 0.0
        %v4486 = vmax.f32 %v4478, 0.0
        %v4487 = vmax.f32 %v4479, 0.0
        %v4488 = vmax.f32 %v4480, 0.0
        %v4489 = vmax.f32 %v4481, 0.0
        %v4490 = vmax.f32 %v4482, 0.0
        %v4491 = vmax.f32 %v4483, 0.0
        %v4492 = vmax.f32 %v4484, 0.0
        %v4493 = vadd.f32 %v4485, %v3121
        %v4494 = vadd.f32 %v4486, %v3122
        %v4495 = vadd.f32 %v4487, %v3123
        %v4496 = vadd.f32 %v4488, %v3124
        %v4497 = vadd.f32 %v4489, %v3125
        %v4498 = vadd.f32 %v4490, %v3126
        %v4499 = vadd.f32 %v4491, %v3127
        %v4500 = vadd.f32 %v4492, %v3128
        %s4501 = scalar_lea.vmem [#allocation2], 3456
        %v4502 = vld [vmem:[%s4501] sm:$0xff]
        %v4503 = vld [vmem:[%s4501 + $0x8] sm:$0xff]
        %v4504 = vld [vmem:[%s4501 + $0x10] sm:$0xff]
        %v4505 = vld [vmem:[%s4501 + $0x18] sm:$0xff]
        %v4506 = vld [vmem:[%s4501 + $0x20] sm:$0xff]
        %v4507 = vld [vmem:[%s4501 + $0x28] sm:$0xff]
        %v4508 = vld [vmem:[%s4501 + $0x30] sm:$0xff]
        %v4509 = vld [vmem:[%s4501 + $0x38] sm:$0xff]
        %v4510 = vld [vmem:[%s4501 + $0x40] sm:$0xff]
        %v4511 = vld [vmem:[%s4501 + $0x48] sm:$0xff]
        %v4512 = vld [vmem:[%s4501 + $0x50] sm:$0xff]
        %v4513 = vld [vmem:[%s4501 + $0x58] sm:$0xff]
        %v4514 = vld [vmem:[%s4501 + $0x60] sm:$0xff]
        %v4515 = vld [vmem:[%s4501 + $0x68] sm:$0xff]
        %v4516 = vld [vmem:[%s4501 + $0x70] sm:$0xff]
        %v4517 = vld [vmem:[%s4501 + $0x78] sm:$0xff]
        %s4518 = scalar_lea.vmem [#allocation2], 3584
        %v4519 = vld [vmem:[%s4518] sm:$0xff]
        %v4520 = vld [vmem:[%s4518 + $0x8] sm:$0xff]
        %v4521 = vld [vmem:[%s4518 + $0x10] sm:$0xff]
        %v4522 = vld [vmem:[%s4518 + $0x18] sm:$0xff]
        %v4523 = vld [vmem:[%s4518 + $0x20] sm:$0xff]
        %v4524 = vld [vmem:[%s4518 + $0x28] sm:$0xff]
        %v4525 = vld [vmem:[%s4518 + $0x30] sm:$0xff]
        %v4526 = vld [vmem:[%s4518 + $0x38] sm:$0xff]
        %v4527 = vld [vmem:[%s4518 + $0x40] sm:$0xff]
        %v4528 = vld [vmem:[%s4518 + $0x48] sm:$0xff]
        %v4529 = vld [vmem:[%s4518 + $0x50] sm:$0xff]
        %v4530 = vld [vmem:[%s4518 + $0x58] sm:$0xff]
        %v4531 = vld [vmem:[%s4518 + $0x60] sm:$0xff]
        %v4532 = vld [vmem:[%s4518 + $0x68] sm:$0xff]
        %v4533 = vld [vmem:[%s4518 + $0x70] sm:$0xff]
        %v4534 = vld [vmem:[%s4518 + $0x78] sm:$0xff]
        %4535 = vmatprep.subr.mxu0 0.0
        %4536 = vmatpush1.msra.mxu0 %v4519
        %4537 = vmatprep.subr.mxu0 0.0
        %4538 = vmatpush1.msra.mxu0 %v4520
        %4539 = vmatprep.subr.mxu0 0.0
        %4540 = vmatpush1.msra.mxu0 %v4521
        %4541 = vmatprep.subr.mxu0 0.0
        %4542 = vmatpush1.msra.mxu0 %v4522
        %4543 = vmatprep.subr.mxu0 0.0
        %4544 = vmatpush1.msra.mxu0 %v4523
        %4545 = vmatprep.subr.mxu0 0.0
        %4546 = vmatpush1.msra.mxu0 %v4524
        %4547 = vmatprep.subr.mxu0 0.0
        %4548 = vmatpush1.msra.mxu0 %v4525
        %4549 = vmatprep.subr.mxu0 0.0
        %4550 = vmatpush1.msra.mxu0 %v4526
        %4551 = vmatprep.subr.mxu0 0.0
        %4552 = vmatpush1.msra.mxu0 %v4527
        %4553 = vmatprep.subr.mxu0 0.0
        %4554 = vmatpush1.msra.mxu0 %v4528
        %4555 = vmatprep.subr.mxu0 0.0
        %4556 = vmatpush1.msra.mxu0 %v4529
        %4557 = vmatprep.subr.mxu0 0.0
        %4558 = vmatpush1.msra.mxu0 %v4530
        %4559 = vmatprep.subr.mxu0 0.0
        %4560 = vmatpush1.msra.mxu0 %v4531
        %4561 = vmatprep.subr.mxu0 0.0
        %4562 = vmatpush1.msra.mxu0 %v4532
        %4563 = vmatprep.subr.mxu0 0.0
        %4564 = vmatpush1.msra.mxu0 %v4533
        %4565 = vmatprep.subr.mxu0 0.0
        %4566 = vmatpush1.msra.mxu0 %v4534
        %4567 = vmatprep.subr.mxu0 0.0
        %4568 = vmatpush1.msra.mxu0 0.0
        %4569 = vmatprep.subr.mxu0 0.0
        %4570 = vmatpush1.msra.mxu0 0.0
        %4571 = vmatprep.subr.mxu0 0.0
        %4572 = vmatpush1.msra.mxu0 0.0
        %4573 = vmatprep.subr.mxu0 0.0
        %4574 = vmatpush1.msra.mxu0 0.0
        %4575 = vmatprep.subr.mxu0 0.0
        %4576 = vmatpush1.msra.mxu0 0.0
        %4577 = vmatprep.subr.mxu0 0.0
        %4578 = vmatpush1.msra.mxu0 0.0
        %4579 = vmatprep.subr.mxu0 0.0
        %4580 = vmatpush1.msra.mxu0 0.0
        %4581 = vmatprep.subr.mxu0 0.0
        %4582 = vmatpush1.msra.mxu0 0.0
        %4583 = vmatprep.subr.mxu0 0.0
        %4584 = vmatpush1.msra.mxu0 0.0
        %4585 = vmatprep.subr.mxu0 0.0
        %4586 = vmatpush1.msra.mxu0 0.0
        %4587 = vmatprep.subr.mxu0 0.0
        %4588 = vmatpush1.msra.mxu0 0.0
        %4589 = vmatprep.subr.mxu0 0.0
        %4590 = vmatpush1.msra.mxu0 0.0
        %4591 = vmatprep.subr.mxu0 0.0
        %4592 = vmatpush1.msra.mxu0 0.0
        %4593 = vmatprep.subr.mxu0 0.0
        %4594 = vmatpush1.msra.mxu0 0.0
        %4595 = vmatprep.subr.mxu0 0.0
        %4596 = vmatpush1.msra.mxu0 0.0
        %4597 = vmatprep.subr.mxu0 0.0
        %4598 = vmatpush1.msra.mxu0 0.0
        %4599 = vmatprep.mubr.f32.mxu0 0.0
        %4600 = vmatmul.mubr.f32.gmra.mrb[0].mxu0 %v4493
        %v4601 = vpop.f32.mrb[0].mxu0
        %v4602 = vadd.f32 0.0, %v4601
        %v4603 = vpop.f32.mrb[0].mxu0
        %4604 = vmatprep.mubr.f32.mxu0 0.0
        %4605 = vmatmul.mubr.f32.gmra.mrb[0].mxu0 %v4494
        %v4606 = vpop.f32.mrb[0].mxu0
        %v4607 = vadd.f32 0.0, %v4606
        %v4608 = vpop.f32.mrb[0].mxu0
        %4609 = vmatprep.mubr.f32.mxu0 0.0
        %4610 = vmatmul.mubr.f32.gmra.mrb[0].mxu0 %v4495
        %v4611 = vpop.f32.mrb[0].mxu0
        %v4612 = vadd.f32 0.0, %v4611
        %v4613 = vpop.f32.mrb[0].mxu0
        %4614 = vmatprep.mubr.f32.mxu0 0.0
        %4615 = vmatmul.mubr.f32.gmra.mrb[0].mxu0 %v4496
        %v4616 = vpop.f32.mrb[0].mxu0
        %v4617 = vadd.f32 0.0, %v4616
        %v4618 = vpop.f32.mrb[0].mxu0
        %4619 = vmatprep.mubr.f32.mxu0 0.0
        %4620 = vmatmul.mubr.f32.gmra.mrb[0].mxu0 %v4497
        %v4621 = vpop.f32.mrb[0].mxu0
        %v4622 = vadd.f32 0.0, %v4621
        %v4623 = vpop.f32.mrb[0].mxu0
        %4624 = vmatprep.mubr.f32.mxu0 0.0
        %4625 = vmatmul.mubr.f32.gmra.mrb[0].mxu0 %v4498
        %v4626 = vpop.f32.mrb[0].mxu0
        %v4627 = vadd.f32 0.0, %v4626
        %v4628 = vpop.f32.mrb[0].mxu0
        %4629 = vmatprep.mubr.f32.mxu0 0.0
        %4630 = vmatmul.mubr.f32.gmra.mrb[0].mxu0 %v4499
        %v4631 = vpop.f32.mrb[0].mxu0
        %v4632 = vadd.f32 0.0, %v4631
        %v4633 = vpop.f32.mrb[0].mxu0
        %4634 = vmatprep.mubr.f32.mxu0 0.0
        %4635 = vmatmul.mubr.f32.gmra.mrb[0].mxu0 %v4500
        %v4636 = vpop.f32.mrb[0].mxu0
        %v4637 = vadd.f32 0.0, %v4636
        %v4638 = vpop.f32.mrb[0].mxu0
        %4639 = vdwg.mxu0
        %4640 = vmatprep.subr.mxu0 0.0
        %4641 = vmatpush1.msra.mxu0 %v4502
        %4642 = vmatprep.subr.mxu0 0.0
        %4643 = vmatpush1.msra.mxu0 %v4503
        %4644 = vmatprep.subr.mxu0 0.0
        %4645 = vmatpush1.msra.mxu0 %v4504
        %4646 = vmatprep.subr.mxu0 0.0
        %4647 = vmatpush1.msra.mxu0 %v4505
        %4648 = vmatprep.subr.mxu0 0.0
        %4649 = vmatpush1.msra.mxu0 %v4506
        %4650 = vmatprep.subr.mxu0 0.0
        %4651 = vmatpush1.msra.mxu0 %v4507
        %4652 = vmatprep.subr.mxu0 0.0
        %4653 = vmatpush1.msra.mxu0 %v4508
        %4654 = vmatprep.subr.mxu0 0.0
        %4655 = vmatpush1.msra.mxu0 %v4509
        %4656 = vmatprep.subr.mxu0 0.0
        %4657 = vmatpush1.msra.mxu0 %v4510
        %4658 = vmatprep.subr.mxu0 0.0
        %4659 = vmatpush1.msra.mxu0 %v4511
        %4660 = vmatprep.subr.mxu0 0.0
        %4661 = vmatpush1.msra.mxu0 %v4512
        %4662 = vmatprep.subr.mxu0 0.0
        %4663 = vmatpush1.msra.mxu0 %v4513
        %4664 = vmatprep.subr.mxu0 0.0
        %4665 = vmatpush1.msra.mxu0 %v4514
        %4666 = vmatprep.subr.mxu0 0.0
        %4667 = vmatpush1.msra.mxu0 %v4515
        %4668 = vmatprep.subr.mxu0 0.0
        %4669 = vmatpush1.msra.mxu0 %v4516
        %4670 = vmatprep.subr.mxu0 0.0
        %4671 = vmatpush1.msra.mxu0 %v4517
        %4672 = vmatprep.subr.mxu0 0.0
        %4673 = vmatpush1.msra.mxu0 0.0
        %4674 = vmatprep.subr.mxu0 0.0
        %4675 = vmatpush1.msra.mxu0 0.0
        %4676 = vmatprep.subr.mxu0 0.0
        %4677 = vmatpush1.msra.mxu0 0.0
        %4678 = vmatprep.subr.mxu0 0.0
        %4679 = vmatpush1.msra.mxu0 0.0
        %4680 = vmatprep.subr.mxu0 0.0
        %4681 = vmatpush1.msra.mxu0 0.0
        %4682 = vmatprep.subr.mxu0 0.0
        %4683 = vmatpush1.msra.mxu0 0.0
        %4684 = vmatprep.subr.mxu0 0.0
        %4685 = vmatpush1.msra.mxu0 0.0
        %4686 = vmatprep.subr.mxu0 0.0
        %4687 = vmatpush1.msra.mxu0 0.0
        %4688 = vmatprep.subr.mxu0 0.0
        %4689 = vmatpush1.msra.mxu0 0.0
        %4690 = vmatprep.subr.mxu0 0.0
        %4691 = vmatpush1.msra.mxu0 0.0
        %4692 = vmatprep.subr.mxu0 0.0
        %4693 = vmatpush1.msra.mxu0 0.0
        %4694 = vmatprep.subr.mxu0 0.0
        %4695 = vmatpush1.msra.mxu0 0.0
        %4696 = vmatprep.subr.mxu0 0.0
        %4697 = vmatpush1.msra.mxu0 0.0
        %4698 = vmatprep.subr.mxu0 0.0
        %4699 = vmatpush1.msra.mxu0 0.0
        %4700 = vmatprep.subr.mxu0 0.0
        %4701 = vmatpush1.msra.mxu0 0.0
        %4702 = vmatprep.subr.mxu0 0.0
        %4703 = vmatpush1.msra.mxu0 0.0
        %4704 = vmatprep.mubr.f32.mxu0 0.0
        %4705 = vmatmul.mubr.f32.gmra.mrb[0].mxu0 0.0
        %v4706 = vpop.f32.mrb[0].mxu0
        %v4707 = vadd.f32 %v4602, %v4706
        %v4708 = vpop.f32.mrb[0].mxu0
        %4709 = vmatprep.mubr.f32.mxu0 0.0
        %4710 = vmatmul.mubr.f32.gmra.mrb[0].mxu0 %v4493
        %v4711 = vpop.f32.mrb[0].mxu0
        %v4712 = vadd.f32 %v4607, %v4711
        %v4713 = vpop.f32.mrb[0].mxu0
        %4714 = vmatprep.mubr.f32.mxu0 0.0
        %4715 = vmatmul.mubr.f32.gmra.mrb[0].mxu0 %v4494
        %v4716 = vpop.f32.mrb[0].mxu0
        %v4717 = vadd.f32 %v4612, %v4716
        %v4718 = vpop.f32.mrb[0].mxu0
        %4719 = vmatprep.mubr.f32.mxu0 0.0
        %4720 = vmatmul.mubr.f32.gmra.mrb[0].mxu0 %v4495
        %v4721 = vpop.f32.mrb[0].mxu0
        %v4722 = vadd.f32 %v4617, %v4721
        %v4723 = vpop.f32.mrb[0].mxu0
        %4724 = vmatprep.mubr.f32.mxu0 0.0
        %4725 = vmatmul.mubr.f32.gmra.mrb[0].mxu0 %v4496
        %v4726 = vpop.f32.mrb[0].mxu0
        %v4727 = vadd.f32 %v4622, %v4726
        %v4728 = vpop.f32.mrb[0].mxu0
        %4729 = vmatprep.mubr.f32.mxu0 0.0
        %4730 = vmatmul.mubr.f32.gmra.mrb[0].mxu0 %v4497
        %v4731 = vpop.f32.mrb[0].mxu0
        %v4732 = vadd.f32 %v4627, %v4731
        %v4733 = vpop.f32.mrb[0].mxu0
        %4734 = vmatprep.mubr.f32.mxu0 0.0
        %4735 = vmatmul.mubr.f32.gmra.mrb[0].mxu0 %v4498
        %v4736 = vpop.f32.mrb[0].mxu0
        %v4737 = vadd.f32 %v4632, %v4736
        %v4738 = vpop.f32.mrb[0].mxu0
        %4739 = vmatprep.mubr.f32.mxu0 0.0
        %4740 = vmatmul.mubr.f32.gmra.mrb[0].mxu0 %v4499
        %v4741 = vpop.f32.mrb[0].mxu0
        %v4742 = vadd.f32 %v4637, %v4741
        %v4743 = vpop.f32.mrb[0].mxu0
        %4744 = vdwg.mxu0
        %s4745 = scalar_lea.vmem [#allocation2], 3712
        %v4746 = vld [vmem:[%s4745] sm:$0xff]
        %v4747 = vld [vmem:[%s4745 + $0x8] sm:$0xff]
        %v4748 = vld [vmem:[%s4745 + $0x10] sm:$0xff]
        %v4749 = vld [vmem:[%s4745 + $0x18] sm:$0xff]
        %v4750 = vld [vmem:[%s4745 + $0x20] sm:$0xff]
        %v4751 = vld [vmem:[%s4745 + $0x28] sm:$0xff]
        %v4752 = vld [vmem:[%s4745 + $0x30] sm:$0xff]
        %v4753 = vld [vmem:[%s4745 + $0x38] sm:$0xff]
        %v4754 = vld [vmem:[%s4745 + $0x40] sm:$0xff]
        %v4755 = vld [vmem:[%s4745 + $0x48] sm:$0xff]
        %v4756 = vld [vmem:[%s4745 + $0x50] sm:$0xff]
        %v4757 = vld [vmem:[%s4745 + $0x58] sm:$0xff]
        %v4758 = vld [vmem:[%s4745 + $0x60] sm:$0xff]
        %v4759 = vld [vmem:[%s4745 + $0x68] sm:$0xff]
        %v4760 = vld [vmem:[%s4745 + $0x70] sm:$0xff]
        %v4761 = vld [vmem:[%s4745 + $0x78] sm:$0xff]
        %4762 = vmatprep.subr.mxu0 0.0
        %4763 = vmatpush1.msra.mxu0 %v4746
        %4764 = vmatprep.subr.mxu0 0.0
        %4765 = vmatpush1.msra.mxu0 %v4747
        %4766 = vmatprep.subr.mxu0 0.0
        %4767 = vmatpush1.msra.mxu0 %v4748
        %4768 = vmatprep.subr.mxu0 0.0
        %4769 = vmatpush1.msra.mxu0 %v4749
        %4770 = vmatprep.subr.mxu0 0.0
        %4771 = vmatpush1.msra.mxu0 %v4750
        %4772 = vmatprep.subr.mxu0 0.0
        %4773 = vmatpush1.msra.mxu0 %v4751
        %4774 = vmatprep.subr.mxu0 0.0
        %4775 = vmatpush1.msra.mxu0 %v4752
        %4776 = vmatprep.subr.mxu0 0.0
        %4777 = vmatpush1.msra.mxu0 %v4753
        %4778 = vmatprep.subr.mxu0 0.0
        %4779 = vmatpush1.msra.mxu0 %v4754
        %4780 = vmatprep.subr.mxu0 0.0
        %4781 = vmatpush1.msra.mxu0 %v4755
        %4782 = vmatprep.subr.mxu0 0.0
        %4783 = vmatpush1.msra.mxu0 %v4756
        %4784 = vmatprep.subr.mxu0 0.0
        %4785 = vmatpush1.msra.mxu0 %v4757
        %4786 = vmatprep.subr.mxu0 0.0
        %4787 = vmatpush1.msra.mxu0 %v4758
        %4788 = vmatprep.subr.mxu0 0.0
        %4789 = vmatpush1.msra.mxu0 %v4759
        %4790 = vmatprep.subr.mxu0 0.0
        %4791 = vmatpush1.msra.mxu0 %v4760
        %4792 = vmatprep.subr.mxu0 0.0
        %4793 = vmatpush1.msra.mxu0 %v4761
        %4794 = vmatprep.subr.mxu0 0.0
        %4795 = vmatpush1.msra.mxu0 0.0
        %4796 = vmatprep.subr.mxu0 0.0
        %4797 = vmatpush1.msra.mxu0 0.0
        %4798 = vmatprep.subr.mxu0 0.0
        %4799 = vmatpush1.msra.mxu0 0.0
        %4800 = vmatprep.subr.mxu0 0.0
        %4801 = vmatpush1.msra.mxu0 0.0
        %4802 = vmatprep.subr.mxu0 0.0
        %4803 = vmatpush1.msra.mxu0 0.0
        %4804 = vmatprep.subr.mxu0 0.0
        %4805 = vmatpush1.msra.mxu0 0.0
        %4806 = vmatprep.subr.mxu0 0.0
        %4807 = vmatpush1.msra.mxu0 0.0
        %4808 = vmatprep.subr.mxu0 0.0
        %4809 = vmatpush1.msra.mxu0 0.0
        %4810 = vmatprep.subr.mxu0 0.0
        %4811 = vmatpush1.msra.mxu0 0.0
        %4812 = vmatprep.subr.mxu0 0.0
        %4813 = vmatpush1.msra.mxu0 0.0
        %4814 = vmatprep.subr.mxu0 0.0
        %4815 = vmatpush1.msra.mxu0 0.0
        %4816 = vmatprep.subr.mxu0 0.0
        %4817 = vmatpush1.msra.mxu0 0.0
        %4818 = vmatprep.subr.mxu0 0.0
        %4819 = vmatpush1.msra.mxu0 0.0
        %4820 = vmatprep.subr.mxu0 0.0
        %4821 = vmatpush1.msra.mxu0 0.0
        %4822 = vmatprep.subr.mxu0 0.0
        %4823 = vmatpush1.msra.mxu0 0.0
        %4824 = vmatprep.subr.mxu0 0.0
        %4825 = vmatpush1.msra.mxu0 0.0
        %4826 = vmatprep.mubr.f32.mxu0 0.0
        %4827 = vmatmul.mubr.f32.gmra.mrb[0].mxu0 %v4494
        %v4828 = vpop.f32.mrb[0].mxu0
        %v4829 = vadd.f32 0.0, %v4828
        %v4830 = vpop.f32.mrb[0].mxu0
        %4831 = vmatprep.mubr.f32.mxu0 0.0
        %4832 = vmatmul.mubr.f32.gmra.mrb[0].mxu0 %v4495
        %v4833 = vpop.f32.mrb[0].mxu0
        %v4834 = vadd.f32 0.0, %v4833
        %v4835 = vpop.f32.mrb[0].mxu0
        %4836 = vmatprep.mubr.f32.mxu0 0.0
        %4837 = vmatmul.mubr.f32.gmra.mrb[0].mxu0 %v4496
        %v4838 = vpop.f32.mrb[0].mxu0
        %v4839 = vadd.f32 0.0, %v4838
        %v4840 = vpop.f32.mrb[0].mxu0
        %4841 = vmatprep.mubr.f32.mxu0 0.0
        %4842 = vmatmul.mubr.f32.gmra.mrb[0].mxu0 %v4497
        %v4843 = vpop.f32.mrb[0].mxu0
        %v4844 = vadd.f32 0.0, %v4843
        %v4845 = vpop.f32.mrb[0].mxu0
        %4846 = vmatprep.mubr.f32.mxu0 0.0
        %4847 = vmatmul.mubr.f32.gmra.mrb[0].mxu0 %v4498
        %v4848 = vpop.f32.mrb[0].mxu0
        %v4849 = vadd.f32 0.0, %v4848
        %v4850 = vpop.f32.mrb[0].mxu0
        %4851 = vmatprep.mubr.f32.mxu0 0.0
        %4852 = vmatmul.mubr.f32.gmra.mrb[0].mxu0 %v4499
        %v4853 = vpop.f32.mrb[0].mxu0
        %v4854 = vadd.f32 0.0, %v4853
        %v4855 = vpop.f32.mrb[0].mxu0
        %4856 = vmatprep.mubr.f32.mxu0 0.0
        %4857 = vmatmul.mubr.f32.gmra.mrb[0].mxu0 %v4500
        %v4858 = vpop.f32.mrb[0].mxu0
        %v4859 = vadd.f32 0.0, %v4858
        %v4860 = vpop.f32.mrb[0].mxu0
        %4861 = vmatprep.mubr.f32.mxu0 0.0
        %4862 = vmatmul.mubr.f32.gmra.mrb[0].mxu0 0.0
        %v4863 = vpop.f32.mrb[0].mxu0
        %v4864 = vadd.f32 0.0, %v4863
        %v4865 = vpop.f32.mrb[0].mxu0
        %4866 = vdwg.mxu0
        %v4867 = vadd.f32 %v4707, %v4829
        %v4868 = vadd.f32 %v4712, %v4834
        %v4869 = vadd.f32 %v4717, %v4839
        %v4870 = vadd.f32 %v4722, %v4844
        %v4871 = vadd.f32 %v4727, %v4849
        %v4872 = vadd.f32 %v4732, %v4854
        %v4873 = vadd.f32 %v4737, %v4859
        %v4874 = vadd.f32 %v4742, %v4864
        %s4875 = scalar_lea.vmem [#allocation2], 3840
        %v4876 = vld [vmem:[%s4875] sm:$0xff]
        %v4877 = vld [vmem:[%s4875 + $0x8] sm:$0xff]
        %v4878 = vld [vmem:[%s4875 + $0x10] sm:$0xff]
        %v4879 = vld [vmem:[%s4875 + $0x18] sm:$0xff]
        %v4880 = vld [vmem:[%s4875 + $0x20] sm:$0xff]
        %v4881 = vld [vmem:[%s4875 + $0x28] sm:$0xff]
        %v4882 = vld [vmem:[%s4875 + $0x30] sm:$0xff]
        %v4883 = vld [vmem:[%s4875 + $0x38] sm:$0xff]
        %v4884 = vld [vmem:[%s4875 + $0x40] sm:$0xff]
        %v4885 = vld [vmem:[%s4875 + $0x48] sm:$0xff]
        %v4886 = vld [vmem:[%s4875 + $0x50] sm:$0xff]
        %v4887 = vld [vmem:[%s4875 + $0x58] sm:$0xff]
        %v4888 = vld [vmem:[%s4875 + $0x60] sm:$0xff]
        %v4889 = vld [vmem:[%s4875 + $0x68] sm:$0xff]
        %v4890 = vld [vmem:[%s4875 + $0x70] sm:$0xff]
        %v4891 = vld [vmem:[%s4875 + $0x78] sm:$0xff]
        %s4892 = scalar_lea.vmem [#allocation2], 3968
        %v4893 = vld [vmem:[%s4892] sm:$0xff]
        %v4894 = vld [vmem:[%s4892 + $0x8] sm:$0xff]
        %v4895 = vld [vmem:[%s4892 + $0x10] sm:$0xff]
        %v4896 = vld [vmem:[%s4892 + $0x18] sm:$0xff]
        %v4897 = vld [vmem:[%s4892 + $0x20] sm:$0xff]
        %v4898 = vld [vmem:[%s4892 + $0x28] sm:$0xff]
        %v4899 = vld [vmem:[%s4892 + $0x30] sm:$0xff]
        %v4900 = vld [vmem:[%s4892 + $0x38] sm:$0xff]
        %v4901 = vld [vmem:[%s4892 + $0x40] sm:$0xff]
        %v4902 = vld [vmem:[%s4892 + $0x48] sm:$0xff]
        %v4903 = vld [vmem:[%s4892 + $0x50] sm:$0xff]
        %v4904 = vld [vmem:[%s4892 + $0x58] sm:$0xff]
        %v4905 = vld [vmem:[%s4892 + $0x60] sm:$0xff]
        %v4906 = vld [vmem:[%s4892 + $0x68] sm:$0xff]
        %v4907 = vld [vmem:[%s4892 + $0x70] sm:$0xff]
        %v4908 = vld [vmem:[%s4892 + $0x78] sm:$0xff]
        %4909 = vmatprep.subr.mxu0 0.0
        %4910 = vmatpush1.msra.mxu0 %v4893
        %4911 = vmatprep.subr.mxu0 0.0
        %4912 = vmatpush1.msra.mxu0 %v4894
        %4913 = vmatprep.subr.mxu0 0.0
        %4914 = vmatpush1.msra.mxu0 %v4895
        %4915 = vmatprep.subr.mxu0 0.0
        %4916 = vmatpush1.msra.mxu0 %v4896
        %4917 = vmatprep.subr.mxu0 0.0
        %4918 = vmatpush1.msra.mxu0 %v4897
        %4919 = vmatprep.subr.mxu0 0.0
        %4920 = vmatpush1.msra.mxu0 %v4898
        %4921 = vmatprep.subr.mxu0 0.0
        %4922 = vmatpush1.msra.mxu0 %v4899
        %4923 = vmatprep.subr.mxu0 0.0
        %4924 = vmatpush1.msra.mxu0 %v4900
        %4925 = vmatprep.subr.mxu0 0.0
        %4926 = vmatpush1.msra.mxu0 %v4901
        %4927 = vmatprep.subr.mxu0 0.0
        %4928 = vmatpush1.msra.mxu0 %v4902
        %4929 = vmatprep.subr.mxu0 0.0
        %4930 = vmatpush1.msra.mxu0 %v4903
        %4931 = vmatprep.subr.mxu0 0.0
        %4932 = vmatpush1.msra.mxu0 %v4904
        %4933 = vmatprep.subr.mxu0 0.0
        %4934 = vmatpush1.msra.mxu0 %v4905
        %4935 = vmatprep.subr.mxu0 0.0
        %4936 = vmatpush1.msra.mxu0 %v4906
        %4937 = vmatprep.subr.mxu0 0.0
        %4938 = vmatpush1.msra.mxu0 %v4907
        %4939 = vmatprep.subr.mxu0 0.0
        %4940 = vmatpush1.msra.mxu0 %v4908
        %4941 = vmatprep.subr.mxu0 0.0
        %4942 = vmatpush1.msra.mxu0 0.0
        %4943 = vmatprep.subr.mxu0 0.0
        %4944 = vmatpush1.msra.mxu0 0.0
        %4945 = vmatprep.subr.mxu0 0.0
        %4946 = vmatpush1.msra.mxu0 0.0
        %4947 = vmatprep.subr.mxu0 0.0
        %4948 = vmatpush1.msra.mxu0 0.0
        %4949 = vmatprep.subr.mxu0 0.0
        %4950 = vmatpush1.msra.mxu0 0.0
        %4951 = vmatprep.subr.mxu0 0.0
        %4952 = vmatpush1.msra.mxu0 0.0
        %4953 = vmatprep.subr.mxu0 0.0
        %4954 = vmatpush1.msra.mxu0 0.0
        %4955 = vmatprep.subr.mxu0 0.0
        %4956 = vmatpush1.msra.mxu0 0.0
        %4957 = vmatprep.subr.mxu0 0.0
        %4958 = vmatpush1.msra.mxu0 0.0
        %4959 = vmatprep.subr.mxu0 0.0
        %4960 = vmatpush1.msra.mxu0 0.0
        %4961 = vmatprep.subr.mxu0 0.0
        %4962 = vmatpush1.msra.mxu0 0.0
        %4963 = vmatprep.subr.mxu0 0.0
        %4964 = vmatpush1.msra.mxu0 0.0
        %4965 = vmatprep.subr.mxu0 0.0
        %4966 = vmatpush1.msra.mxu0 0.0
        %4967 = vmatprep.subr.mxu0 0.0
        %4968 = vmatpush1.msra.mxu0 0.0
        %4969 = vmatprep.subr.mxu0 0.0
        %4970 = vmatpush1.msra.mxu0 0.0
        %4971 = vmatprep.subr.mxu0 0.0
        %4972 = vmatpush1.msra.mxu0 0.0
        %4973 = vmatprep.mubr.f32.mxu0 0.0
        %4974 = vmatmul.mubr.f32.gmra.mrb[0].mxu0 %v4493
        %v4975 = vpop.f32.mrb[0].mxu0
        %v4976 = vadd.f32 0.0, %v4975
        %v4977 = vpop.f32.mrb[0].mxu0
        %4978 = vmatprep.mubr.f32.mxu0 0.0
        %4979 = vmatmul.mubr.f32.gmra.mrb[0].mxu0 %v4494
        %v4980 = vpop.f32.mrb[0].mxu0
        %v4981 = vadd.f32 0.0, %v4980
        %v4982 = vpop.f32.mrb[0].mxu0
        %4983 = vmatprep.mubr.f32.mxu0 0.0
        %4984 = vmatmul.mubr.f32.gmra.mrb[0].mxu0 %v4495
        %v4985 = vpop.f32.mrb[0].mxu0
        %v4986 = vadd.f32 0.0, %v4985
        %v4987 = vpop.f32.mrb[0].mxu0
        %4988 = vmatprep.mubr.f32.mxu0 0.0
        %4989 = vmatmul.mubr.f32.gmra.mrb[0].mxu0 %v4496
        %v4990 = vpop.f32.mrb[0].mxu0
        %v4991 = vadd.f32 0.0, %v4990
        %v4992 = vpop.f32.mrb[0].mxu0
        %4993 = vmatprep.mubr.f32.mxu0 0.0
        %4994 = vmatmul.mubr.f32.gmra.mrb[0].mxu0 %v4497
        %v4995 = vpop.f32.mrb[0].mxu0
        %v4996 = vadd.f32 0.0, %v4995
        %v4997 = vpop.f32.mrb[0].mxu0
        %4998 = vmatprep.mubr.f32.mxu0 0.0
        %4999 = vmatmul.mubr.f32.gmra.mrb[0].mxu0 %v4498
        %v5000 = vpop.f32.mrb[0].mxu0
        %v5001 = vadd.f32 0.0, %v5000
        %v5002 = vpop.f32.mrb[0].mxu0
        %5003 = vmatprep.mubr.f32.mxu0 0.0
        %5004 = vmatmul.mubr.f32.gmra.mrb[0].mxu0 %v4499
        %v5005 = vpop.f32.mrb[0].mxu0
        %v5006 = vadd.f32 0.0, %v5005
        %v5007 = vpop.f32.mrb[0].mxu0
        %5008 = vmatprep.mubr.f32.mxu0 0.0
        %5009 = vmatmul.mubr.f32.gmra.mrb[0].mxu0 %v4500
        %v5010 = vpop.f32.mrb[0].mxu0
        %v5011 = vadd.f32 0.0, %v5010
        %v5012 = vpop.f32.mrb[0].mxu0
        %5013 = vdwg.mxu0
        %5014 = vmatprep.subr.mxu0 0.0
        %5015 = vmatpush1.msra.mxu0 %v4876
        %5016 = vmatprep.subr.mxu0 0.0
        %5017 = vmatpush1.msra.mxu0 %v4877
        %5018 = vmatprep.subr.mxu0 0.0
        %5019 = vmatpush1.msra.mxu0 %v4878
        %5020 = vmatprep.subr.mxu0 0.0
        %5021 = vmatpush1.msra.mxu0 %v4879
        %5022 = vmatprep.subr.mxu0 0.0
        %5023 = vmatpush1.msra.mxu0 %v4880
        %5024 = vmatprep.subr.mxu0 0.0
        %5025 = vmatpush1.msra.mxu0 %v4881
        %5026 = vmatprep.subr.mxu0 0.0
        %5027 = vmatpush1.msra.mxu0 %v4882
        %5028 = vmatprep.subr.mxu0 0.0
        %5029 = vmatpush1.msra.mxu0 %v4883
        %5030 = vmatprep.subr.mxu0 0.0
        %5031 = vmatpush1.msra.mxu0 %v4884
        %5032 = vmatprep.subr.mxu0 0.0
        %5033 = vmatpush1.msra.mxu0 %v4885
        %5034 = vmatprep.subr.mxu0 0.0
        %5035 = vmatpush1.msra.mxu0 %v4886
        %5036 = vmatprep.subr.mxu0 0.0
        %5037 = vmatpush1.msra.mxu0 %v4887
        %5038 = vmatprep.subr.mxu0 0.0
        %5039 = vmatpush1.msra.mxu0 %v4888
        %5040 = vmatprep.subr.mxu0 0.0
        %5041 = vmatpush1.msra.mxu0 %v4889
        %5042 = vmatprep.subr.mxu0 0.0
        %5043 = vmatpush1.msra.mxu0 %v4890
        %5044 = vmatprep.subr.mxu0 0.0
        %5045 = vmatpush1.msra.mxu0 %v4891
        %5046 = vmatprep.subr.mxu0 0.0
        %5047 = vmatpush1.msra.mxu0 0.0
        %5048 = vmatprep.subr.mxu0 0.0
        %5049 = vmatpush1.msra.mxu0 0.0
        %5050 = vmatprep.subr.mxu0 0.0
        %5051 = vmatpush1.msra.mxu0 0.0
        %5052 = vmatprep.subr.mxu0 0.0
        %5053 = vmatpush1.msra.mxu0 0.0
        %5054 = vmatprep.subr.mxu0 0.0
        %5055 = vmatpush1.msra.mxu0 0.0
        %5056 = vmatprep.subr.mxu0 0.0
        %5057 = vmatpush1.msra.mxu0 0.0
        %5058 = vmatprep.subr.mxu0 0.0
        %5059 = vmatpush1.msra.mxu0 0.0
        %5060 = vmatprep.subr.mxu0 0.0
        %5061 = vmatpush1.msra.mxu0 0.0
        %5062 = vmatprep.subr.mxu0 0.0
        %5063 = vmatpush1.msra.mxu0 0.0
        %5064 = vmatprep.subr.mxu0 0.0
        %5065 = vmatpush1.msra.mxu0 0.0
        %5066 = vmatprep.subr.mxu0 0.0
        %5067 = vmatpush1.msra.mxu0 0.0
        %5068 = vmatprep.subr.mxu0 0.0
        %5069 = vmatpush1.msra.mxu0 0.0
        %5070 = vmatprep.subr.mxu0 0.0
        %5071 = vmatpush1.msra.mxu0 0.0
        %5072 = vmatprep.subr.mxu0 0.0
        %5073 = vmatpush1.msra.mxu0 0.0
        %5074 = vmatprep.subr.mxu0 0.0
        %5075 = vmatpush1.msra.mxu0 0.0
        %5076 = vmatprep.subr.mxu0 0.0
        %5077 = vmatpush1.msra.mxu0 0.0
        %5078 = vmatprep.mubr.f32.mxu0 0.0
        %5079 = vmatmul.mubr.f32.gmra.mrb[0].mxu0 0.0
        %v5080 = vpop.f32.mrb[0].mxu0
        %v5081 = vadd.f32 %v4976, %v5080
        %v5082 = vpop.f32.mrb[0].mxu0
        %5083 = vmatprep.mubr.f32.mxu0 0.0
        %5084 = vmatmul.mubr.f32.gmra.mrb[0].mxu0 %v4493
        %v5085 = vpop.f32.mrb[0].mxu0
        %v5086 = vadd.f32 %v4981, %v5085
        %v5087 = vpop.f32.mrb[0].mxu0
        %5088 = vmatprep.mubr.f32.mxu0 0.0
        %5089 = vmatmul.mubr.f32.gmra.mrb[0].mxu0 %v4494
        %v5090 = vpop.f32.mrb[0].mxu0
        %v5091 = vadd.f32 %v4986, %v5090
        %v5092 = vpop.f32.mrb[0].mxu0
        %5093 = vmatprep.mubr.f32.mxu0 0.0
        %5094 = vmatmul.mubr.f32.gmra.mrb[0].mxu0 %v4495
        %v5095 = vpop.f32.mrb[0].mxu0
        %v5096 = vadd.f32 %v4991, %v5095
        %v5097 = vpop.f32.mrb[0].mxu0
        %5098 = vmatprep.mubr.f32.mxu0 0.0
        %5099 = vmatmul.mubr.f32.gmra.mrb[0].mxu0 %v4496
        %v5100 = vpop.f32.mrb[0].mxu0
        %v5101 = vadd.f32 %v4996, %v5100
        %v5102 = vpop.f32.mrb[0].mxu0
        %5103 = vmatprep.mubr.f32.mxu0 0.0
        %5104 = vmatmul.mubr.f32.gmra.mrb[0].mxu0 %v4497
        %v5105 = vpop.f32.mrb[0].mxu0
        %v5106 = vadd.f32 %v5001, %v5105
        %v5107 = vpop.f32.mrb[0].mxu0
        %5108 = vmatprep.mubr.f32.mxu0 0.0
        %5109 = vmatmul.mubr.f32.gmra.mrb[0].mxu0 %v4498
        %v5110 = vpop.f32.mrb[0].mxu0
        %v5111 = vadd.f32 %v5006, %v5110
        %v5112 = vpop.f32.mrb[0].mxu0
        %5113 = vmatprep.mubr.f32.mxu0 0.0
        %5114 = vmatmul.mubr.f32.gmra.mrb[0].mxu0 %v4499
        %v5115 = vpop.f32.mrb[0].mxu0
        %v5116 = vadd.f32 %v5011, %v5115
        %v5117 = vpop.f32.mrb[0].mxu0
        %5118 = vdwg.mxu0
        %s5119 = scalar_lea.vmem [#allocation2], 4096
        %v5120 = vld [vmem:[%s5119] sm:$0xff]
        %v5121 = vld [vmem:[%s5119 + $0x8] sm:$0xff]
        %v5122 = vld [vmem:[%s5119 + $0x10] sm:$0xff]
        %v5123 = vld [vmem:[%s5119 + $0x18] sm:$0xff]
        %v5124 = vld [vmem:[%s5119 + $0x20] sm:$0xff]
        %v5125 = vld [vmem:[%s5119 + $0x28] sm:$0xff]
        %v5126 = vld [vmem:[%s5119 + $0x30] sm:$0xff]
        %v5127 = vld [vmem:[%s5119 + $0x38] sm:$0xff]
        %v5128 = vld [vmem:[%s5119 + $0x40] sm:$0xff]
        %v5129 = vld [vmem:[%s5119 + $0x48] sm:$0xff]
        %v5130 = vld [vmem:[%s5119 + $0x50] sm:$0xff]
        %v5131 = vld [vmem:[%s5119 + $0x58] sm:$0xff]
        %v5132 = vld [vmem:[%s5119 + $0x60] sm:$0xff]
        %v5133 = vld [vmem:[%s5119 + $0x68] sm:$0xff]
        %v5134 = vld [vmem:[%s5119 + $0x70] sm:$0xff]
        %v5135 = vld [vmem:[%s5119 + $0x78] sm:$0xff]
        %5136 = vmatprep.subr.mxu0 0.0
        %5137 = vmatpush1.msra.mxu0 %v5120
        %5138 = vmatprep.subr.mxu0 0.0
        %5139 = vmatpush1.msra.mxu0 %v5121
        %5140 = vmatprep.subr.mxu0 0.0
        %5141 = vmatpush1.msra.mxu0 %v5122
        %5142 = vmatprep.subr.mxu0 0.0
        %5143 = vmatpush1.msra.mxu0 %v5123
        %5144 = vmatprep.subr.mxu0 0.0
        %5145 = vmatpush1.msra.mxu0 %v5124
        %5146 = vmatprep.subr.mxu0 0.0
        %5147 = vmatpush1.msra.mxu0 %v5125
        %5148 = vmatprep.subr.mxu0 0.0
        %5149 = vmatpush1.msra.mxu0 %v5126
        %5150 = vmatprep.subr.mxu0 0.0
        %5151 = vmatpush1.msra.mxu0 %v5127
        %5152 = vmatprep.subr.mxu0 0.0
        %5153 = vmatpush1.msra.mxu0 %v5128
        %5154 = vmatprep.subr.mxu0 0.0
        %5155 = vmatpush1.msra.mxu0 %v5129
        %5156 = vmatprep.subr.mxu0 0.0
        %5157 = vmatpush1.msra.mxu0 %v5130
        %5158 = vmatprep.subr.mxu0 0.0
        %5159 = vmatpush1.msra.mxu0 %v5131
        %5160 = vmatprep.subr.mxu0 0.0
        %5161 = vmatpush1.msra.mxu0 %v5132
        %5162 = vmatprep.subr.mxu0 0.0
        %5163 = vmatpush1.msra.mxu0 %v5133
        %5164 = vmatprep.subr.mxu0 0.0
        %5165 = vmatpush1.msra.mxu0 %v5134
        %5166 = vmatprep.subr.mxu0 0.0
        %5167 = vmatpush1.msra.mxu0 %v5135
        %5168 = vmatprep.subr.mxu0 0.0
        %5169 = vmatpush1.msra.mxu0 0.0
        %5170 = vmatprep.subr.mxu0 0.0
        %5171 = vmatpush1.msra.mxu0 0.0
        %5172 = vmatprep.subr.mxu0 0.0
        %5173 = vmatpush1.msra.mxu0 0.0
        %5174 = vmatprep.subr.mxu0 0.0
        %5175 = vmatpush1.msra.mxu0 0.0
        %5176 = vmatprep.subr.mxu0 0.0
        %5177 = vmatpush1.msra.mxu0 0.0
        %5178 = vmatprep.subr.mxu0 0.0
        %5179 = vmatpush1.msra.mxu0 0.0
        %5180 = vmatprep.subr.mxu0 0.0
        %5181 = vmatpush1.msra.mxu0 0.0
        %5182 = vmatprep.subr.mxu0 0.0
        %5183 = vmatpush1.msra.mxu0 0.0
        %5184 = vmatprep.subr.mxu0 0.0
        %5185 = vmatpush1.msra.mxu0 0.0
        %5186 = vmatprep.subr.mxu0 0.0
        %5187 = vmatpush1.msra.mxu0 0.0
        %5188 = vmatprep.subr.mxu0 0.0
        %5189 = vmatpush1.msra.mxu0 0.0
        %5190 = vmatprep.subr.mxu0 0.0
        %5191 = vmatpush1.msra.mxu0 0.0
        %5192 = vmatprep.subr.mxu0 0.0
        %5193 = vmatpush1.msra.mxu0 0.0
        %5194 = vmatprep.subr.mxu0 0.0
        %5195 = vmatpush1.msra.mxu0 0.0
        %5196 = vmatprep.subr.mxu0 0.0
        %5197 = vmatpush1.msra.mxu0 0.0
        %5198 = vmatprep.subr.mxu0 0.0
        %5199 = vmatpush1.msra.mxu0 0.0
        %5200 = vmatprep.mubr.f32.mxu0 0.0
        %5201 = vmatmul.mubr.f32.gmra.mrb[0].mxu0 %v4494
        %v5202 = vpop.f32.mrb[0].mxu0
        %v5203 = vadd.f32 0.0, %v5202
        %v5204 = vpop.f32.mrb[0].mxu0
        %5205 = vmatprep.mubr.f32.mxu0 0.0
        %5206 = vmatmul.mubr.f32.gmra.mrb[0].mxu0 %v4495
        %v5207 = vpop.f32.mrb[0].mxu0
        %v5208 = vadd.f32 0.0, %v5207
        %v5209 = vpop.f32.mrb[0].mxu0
        %5210 = vmatprep.mubr.f32.mxu0 0.0
        %5211 = vmatmul.mubr.f32.gmra.mrb[0].mxu0 %v4496
        %v5212 = vpop.f32.mrb[0].mxu0
        %v5213 = vadd.f32 0.0, %v5212
        %v5214 = vpop.f32.mrb[0].mxu0
        %5215 = vmatprep.mubr.f32.mxu0 0.0
        %5216 = vmatmul.mubr.f32.gmra.mrb[0].mxu0 %v4497
        %v5217 = vpop.f32.mrb[0].mxu0
        %v5218 = vadd.f32 0.0, %v5217
        %v5219 = vpop.f32.mrb[0].mxu0
        %5220 = vmatprep.mubr.f32.mxu0 0.0
        %5221 = vmatmul.mubr.f32.gmra.mrb[0].mxu0 %v4498
        %v5222 = vpop.f32.mrb[0].mxu0
        %v5223 = vadd.f32 0.0, %v5222
        %v5224 = vpop.f32.mrb[0].mxu0
        %5225 = vmatprep.mubr.f32.mxu0 0.0
        %5226 = vmatmul.mubr.f32.gmra.mrb[0].mxu0 %v4499
        %v5227 = vpop.f32.mrb[0].mxu0
        %v5228 = vadd.f32 0.0, %v5227
        %v5229 = vpop.f32.mrb[0].mxu0
        %5230 = vmatprep.mubr.f32.mxu0 0.0
        %5231 = vmatmul.mubr.f32.gmra.mrb[0].mxu0 %v4500
        %v5232 = vpop.f32.mrb[0].mxu0
        %v5233 = vadd.f32 0.0, %v5232
        %v5234 = vpop.f32.mrb[0].mxu0
        %5235 = vmatprep.mubr.f32.mxu0 0.0
        %5236 = vmatmul.mubr.f32.gmra.mrb[0].mxu0 0.0
        %v5237 = vpop.f32.mrb[0].mxu0
        %v5238 = vadd.f32 0.0, %v5237
        %v5239 = vpop.f32.mrb[0].mxu0
        %5240 = vdwg.mxu0
        %v5241 = vadd.f32 %v5081, %v5203
        %v5242 = vadd.f32 %v5086, %v5208
        %v5243 = vadd.f32 %v5091, %v5213
        %v5244 = vadd.f32 %v5096, %v5218
        %v5245 = vadd.f32 %v5101, %v5223
        %v5246 = vadd.f32 %v5106, %v5228
        %v5247 = vadd.f32 %v5111, %v5233
        %v5248 = vadd.f32 %v5116, %v5238
        %5249 = vmatprep.subr.mxu0 0.0
        %5250 = vmatpush1.msra.mxu0 %v4867
        %5251 = vmatprep.subr.mxu0 0.0
        %5252 = vmatpush1.msra.mxu0 %v4868
        %5253 = vmatprep.subr.mxu0 0.0
        %5254 = vmatpush1.msra.mxu0 %v4869
        %5255 = vmatprep.subr.mxu0 0.0
        %5256 = vmatpush1.msra.mxu0 %v4870
        %5257 = vmatprep.subr.mxu0 0.0
        %5258 = vmatpush1.msra.mxu0 %v4871
        %5259 = vmatprep.subr.mxu0 0.0
        %5260 = vmatpush1.msra.mxu0 %v4872
        %5261 = vmatprep.subr.mxu0 0.0
        %5262 = vmatpush1.msra.mxu0 %v4873
        %5263 = vmatprep.subr.mxu0 0.0
        %5264 = vmatpush1.msra.mxu0 %v4874
        %5265 = vmatprep.subr.mxu0 0.0
        %5266 = vmatpush1.msra.mxu0 0.0
        %5267 = vmatprep.subr.mxu0 0.0
        %5268 = vmatpush1.msra.mxu0 0.0
        %5269 = vmatprep.subr.mxu0 0.0
        %5270 = vmatpush1.msra.mxu0 0.0
        %5271 = vmatprep.subr.mxu0 0.0
        %5272 = vmatpush1.msra.mxu0 0.0
        %5273 = vmatprep.subr.mxu0 0.0
        %5274 = vmatpush1.msra.mxu0 0.0
        %5275 = vmatprep.subr.mxu0 0.0
        %5276 = vmatpush1.msra.mxu0 0.0
        %5277 = vmatprep.subr.mxu0 0.0
        %5278 = vmatpush1.msra.mxu0 0.0
        %5279 = vmatprep.subr.mxu0 0.0
        %5280 = vmatpush1.msra.mxu0 0.0
        %5281 = vmatprep.subr.mxu0 0.0
        %5282 = vmatpush1.msra.mxu0 0.0
        %5283 = vmatprep.subr.mxu0 0.0
        %5284 = vmatpush1.msra.mxu0 0.0
        %5285 = vmatprep.subr.mxu0 0.0
        %5286 = vmatpush1.msra.mxu0 0.0
        %5287 = vmatprep.subr.mxu0 0.0
        %5288 = vmatpush1.msra.mxu0 0.0
        %5289 = vmatprep.subr.mxu0 0.0
        %5290 = vmatpush1.msra.mxu0 0.0
        %5291 = vmatprep.subr.mxu0 0.0
        %5292 = vmatpush1.msra.mxu0 0.0
        %5293 = vmatprep.subr.mxu0 0.0
        %5294 = vmatpush1.msra.mxu0 0.0
        %5295 = vmatprep.subr.mxu0 0.0
        %5296 = vmatpush1.msra.mxu0 0.0
        %5297 = vmatprep.subr.mxu0 0.0
        %5298 = vmatpush1.msra.mxu0 0.0
        %5299 = vmatprep.subr.mxu0 0.0
        %5300 = vmatpush1.msra.mxu0 0.0
        %5301 = vmatprep.subr.mxu0 0.0
        %5302 = vmatpush1.msra.mxu0 0.0
        %5303 = vmatprep.subr.mxu0 0.0
        %5304 = vmatpush1.msra.mxu0 0.0
        %5305 = vmatprep.subr.mxu0 0.0
        %5306 = vmatpush1.msra.mxu0 0.0
        %5307 = vmatprep.subr.mxu0 0.0
        %5308 = vmatpush1.msra.mxu0 0.0
        %5309 = vmatprep.subr.mxu0 0.0
        %5310 = vmatpush1.msra.mxu0 0.0
        %5311 = vmatprep.subr.mxu0 0.0
        %5312 = vmatpush1.msra.mxu0 0.0
        %5313 = vmatprep.mubr.f32.mxu0 0.0
        %5314 = vmatmul.mubr.f32.gmra.mrb[0].mxu0 %v1086
        %v5315 = vpop.f32.mrb[0].mxu0
        %v5316 = vadd.f32 %v5241, %v5315
        %v5317 = vpop.f32.mrb[0].mxu0
        %5318 = vmatprep.mubr.f32.mxu0 0.0
        %5319 = vmatmul.mubr.f32.gmra.mrb[0].mxu0 %v1089
        %v5320 = vpop.f32.mrb[0].mxu0
        %v5321 = vadd.f32 %v5242, %v5320
        %v5322 = vpop.f32.mrb[0].mxu0
        %5323 = vmatprep.mubr.f32.mxu0 0.0
        %5324 = vmatmul.mubr.f32.gmra.mrb[0].mxu0 %v1092
        %v5325 = vpop.f32.mrb[0].mxu0
        %v5326 = vadd.f32 %v5243, %v5325
        %v5327 = vpop.f32.mrb[0].mxu0
        %5328 = vmatprep.mubr.f32.mxu0 0.0
        %5329 = vmatmul.mubr.f32.gmra.mrb[0].mxu0 %v1095
        %v5330 = vpop.f32.mrb[0].mxu0
        %v5331 = vadd.f32 %v5244, %v5330
        %v5332 = vpop.f32.mrb[0].mxu0
        %5333 = vmatprep.mubr.f32.mxu0 0.0
        %5334 = vmatmul.mubr.f32.gmra.mrb[0].mxu0 %v1098
        %v5335 = vpop.f32.mrb[0].mxu0
        %v5336 = vadd.f32 %v5245, %v5335
        %v5337 = vpop.f32.mrb[0].mxu0
        %5338 = vmatprep.mubr.f32.mxu0 0.0
        %5339 = vmatmul.mubr.f32.gmra.mrb[0].mxu0 %v1101
        %v5340 = vpop.f32.mrb[0].mxu0
        %v5341 = vadd.f32 %v5246, %v5340
        %v5342 = vpop.f32.mrb[0].mxu0
        %5343 = vmatprep.mubr.f32.mxu0 0.0
        %5344 = vmatmul.mubr.f32.gmra.mrb[0].mxu0 %v1104
        %v5345 = vpop.f32.mrb[0].mxu0
        %v5346 = vadd.f32 %v5247, %v5345
        %v5347 = vpop.f32.mrb[0].mxu0
        %5348 = vmatprep.mubr.f32.mxu0 0.0
        %5349 = vmatmul.mubr.f32.gmra.mrb[0].mxu0 %v1107
        %v5350 = vpop.f32.mrb[0].mxu0
        %v5351 = vadd.f32 %v5248, %v5350
        %v5352 = vpop.f32.mrb[0].mxu0
        %5353 = vdwg.mxu0
        %s5354 = scalar_lea.vmem [#allocation2], 4224
        %v5355 = vld [vmem:[%s5354] sm:$0xff]
        %v5356 = vld [vmem:[%s5354 + $0x8] sm:$0xff]
        %v5357 = vld [vmem:[%s5354 + $0x10] sm:$0xff]
        %v5358 = vld [vmem:[%s5354 + $0x18] sm:$0xff]
        %v5359 = vld [vmem:[%s5354 + $0x20] sm:$0xff]
        %v5360 = vld [vmem:[%s5354 + $0x28] sm:$0xff]
        %v5361 = vld [vmem:[%s5354 + $0x30] sm:$0xff]
        %v5362 = vld [vmem:[%s5354 + $0x38] sm:$0xff]
        %v5363 = vld [vmem:[%s5354 + $0x40] sm:$0xff]
        %v5364 = vld [vmem:[%s5354 + $0x48] sm:$0xff]
        %v5365 = vld [vmem:[%s5354 + $0x50] sm:$0xff]
        %v5366 = vld [vmem:[%s5354 + $0x58] sm:$0xff]
        %v5367 = vld [vmem:[%s5354 + $0x60] sm:$0xff]
        %v5368 = vld [vmem:[%s5354 + $0x68] sm:$0xff]
        %v5369 = vld [vmem:[%s5354 + $0x70] sm:$0xff]
        %v5370 = vld [vmem:[%s5354 + $0x78] sm:$0xff]
        %s5371 = scalar_lea.vmem [#allocation2], 4352
        %v5372 = vld [vmem:[%s5371] sm:$0xff]
        %v5373 = vld [vmem:[%s5371 + $0x8] sm:$0xff]
        %v5374 = vld [vmem:[%s5371 + $0x10] sm:$0xff]
        %v5375 = vld [vmem:[%s5371 + $0x18] sm:$0xff]
        %v5376 = vld [vmem:[%s5371 + $0x20] sm:$0xff]
        %v5377 = vld [vmem:[%s5371 + $0x28] sm:$0xff]
        %v5378 = vld [vmem:[%s5371 + $0x30] sm:$0xff]
        %v5379 = vld [vmem:[%s5371 + $0x38] sm:$0xff]
        %v5380 = vld [vmem:[%s5371 + $0x40] sm:$0xff]
        %v5381 = vld [vmem:[%s5371 + $0x48] sm:$0xff]
        %v5382 = vld [vmem:[%s5371 + $0x50] sm:$0xff]
        %v5383 = vld [vmem:[%s5371 + $0x58] sm:$0xff]
        %v5384 = vld [vmem:[%s5371 + $0x60] sm:$0xff]
        %v5385 = vld [vmem:[%s5371 + $0x68] sm:$0xff]
        %v5386 = vld [vmem:[%s5371 + $0x70] sm:$0xff]
        %v5387 = vld [vmem:[%s5371 + $0x78] sm:$0xff]
        %5388 = vmatprep.subr.mxu0 0.0
        %5389 = vmatpush1.msra.mxu0 %v5372
        %5390 = vmatprep.subr.mxu0 0.0
        %5391 = vmatpush1.msra.mxu0 %v5373
        %5392 = vmatprep.subr.mxu0 0.0
        %5393 = vmatpush1.msra.mxu0 %v5374
        %5394 = vmatprep.subr.mxu0 0.0
        %5395 = vmatpush1.msra.mxu0 %v5375
        %5396 = vmatprep.subr.mxu0 0.0
        %5397 = vmatpush1.msra.mxu0 %v5376
        %5398 = vmatprep.subr.mxu0 0.0
        %5399 = vmatpush1.msra.mxu0 %v5377
        %5400 = vmatprep.subr.mxu0 0.0
        %5401 = vmatpush1.msra.mxu0 %v5378
        %5402 = vmatprep.subr.mxu0 0.0
        %5403 = vmatpush1.msra.mxu0 %v5379
        %5404 = vmatprep.subr.mxu0 0.0
        %5405 = vmatpush1.msra.mxu0 %v5380
        %5406 = vmatprep.subr.mxu0 0.0
        %5407 = vmatpush1.msra.mxu0 %v5381
        %5408 = vmatprep.subr.mxu0 0.0
        %5409 = vmatpush1.msra.mxu0 %v5382
        %5410 = vmatprep.subr.mxu0 0.0
        %5411 = vmatpush1.msra.mxu0 %v5383
        %5412 = vmatprep.subr.mxu0 0.0
        %5413 = vmatpush1.msra.mxu0 %v5384
        %5414 = vmatprep.subr.mxu0 0.0
        %5415 = vmatpush1.msra.mxu0 %v5385
        %5416 = vmatprep.subr.mxu0 0.0
        %5417 = vmatpush1.msra.mxu0 %v5386
        %5418 = vmatprep.subr.mxu0 0.0
        %5419 = vmatpush1.msra.mxu0 %v5387
        %5420 = vmatprep.subr.mxu0 0.0
        %5421 = vmatpush1.msra.mxu0 0.0
        %5422 = vmatprep.subr.mxu0 0.0
        %5423 = vmatpush1.msra.mxu0 0.0
        %5424 = vmatprep.subr.mxu0 0.0
        %5425 = vmatpush1.msra.mxu0 0.0
        %5426 = vmatprep.subr.mxu0 0.0
        %5427 = vmatpush1.msra.mxu0 0.0
        %5428 = vmatprep.subr.mxu0 0.0
        %5429 = vmatpush1.msra.mxu0 0.0
        %5430 = vmatprep.subr.mxu0 0.0
        %5431 = vmatpush1.msra.mxu0 0.0
        %5432 = vmatprep.subr.mxu0 0.0
        %5433 = vmatpush1.msra.mxu0 0.0
        %5434 = vmatprep.subr.mxu0 0.0
        %5435 = vmatpush1.msra.mxu0 0.0
        %5436 = vmatprep.subr.mxu0 0.0
        %5437 = vmatpush1.msra.mxu0 0.0
        %5438 = vmatprep.subr.mxu0 0.0
        %5439 = vmatpush1.msra.mxu0 0.0
        %5440 = vmatprep.subr.mxu0 0.0
        %5441 = vmatpush1.msra.mxu0 0.0
        %5442 = vmatprep.subr.mxu0 0.0
        %5443 = vmatpush1.msra.mxu0 0.0
        %5444 = vmatprep.subr.mxu0 0.0
        %5445 = vmatpush1.msra.mxu0 0.0
        %5446 = vmatprep.subr.mxu0 0.0
        %5447 = vmatpush1.msra.mxu0 0.0
        %5448 = vmatprep.subr.mxu0 0.0
        %5449 = vmatpush1.msra.mxu0 0.0
        %5450 = vmatprep.subr.mxu0 0.0
        %5451 = vmatpush1.msra.mxu0 0.0
        %5452 = vmatprep.mubr.f32.mxu0 0.0
        %5453 = vmatmul.mubr.f32.gmra.mrb[0].mxu0 %v4493
        %v5454 = vpop.f32.mrb[0].mxu0
        %v5455 = vadd.f32 0.0, %v5454
        %v5456 = vpop.f32.mrb[0].mxu0
        %5457 = vmatprep.mubr.f32.mxu0 0.0
        %5458 = vmatmul.mubr.f32.gmra.mrb[0].mxu0 %v4494
        %v5459 = vpop.f32.mrb[0].mxu0
        %v5460 = vadd.f32 0.0, %v5459
        %v5461 = vpop.f32.mrb[0].mxu0
        %5462 = vmatprep.mubr.f32.mxu0 0.0
        %5463 = vmatmul.mubr.f32.gmra.mrb[0].mxu0 %v4495
        %v5464 = vpop.f32.mrb[0].mxu0
        %v5465 = vadd.f32 0.0, %v5464
        %v5466 = vpop.f32.mrb[0].mxu0
        %5467 = vmatprep.mubr.f32.mxu0 0.0
        %5468 = vmatmul.mubr.f32.gmra.mrb[0].mxu0 %v4496
        %v5469 = vpop.f32.mrb[0].mxu0
        %v5470 = vadd.f32 0.0, %v5469
        %v5471 = vpop.f32.mrb[0].mxu0
        %5472 = vmatprep.mubr.f32.mxu0 0.0
        %5473 = vmatmul.mubr.f32.gmra.mrb[0].mxu0 %v4497
        %v5474 = vpop.f32.mrb[0].mxu0
        %v5475 = vadd.f32 0.0, %v5474
        %v5476 = vpop.f32.mrb[0].mxu0
        %5477 = vmatprep.mubr.f32.mxu0 0.0
        %5478 = vmatmul.mubr.f32.gmra.mrb[0].mxu0 %v4498
        %v5479 = vpop.f32.mrb[0].mxu0
        %v5480 = vadd.f32 0.0, %v5479
        %v5481 = vpop.f32.mrb[0].mxu0
        %5482 = vmatprep.mubr.f32.mxu0 0.0
        %5483 = vmatmul.mubr.f32.gmra.mrb[0].mxu0 %v4499
        %v5484 = vpop.f32.mrb[0].mxu0
        %v5485 = vadd.f32 0.0, %v5484
        %v5486 = vpop.f32.mrb[0].mxu0
        %5487 = vmatprep.mubr.f32.mxu0 0.0
        %5488 = vmatmul.mubr.f32.gmra.mrb[0].mxu0 %v4500
        %v5489 = vpop.f32.mrb[0].mxu0
        %v5490 = vadd.f32 0.0, %v5489
        %v5491 = vpop.f32.mrb[0].mxu0
        %5492 = vdwg.mxu0
        %5493 = vmatprep.subr.mxu0 0.0
        %5494 = vmatpush1.msra.mxu0 %v5355
        %5495 = vmatprep.subr.mxu0 0.0
        %5496 = vmatpush1.msra.mxu0 %v5356
        %5497 = vmatprep.subr.mxu0 0.0
        %5498 = vmatpush1.msra.mxu0 %v5357
        %5499 = vmatprep.subr.mxu0 0.0
        %5500 = vmatpush1.msra.mxu0 %v5358
        %5501 = vmatprep.subr.mxu0 0.0
        %5502 = vmatpush1.msra.mxu0 %v5359
        %5503 = vmatprep.subr.mxu0 0.0
        %5504 = vmatpush1.msra.mxu0 %v5360
        %5505 = vmatprep.subr.mxu0 0.0
        %5506 = vmatpush1.msra.mxu0 %v5361
        %5507 = vmatprep.subr.mxu0 0.0
        %5508 = vmatpush1.msra.mxu0 %v5362
        %5509 = vmatprep.subr.mxu0 0.0
        %5510 = vmatpush1.msra.mxu0 %v5363
        %5511 = vmatprep.subr.mxu0 0.0
        %5512 = vmatpush1.msra.mxu0 %v5364
        %5513 = vmatprep.subr.mxu0 0.0
        %5514 = vmatpush1.msra.mxu0 %v5365
        %5515 = vmatprep.subr.mxu0 0.0
        %5516 = vmatpush1.msra.mxu0 %v5366
        %5517 = vmatprep.subr.mxu0 0.0
        %5518 = vmatpush1.msra.mxu0 %v5367
        %5519 = vmatprep.subr.mxu0 0.0
        %5520 = vmatpush1.msra.mxu0 %v5368
        %5521 = vmatprep.subr.mxu0 0.0
        %5522 = vmatpush1.msra.mxu0 %v5369
        %5523 = vmatprep.subr.mxu0 0.0
        %5524 = vmatpush1.msra.mxu0 %v5370
        %5525 = vmatprep.subr.mxu0 0.0
        %5526 = vmatpush1.msra.mxu0 0.0
        %5527 = vmatprep.subr.mxu0 0.0
        %5528 = vmatpush1.msra.mxu0 0.0
        %5529 = vmatprep.subr.mxu0 0.0
        %5530 = vmatpush1.msra.mxu0 0.0
        %5531 = vmatprep.subr.mxu0 0.0
        %5532 = vmatpush1.msra.mxu0 0.0
        %5533 = vmatprep.subr.mxu0 0.0
        %5534 = vmatpush1.msra.mxu0 0.0
        %5535 = vmatprep.subr.mxu0 0.0
        %5536 = vmatpush1.msra.mxu0 0.0
        %5537 = vmatprep.subr.mxu0 0.0
        %5538 = vmatpush1.msra.mxu0 0.0
        %5539 = vmatprep.subr.mxu0 0.0
        %5540 = vmatpush1.msra.mxu0 0.0
        %5541 = vmatprep.subr.mxu0 0.0
        %5542 = vmatpush1.msra.mxu0 0.0
        %5543 = vmatprep.subr.mxu0 0.0
        %5544 = vmatpush1.msra.mxu0 0.0
        %5545 = vmatprep.subr.mxu0 0.0
        %5546 = vmatpush1.msra.mxu0 0.0
        %5547 = vmatprep.subr.mxu0 0.0
        %5548 = vmatpush1.msra.mxu0 0.0
        %5549 = vmatprep.subr.mxu0 0.0
        %5550 = vmatpush1.msra.mxu0 0.0
        %5551 = vmatprep.subr.mxu0 0.0
        %5552 = vmatpush1.msra.mxu0 0.0
        %5553 = vmatprep.subr.mxu0 0.0
        %5554 = vmatpush1.msra.mxu0 0.0
        %5555 = vmatprep.subr.mxu0 0.0
        %5556 = vmatpush1.msra.mxu0 0.0
        %5557 = vmatprep.mubr.f32.mxu0 0.0
        %5558 = vmatmul.mubr.f32.gmra.mrb[0].mxu0 0.0
        %v5559 = vpop.f32.mrb[0].mxu0
        %v5560 = vadd.f32 %v5455, %v5559
        %v5561 = vpop.f32.mrb[0].mxu0
        %5562 = vmatprep.mubr.f32.mxu0 0.0
        %5563 = vmatmul.mubr.f32.gmra.mrb[0].mxu0 %v4493
        %v5564 = vpop.f32.mrb[0].mxu0
        %v5565 = vadd.f32 %v5460, %v5564
        %v5566 = vpop.f32.mrb[0].mxu0
        %5567 = vmatprep.mubr.f32.mxu0 0.0
        %5568 = vmatmul.mubr.f32.gmra.mrb[0].mxu0 %v4494
        %v5569 = vpop.f32.mrb[0].mxu0
        %v5570 = vadd.f32 %v5465, %v5569
        %v5571 = vpop.f32.mrb[0].mxu0
        %5572 = vmatprep.mubr.f32.mxu0 0.0
        %5573 = vmatmul.mubr.f32.gmra.mrb[0].mxu0 %v4495
        %v5574 = vpop.f32.mrb[0].mxu0
        %v5575 = vadd.f32 %v5470, %v5574
        %v5576 = vpop.f32.mrb[0].mxu0
        %5577 = vmatprep.mubr.f32.mxu0 0.0
        %5578 = vmatmul.mubr.f32.gmra.mrb[0].mxu0 %v4496
        %v5579 = vpop.f32.mrb[0].mxu0
        %v5580 = vadd.f32 %v5475, %v5579
        %v5581 = vpop.f32.mrb[0].mxu0
        %5582 = vmatprep.mubr.f32.mxu0 0.0
        %5583 = vmatmul.mubr.f32.gmra.mrb[0].mxu0 %v4497
        %v5584 = vpop.f32.mrb[0].mxu0
        %v5585 = vadd.f32 %v5480, %v5584
        %v5586 = vpop.f32.mrb[0].mxu0
        %5587 = vmatprep.mubr.f32.mxu0 0.0
        %5588 = vmatmul.mubr.f32.gmra.mrb[0].mxu0 %v4498
        %v5589 = vpop.f32.mrb[0].mxu0
        %v5590 = vadd.f32 %v5485, %v5589
        %v5591 = vpop.f32.mrb[0].mxu0
        %5592 = vmatprep.mubr.f32.mxu0 0.0
        %5593 = vmatmul.mubr.f32.gmra.mrb[0].mxu0 %v4499
        %v5594 = vpop.f32.mrb[0].mxu0
        %v5595 = vadd.f32 %v5490, %v5594
        %v5596 = vpop.f32.mrb[0].mxu0
        %5597 = vdwg.mxu0
        %s5598 = scalar_lea.vmem [#allocation2], 4480
        %v5599 = vld [vmem:[%s5598] sm:$0xff]
        %v5600 = vld [vmem:[%s5598 + $0x8] sm:$0xff]
        %v5601 = vld [vmem:[%s5598 + $0x10] sm:$0xff]
        %v5602 = vld [vmem:[%s5598 + $0x18] sm:$0xff]
        %v5603 = vld [vmem:[%s5598 + $0x20] sm:$0xff]
        %v5604 = vld [vmem:[%s5598 + $0x28] sm:$0xff]
        %v5605 = vld [vmem:[%s5598 + $0x30] sm:$0xff]
        %v5606 = vld [vmem:[%s5598 + $0x38] sm:$0xff]
        %v5607 = vld [vmem:[%s5598 + $0x40] sm:$0xff]
        %v5608 = vld [vmem:[%s5598 + $0x48] sm:$0xff]
        %v5609 = vld [vmem:[%s5598 + $0x50] sm:$0xff]
        %v5610 = vld [vmem:[%s5598 + $0x58] sm:$0xff]
        %v5611 = vld [vmem:[%s5598 + $0x60] sm:$0xff]
        %v5612 = vld [vmem:[%s5598 + $0x68] sm:$0xff]
        %v5613 = vld [vmem:[%s5598 + $0x70] sm:$0xff]
        %v5614 = vld [vmem:[%s5598 + $0x78] sm:$0xff]
        %5615 = vmatprep.subr.mxu0 0.0
        %5616 = vmatpush1.msra.mxu0 %v5599
        %5617 = vmatprep.subr.mxu0 0.0
        %5618 = vmatpush1.msra.mxu0 %v5600
        %5619 = vmatprep.subr.mxu0 0.0
        %5620 = vmatpush1.msra.mxu0 %v5601
        %5621 = vmatprep.subr.mxu0 0.0
        %5622 = vmatpush1.msra.mxu0 %v5602
        %5623 = vmatprep.subr.mxu0 0.0
        %5624 = vmatpush1.msra.mxu0 %v5603
        %5625 = vmatprep.subr.mxu0 0.0
        %5626 = vmatpush1.msra.mxu0 %v5604
        %5627 = vmatprep.subr.mxu0 0.0
        %5628 = vmatpush1.msra.mxu0 %v5605
        %5629 = vmatprep.subr.mxu0 0.0
        %5630 = vmatpush1.msra.mxu0 %v5606
        %5631 = vmatprep.subr.mxu0 0.0
        %5632 = vmatpush1.msra.mxu0 %v5607
        %5633 = vmatprep.subr.mxu0 0.0
        %5634 = vmatpush1.msra.mxu0 %v5608
        %5635 = vmatprep.subr.mxu0 0.0
        %5636 = vmatpush1.msra.mxu0 %v5609
        %5637 = vmatprep.subr.mxu0 0.0
        %5638 = vmatpush1.msra.mxu0 %v5610
        %5639 = vmatprep.subr.mxu0 0.0
        %5640 = vmatpush1.msra.mxu0 %v5611
        %5641 = vmatprep.subr.mxu0 0.0
        %5642 = vmatpush1.msra.mxu0 %v5612
        %5643 = vmatprep.subr.mxu0 0.0
        %5644 = vmatpush1.msra.mxu0 %v5613
        %5645 = vmatprep.subr.mxu0 0.0
        %5646 = vmatpush1.msra.mxu0 %v5614
        %5647 = vmatprep.subr.mxu0 0.0
        %5648 = vmatpush1.msra.mxu0 0.0
        %5649 = vmatprep.subr.mxu0 0.0
        %5650 = vmatpush1.msra.mxu0 0.0
        %5651 = vmatprep.subr.mxu0 0.0
        %5652 = vmatpush1.msra.mxu0 0.0
        %5653 = vmatprep.subr.mxu0 0.0
        %5654 = vmatpush1.msra.mxu0 0.0
        %5655 = vmatprep.subr.mxu0 0.0
        %5656 = vmatpush1.msra.mxu0 0.0
        %5657 = vmatprep.subr.mxu0 0.0
        %5658 = vmatpush1.msra.mxu0 0.0
        %5659 = vmatprep.subr.mxu0 0.0
        %5660 = vmatpush1.msra.mxu0 0.0
        %5661 = vmatprep.subr.mxu0 0.0
        %5662 = vmatpush1.msra.mxu0 0.0
        %5663 = vmatprep.subr.mxu0 0.0
        %5664 = vmatpush1.msra.mxu0 0.0
        %5665 = vmatprep.subr.mxu0 0.0
        %5666 = vmatpush1.msra.mxu0 0.0
        %5667 = vmatprep.subr.mxu0 0.0
        %5668 = vmatpush1.msra.mxu0 0.0
        %5669 = vmatprep.subr.mxu0 0.0
        %5670 = vmatpush1.msra.mxu0 0.0
        %5671 = vmatprep.subr.mxu0 0.0
        %5672 = vmatpush1.msra.mxu0 0.0
        %5673 = vmatprep.subr.mxu0 0.0
        %5674 = vmatpush1.msra.mxu0 0.0
        %5675 = vmatprep.subr.mxu0 0.0
        %5676 = vmatpush1.msra.mxu0 0.0
        %5677 = vmatprep.subr.mxu0 0.0
        %5678 = vmatpush1.msra.mxu0 0.0
        %5679 = vmatprep.mubr.f32.mxu0 0.0
        %5680 = vmatmul.mubr.f32.gmra.mrb[0].mxu0 %v4494
        %v5681 = vpop.f32.mrb[0].mxu0
        %v5682 = vadd.f32 0.0, %v5681
        %v5683 = vpop.f32.mrb[0].mxu0
        %5684 = vmatprep.mubr.f32.mxu0 0.0
        %5685 = vmatmul.mubr.f32.gmra.mrb[0].mxu0 %v4495
        %v5686 = vpop.f32.mrb[0].mxu0
        %v5687 = vadd.f32 0.0, %v5686
        %v5688 = vpop.f32.mrb[0].mxu0
        %5689 = vmatprep.mubr.f32.mxu0 0.0
        %5690 = vmatmul.mubr.f32.gmra.mrb[0].mxu0 %v4496
        %v5691 = vpop.f32.mrb[0].mxu0
        %v5692 = vadd.f32 0.0, %v5691
        %v5693 = vpop.f32.mrb[0].mxu0
        %5694 = vmatprep.mubr.f32.mxu0 0.0
        %5695 = vmatmul.mubr.f32.gmra.mrb[0].mxu0 %v4497
        %v5696 = vpop.f32.mrb[0].mxu0
        %v5697 = vadd.f32 0.0, %v5696
        %v5698 = vpop.f32.mrb[0].mxu0
        %5699 = vmatprep.mubr.f32.mxu0 0.0
        %5700 = vmatmul.mubr.f32.gmra.mrb[0].mxu0 %v4498
        %v5701 = vpop.f32.mrb[0].mxu0
        %v5702 = vadd.f32 0.0, %v5701
        %v5703 = vpop.f32.mrb[0].mxu0
        %5704 = vmatprep.mubr.f32.mxu0 0.0
        %5705 = vmatmul.mubr.f32.gmra.mrb[0].mxu0 %v4499
        %v5706 = vpop.f32.mrb[0].mxu0
        %v5707 = vadd.f32 0.0, %v5706
        %v5708 = vpop.f32.mrb[0].mxu0
        %5709 = vmatprep.mubr.f32.mxu0 0.0
        %5710 = vmatmul.mubr.f32.gmra.mrb[0].mxu0 %v4500
        %v5711 = vpop.f32.mrb[0].mxu0
        %v5712 = vadd.f32 0.0, %v5711
        %v5713 = vpop.f32.mrb[0].mxu0
        %5714 = vmatprep.mubr.f32.mxu0 0.0
        %5715 = vmatmul.mubr.f32.gmra.mrb[0].mxu0 0.0
        %v5716 = vpop.f32.mrb[0].mxu0
        %v5717 = vadd.f32 0.0, %v5716
        %v5718 = vpop.f32.mrb[0].mxu0
        %5719 = vdwg.mxu0
        %v5720 = vadd.f32 %v5560, %v5682
        %v5721 = vadd.f32 %v5565, %v5687
        %v5722 = vadd.f32 %v5570, %v5692
        %v5723 = vadd.f32 %v5575, %v5697
        %v5724 = vadd.f32 %v5580, %v5702
        %v5725 = vadd.f32 %v5585, %v5707
        %v5726 = vadd.f32 %v5590, %v5712
        %v5727 = vadd.f32 %v5595, %v5717
        %5728 = vmatprep.subr.mxu0 0.0
        %5729 = vmatpush1.msra.mxu0 %v5720
        %5730 = vmatprep.subr.mxu0 0.0
        %5731 = vmatpush1.msra.mxu0 %v5721
        %5732 = vmatprep.subr.mxu0 0.0
        %5733 = vmatpush1.msra.mxu0 %v5722
        %5734 = vmatprep.subr.mxu0 0.0
        %5735 = vmatpush1.msra.mxu0 %v5723
        %5736 = vmatprep.subr.mxu0 0.0
        %5737 = vmatpush1.msra.mxu0 %v5724
        %5738 = vmatprep.subr.mxu0 0.0
        %5739 = vmatpush1.msra.mxu0 %v5725
        %5740 = vmatprep.subr.mxu0 0.0
        %5741 = vmatpush1.msra.mxu0 %v5726
        %5742 = vmatprep.subr.mxu0 0.0
        %5743 = vmatpush1.msra.mxu0 %v5727
        %5744 = vmatprep.subr.mxu0 0.0
        %5745 = vmatpush1.msra.mxu0 0.0
        %5746 = vmatprep.subr.mxu0 0.0
        %5747 = vmatpush1.msra.mxu0 0.0
        %5748 = vmatprep.subr.mxu0 0.0
        %5749 = vmatpush1.msra.mxu0 0.0
        %5750 = vmatprep.subr.mxu0 0.0
        %5751 = vmatpush1.msra.mxu0 0.0
        %5752 = vmatprep.subr.mxu0 0.0
        %5753 = vmatpush1.msra.mxu0 0.0
        %5754 = vmatprep.subr.mxu0 0.0
        %5755 = vmatpush1.msra.mxu0 0.0
        %5756 = vmatprep.subr.mxu0 0.0
        %5757 = vmatpush1.msra.mxu0 0.0
        %5758 = vmatprep.subr.mxu0 0.0
        %5759 = vmatpush1.msra.mxu0 0.0
        %5760 = vmatprep.subr.mxu0 0.0
        %5761 = vmatpush1.msra.mxu0 0.0
        %5762 = vmatprep.subr.mxu0 0.0
        %5763 = vmatpush1.msra.mxu0 0.0
        %5764 = vmatprep.subr.mxu0 0.0
        %5765 = vmatpush1.msra.mxu0 0.0
        %5766 = vmatprep.subr.mxu0 0.0
        %5767 = vmatpush1.msra.mxu0 0.0
        %5768 = vmatprep.subr.mxu0 0.0
        %5769 = vmatpush1.msra.mxu0 0.0
        %5770 = vmatprep.subr.mxu0 0.0
        %5771 = vmatpush1.msra.mxu0 0.0
        %5772 = vmatprep.subr.mxu0 0.0
        %5773 = vmatpush1.msra.mxu0 0.0
        %5774 = vmatprep.subr.mxu0 0.0
        %5775 = vmatpush1.msra.mxu0 0.0
        %5776 = vmatprep.subr.mxu0 0.0
        %5777 = vmatpush1.msra.mxu0 0.0
        %5778 = vmatprep.subr.mxu0 0.0
        %5779 = vmatpush1.msra.mxu0 0.0
        %5780 = vmatprep.subr.mxu0 0.0
        %5781 = vmatpush1.msra.mxu0 0.0
        %5782 = vmatprep.subr.mxu0 0.0
        %5783 = vmatpush1.msra.mxu0 0.0
        %5784 = vmatprep.subr.mxu0 0.0
        %5785 = vmatpush1.msra.mxu0 0.0
        %5786 = vmatprep.subr.mxu0 0.0
        %5787 = vmatpush1.msra.mxu0 0.0
        %5788 = vmatprep.subr.mxu0 0.0
        %5789 = vmatpush1.msra.mxu0 0.0
        %5790 = vmatprep.subr.mxu0 0.0
        %5791 = vmatpush1.msra.mxu0 0.0
        %5792 = vmatprep.mubr.f32.mxu0 0.0
        %5793 = vmatmul.mubr.f32.gmra.mrb[0].mxu0 %v1598
        %v5794 = vpop.f32.mrb[0].mxu0
        %v5795 = vadd.f32 0.0, %v5794
        %v5796 = vpop.f32.mrb[0].mxu0
        %5797 = vmatprep.mubr.f32.mxu0 0.0
        %5798 = vmatmul.mubr.f32.gmra.mrb[0].mxu0 %v1601
        %v5799 = vpop.f32.mrb[0].mxu0
        %v5800 = vadd.f32 0.0, %v5799
        %v5801 = vpop.f32.mrb[0].mxu0
        %5802 = vmatprep.mubr.f32.mxu0 0.0
        %5803 = vmatmul.mubr.f32.gmra.mrb[0].mxu0 %v1604
        %v5804 = vpop.f32.mrb[0].mxu0
        %v5805 = vadd.f32 0.0, %v5804
        %v5806 = vpop.f32.mrb[0].mxu0
        %5807 = vmatprep.mubr.f32.mxu0 0.0
        %5808 = vmatmul.mubr.f32.gmra.mrb[0].mxu0 %v1607
        %v5809 = vpop.f32.mrb[0].mxu0
        %v5810 = vadd.f32 0.0, %v5809
        %v5811 = vpop.f32.mrb[0].mxu0
        %5812 = vmatprep.mubr.f32.mxu0 0.0
        %5813 = vmatmul.mubr.f32.gmra.mrb[0].mxu0 %v1610
        %v5814 = vpop.f32.mrb[0].mxu0
        %v5815 = vadd.f32 0.0, %v5814
        %v5816 = vpop.f32.mrb[0].mxu0
        %5817 = vmatprep.mubr.f32.mxu0 0.0
        %5818 = vmatmul.mubr.f32.gmra.mrb[0].mxu0 %v1613
        %v5819 = vpop.f32.mrb[0].mxu0
        %v5820 = vadd.f32 0.0, %v5819
        %v5821 = vpop.f32.mrb[0].mxu0
        %5822 = vmatprep.mubr.f32.mxu0 0.0
        %5823 = vmatmul.mubr.f32.gmra.mrb[0].mxu0 %v1616
        %v5824 = vpop.f32.mrb[0].mxu0
        %v5825 = vadd.f32 0.0, %v5824
        %v5826 = vpop.f32.mrb[0].mxu0
        %5827 = vmatprep.mubr.f32.mxu0 0.0
        %5828 = vmatmul.mubr.f32.gmra.mrb[0].mxu0 %v1619
        %v5829 = vpop.f32.mrb[0].mxu0
        %v5830 = vadd.f32 0.0, %v5829
        %v5831 = vpop.f32.mrb[0].mxu0
        %5832 = vdwg.mxu0
        %v5833 = vadd.f32 %v5316, %v5795
        %v5834 = vadd.f32 %v5321, %v5800
        %v5835 = vadd.f32 %v5326, %v5805
        %v5836 = vadd.f32 %v5331, %v5810
        %v5837 = vadd.f32 %v5336, %v5815
        %v5838 = vadd.f32 %v5341, %v5820
        %v5839 = vadd.f32 %v5346, %v5825
        %v5840 = vadd.f32 %v5351, %v5830
        %s5841 = scalar_lea.vmem [#allocation5], 3
        %v5842 = vld [vmem:[%s5841] sm:$0x1]
        %v5844 = vlaneseq
        %v5845 = vshrl.u32 %v5844, 7
        %v5846 = vsub.s32 0, %v5845
        %v5847 = vrot.slane %v5842, %v5846
        %v5849 = vadd.f32 %v5833, %v5847
        %v5850 = vadd.f32 %v5834, %v5847
        %v5851 = vadd.f32 %v5835, %v5847
        %v5852 = vadd.f32 %v5836, %v5847
        %v5853 = vadd.f32 %v5837, %v5847
        %v5854 = vadd.f32 %v5838, %v5847
        %v5855 = vadd.f32 %v5839, %v5847
        %v5856 = vadd.f32 %v5840, %v5847
        %v5857 = vmax.f32 %v5849, 0.0
        %v5858 = vmax.f32 %v5850, 0.0
        %v5859 = vmax.f32 %v5851, 0.0
        %v5860 = vmax.f32 %v5852, 0.0
        %v5861 = vmax.f32 %v5853, 0.0
        %v5862 = vmax.f32 %v5854, 0.0
        %v5863 = vmax.f32 %v5855, 0.0
        %v5864 = vmax.f32 %v5856, 0.0
        %v5865 = vld [vmem:[#allocation8] sm:$0xff]
        %v5866 = vld [vmem:[#allocation8 + $0x8] sm:$0xff]
        %v5867 = vld [vmem:[#allocation8 + $0x10] sm:$0xff]
        %v5868 = vld [vmem:[#allocation8 + $0x18] sm:$0xff]
        %v5869 = vld [vmem:[#allocation8 + $0x20] sm:$0xff]
        %v5870 = vld [vmem:[#allocation8 + $0x28] sm:$0xff]
        %v5871 = vld [vmem:[#allocation8 + $0x30] sm:$0xff]
        %v5872 = vld [vmem:[#allocation8 + $0x38] sm:$0xff]
        %v5873 = vld [vmem:[#allocation8 + $0x40] sm:$0xff]
        %v5874 = vld [vmem:[#allocation8 + $0x48] sm:$0xff]
        %v5875 = vld [vmem:[#allocation8 + $0x50] sm:$0xff]
        %v5876 = vld [vmem:[#allocation8 + $0x58] sm:$0xff]
        %v5877 = vld [vmem:[#allocation8 + $0x60] sm:$0xff]
        %v5878 = vld [vmem:[#allocation8 + $0x68] sm:$0xff]
        %v5879 = vld [vmem:[#allocation8 + $0x70] sm:$0xff]
        %v5880 = vld [vmem:[#allocation8 + $0x78] sm:$0xff]
        %s5881 = scalar_lea.vmem [#allocation8], 128
        %v5882 = vld [vmem:[%s5881] sm:$0xff]
        %v5883 = vld [vmem:[%s5881 + $0x8] sm:$0xff]
        %v5884 = vld [vmem:[%s5881 + $0x10] sm:$0xff]
        %v5885 = vld [vmem:[%s5881 + $0x18] sm:$0xff]
        %v5886 = vld [vmem:[%s5881 + $0x20] sm:$0xff]
        %v5887 = vld [vmem:[%s5881 + $0x28] sm:$0xff]
        %v5888 = vld [vmem:[%s5881 + $0x30] sm:$0xff]
        %v5889 = vld [vmem:[%s5881 + $0x38] sm:$0xff]
        %v5890 = vld [vmem:[%s5881 + $0x40] sm:$0xff]
        %v5891 = vld [vmem:[%s5881 + $0x48] sm:$0xff]
        %v5892 = vld [vmem:[%s5881 + $0x50] sm:$0xff]
        %v5893 = vld [vmem:[%s5881 + $0x58] sm:$0xff]
        %v5894 = vld [vmem:[%s5881 + $0x60] sm:$0xff]
        %v5895 = vld [vmem:[%s5881 + $0x68] sm:$0xff]
        %v5896 = vld [vmem:[%s5881 + $0x70] sm:$0xff]
        %v5897 = vld [vmem:[%s5881 + $0x78] sm:$0xff]
        %5898 = vmatprep.subr.mxu0 0.0
        %5899 = vmatpush1.msra.mxu0 %v5882
        %5900 = vmatprep.subr.mxu0 0.0
        %5901 = vmatpush1.msra.mxu0 %v5883
        %5902 = vmatprep.subr.mxu0 0.0
        %5903 = vmatpush1.msra.mxu0 %v5884
        %5904 = vmatprep.subr.mxu0 0.0
        %5905 = vmatpush1.msra.mxu0 %v5885
        %5906 = vmatprep.subr.mxu0 0.0
        %5907 = vmatpush1.msra.mxu0 %v5886
        %5908 = vmatprep.subr.mxu0 0.0
        %5909 = vmatpush1.msra.mxu0 %v5887
        %5910 = vmatprep.subr.mxu0 0.0
        %5911 = vmatpush1.msra.mxu0 %v5888
        %5912 = vmatprep.subr.mxu0 0.0
        %5913 = vmatpush1.msra.mxu0 %v5889
        %5914 = vmatprep.subr.mxu0 0.0
        %5915 = vmatpush1.msra.mxu0 %v5890
        %5916 = vmatprep.subr.mxu0 0.0
        %5917 = vmatpush1.msra.mxu0 %v5891
        %5918 = vmatprep.subr.mxu0 0.0
        %5919 = vmatpush1.msra.mxu0 %v5892
        %5920 = vmatprep.subr.mxu0 0.0
        %5921 = vmatpush1.msra.mxu0 %v5893
        %5922 = vmatprep.subr.mxu0 0.0
        %5923 = vmatpush1.msra.mxu0 %v5894
        %5924 = vmatprep.subr.mxu0 0.0
        %5925 = vmatpush1.msra.mxu0 %v5895
        %5926 = vmatprep.subr.mxu0 0.0
        %5927 = vmatpush1.msra.mxu0 %v5896
        %5928 = vmatprep.subr.mxu0 0.0
        %5929 = vmatpush1.msra.mxu0 %v5897
        %5930 = vmatprep.subr.mxu0 0.0
        %5931 = vmatpush1.msra.mxu0 0.0
        %5932 = vmatprep.subr.mxu0 0.0
        %5933 = vmatpush1.msra.mxu0 0.0
        %5934 = vmatprep.subr.mxu0 0.0
        %5935 = vmatpush1.msra.mxu0 0.0
        %5936 = vmatprep.subr.mxu0 0.0
        %5937 = vmatpush1.msra.mxu0 0.0
        %5938 = vmatprep.subr.mxu0 0.0
        %5939 = vmatpush1.msra.mxu0 0.0
        %5940 = vmatprep.subr.mxu0 0.0
        %5941 = vmatpush1.msra.mxu0 0.0
        %5942 = vmatprep.subr.mxu0 0.0
        %5943 = vmatpush1.msra.mxu0 0.0
        %5944 = vmatprep.subr.mxu0 0.0
        %5945 = vmatpush1.msra.mxu0 0.0
        %5946 = vmatprep.subr.mxu0 0.0
        %5947 = vmatpush1.msra.mxu0 0.0
        %5948 = vmatprep.subr.mxu0 0.0
        %5949 = vmatpush1.msra.mxu0 0.0
        %5950 = vmatprep.subr.mxu0 0.0
        %5951 = vmatpush1.msra.mxu0 0.0
        %5952 = vmatprep.subr.mxu0 0.0
        %5953 = vmatpush1.msra.mxu0 0.0
        %5954 = vmatprep.subr.mxu0 0.0
        %5955 = vmatpush1.msra.mxu0 0.0
        %5956 = vmatprep.subr.mxu0 0.0
        %5957 = vmatpush1.msra.mxu0 0.0
        %5958 = vmatprep.subr.mxu0 0.0
        %5959 = vmatpush1.msra.mxu0 0.0
        %5960 = vmatprep.subr.mxu0 0.0
        %5961 = vmatpush1.msra.mxu0 0.0
        %5962 = vmatprep.mubr.f32.mxu0 0.0
        %5963 = vmatmul.mubr.f32.gmra.mrb[0].mxu0 %v5858
        %v5964 = vpop.f32.mrb[0].mxu0
        %v5965 = vadd.f32 0.0, %v5964
        %v5966 = vpop.f32.mrb[0].mxu0
        %5967 = vdwg.mxu0
        %5968 = vmatprep.subr.mxu0 0.0
        %5969 = vmatpush1.msra.mxu0 %v5865
        %5970 = vmatprep.subr.mxu0 0.0
        %5971 = vmatpush1.msra.mxu0 %v5866
        %5972 = vmatprep.subr.mxu0 0.0
        %5973 = vmatpush1.msra.mxu0 %v5867
        %5974 = vmatprep.subr.mxu0 0.0
        %5975 = vmatpush1.msra.mxu0 %v5868
        %5976 = vmatprep.subr.mxu0 0.0
        %5977 = vmatpush1.msra.mxu0 %v5869
        %5978 = vmatprep.subr.mxu0 0.0
        %5979 = vmatpush1.msra.mxu0 %v5870
        %5980 = vmatprep.subr.mxu0 0.0
        %5981 = vmatpush1.msra.mxu0 %v5871
        %5982 = vmatprep.subr.mxu0 0.0
        %5983 = vmatpush1.msra.mxu0 %v5872
        %5984 = vmatprep.subr.mxu0 0.0
        %5985 = vmatpush1.msra.mxu0 %v5873
        %5986 = vmatprep.subr.mxu0 0.0
        %5987 = vmatpush1.msra.mxu0 %v5874
        %5988 = vmatprep.subr.mxu0 0.0
        %5989 = vmatpush1.msra.mxu0 %v5875
        %5990 = vmatprep.subr.mxu0 0.0
        %5991 = vmatpush1.msra.mxu0 %v5876
        %5992 = vmatprep.subr.mxu0 0.0
        %5993 = vmatpush1.msra.mxu0 %v5877
        %5994 = vmatprep.subr.mxu0 0.0
        %5995 = vmatpush1.msra.mxu0 %v5878
        %5996 = vmatprep.subr.mxu0 0.0
        %5997 = vmatpush1.msra.mxu0 %v5879
        %5998 = vmatprep.subr.mxu0 0.0
        %5999 = vmatpush1.msra.mxu0 %v5880
        %6000 = vmatprep.subr.mxu0 0.0
        %6001 = vmatpush1.msra.mxu0 0.0
        %6002 = vmatprep.subr.mxu0 0.0
        %6003 = vmatpush1.msra.mxu0 0.0
        %6004 = vmatprep.subr.mxu0 0.0
        %6005 = vmatpush1.msra.mxu0 0.0
        %6006 = vmatprep.subr.mxu0 0.0
        %6007 = vmatpush1.msra.mxu0 0.0
        %6008 = vmatprep.subr.mxu0 0.0
        %6009 = vmatpush1.msra.mxu0 0.0
        %6010 = vmatprep.subr.mxu0 0.0
        %6011 = vmatpush1.msra.mxu0 0.0
        %6012 = vmatprep.subr.mxu0 0.0
        %6013 = vmatpush1.msra.mxu0 0.0
        %6014 = vmatprep.subr.mxu0 0.0
        %6015 = vmatpush1.msra.mxu0 0.0
        %6016 = vmatprep.subr.mxu0 0.0
        %6017 = vmatpush1.msra.mxu0 0.0
        %6018 = vmatprep.subr.mxu0 0.0
        %6019 = vmatpush1.msra.mxu0 0.0
        %6020 = vmatprep.subr.mxu0 0.0
        %6021 = vmatpush1.msra.mxu0 0.0
        %6022 = vmatprep.subr.mxu0 0.0
        %6023 = vmatpush1.msra.mxu0 0.0
        %6024 = vmatprep.subr.mxu0 0.0
        %6025 = vmatpush1.msra.mxu0 0.0
        %6026 = vmatprep.subr.mxu0 0.0
        %6027 = vmatpush1.msra.mxu0 0.0
        %6028 = vmatprep.subr.mxu0 0.0
        %6029 = vmatpush1.msra.mxu0 0.0
        %6030 = vmatprep.subr.mxu0 0.0
        %6031 = vmatpush1.msra.mxu0 0.0
        %6032 = vmatprep.mubr.f32.mxu0 0.0
        %6033 = vmatmul.mubr.f32.gmra.mrb[0].mxu0 %v5857
        %v6034 = vpop.f32.mrb[0].mxu0
        %v6035 = vadd.f32 %v5965, %v6034
        %v6036 = vpop.f32.mrb[0].mxu0
        %6037 = vdwg.mxu0
        %s6038 = scalar_lea.vmem [#allocation8], 256
        %v6039 = vld [vmem:[%s6038] sm:$0xff]
        %v6040 = vld [vmem:[%s6038 + $0x8] sm:$0xff]
        %v6041 = vld [vmem:[%s6038 + $0x10] sm:$0xff]
        %v6042 = vld [vmem:[%s6038 + $0x18] sm:$0xff]
        %v6043 = vld [vmem:[%s6038 + $0x20] sm:$0xff]
        %v6044 = vld [vmem:[%s6038 + $0x28] sm:$0xff]
        %v6045 = vld [vmem:[%s6038 + $0x30] sm:$0xff]
        %v6046 = vld [vmem:[%s6038 + $0x38] sm:$0xff]
        %v6047 = vld [vmem:[%s6038 + $0x40] sm:$0xff]
        %v6048 = vld [vmem:[%s6038 + $0x48] sm:$0xff]
        %v6049 = vld [vmem:[%s6038 + $0x50] sm:$0xff]
        %v6050 = vld [vmem:[%s6038 + $0x58] sm:$0xff]
        %v6051 = vld [vmem:[%s6038 + $0x60] sm:$0xff]
        %v6052 = vld [vmem:[%s6038 + $0x68] sm:$0xff]
        %v6053 = vld [vmem:[%s6038 + $0x70] sm:$0xff]
        %v6054 = vld [vmem:[%s6038 + $0x78] sm:$0xff]
        %6055 = vmatprep.subr.mxu0 0.0
        %6056 = vmatpush1.msra.mxu0 %v6039
        %6057 = vmatprep.subr.mxu0 0.0
        %6058 = vmatpush1.msra.mxu0 %v6040
        %6059 = vmatprep.subr.mxu0 0.0
        %6060 = vmatpush1.msra.mxu0 %v6041
        %6061 = vmatprep.subr.mxu0 0.0
        %6062 = vmatpush1.msra.mxu0 %v6042
        %6063 = vmatprep.subr.mxu0 0.0
        %6064 = vmatpush1.msra.mxu0 %v6043
        %6065 = vmatprep.subr.mxu0 0.0
        %6066 = vmatpush1.msra.mxu0 %v6044
        %6067 = vmatprep.subr.mxu0 0.0
        %6068 = vmatpush1.msra.mxu0 %v6045
        %6069 = vmatprep.subr.mxu0 0.0
        %6070 = vmatpush1.msra.mxu0 %v6046
        %6071 = vmatprep.subr.mxu0 0.0
        %6072 = vmatpush1.msra.mxu0 %v6047
        %6073 = vmatprep.subr.mxu0 0.0
        %6074 = vmatpush1.msra.mxu0 %v6048
        %6075 = vmatprep.subr.mxu0 0.0
        %6076 = vmatpush1.msra.mxu0 %v6049
        %6077 = vmatprep.subr.mxu0 0.0
        %6078 = vmatpush1.msra.mxu0 %v6050
        %6079 = vmatprep.subr.mxu0 0.0
        %6080 = vmatpush1.msra.mxu0 %v6051
        %6081 = vmatprep.subr.mxu0 0.0
        %6082 = vmatpush1.msra.mxu0 %v6052
        %6083 = vmatprep.subr.mxu0 0.0
        %6084 = vmatpush1.msra.mxu0 %v6053
        %6085 = vmatprep.subr.mxu0 0.0
        %6086 = vmatpush1.msra.mxu0 %v6054
        %6087 = vmatprep.subr.mxu0 0.0
        %6088 = vmatpush1.msra.mxu0 0.0
        %6089 = vmatprep.subr.mxu0 0.0
        %6090 = vmatpush1.msra.mxu0 0.0
        %6091 = vmatprep.subr.mxu0 0.0
        %6092 = vmatpush1.msra.mxu0 0.0
        %6093 = vmatprep.subr.mxu0 0.0
        %6094 = vmatpush1.msra.mxu0 0.0
        %6095 = vmatprep.subr.mxu0 0.0
        %6096 = vmatpush1.msra.mxu0 0.0
        %6097 = vmatprep.subr.mxu0 0.0
        %6098 = vmatpush1.msra.mxu0 0.0
        %6099 = vmatprep.subr.mxu0 0.0
        %6100 = vmatpush1.msra.mxu0 0.0
        %6101 = vmatprep.subr.mxu0 0.0
        %6102 = vmatpush1.msra.mxu0 0.0
        %6103 = vmatprep.subr.mxu0 0.0
        %6104 = vmatpush1.msra.mxu0 0.0
        %6105 = vmatprep.subr.mxu0 0.0
        %6106 = vmatpush1.msra.mxu0 0.0
        %6107 = vmatprep.subr.mxu0 0.0
        %6108 = vmatpush1.msra.mxu0 0.0
        %6109 = vmatprep.subr.mxu0 0.0
        %6110 = vmatpush1.msra.mxu0 0.0
        %6111 = vmatprep.subr.mxu0 0.0
        %6112 = vmatpush1.msra.mxu0 0.0
        %6113 = vmatprep.subr.mxu0 0.0
        %6114 = vmatpush1.msra.mxu0 0.0
        %6115 = vmatprep.subr.mxu0 0.0
        %6116 = vmatpush1.msra.mxu0 0.0
        %6117 = vmatprep.subr.mxu0 0.0
        %6118 = vmatpush1.msra.mxu0 0.0
        %6119 = vmatprep.mubr.f32.mxu0 0.0
        %6120 = vmatmul.mubr.f32.gmra.mrb[0].mxu0 %v5859
        %v6121 = vpop.f32.mrb[0].mxu0
        %v6122 = vadd.f32 0.0, %v6121
        %v6123 = vpop.f32.mrb[0].mxu0
        %6124 = vdwg.mxu0
        %v6125 = vadd.f32 %v6035, %v6122
        %s6126 = scalar_lea.vmem [#allocation8], 384
        %v6127 = vld [vmem:[%s6126] sm:$0xff]
        %v6128 = vld [vmem:[%s6126 + $0x8] sm:$0xff]
        %v6129 = vld [vmem:[%s6126 + $0x10] sm:$0xff]
        %v6130 = vld [vmem:[%s6126 + $0x18] sm:$0xff]
        %v6131 = vld [vmem:[%s6126 + $0x20] sm:$0xff]
        %v6132 = vld [vmem:[%s6126 + $0x28] sm:$0xff]
        %v6133 = vld [vmem:[%s6126 + $0x30] sm:$0xff]
        %v6134 = vld [vmem:[%s6126 + $0x38] sm:$0xff]
        %v6135 = vld [vmem:[%s6126 + $0x40] sm:$0xff]
        %v6136 = vld [vmem:[%s6126 + $0x48] sm:$0xff]
        %v6137 = vld [vmem:[%s6126 + $0x50] sm:$0xff]
        %v6138 = vld [vmem:[%s6126 + $0x58] sm:$0xff]
        %v6139 = vld [vmem:[%s6126 + $0x60] sm:$0xff]
        %v6140 = vld [vmem:[%s6126 + $0x68] sm:$0xff]
        %v6141 = vld [vmem:[%s6126 + $0x70] sm:$0xff]
        %v6142 = vld [vmem:[%s6126 + $0x78] sm:$0xff]
        %6143 = vmatprep.subr.mxu0 0.0
        %6144 = vmatpush1.msra.mxu0 %v6127
        %6145 = vmatprep.subr.mxu0 0.0
        %6146 = vmatpush1.msra.mxu0 %v6128
        %6147 = vmatprep.subr.mxu0 0.0
        %6148 = vmatpush1.msra.mxu0 %v6129
        %6149 = vmatprep.subr.mxu0 0.0
        %6150 = vmatpush1.msra.mxu0 %v6130
        %6151 = vmatprep.subr.mxu0 0.0
        %6152 = vmatpush1.msra.mxu0 %v6131
        %6153 = vmatprep.subr.mxu0 0.0
        %6154 = vmatpush1.msra.mxu0 %v6132
        %6155 = vmatprep.subr.mxu0 0.0
        %6156 = vmatpush1.msra.mxu0 %v6133
        %6157 = vmatprep.subr.mxu0 0.0
        %6158 = vmatpush1.msra.mxu0 %v6134
        %6159 = vmatprep.subr.mxu0 0.0
        %6160 = vmatpush1.msra.mxu0 %v6135
        %6161 = vmatprep.subr.mxu0 0.0
        %6162 = vmatpush1.msra.mxu0 %v6136
        %6163 = vmatprep.subr.mxu0 0.0
        %6164 = vmatpush1.msra.mxu0 %v6137
        %6165 = vmatprep.subr.mxu0 0.0
        %6166 = vmatpush1.msra.mxu0 %v6138
        %6167 = vmatprep.subr.mxu0 0.0
        %6168 = vmatpush1.msra.mxu0 %v6139
        %6169 = vmatprep.subr.mxu0 0.0
        %6170 = vmatpush1.msra.mxu0 %v6140
        %6171 = vmatprep.subr.mxu0 0.0
        %6172 = vmatpush1.msra.mxu0 %v6141
        %6173 = vmatprep.subr.mxu0 0.0
        %6174 = vmatpush1.msra.mxu0 %v6142
        %6175 = vmatprep.subr.mxu0 0.0
        %6176 = vmatpush1.msra.mxu0 0.0
        %6177 = vmatprep.subr.mxu0 0.0
        %6178 = vmatpush1.msra.mxu0 0.0
        %6179 = vmatprep.subr.mxu0 0.0
        %6180 = vmatpush1.msra.mxu0 0.0
        %6181 = vmatprep.subr.mxu0 0.0
        %6182 = vmatpush1.msra.mxu0 0.0
        %6183 = vmatprep.subr.mxu0 0.0
        %6184 = vmatpush1.msra.mxu0 0.0
        %6185 = vmatprep.subr.mxu0 0.0
        %6186 = vmatpush1.msra.mxu0 0.0
        %6187 = vmatprep.subr.mxu0 0.0
        %6188 = vmatpush1.msra.mxu0 0.0
        %6189 = vmatprep.subr.mxu0 0.0
        %6190 = vmatpush1.msra.mxu0 0.0
        %6191 = vmatprep.subr.mxu0 0.0
        %6192 = vmatpush1.msra.mxu0 0.0
        %6193 = vmatprep.subr.mxu0 0.0
        %6194 = vmatpush1.msra.mxu0 0.0
        %6195 = vmatprep.subr.mxu0 0.0
        %6196 = vmatpush1.msra.mxu0 0.0
        %6197 = vmatprep.subr.mxu0 0.0
        %6198 = vmatpush1.msra.mxu0 0.0
        %6199 = vmatprep.subr.mxu0 0.0
        %6200 = vmatpush1.msra.mxu0 0.0
        %6201 = vmatprep.subr.mxu0 0.0
        %6202 = vmatpush1.msra.mxu0 0.0
        %6203 = vmatprep.subr.mxu0 0.0
        %6204 = vmatpush1.msra.mxu0 0.0
        %6205 = vmatprep.subr.mxu0 0.0
        %6206 = vmatpush1.msra.mxu0 0.0
        %6207 = vmatprep.mubr.f32.mxu0 0.0
        %6208 = vmatmul.mubr.f32.gmra.mrb[0].mxu0 %v5860
        %v6209 = vpop.f32.mrb[0].mxu0
        %v6210 = vadd.f32 0.0, %v6209
        %v6211 = vpop.f32.mrb[0].mxu0
        %6212 = vdwg.mxu0
        %v6213 = vadd.f32 %v6125, %v6210
        %s6214 = scalar_lea.vmem [#allocation8], 512
        %v6215 = vld [vmem:[%s6214] sm:$0xff]
        %v6216 = vld [vmem:[%s6214 + $0x8] sm:$0xff]
        %v6217 = vld [vmem:[%s6214 + $0x10] sm:$0xff]
        %v6218 = vld [vmem:[%s6214 + $0x18] sm:$0xff]
        %v6219 = vld [vmem:[%s6214 + $0x20] sm:$0xff]
        %v6220 = vld [vmem:[%s6214 + $0x28] sm:$0xff]
        %v6221 = vld [vmem:[%s6214 + $0x30] sm:$0xff]
        %v6222 = vld [vmem:[%s6214 + $0x38] sm:$0xff]
        %v6223 = vld [vmem:[%s6214 + $0x40] sm:$0xff]
        %v6224 = vld [vmem:[%s6214 + $0x48] sm:$0xff]
        %v6225 = vld [vmem:[%s6214 + $0x50] sm:$0xff]
        %v6226 = vld [vmem:[%s6214 + $0x58] sm:$0xff]
        %v6227 = vld [vmem:[%s6214 + $0x60] sm:$0xff]
        %v6228 = vld [vmem:[%s6214 + $0x68] sm:$0xff]
        %v6229 = vld [vmem:[%s6214 + $0x70] sm:$0xff]
        %v6230 = vld [vmem:[%s6214 + $0x78] sm:$0xff]
        %6231 = vmatprep.subr.mxu0 0.0
        %6232 = vmatpush1.msra.mxu0 %v6215
        %6233 = vmatprep.subr.mxu0 0.0
        %6234 = vmatpush1.msra.mxu0 %v6216
        %6235 = vmatprep.subr.mxu0 0.0
        %6236 = vmatpush1.msra.mxu0 %v6217
        %6237 = vmatprep.subr.mxu0 0.0
        %6238 = vmatpush1.msra.mxu0 %v6218
        %6239 = vmatprep.subr.mxu0 0.0
        %6240 = vmatpush1.msra.mxu0 %v6219
        %6241 = vmatprep.subr.mxu0 0.0
        %6242 = vmatpush1.msra.mxu0 %v6220
        %6243 = vmatprep.subr.mxu0 0.0
        %6244 = vmatpush1.msra.mxu0 %v6221
        %6245 = vmatprep.subr.mxu0 0.0
        %6246 = vmatpush1.msra.mxu0 %v6222
        %6247 = vmatprep.subr.mxu0 0.0
        %6248 = vmatpush1.msra.mxu0 %v6223
        %6249 = vmatprep.subr.mxu0 0.0
        %6250 = vmatpush1.msra.mxu0 %v6224
        %6251 = vmatprep.subr.mxu0 0.0
        %6252 = vmatpush1.msra.mxu0 %v6225
        %6253 = vmatprep.subr.mxu0 0.0
        %6254 = vmatpush1.msra.mxu0 %v6226
        %6255 = vmatprep.subr.mxu0 0.0
        %6256 = vmatpush1.msra.mxu0 %v6227
        %6257 = vmatprep.subr.mxu0 0.0
        %6258 = vmatpush1.msra.mxu0 %v6228
        %6259 = vmatprep.subr.mxu0 0.0
        %6260 = vmatpush1.msra.mxu0 %v6229
        %6261 = vmatprep.subr.mxu0 0.0
        %6262 = vmatpush1.msra.mxu0 %v6230
        %6263 = vmatprep.subr.mxu0 0.0
        %6264 = vmatpush1.msra.mxu0 0.0
        %6265 = vmatprep.subr.mxu0 0.0
        %6266 = vmatpush1.msra.mxu0 0.0
        %6267 = vmatprep.subr.mxu0 0.0
        %6268 = vmatpush1.msra.mxu0 0.0
        %6269 = vmatprep.subr.mxu0 0.0
        %6270 = vmatpush1.msra.mxu0 0.0
        %6271 = vmatprep.subr.mxu0 0.0
        %6272 = vmatpush1.msra.mxu0 0.0
        %6273 = vmatprep.subr.mxu0 0.0
        %6274 = vmatpush1.msra.mxu0 0.0
        %6275 = vmatprep.subr.mxu0 0.0
        %6276 = vmatpush1.msra.mxu0 0.0
        %6277 = vmatprep.subr.mxu0 0.0
        %6278 = vmatpush1.msra.mxu0 0.0
        %6279 = vmatprep.subr.mxu0 0.0
        %6280 = vmatpush1.msra.mxu0 0.0
        %6281 = vmatprep.subr.mxu0 0.0
        %6282 = vmatpush1.msra.mxu0 0.0
        %6283 = vmatprep.subr.mxu0 0.0
        %6284 = vmatpush1.msra.mxu0 0.0
        %6285 = vmatprep.subr.mxu0 0.0
        %6286 = vmatpush1.msra.mxu0 0.0
        %6287 = vmatprep.subr.mxu0 0.0
        %6288 = vmatpush1.msra.mxu0 0.0
        %6289 = vmatprep.subr.mxu0 0.0
        %6290 = vmatpush1.msra.mxu0 0.0
        %6291 = vmatprep.subr.mxu0 0.0
        %6292 = vmatpush1.msra.mxu0 0.0
        %6293 = vmatprep.subr.mxu0 0.0
        %6294 = vmatpush1.msra.mxu0 0.0
        %6295 = vmatprep.mubr.f32.mxu0 0.0
        %6296 = vmatmul.mubr.f32.gmra.mrb[0].mxu0 %v5861
        %v6297 = vpop.f32.mrb[0].mxu0
        %v6298 = vadd.f32 0.0, %v6297
        %v6299 = vpop.f32.mrb[0].mxu0
        %6300 = vdwg.mxu0
        %v6301 = vadd.f32 %v6213, %v6298
        %s6302 = scalar_lea.vmem [#allocation8], 640
        %v6303 = vld [vmem:[%s6302] sm:$0xff]
        %v6304 = vld [vmem:[%s6302 + $0x8] sm:$0xff]
        %v6305 = vld [vmem:[%s6302 + $0x10] sm:$0xff]
        %v6306 = vld [vmem:[%s6302 + $0x18] sm:$0xff]
        %v6307 = vld [vmem:[%s6302 + $0x20] sm:$0xff]
        %v6308 = vld [vmem:[%s6302 + $0x28] sm:$0xff]
        %v6309 = vld [vmem:[%s6302 + $0x30] sm:$0xff]
        %v6310 = vld [vmem:[%s6302 + $0x38] sm:$0xff]
        %v6311 = vld [vmem:[%s6302 + $0x40] sm:$0xff]
        %v6312 = vld [vmem:[%s6302 + $0x48] sm:$0xff]
        %v6313 = vld [vmem:[%s6302 + $0x50] sm:$0xff]
        %v6314 = vld [vmem:[%s6302 + $0x58] sm:$0xff]
        %v6315 = vld [vmem:[%s6302 + $0x60] sm:$0xff]
        %v6316 = vld [vmem:[%s6302 + $0x68] sm:$0xff]
        %v6317 = vld [vmem:[%s6302 + $0x70] sm:$0xff]
        %v6318 = vld [vmem:[%s6302 + $0x78] sm:$0xff]
        %6319 = vmatprep.subr.mxu0 0.0
        %6320 = vmatpush1.msra.mxu0 %v6303
        %6321 = vmatprep.subr.mxu0 0.0
        %6322 = vmatpush1.msra.mxu0 %v6304
        %6323 = vmatprep.subr.mxu0 0.0
        %6324 = vmatpush1.msra.mxu0 %v6305
        %6325 = vmatprep.subr.mxu0 0.0
        %6326 = vmatpush1.msra.mxu0 %v6306
        %6327 = vmatprep.subr.mxu0 0.0
        %6328 = vmatpush1.msra.mxu0 %v6307
        %6329 = vmatprep.subr.mxu0 0.0
        %6330 = vmatpush1.msra.mxu0 %v6308
        %6331 = vmatprep.subr.mxu0 0.0
        %6332 = vmatpush1.msra.mxu0 %v6309
        %6333 = vmatprep.subr.mxu0 0.0
        %6334 = vmatpush1.msra.mxu0 %v6310
        %6335 = vmatprep.subr.mxu0 0.0
        %6336 = vmatpush1.msra.mxu0 %v6311
        %6337 = vmatprep.subr.mxu0 0.0
        %6338 = vmatpush1.msra.mxu0 %v6312
        %6339 = vmatprep.subr.mxu0 0.0
        %6340 = vmatpush1.msra.mxu0 %v6313
        %6341 = vmatprep.subr.mxu0 0.0
        %6342 = vmatpush1.msra.mxu0 %v6314
        %6343 = vmatprep.subr.mxu0 0.0
        %6344 = vmatpush1.msra.mxu0 %v6315
        %6345 = vmatprep.subr.mxu0 0.0
        %6346 = vmatpush1.msra.mxu0 %v6316
        %6347 = vmatprep.subr.mxu0 0.0
        %6348 = vmatpush1.msra.mxu0 %v6317
        %6349 = vmatprep.subr.mxu0 0.0
        %6350 = vmatpush1.msra.mxu0 %v6318
        %6351 = vmatprep.subr.mxu0 0.0
        %6352 = vmatpush1.msra.mxu0 0.0
        %6353 = vmatprep.subr.mxu0 0.0
        %6354 = vmatpush1.msra.mxu0 0.0
        %6355 = vmatprep.subr.mxu0 0.0
        %6356 = vmatpush1.msra.mxu0 0.0
        %6357 = vmatprep.subr.mxu0 0.0
        %6358 = vmatpush1.msra.mxu0 0.0
        %6359 = vmatprep.subr.mxu0 0.0
        %6360 = vmatpush1.msra.mxu0 0.0
        %6361 = vmatprep.subr.mxu0 0.0
        %6362 = vmatpush1.msra.mxu0 0.0
        %6363 = vmatprep.subr.mxu0 0.0
        %6364 = vmatpush1.msra.mxu0 0.0
        %6365 = vmatprep.subr.mxu0 0.0
        %6366 = vmatpush1.msra.mxu0 0.0
        %6367 = vmatprep.subr.mxu0 0.0
        %6368 = vmatpush1.msra.mxu0 0.0
        %6369 = vmatprep.subr.mxu0 0.0
        %6370 = vmatpush1.msra.mxu0 0.0
        %6371 = vmatprep.subr.mxu0 0.0
        %6372 = vmatpush1.msra.mxu0 0.0
        %6373 = vmatprep.subr.mxu0 0.0
        %6374 = vmatpush1.msra.mxu0 0.0
        %6375 = vmatprep.subr.mxu0 0.0
        %6376 = vmatpush1.msra.mxu0 0.0
        %6377 = vmatprep.subr.mxu0 0.0
        %6378 = vmatpush1.msra.mxu0 0.0
        %6379 = vmatprep.subr.mxu0 0.0
        %6380 = vmatpush1.msra.mxu0 0.0
        %6381 = vmatprep.subr.mxu0 0.0
        %6382 = vmatpush1.msra.mxu0 0.0
        %6383 = vmatprep.mubr.f32.mxu0 0.0
        %6384 = vmatmul.mubr.f32.gmra.mrb[0].mxu0 %v5862
        %v6385 = vpop.f32.mrb[0].mxu0
        %v6386 = vadd.f32 0.0, %v6385
        %v6387 = vpop.f32.mrb[0].mxu0
        %6388 = vdwg.mxu0
        %v6389 = vadd.f32 %v6301, %v6386
        %s6390 = scalar_lea.vmem [#allocation8], 768
        %v6391 = vld [vmem:[%s6390] sm:$0xff]
        %v6392 = vld [vmem:[%s6390 + $0x8] sm:$0xff]
        %v6393 = vld [vmem:[%s6390 + $0x10] sm:$0xff]
        %v6394 = vld [vmem:[%s6390 + $0x18] sm:$0xff]
        %v6395 = vld [vmem:[%s6390 + $0x20] sm:$0xff]
        %v6396 = vld [vmem:[%s6390 + $0x28] sm:$0xff]
        %v6397 = vld [vmem:[%s6390 + $0x30] sm:$0xff]
        %v6398 = vld [vmem:[%s6390 + $0x38] sm:$0xff]
        %v6399 = vld [vmem:[%s6390 + $0x40] sm:$0xff]
        %v6400 = vld [vmem:[%s6390 + $0x48] sm:$0xff]
        %v6401 = vld [vmem:[%s6390 + $0x50] sm:$0xff]
        %v6402 = vld [vmem:[%s6390 + $0x58] sm:$0xff]
        %v6403 = vld [vmem:[%s6390 + $0x60] sm:$0xff]
        %v6404 = vld [vmem:[%s6390 + $0x68] sm:$0xff]
        %v6405 = vld [vmem:[%s6390 + $0x70] sm:$0xff]
        %v6406 = vld [vmem:[%s6390 + $0x78] sm:$0xff]
        %6407 = vmatprep.subr.mxu0 0.0
        %6408 = vmatpush1.msra.mxu0 %v6391
        %6409 = vmatprep.subr.mxu0 0.0
        %6410 = vmatpush1.msra.mxu0 %v6392
        %6411 = vmatprep.subr.mxu0 0.0
        %6412 = vmatpush1.msra.mxu0 %v6393
        %6413 = vmatprep.subr.mxu0 0.0
        %6414 = vmatpush1.msra.mxu0 %v6394
        %6415 = vmatprep.subr.mxu0 0.0
        %6416 = vmatpush1.msra.mxu0 %v6395
        %6417 = vmatprep.subr.mxu0 0.0
        %6418 = vmatpush1.msra.mxu0 %v6396
        %6419 = vmatprep.subr.mxu0 0.0
        %6420 = vmatpush1.msra.mxu0 %v6397
        %6421 = vmatprep.subr.mxu0 0.0
        %6422 = vmatpush1.msra.mxu0 %v6398
        %6423 = vmatprep.subr.mxu0 0.0
        %6424 = vmatpush1.msra.mxu0 %v6399
        %6425 = vmatprep.subr.mxu0 0.0
        %6426 = vmatpush1.msra.mxu0 %v6400
        %6427 = vmatprep.subr.mxu0 0.0
        %6428 = vmatpush1.msra.mxu0 %v6401
        %6429 = vmatprep.subr.mxu0 0.0
        %6430 = vmatpush1.msra.mxu0 %v6402
        %6431 = vmatprep.subr.mxu0 0.0
        %6432 = vmatpush1.msra.mxu0 %v6403
        %6433 = vmatprep.subr.mxu0 0.0
        %6434 = vmatpush1.msra.mxu0 %v6404
        %6435 = vmatprep.subr.mxu0 0.0
        %6436 = vmatpush1.msra.mxu0 %v6405
        %6437 = vmatprep.subr.mxu0 0.0
        %6438 = vmatpush1.msra.mxu0 %v6406
        %6439 = vmatprep.subr.mxu0 0.0
        %6440 = vmatpush1.msra.mxu0 0.0
        %6441 = vmatprep.subr.mxu0 0.0
        %6442 = vmatpush1.msra.mxu0 0.0
        %6443 = vmatprep.subr.mxu0 0.0
        %6444 = vmatpush1.msra.mxu0 0.0
        %6445 = vmatprep.subr.mxu0 0.0
        %6446 = vmatpush1.msra.mxu0 0.0
        %6447 = vmatprep.subr.mxu0 0.0
        %6448 = vmatpush1.msra.mxu0 0.0
        %6449 = vmatprep.subr.mxu0 0.0
        %6450 = vmatpush1.msra.mxu0 0.0
        %6451 = vmatprep.subr.mxu0 0.0
        %6452 = vmatpush1.msra.mxu0 0.0
        %6453 = vmatprep.subr.mxu0 0.0
        %6454 = vmatpush1.msra.mxu0 0.0
        %6455 = vmatprep.subr.mxu0 0.0
        %6456 = vmatpush1.msra.mxu0 0.0
        %6457 = vmatprep.subr.mxu0 0.0
        %6458 = vmatpush1.msra.mxu0 0.0
        %6459 = vmatprep.subr.mxu0 0.0
        %6460 = vmatpush1.msra.mxu0 0.0
        %6461 = vmatprep.subr.mxu0 0.0
        %6462 = vmatpush1.msra.mxu0 0.0
        %6463 = vmatprep.subr.mxu0 0.0
        %6464 = vmatpush1.msra.mxu0 0.0
        %6465 = vmatprep.subr.mxu0 0.0
        %6466 = vmatpush1.msra.mxu0 0.0
        %6467 = vmatprep.subr.mxu0 0.0
        %6468 = vmatpush1.msra.mxu0 0.0
        %6469 = vmatprep.subr.mxu0 0.0
        %6470 = vmatpush1.msra.mxu0 0.0
        %6471 = vmatprep.mubr.f32.mxu0 0.0
        %6472 = vmatmul.mubr.f32.gmra.mrb[0].mxu0 %v5863
        %v6473 = vpop.f32.mrb[0].mxu0
        %v6474 = vadd.f32 0.0, %v6473
        %v6475 = vpop.f32.mrb[0].mxu0
        %6476 = vdwg.mxu0
        %v6477 = vadd.f32 %v6389, %v6474
        %s6478 = scalar_lea.vmem [#allocation8], 896
        %v6479 = vld [vmem:[%s6478] sm:$0xff]
        %v6480 = vld [vmem:[%s6478 + $0x8] sm:$0xff]
        %v6481 = vld [vmem:[%s6478 + $0x10] sm:$0xff]
        %v6482 = vld [vmem:[%s6478 + $0x18] sm:$0xff]
        %v6483 = vld [vmem:[%s6478 + $0x20] sm:$0xff]
        %v6484 = vld [vmem:[%s6478 + $0x28] sm:$0xff]
        %v6485 = vld [vmem:[%s6478 + $0x30] sm:$0xff]
        %v6486 = vld [vmem:[%s6478 + $0x38] sm:$0xff]
        %v6487 = vld [vmem:[%s6478 + $0x40] sm:$0xff]
        %v6488 = vld [vmem:[%s6478 + $0x48] sm:$0xff]
        %v6489 = vld [vmem:[%s6478 + $0x50] sm:$0xff]
        %v6490 = vld [vmem:[%s6478 + $0x58] sm:$0xff]
        %v6491 = vld [vmem:[%s6478 + $0x60] sm:$0xff]
        %v6492 = vld [vmem:[%s6478 + $0x68] sm:$0xff]
        %v6493 = vld [vmem:[%s6478 + $0x70] sm:$0xff]
        %v6494 = vld [vmem:[%s6478 + $0x78] sm:$0xff]
        %6495 = vmatprep.subr.mxu0 0.0
        %6496 = vmatpush1.msra.mxu0 %v6479
        %6497 = vmatprep.subr.mxu0 0.0
        %6498 = vmatpush1.msra.mxu0 %v6480
        %6499 = vmatprep.subr.mxu0 0.0
        %6500 = vmatpush1.msra.mxu0 %v6481
        %6501 = vmatprep.subr.mxu0 0.0
        %6502 = vmatpush1.msra.mxu0 %v6482
        %6503 = vmatprep.subr.mxu0 0.0
        %6504 = vmatpush1.msra.mxu0 %v6483
        %6505 = vmatprep.subr.mxu0 0.0
        %6506 = vmatpush1.msra.mxu0 %v6484
        %6507 = vmatprep.subr.mxu0 0.0
        %6508 = vmatpush1.msra.mxu0 %v6485
        %6509 = vmatprep.subr.mxu0 0.0
        %6510 = vmatpush1.msra.mxu0 %v6486
        %6511 = vmatprep.subr.mxu0 0.0
        %6512 = vmatpush1.msra.mxu0 %v6487
        %6513 = vmatprep.subr.mxu0 0.0
        %6514 = vmatpush1.msra.mxu0 %v6488
        %6515 = vmatprep.subr.mxu0 0.0
        %6516 = vmatpush1.msra.mxu0 %v6489
        %6517 = vmatprep.subr.mxu0 0.0
        %6518 = vmatpush1.msra.mxu0 %v6490
        %6519 = vmatprep.subr.mxu0 0.0
        %6520 = vmatpush1.msra.mxu0 %v6491
        %6521 = vmatprep.subr.mxu0 0.0
        %6522 = vmatpush1.msra.mxu0 %v6492
        %6523 = vmatprep.subr.mxu0 0.0
        %6524 = vmatpush1.msra.mxu0 %v6493
        %6525 = vmatprep.subr.mxu0 0.0
        %6526 = vmatpush1.msra.mxu0 %v6494
        %6527 = vmatprep.subr.mxu0 0.0
        %6528 = vmatpush1.msra.mxu0 0.0
        %6529 = vmatprep.subr.mxu0 0.0
        %6530 = vmatpush1.msra.mxu0 0.0
        %6531 = vmatprep.subr.mxu0 0.0
        %6532 = vmatpush1.msra.mxu0 0.0
        %6533 = vmatprep.subr.mxu0 0.0
        %6534 = vmatpush1.msra.mxu0 0.0
        %6535 = vmatprep.subr.mxu0 0.0
        %6536 = vmatpush1.msra.mxu0 0.0
        %6537 = vmatprep.subr.mxu0 0.0
        %6538 = vmatpush1.msra.mxu0 0.0
        %6539 = vmatprep.subr.mxu0 0.0
        %6540 = vmatpush1.msra.mxu0 0.0
        %6541 = vmatprep.subr.mxu0 0.0
        %6542 = vmatpush1.msra.mxu0 0.0
        %6543 = vmatprep.subr.mxu0 0.0
        %6544 = vmatpush1.msra.mxu0 0.0
        %6545 = vmatprep.subr.mxu0 0.0
        %6546 = vmatpush1.msra.mxu0 0.0
        %6547 = vmatprep.subr.mxu0 0.0
        %6548 = vmatpush1.msra.mxu0 0.0
        %6549 = vmatprep.subr.mxu0 0.0
        %6550 = vmatpush1.msra.mxu0 0.0
        %6551 = vmatprep.subr.mxu0 0.0
        %6552 = vmatpush1.msra.mxu0 0.0
        %6553 = vmatprep.subr.mxu0 0.0
        %6554 = vmatpush1.msra.mxu0 0.0
        %6555 = vmatprep.subr.mxu0 0.0
        %6556 = vmatpush1.msra.mxu0 0.0
        %6557 = vmatprep.subr.mxu0 0.0
        %6558 = vmatpush1.msra.mxu0 0.0
        %6559 = vmatprep.mubr.f32.mxu0 0.0
        %6560 = vmatmul.mubr.f32.gmra.mrb[0].mxu0 %v5864
        %v6561 = vpop.f32.mrb[0].mxu0
        %v6562 = vadd.f32 0.0, %v6561
        %v6563 = vpop.f32.mrb[0].mxu0
        %6564 = vdwg.mxu0
        %v6565 = vadd.f32 %v6477, %v6562
        %v6566 = vld [vmem:[#allocation10] sm:$0x1]
        %v6568 = vlaneseq
        %v6569 = vshrl.u32 %v6568, 7
        %v6570 = vsub.s32 0, %v6569
        %v6571 = vrot.slane %v6566, %v6570
        %v6573 = vadd.f32 %v6565, %v6571
        %6574 = vst [vmem:[%s315] sm:$0xff] %v6573
        %s6575 = sand.u32 %s162, 1
        %s6576 = scalar_lea.sflag [#allocation4], %s6575
        %s6577 = sand.u32 %s162, 1
        %s6578 = smul.addr %s6577, 8
        %s6579 = scalar_lea.vmem [#allocation11], %s6578
        // Predicated region
        $region65: #{_lambda_.1} parent=43 // pred_check
          %p6580 = pneg %p172
        $region66: #{_lambda_.1} parent=43 // pred_check_branch
          %6582 = sbr.rel (%p6580) target = $region68
        $region67: #{_lambda_.1} parent=43 // pred_region
          %s6584 = ssub.s32 128, 128
          %6585 = vsyncadd %s6576, %s6584
          %s6586 = smul.addr %s23, 128
          %s6587 = scalar_lea.hbm %s6, %s6586
          %s6589 = sshll.u32 %s6579, 4
          %s6590 = int_to_ptr.vmem [resolvable:$true] %s6589
          %6592 = dma.vmem_to_hbm [thread:$0]  %s6590, 128, %s6587, %s6576
        $region68: #{_lambda_.1} parent=43 // pred_fallthru
          _
      $region44: #{_lambda_.1} parent=5 // pred_fallthru
        _
      %p6593 = scmp.le.s32.totalorder 2, %s18
      // Predicated region
      $region69: #{_lambda_.1} parent=5 // pred_check
        %p6594 = pneg %p6593
      $region70: #{_lambda_.1} parent=5 // pred_check_branch
        %6596 = sbr.rel (%p6594) target = $region72
      $region71: #{_lambda_.1} parent=5 // pred_region
        %s6597 = ssub.s32 %s18, 2
        // Predicated region
        $region73: #{_lambda_.1} parent=71 // pred_check
          %p6598 = pneg %p178
        $region74: #{_lambda_.1} parent=71 // pred_check_branch
          %6600 = sbr.rel (%p6598) target = $region76
        $region75: #{_lambda_.1} parent=71 // pred_region
          %s6601 = sand.u32 %s163, 1
          %s6602 = scalar_lea.sflag [#allocation4], %s6601
          %s6603 = sand.u32 %s163, 1
          %s6604 = smul.addr %s6603, 8
          %s6605 = scalar_lea.vmem [#allocation11], %s6604
          %6606 = dma.done %s6602, 128
        $region76: #{_lambda_.1} parent=71 // pred_fallthru
          _
      $region72: #{_lambda_.1} parent=5 // pred_fallthru
        _
    $region6: #{_lambda_.1} parent=1 // loop_footer
      %s22 = sadd.s32 1, %s18
    $region7: #{_lambda_.1} parent=1 // loop_footer_branch
      %17 = sbr.rel target = $region3
    $region8: #{_lambda_.1} parent=1 // loop_exit
      _
    %6607 = vsyncpa [#allocation3], 1
    %s6608 = scalar_lea.sflag [#allocation3], 1
    %6609 = vsyncpa %s6608, 1
    %6610 = vsyncpa [#allocation6], 1
    %6611 = vsyncpa [#allocation9], 1
    %6612 = vsyncpa [#allocation4], 1
    %s6613 = scalar_lea.sflag [#allocation4], 1
    %6614 = vsyncpa %s6613, 1

</llo_original>
